<compile_context>
chip_gen: v7x
topology: tpu7x:2x2x1
jax: 0.10.0
libtpu: 0.0.40
codegen_flags: <defaults>
</compile_context>

<pallas_src>
import jax
import jax.numpy as jnp
from jax.experimental import pallas as pl
from jax.experimental.pallas import tpu as pltpu


# ---------------------------------------------------------------- kernel ----
def _make_kernel(H, W, C, Cd):
    Wp = W + 2                    # padded width
    HWp = H * Wp                  # rows of the "output-flat" slab
    K = 9 * C                     # im2col contraction size

    def kernel(x_ref, w1_ref, b1_ref, w2_ref, b2_ref, wd_ref, bd_ref,
               mask_ref, pool_ref, o_ref, pad, col):
        # Zero only the border rows of the flattened padded image; the
        # interior [Wp+1, Wp+1+HWp) is fully overwritten every use.
        zeros = jnp.zeros((Wp + 1, C), jnp.float32)
        pad[pl.ds(0, Wp + 1), :] = zeros
        pad[pl.ds(Wp + 1 + HWp, Wp + 1), :] = zeros

        mask = mask_ref[...]                          # (HWp, 1) f32, 1 on valid cols

        def tap(t):
            di, dj = divmod(t, 3)
            # contiguous shifted slab for tap (di, dj); bf16 for the MXU
            return pad[pl.ds(di * Wp + dj, HWp), :].astype(jnp.bfloat16)

        def conv_swish(w_ref, b_ref):
            # im2col pack: 9 tap slabs -> one (HWp, 9C) bf16 buffer.  Taps are
            # written in pairs so every store lands on a 128-lane-aligned
            # vreg column (2*C == 128 for the default filters=64).
            for t in range(0, 8, 2):
                col[:, pl.ds(t * C, 2 * C)] = jnp.concatenate(
                    [tap(t), tap(t + 1)], axis=1)
            col[:, pl.ds(8 * C, C)] = tap(8)
            # one big matmul per conv: (HWp, 9C) @ (9C, Cout), f32 accumulate
            acc = jnp.dot(col[...], w_ref[...],
                          preferred_element_type=jnp.float32) + b_ref[...]
            # swish; divide on the EUP slot (exp is already there)
            return acc * pl.reciprocal(1.0 + jnp.exp(-acc), approx=True)

        x0 = x_ref[...]                               # (HWp, C) f32, garbage cols = 0
        pad[pl.ds(Wp + 1, HWp), :] = x0               # no mask needed for x0
        y1 = conv_swish(w1_ref, b1_ref)               # swish(conv1(x))
        pad[pl.ds(Wp + 1, HWp), :] = y1 * mask
        y2 = conv_swish(w2_ref, b2_ref)               # swish(conv2(.))
        x_out = x0 + y2                               # residual add
        pad[pl.ds(Wp + 1, HWp), :] = x_out * mask
        d = conv_swish(wd_ref, bd_ref)                # swish(conv_downsample), Cd chans

        # AvgPool2d(3, stride=2, padding=1) == 0/1 selection matmul, / 9.
        pooled = jnp.dot(pool_ref[...], d.astype(jnp.bfloat16),
                         preferred_element_type=jnp.float32) * (1.0 / 9.0)
        o_ref[...] = pooled.astype(o_ref.dtype)       # single lane-dense store

    return kernel


# --------------------------------------------------------------- wrapper ----
def cond_res_block_no_latent(x_nchw, params):
    """x_nchw: (B, C, H, W) f32.  params = (w1, b1, w2, b2, wd, bd), conv
    weights in HWIO layout (3, 3, Cin, Cout), biases (Cout,)."""
    w1, b1, w2, b2, wd, bd = params
    B, C, H, W = x_nchw.shape
    Cd = wd.shape[-1]
    Wp = W + 2
    HWp = H * Wp
    NPAD = HWp + 2 * (Wp + 1)     # interior + top/bottom halo for all tap slices
    Ho = (H - 1) // 2 + 1
    Wo = (W - 1) // 2 + 1

    # ---- wrapper-side layout plumbing (plain JAX) --------------------------
    x_nhwc = jnp.transpose(x_nchw, (0, 2, 3, 1)).astype(jnp.float32)
    # "output-flat" layout: row-major over (H, Wp) with 2 zero garbage columns
    x_flat = jnp.pad(x_nhwc, ((0, 0), (0, 0), (0, 2), (0, 0))).reshape(B, HWp, C)

    # valid-column mask in the output-flat domain
    col_idx = jnp.arange(HWp, dtype=jnp.int32) % Wp
    mask = (col_idx < W).astype(jnp.float32).reshape(HWp, 1)

    # avg-pool 0/1 selection matrix: row p = i*Wo + j sums the 3x3 window
    p = jnp.arange(Ho * Wo, dtype=jnp.int32)
    m = jnp.arange(HWp, dtype=jnp.int32)
    i_idx, j_idx = p // Wo, p % Wo
    h_idx, w_idx = m // Wp, m % Wp
    dh = (h_idx[None, :] + 1) - 2 * i_idx[:, None]
    dw = (w_idx[None, :] + 1) - 2 * j_idx[:, None]
    pool_mat = ((dh >= 0) & (dh <= 2) & (dw >= 0) & (dw <= 2)
                & (w_idx[None, :] < W)).astype(jnp.bfloat16)

    # im2col weights: (3, 3, Cin, Cout) -> (9*Cin, Cout), bf16 for the MXU
    w1b = w1.reshape(9 * C, C).astype(jnp.bfloat16)
    w2b = w2.reshape(9 * C, C).astype(jnp.bfloat16)
    wdb = wd.reshape(9 * C, Cd).astype(jnp.bfloat16)
    b1r = b1.reshape(1, C).astype(jnp.float32)
    b2r = b2.reshape(1, C).astype(jnp.float32)
    bdr = bd.reshape(1, Cd).astype(jnp.float32)

    def full_spec(a):
        nd = a.ndim
        return pl.BlockSpec(a.shape, lambda b, _nd=nd: (0,) * _nd)

    kernel = _make_kernel(H, W, C, Cd)
    out_flat = pl.pallas_call(
        kernel,
        out_shape=jax.ShapeDtypeStruct((B, Ho * Wo, Cd), jnp.float32),
        grid=(B,),
        in_specs=[pl.BlockSpec((None, HWp, C), lambda b: (b, 0, 0))]
                + [full_spec(a) for a in
                   (w1b, b1r, w2b, b2r, wdb, bdr, mask, pool_mat)],
        out_specs=pl.BlockSpec((None, Ho * Wo, Cd), lambda b: (b, 0, 0)),
        scratch_shapes=[pltpu.VMEM((NPAD, C), jnp.float32),      # padded slab
                        pltpu.VMEM((HWp, 9 * C), jnp.bfloat16)], # im2col buffer
        compiler_params=pltpu.CompilerParams(
            dimension_semantics=("parallel",)),
    )(x_flat, w1b, b1r, w2b, b2r, wdb, bdr, mask, pool_mat)

    out = out_flat.reshape(B, Ho, Wo, Cd)
    return jnp.transpose(out, (0, 3, 1, 2))     # NCHW, matching PyTorch output


# ------------------------------------------------------------- reference ----
def reference_forward(x_nchw, params):
    w1, b1, w2, b2, wd, bd = params
    x = jnp.transpose(x_nchw, (0, 2, 3, 1)).astype(jnp.float32)

    def conv(v, w, b):
        y = jax.lax.conv_general_dilated(
            v, w, window_strides=(1, 1), padding=((1, 1), (1, 1)),
            dimension_numbers=("NHWC", "HWIO", "NHWC"),
            precision=jax.lax.Precision.HIGHEST)
        return y + b.reshape(1, 1, 1, -1)

    def sw(v):
        return v * jax.nn.sigmoid(v)

    h = sw(conv(x, w1, b1))
    h = sw(conv(h, w2, b2))
    x_out = x + h
    d = sw(conv(x_out, wd, bd))
    pooled = jax.lax.reduce_window(
        d, 0.0, jax.lax.add,
        window_dimensions=(1, 3, 3, 1), window_strides=(1, 2, 2, 1),
        padding=((0, 0), (1, 1), (1, 1), (0, 0))) / 9.0      # count_include_pad=True
    return jnp.transpose(pooled, (0, 3, 1, 2))


# ------------------------------------------------------------------ setup ---
def init_params(key, filters):
    def conv_init(kw, kb, cin, cout):
        fan_in = 3 * 3 * cin
        w = jax.random.normal(kw, (3, 3, cin, cout), jnp.float32) / jnp.sqrt(
            float(fan_in))
        b = jax.random.normal(kb, (cout,), jnp.float32) * 0.1
        return w, b

    k = jax.random.split(key, 6)
    w1, b1 = conv_init(k[0], k[1], filters, filters)
    w2, b2 = conv_init(k[2], k[3], filters, filters)
    wd, bd = conv_init(k[4], k[5], filters, 2 * filters)    # rescale=True -> 2x
    return (w1, b1, w2, b2, wd, bd)


if __name__ == "__main__":
    B, filters, H, W = 2, 64, 16, 16       # module default: filters=64
    key = jax.random.PRNGKey(0)
    kx, kp = jax.random.split(key)
    x = jax.random.normal(kx, (B, filters, H, W), dtype=jnp.float32)
    params = init_params(kp, filters)

    out = cond_res_block_no_latent(x, params)
    out = jax.block_until_ready(out)

    assert out.shape == (B, 2 * filters, H // 2, W // 2), out.shape
    ref = reference_forward(x, params)
    max_abs = float(jnp.max(jnp.abs(out - ref)))
    # bf16 MXU operands (f32 accumulation) vs f32/HIGHEST reference: 3e-2 rel.
    tol = 3e-2 * max(1.0, float(jnp.max(jnp.abs(ref))))
    assert max_abs < tol, f"max abs err {max_abs} (tol {tol})"
    print("KERNEL_OK")
</pallas_src>

<mosaic_0001>
module attributes {stable_mosaic.version = 11 : i64} {
  func.func @kernel(%arg0: i32, %arg1: memref<1x288x64xf32, #tpu.memory_space<vmem>>, %arg2: memref<576x64xbf16, #tpu.memory_space<vmem>>, %arg3: memref<1x64xf32, #tpu.memory_space<vmem>>, %arg4: memref<576x64xbf16, #tpu.memory_space<vmem>>, %arg5: memref<1x64xf32, #tpu.memory_space<vmem>>, %arg6: memref<576x128xbf16, #tpu.memory_space<vmem>>, %arg7: memref<1x128xf32, #tpu.memory_space<vmem>>, %arg8: memref<288x1xf32, #tpu.memory_space<vmem>>, %arg9: memref<64x288xbf16, #tpu.memory_space<vmem>>, %arg10: memref<1x64x128xf32, #tpu.memory_space<vmem>>, %arg11: memref<326x64xf32, #tpu.memory_space<vmem>>, %arg12: memref<288x576xbf16, #tpu.memory_space<vmem>>) attributes {dimension_semantics = [#tpu.dimension_semantics<parallel>], iteration_bounds = array<i64: 2>, scalar_prefetch = 0 : i64, scratch_operands = 2 : i64, tpu.core_type = #tpu.core_type<tc>, window_params = [{transform_indices = @transform_0, window_bounds = array<i64: 1, 288, 64>}, {pipeline_mode = #tpu.pipeline_mode<synchronous>, transform_indices = @transform_1, window_bounds = array<i64: 576, 64>}, {pipeline_mode = #tpu.pipeline_mode<synchronous>, transform_indices = @transform_2, window_bounds = array<i64: 1, 64>}, {pipeline_mode = #tpu.pipeline_mode<synchronous>, transform_indices = @transform_3, window_bounds = array<i64: 576, 64>}, {pipeline_mode = #tpu.pipeline_mode<synchronous>, transform_indices = @transform_4, window_bounds = array<i64: 1, 64>}, {pipeline_mode = #tpu.pipeline_mode<synchronous>, transform_indices = @transform_5, window_bounds = array<i64: 576, 128>}, {pipeline_mode = #tpu.pipeline_mode<synchronous>, transform_indices = @transform_6, window_bounds = array<i64: 1, 128>}, {pipeline_mode = #tpu.pipeline_mode<synchronous>, transform_indices = @transform_7, window_bounds = array<i64: 288, 1>}, {pipeline_mode = #tpu.pipeline_mode<synchronous>, transform_indices = @transform_8, window_bounds = array<i64: 64, 288>}, {transform_indices = @transform_9, window_bounds = array<i64: 1, 64, 128>}]} {
    %cst = arith.constant 0.000000e+00 : f32
    %0 = vector.broadcast %cst : f32 to vector<19x64xf32>
    %c0 = arith.constant 0 : index
    %c0_0 = arith.constant 0 : index
    %1 = vector.load %arg11[%c0, %c0_0] : memref<326x64xf32, #tpu.memory_space<vmem>>, vector<19x64xf32>
    tpu.vector_store %arg11[%c0, %c0_0], %0 {strides = array<i32>} : memref<326x64xf32, #tpu.memory_space<vmem>>, vector<19x64xf32>,
    %c307 = arith.constant 307 : index
    %c0_1 = arith.constant 0 : index
    %2 = vector.load %arg11[%c307, %c0_1] : memref<326x64xf32, #tpu.memory_space<vmem>>, vector<19x64xf32>
    tpu.vector_store %arg11[%c307, %c0_1], %0 {strides = array<i32>} : memref<326x64xf32, #tpu.memory_space<vmem>>, vector<19x64xf32>,
    %c0_2 = arith.constant 0 : index
    %c0_3 = arith.constant 0 : index
    %3 = vector.load %arg8[%c0_2, %c0_3] : memref<288x1xf32, #tpu.memory_space<vmem>>, vector<288x1xf32>
    %c0_4 = arith.constant 0 : index
    %c0_5 = arith.constant 0 : index
    %c0_6 = arith.constant 0 : index
    %4 = vector.load %arg1[%c0_4, %c0_5, %c0_6] : memref<1x288x64xf32, #tpu.memory_space<vmem>>, vector<1x288x64xf32>
    %5 = vector.shape_cast %4 : vector<1x288x64xf32> to vector<288x64xf32>
    %c19 = arith.constant 19 : index
    %c0_7 = arith.constant 0 : index
    %6 = vector.load %arg11[%c19, %c0_7] : memref<326x64xf32, #tpu.memory_space<vmem>>, vector<288x64xf32>
    tpu.vector_store %arg11[%c19, %c0_7], %5 {strides = array<i32>} : memref<326x64xf32, #tpu.memory_space<vmem>>, vector<288x64xf32>,
    %c0_8 = arith.constant 0 : index
    %c0_9 = arith.constant 0 : index
    %7 = vector.load %arg11[%c0_8, %c0_9] : memref<326x64xf32, #tpu.memory_space<vmem>>, vector<288x64xf32>
    %8 = arith.truncf %7 : vector<288x64xf32> to vector<288x64xbf16>
    %c1 = arith.constant 1 : index
    %c0_10 = arith.constant 0 : index
    %9 = vector.load %arg11[%c1, %c0_10] : memref<326x64xf32, #tpu.memory_space<vmem>>, vector<288x64xf32>
    %10 = arith.truncf %9 : vector<288x64xf32> to vector<288x64xbf16>
    %11 = tpu.concatenate %8, %10 in 1 : vector<288x64xbf16>, vector<288x64xbf16> -> vector<288x128xbf16>
    %c0_11 = arith.constant 0 : index
    %c0_12 = arith.constant 0 : index
    %12 = vector.load %arg12[%c0_11, %c0_12] : memref<288x576xbf16, #tpu.memory_space<vmem>>, vector<288x128xbf16>
    tpu.vector_store %arg12[%c0_11, %c0_12], %11 {strides = array<i32>} : memref<288x576xbf16, #tpu.memory_space<vmem>>, vector<288x128xbf16>,
    %c2 = arith.constant 2 : index
    %c0_13 = arith.constant 0 : index
    %13 = vector.load %arg11[%c2, %c0_13] : memref<326x64xf32, #tpu.memory_space<vmem>>, vector<288x64xf32>
    %14 = arith.truncf %13 : vector<288x64xf32> to vector<288x64xbf16>
    %c18 = arith.constant 18 : index
    %c0_14 = arith.constant 0 : index
    %15 = vector.load %arg11[%c18, %c0_14] : memref<326x64xf32, #tpu.memory_space<vmem>>, vector<288x64xf32>
    %16 = arith.truncf %15 : vector<288x64xf32> to vector<288x64xbf16>
    %17 = tpu.concatenate %14, %16 in 1 : vector<288x64xbf16>, vector<288x64xbf16> -> vector<288x128xbf16>
    %c0_15 = arith.constant 0 : index
    %c128 = arith.constant 128 : index
    %18 = vector.load %arg12[%c0_15, %c128] : memref<288x576xbf16, #tpu.memory_space<vmem>>, vector<288x128xbf16>
    tpu.vector_store %arg12[%c0_15, %c128], %17 {strides = array<i32>} : memref<288x576xbf16, #tpu.memory_space<vmem>>, vector<288x128xbf16>,
    %c19_16 = arith.constant 19 : index
    %c0_17 = arith.constant 0 : index
    %19 = vector.load %arg11[%c19_16, %c0_17] : memref<326x64xf32, #tpu.memory_space<vmem>>, vector<288x64xf32>
    %20 = arith.truncf %19 : vector<288x64xf32> to vector<288x64xbf16>
    %c20 = arith.constant 20 : index
    %c0_18 = arith.constant 0 : index
    %21 = vector.load %arg11[%c20, %c0_18] : memref<326x64xf32, #tpu.memory_space<vmem>>, vector<288x64xf32>
    %22 = arith.truncf %21 : vector<288x64xf32> to vector<288x64xbf16>
    %23 = tpu.concatenate %20, %22 in 1 : vector<288x64xbf16>, vector<288x64xbf16> -> vector<288x128xbf16>
    %c0_19 = arith.constant 0 : index
    %c256 = arith.constant 256 : index
    %24 = vector.load %arg12[%c0_19, %c256] : memref<288x576xbf16, #tpu.memory_space<vmem>>, vector<288x128xbf16>
    tpu.vector_store %arg12[%c0_19, %c256], %23 {strides = array<i32>} : memref<288x576xbf16, #tpu.memory_space<vmem>>, vector<288x128xbf16>,
    %c36 = arith.constant 36 : index
    %c0_20 = arith.constant 0 : index
    %25 = vector.load %arg11[%c36, %c0_20] : memref<326x64xf32, #tpu.memory_space<vmem>>, vector<288x64xf32>
    %26 = arith.truncf %25 : vector<288x64xf32> to vector<288x64xbf16>
    %c37 = arith.constant 37 : index
    %c0_21 = arith.constant 0 : index
    %27 = vector.load %arg11[%c37, %c0_21] : memref<326x64xf32, #tpu.memory_space<vmem>>, vector<288x64xf32>
    %28 = arith.truncf %27 : vector<288x64xf32> to vector<288x64xbf16>
    %29 = tpu.concatenate %26, %28 in 1 : vector<288x64xbf16>, vector<288x64xbf16> -> vector<288x128xbf16>
    %c0_22 = arith.constant 0 : index
    %c384 = arith.constant 384 : index
    %30 = vector.load %arg12[%c0_22, %c384] : memref<288x576xbf16, #tpu.memory_space<vmem>>, vector<288x128xbf16>
    tpu.vector_store %arg12[%c0_22, %c384], %29 {strides = array<i32>} : memref<288x576xbf16, #tpu.memory_space<vmem>>, vector<288x128xbf16>,
    %c38 = arith.constant 38 : index
    %c0_23 = arith.constant 0 : index
    %31 = vector.load %arg11[%c38, %c0_23] : memref<326x64xf32, #tpu.memory_space<vmem>>, vector<288x64xf32>
    %32 = arith.truncf %31 : vector<288x64xf32> to vector<288x64xbf16>
    %c0_24 = arith.constant 0 : index
    %c512 = arith.constant 512 : index
    %33 = vector.load %arg12[%c0_24, %c512] : memref<288x576xbf16, #tpu.memory_space<vmem>>, vector<288x64xbf16>
    tpu.vector_store %arg12[%c0_24, %c512], %32 {strides = array<i32>} : memref<288x576xbf16, #tpu.memory_space<vmem>>, vector<288x64xbf16>,
    %c0_25 = arith.constant 0 : index
    %c0_26 = arith.constant 0 : index
    %34 = vector.load %arg12[%c0_25, %c0_26] : memref<288x576xbf16, #tpu.memory_space<vmem>>, vector<288x576xbf16>
    %c0_27 = arith.constant 0 : index
    %c0_28 = arith.constant 0 : index
    %35 = vector.load %arg2[%c0_27, %c0_28] : memref<576x64xbf16, #tpu.memory_space<vmem>>, vector<576x64xbf16>
    %cst_29 = arith.constant dense<0.000000e+00> : vector<288x64xf32>
    %36 = tpu.matmul %34, %35, %cst_29 {dimension_numbers = #tpu.dot_dimension_numbers<[1], [0], [0], [1], [0, 0, 1, 1], [], []>} : vector<288x576xbf16>, vector<576x64xbf16>, vector<288x64xf32> -> vector<288x64xf32>
    %c0_30 = arith.constant 0 : index
    %c0_31 = arith.constant 0 : index
    %37 = vector.load %arg3[%c0_30, %c0_31] : memref<1x64xf32, #tpu.memory_space<vmem>>, vector<1x64xf32>
    %38 = vector.broadcast %37 : vector<1x64xf32> to vector<288x64xf32>
    %39 = arith.addf %36, %38 : vector<288x64xf32>
    %cst_32 = arith.constant 0.000000e+00 : f32
    %40 = vector.broadcast %cst_32 : f32 to vector<288x64xf32>
    %41 = arith.subf %40, %39 : vector<288x64xf32>
    %42 = math.exp %41 : vector<288x64xf32>
    %cst_33 = arith.constant 1.000000e+00 : f32
    %43 = vector.broadcast %cst_33 : f32 to vector<288x64xf32>
    %44 = arith.addf %43, %42 : vector<288x64xf32>
    %45 = tpu.reciprocal %44 {approx = true} : vector<288x64xf32> -> vector<288x64xf32>
    %46 = arith.mulf %39, %45 : vector<288x64xf32>
    %47 = vector.broadcast %3 : vector<288x1xf32> to vector<288x64xf32>
    %48 = arith.mulf %46, %47 : vector<288x64xf32>
    %c19_34 = arith.constant 19 : index
    %c0_35 = arith.constant 0 : index
    %49 = vector.load %arg11[%c19_34, %c0_35] : memref<326x64xf32, #tpu.memory_space<vmem>>, vector<288x64xf32>
    tpu.vector_store %arg11[%c19_34, %c0_35], %48 {strides = array<i32>} : memref<326x64xf32, #tpu.memory_space<vmem>>, vector<288x64xf32>,
    %c0_36 = arith.constant 0 : index
    %c0_37 = arith.constant 0 : index
    %50 = vector.load %arg11[%c0_36, %c0_37] : memref<326x64xf32, #tpu.memory_space<vmem>>, vector<288x64xf32>
    %51 = arith.truncf %50 : vector<288x64xf32> to vector<288x64xbf16>
    %c1_38 = arith.constant 1 : index
    %c0_39 = arith.constant 0 : index
    %52 = vector.load %arg11[%c1_38, %c0_39] : memref<326x64xf32, #tpu.memory_space<vmem>>, vector<288x64xf32>
    %53 = arith.truncf %52 : vector<288x64xf32> to vector<288x64xbf16>
    %54 = tpu.concatenate %51, %53 in 1 : vector<288x64xbf16>, vector<288x64xbf16> -> vector<288x128xbf16>
    %c0_40 = arith.constant 0 : index
    %c0_41 = arith.constant 0 : index
    %55 = vector.load %arg12[%c0_40, %c0_41] : memref<288x576xbf16, #tpu.memory_space<vmem>>, vector<288x128xbf16>
    tpu.vector_store %arg12[%c0_40, %c0_41], %54 {strides = array<i32>} : memref<288x576xbf16, #tpu.memory_space<vmem>>, vector<288x128xbf16>,
    %c2_42 = arith.constant 2 : index
    %c0_43 = arith.constant 0 : index
    %56 = vector.load %arg11[%c2_42, %c0_43] : memref<326x64xf32, #tpu.memory_space<vmem>>, vector<288x64xf32>
    %57 = arith.truncf %56 : vector<288x64xf32> to vector<288x64xbf16>
    %c18_44 = arith.constant 18 : index
    %c0_45 = arith.constant 0 : index
    %58 = vector.load %arg11[%c18_44, %c0_45] : memref<326x64xf32, #tpu.memory_space<vmem>>, vector<288x64xf32>
    %59 = arith.truncf %58 : vector<288x64xf32> to vector<288x64xbf16>
    %60 = tpu.concatenate %57, %59 in 1 : vector<288x64xbf16>, vector<288x64xbf16> -> vector<288x128xbf16>
    %c0_46 = arith.constant 0 : index
    %c128_47 = arith.constant 128 : index
    %61 = vector.load %arg12[%c0_46, %c128_47] : memref<288x576xbf16, #tpu.memory_space<vmem>>, vector<288x128xbf16>
    tpu.vector_store %arg12[%c0_46, %c128_47], %60 {strides = array<i32>} : memref<288x576xbf16, #tpu.memory_space<vmem>>, vector<288x128xbf16>,
    %c19_48 = arith.constant 19 : index
    %c0_49 = arith.constant 0 : index
    %62 = vector.load %arg11[%c19_48, %c0_49] : memref<326x64xf32, #tpu.memory_space<vmem>>, vector<288x64xf32>
    %63 = arith.truncf %62 : vector<288x64xf32> to vector<288x64xbf16>
    %c20_50 = arith.constant 20 : index
    %c0_51 = arith.constant 0 : index
    %64 = vector.load %arg11[%c20_50, %c0_51] : memref<326x64xf32, #tpu.memory_space<vmem>>, vector<288x64xf32>
    %65 = arith.truncf %64 : vector<288x64xf32> to vector<288x64xbf16>
    %66 = tpu.concatenate %63, %65 in 1 : vector<288x64xbf16>, vector<288x64xbf16> -> vector<288x128xbf16>
    %c0_52 = arith.constant 0 : index
    %c256_53 = arith.constant 256 : index
    %67 = vector.load %arg12[%c0_52, %c256_53] : memref<288x576xbf16, #tpu.memory_space<vmem>>, vector<288x128xbf16>
    tpu.vector_store %arg12[%c0_52, %c256_53], %66 {strides = array<i32>} : memref<288x576xbf16, #tpu.memory_space<vmem>>, vector<288x128xbf16>,
    %c36_54 = arith.constant 36 : index
    %c0_55 = arith.constant 0 : index
    %68 = vector.load %arg11[%c36_54, %c0_55] : memref<326x64xf32, #tpu.memory_space<vmem>>, vector<288x64xf32>
    %69 = arith.truncf %68 : vector<288x64xf32> to vector<288x64xbf16>
    %c37_56 = arith.constant 37 : index
    %c0_57 = arith.constant 0 : index
    %70 = vector.load %arg11[%c37_56, %c0_57] : memref<326x64xf32, #tpu.memory_space<vmem>>, vector<288x64xf32>
    %71 = arith.truncf %70 : vector<288x64xf32> to vector<288x64xbf16>
    %72 = tpu.concatenate %69, %71 in 1 : vector<288x64xbf16>, vector<288x64xbf16> -> vector<288x128xbf16>
    %c0_58 = arith.constant 0 : index
    %c384_59 = arith.constant 384 : index
    %73 = vector.load %arg12[%c0_58, %c384_59] : memref<288x576xbf16, #tpu.memory_space<vmem>>, vector<288x128xbf16>
    tpu.vector_store %arg12[%c0_58, %c384_59], %72 {strides = array<i32>} : memref<288x576xbf16, #tpu.memory_space<vmem>>, vector<288x128xbf16>,
    %c38_60 = arith.constant 38 : index
    %c0_61 = arith.constant 0 : index
    %74 = vector.load %arg11[%c38_60, %c0_61] : memref<326x64xf32, #tpu.memory_space<vmem>>, vector<288x64xf32>
    %75 = arith.truncf %74 : vector<288x64xf32> to vector<288x64xbf16>
    %c0_62 = arith.constant 0 : index
    %c512_63 = arith.constant 512 : index
    %76 = vector.load %arg12[%c0_62, %c512_63] : memref<288x576xbf16, #tpu.memory_space<vmem>>, vector<288x64xbf16>
    tpu.vector_store %arg12[%c0_62, %c512_63], %75 {strides = array<i32>} : memref<288x576xbf16, #tpu.memory_space<vmem>>, vector<288x64xbf16>,
    %c0_64 = arith.constant 0 : index
    %c0_65 = arith.constant 0 : index
    %77 = vector.load %arg12[%c0_64, %c0_65] : memref<288x576xbf16, #tpu.memory_space<vmem>>, vector<288x576xbf16>
    %c0_66 = arith.constant 0 : index
    %c0_67 = arith.constant 0 : index
    %78 = vector.load %arg4[%c0_66, %c0_67] : memref<576x64xbf16, #tpu.memory_space<vmem>>, vector<576x64xbf16>
    %cst_68 = arith.constant dense<0.000000e+00> : vector<288x64xf32>
    %79 = tpu.matmul %77, %78, %cst_68 {dimension_numbers = #tpu.dot_dimension_numbers<[1], [0], [0], [1], [0, 0, 1, 1], [], []>} : vector<288x576xbf16>, vector<576x64xbf16>, vector<288x64xf32> -> vector<288x64xf32>
    %c0_69 = arith.constant 0 : index
    %c0_70 = arith.constant 0 : index
    %80 = vector.load %arg5[%c0_69, %c0_70] : memref<1x64xf32, #tpu.memory_space<vmem>>, vector<1x64xf32>
    %81 = vector.broadcast %80 : vector<1x64xf32> to vector<288x64xf32>
    %82 = arith.addf %79, %81 : vector<288x64xf32>
    %cst_71 = arith.constant 0.000000e+00 : f32
    %83 = vector.broadcast %cst_71 : f32 to vector<288x64xf32>
    %84 = arith.subf %83, %82 : vector<288x64xf32>
    %85 = math.exp %84 : vector<288x64xf32>
    %cst_72 = arith.constant 1.000000e+00 : f32
    %86 = vector.broadcast %cst_72 : f32 to vector<288x64xf32>
    %87 = arith.addf %86, %85 : vector<288x64xf32>
    %88 = tpu.reciprocal %87 {approx = true} : vector<288x64xf32> -> vector<288x64xf32>
    %89 = arith.mulf %82, %88 : vector<288x64xf32>
    %90 = arith.addf %5, %89 : vector<288x64xf32>
    %91 = vector.broadcast %3 : vector<288x1xf32> to vector<288x64xf32>
    %92 = arith.mulf %90, %91 : vector<288x64xf32>
    %c19_73 = arith.constant 19 : index
    %c0_74 = arith.constant 0 : index
    %93 = vector.load %arg11[%c19_73, %c0_74] : memref<326x64xf32, #tpu.memory_space<vmem>>, vector<288x64xf32>
    tpu.vector_store %arg11[%c19_73, %c0_74], %92 {strides = array<i32>} : memref<326x64xf32, #tpu.memory_space<vmem>>, vector<288x64xf32>,
    %c0_75 = arith.constant 0 : index
    %c0_76 = arith.constant 0 : index
    %94 = vector.load %arg11[%c0_75, %c0_76] : memref<326x64xf32, #tpu.memory_space<vmem>>, vector<288x64xf32>
    %95 = arith.truncf %94 : vector<288x64xf32> to vector<288x64xbf16>
    %c1_77 = arith.constant 1 : index
    %c0_78 = arith.constant 0 : index
    %96 = vector.load %arg11[%c1_77, %c0_78] : memref<326x64xf32, #tpu.memory_space<vmem>>, vector<288x64xf32>
    %97 = arith.truncf %96 : vector<288x64xf32> to vector<288x64xbf16>
    %98 = tpu.concatenate %95, %97 in 1 : vector<288x64xbf16>, vector<288x64xbf16> -> vector<288x128xbf16>
    %c0_79 = arith.constant 0 : index
    %c0_80 = arith.constant 0 : index
    %99 = vector.load %arg12[%c0_79, %c0_80] : memref<288x576xbf16, #tpu.memory_space<vmem>>, vector<288x128xbf16>
    tpu.vector_store %arg12[%c0_79, %c0_80], %98 {strides = array<i32>} : memref<288x576xbf16, #tpu.memory_space<vmem>>, vector<288x128xbf16>,
    %c2_81 = arith.constant 2 : index
    %c0_82 = arith.constant 0 : index
    %100 = vector.load %arg11[%c2_81, %c0_82] : memref<326x64xf32, #tpu.memory_space<vmem>>, vector<288x64xf32>
    %101 = arith.truncf %100 : vector<288x64xf32> to vector<288x64xbf16>
    %c18_83 = arith.constant 18 : index
    %c0_84 = arith.constant 0 : index
    %102 = vector.load %arg11[%c18_83, %c0_84] : memref<326x64xf32, #tpu.memory_space<vmem>>, vector<288x64xf32>
    %103 = arith.truncf %102 : vector<288x64xf32> to vector<288x64xbf16>
    %104 = tpu.concatenate %101, %103 in 1 : vector<288x64xbf16>, vector<288x64xbf16> -> vector<288x128xbf16>
    %c0_85 = arith.constant 0 : index
    %c128_86 = arith.constant 128 : index
    %105 = vector.load %arg12[%c0_85, %c128_86] : memref<288x576xbf16, #tpu.memory_space<vmem>>, vector<288x128xbf16>
    tpu.vector_store %arg12[%c0_85, %c128_86], %104 {strides = array<i32>} : memref<288x576xbf16, #tpu.memory_space<vmem>>, vector<288x128xbf16>,
    %c19_87 = arith.constant 19 : index
    %c0_88 = arith.constant 0 : index
    %106 = vector.load %arg11[%c19_87, %c0_88] : memref<326x64xf32, #tpu.memory_space<vmem>>, vector<288x64xf32>
    %107 = arith.truncf %106 : vector<288x64xf32> to vector<288x64xbf16>
    %c20_89 = arith.constant 20 : index
    %c0_90 = arith.constant 0 : index
    %108 = vector.load %arg11[%c20_89, %c0_90] : memref<326x64xf32, #tpu.memory_space<vmem>>, vector<288x64xf32>
    %109 = arith.truncf %108 : vector<288x64xf32> to vector<288x64xbf16>
    %110 = tpu.concatenate %107, %109 in 1 : vector<288x64xbf16>, vector<288x64xbf16> -> vector<288x128xbf16>
    %c0_91 = arith.constant 0 : index
    %c256_92 = arith.constant 256 : index
    %111 = vector.load %arg12[%c0_91, %c256_92] : memref<288x576xbf16, #tpu.memory_space<vmem>>, vector<288x128xbf16>
    tpu.vector_store %arg12[%c0_91, %c256_92], %110 {strides = array<i32>} : memref<288x576xbf16, #tpu.memory_space<vmem>>, vector<288x128xbf16>,
    %c36_93 = arith.constant 36 : index
    %c0_94 = arith.constant 0 : index
    %112 = vector.load %arg11[%c36_93, %c0_94] : memref<326x64xf32, #tpu.memory_space<vmem>>, vector<288x64xf32>
    %113 = arith.truncf %112 : vector<288x64xf32> to vector<288x64xbf16>
    %c37_95 = arith.constant 37 : index
    %c0_96 = arith.constant 0 : index
    %114 = vector.load %arg11[%c37_95, %c0_96] : memref<326x64xf32, #tpu.memory_space<vmem>>, vector<288x64xf32>
    %115 = arith.truncf %114 : vector<288x64xf32> to vector<288x64xbf16>
    %116 = tpu.concatenate %113, %115 in 1 : vector<288x64xbf16>, vector<288x64xbf16> -> vector<288x128xbf16>
    %c0_97 = arith.constant 0 : index
    %c384_98 = arith.constant 384 : index
    %117 = vector.load %arg12[%c0_97, %c384_98] : memref<288x576xbf16, #tpu.memory_space<vmem>>, vector<288x128xbf16>
    tpu.vector_store %arg12[%c0_97, %c384_98], %116 {strides = array<i32>} : memref<288x576xbf16, #tpu.memory_space<vmem>>, vector<288x128xbf16>,
    %c38_99 = arith.constant 38 : index
    %c0_100 = arith.constant 0 : index
    %118 = vector.load %arg11[%c38_99, %c0_100] : memref<326x64xf32, #tpu.memory_space<vmem>>, vector<288x64xf32>
    %119 = arith.truncf %118 : vector<288x64xf32> to vector<288x64xbf16>
    %c0_101 = arith.constant 0 : index
    %c512_102 = arith.constant 512 : index
    %120 = vector.load %arg12[%c0_101, %c512_102] : memref<288x576xbf16, #tpu.memory_space<vmem>>, vector<288x64xbf16>
    tpu.vector_store %arg12[%c0_101, %c512_102], %119 {strides = array<i32>} : memref<288x576xbf16, #tpu.memory_space<vmem>>, vector<288x64xbf16>,
    %c0_103 = arith.constant 0 : index
    %c0_104 = arith.constant 0 : index
    %121 = vector.load %arg12[%c0_103, %c0_104] : memref<288x576xbf16, #tpu.memory_space<vmem>>, vector<288x576xbf16>
    %c0_105 = arith.constant 0 : index
    %c0_106 = arith.constant 0 : index
    %122 = vector.load %arg6[%c0_105, %c0_106] : memref<576x128xbf16, #tpu.memory_space<vmem>>, vector<576x128xbf16>
    %cst_107 = arith.constant dense<0.000000e+00> : vector<288x128xf32>
    %123 = tpu.matmul %121, %122, %cst_107 {dimension_numbers = #tpu.dot_dimension_numbers<[1], [0], [0], [1], [0, 0, 1, 1], [], []>} : vector<288x576xbf16>, vector<576x128xbf16>, vector<288x128xf32> -> vector<288x128xf32>
    %c0_108 = arith.constant 0 : index
    %c0_109 = arith.constant 0 : index
    %124 = vector.load %arg7[%c0_108, %c0_109] : memref<1x128xf32, #tpu.memory_space<vmem>>, vector<1x128xf32>
    %125 = vector.broadcast %124 : vector<1x128xf32> to vector<288x128xf32>
    %126 = arith.addf %123, %125 : vector<288x128xf32>
    %cst_110 = arith.constant 0.000000e+00 : f32
    %127 = vector.broadcast %cst_110 : f32 to vector<288x128xf32>
    %128 = arith.subf %127, %126 : vector<288x128xf32>
    %129 = math.exp %128 : vector<288x128xf32>
    %cst_111 = arith.constant 1.000000e+00 : f32
    %130 = vector.broadcast %cst_111 : f32 to vector<288x128xf32>
    %131 = arith.addf %130, %129 : vector<288x128xf32>
    %132 = tpu.reciprocal %131 {approx = true} : vector<288x128xf32> -> vector<288x128xf32>
    %133 = arith.mulf %126, %132 : vector<288x128xf32>
    %c0_112 = arith.constant 0 : index
    %c0_113 = arith.constant 0 : index
    %134 = vector.load %arg9[%c0_112, %c0_113] : memref<64x288xbf16, #tpu.memory_space<vmem>>, vector<64x288xbf16>
    %135 = arith.truncf %133 : vector<288x128xf32> to vector<288x128xbf16>
    %cst_114 = arith.constant dense<0.000000e+00> : vector<64x128xf32>
    %136 = tpu.matmul %134, %135, %cst_114 {dimension_numbers = #tpu.dot_dimension_numbers<[1], [0], [0], [1], [0, 0, 1, 1], [], []>} : vector<64x288xbf16>, vector<288x128xbf16>, vector<64x128xf32> -> vector<64x128xf32>
    %cst_115 = arith.constant 0.111111112 : f32
    %137 = vector.broadcast %cst_115 : f32 to vector<64x128xf32>
    %138 = arith.mulf %136, %137 : vector<64x128xf32>
    %c0_116 = arith.constant 0 : index
    %c0_117 = arith.constant 0 : index
    %c0_118 = arith.constant 0 : index
    %139 = vector.load %arg10[%c0_116, %c0_117, %c0_118] : memref<1x64x128xf32, #tpu.memory_space<vmem>>, vector<1x64x128xf32>
    %140 = vector.shape_cast %139 : vector<1x64x128xf32> to vector<64x128xf32>
    %141 = vector.shape_cast %138 : vector<64x128xf32> to vector<1x64x128xf32>
    tpu.vector_store %arg10[%c0_116, %c0_117, %c0_118], %141 {strides = array<i32>} : memref<1x64x128xf32, #tpu.memory_space<vmem>>, vector<1x64x128xf32>,
    return
  }
  func.func @transform_0(%arg0: i32) -> (i32, i32, i32) {
    %c0_i32 = arith.constant 0 : i32
    %c0_i32_0 = arith.constant 0 : i32
    %c0_i32_1 = arith.constant 0 : i32
    return %arg0, %c0_i32, %c0_i32_0 : i32, i32, i32
  }
  func.func @transform_1(%arg0: i32) -> (i32, i32) {
    %c0_i32 = arith.constant 0 : i32
    %c0_i32_0 = arith.constant 0 : i32
    %c0_i32_1 = arith.constant 0 : i32
    return %c0_i32, %c0_i32_0 : i32, i32
  }
  func.func @transform_2(%arg0: i32) -> (i32, i32) {
    %c0_i32 = arith.constant 0 : i32
    %c0_i32_0 = arith.constant 0 : i32
    %c0_i32_1 = arith.constant 0 : i32
    return %c0_i32, %c0_i32_0 : i32, i32
  }
  func.func @transform_3(%arg0: i32) -> (i32, i32) {
    %c0_i32 = arith.constant 0 : i32
    %c0_i32_0 = arith.constant 0 : i32
    %c0_i32_1 = arith.constant 0 : i32
    return %c0_i32, %c0_i32_0 : i32, i32
  }
  func.func @transform_4(%arg0: i32) -> (i32, i32) {
    %c0_i32 = arith.constant 0 : i32
    %c0_i32_0 = arith.constant 0 : i32
    %c0_i32_1 = arith.constant 0 : i32
    return %c0_i32, %c0_i32_0 : i32, i32
  }
  func.func @transform_5(%arg0: i32) -> (i32, i32) {
    %c0_i32 = arith.constant 0 : i32
    %c0_i32_0 = arith.constant 0 : i32
    %c0_i32_1 = arith.constant 0 : i32
    return %c0_i32, %c0_i32_0 : i32, i32
  }
  func.func @transform_6(%arg0: i32) -> (i32, i32) {
    %c0_i32 = arith.constant 0 : i32
    %c0_i32_0 = arith.constant 0 : i32
    %c0_i32_1 = arith.constant 0 : i32
    return %c0_i32, %c0_i32_0 : i32, i32
  }
  func.func @transform_7(%arg0: i32) -> (i32, i32) {
    %c0_i32 = arith.constant 0 : i32
    %c0_i32_0 = arith.constant 0 : i32
    %c0_i32_1 = arith.constant 0 : i32
    return %c0_i32, %c0_i32_0 : i32, i32
  }
  func.func @transform_8(%arg0: i32) -> (i32, i32) {
    %c0_i32 = arith.constant 0 : i32
    %c0_i32_0 = arith.constant 0 : i32
    %c0_i32_1 = arith.constant 0 : i32
    return %c0_i32, %c0_i32_0 : i32, i32
  }
  func.func @transform_9(%arg0: i32) -> (i32, i32, i32) {
    %c0_i32 = arith.constant 0 : i32
    %c0_i32_0 = arith.constant 0 : i32
    %c0_i32_1 = arith.constant 0 : i32
    return %arg0, %c0_i32, %c0_i32_0 : i32, i32, i32
  }
}

</mosaic_0001>

<llo_original>
// kernel: tpu_custom_call.1
$region0: #{tpu_custom_call.1}
  #allocation0 [shape = 'u32[]', space=smem, size = 0x4, offset = 0x4, fixed_abs, tag = 'smem constant byte address 0x4 - core index']
  #allocation1 [shape = 'u32[144,128]{1,0:T(1,128)}', space=vmem, size = 0x12000, scoped, tag = 'internal scratch']
  #allocation2 [shape = 'f32[326,64]{1,0:T(8,128)}', space=vmem, size = 0x29000, scoped, tag = 'scratch operand']
  #allocation3 [shape = 'bf16[288,576]{1,0:T(16,128)(2,1)}', space=vmem, size = 0x5a000, scoped, tag = 'scratch operand']
  %s0 = inlined_call_operand.vmem [shape: f32[2,288,64], index: 0, kind: input, shape index: {}]
  %s1 = inlined_call_operand.vmem [shape: bf16[576,64], index: 1, kind: input, shape index: {}]
  %s2 = inlined_call_operand.vmem [shape: f32[1,64], index: 2, kind: input, shape index: {}]
  %s3 = inlined_call_operand.vmem [shape: bf16[576,64], index: 3, kind: input, shape index: {}]
  %s4 = inlined_call_operand.vmem [shape: f32[1,64], index: 4, kind: input, shape index: {}]
  %s5 = inlined_call_operand.vmem [shape: bf16[576,128], index: 5, kind: input, shape index: {}]
  %s6 = inlined_call_operand.vmem [shape: f32[1,128], index: 6, kind: input, shape index: {}]
  %s7 = inlined_call_operand.vmem [shape: f32[288,1], index: 7, kind: input, shape index: {}]
  %s8 = inlined_call_operand.vmem [shape: bf16[64,288], index: 8, kind: input, shape index: {}]
  %s9 = inlined_call_operand.hbm [shape: f32[2,64,128], index: 9, kind: output, shape index: {}]
  %s10 = sld [smem:[#allocation0]]
  $region69: #{tpu_custom_call.1} parent=0
    _
  %s12 = ssub.s32 1, %s10
  %s13 = scalar_select 0, %s12, %s10
  $region1: #{tpu_custom_call.1} parent=0
    #allocation4 [shape = 'u8[65536]{0}', space=vmem, size = 0x10000, scoped, tag = 'output window, operand 0']
    #allocation5 [shape = 's32[2]{0}', space=sflag, size = 0x8, scoped, tag = 'scoped memory for tpu_custom_call.1']
    %14 = vsyncpa [#allocation5], 0
    %s15 = scalar_lea.sflag [#allocation5], 1
    %16 = vsyncpa %s15, 0
    loop: start=0, step=1, limit=4
    $region2: #{tpu_custom_call.1} parent=1 // loop_pre_header
      _
    $region3: #{tpu_custom_call.1} parent=1 // loop_header
      %s18 = sphi 0, %s22
      %p19 = scmp.ge.s32.totalorder %s18, 4
      %s28 = sphi 0, %s30
      %s31 = sphi 0, %s28
      %s32 = sphi 0, %s31
      %s48 = sphi 0, %s32
      %s52 = sphi 0, %s52
      %s54 = sphi 0, %s52
      %s55 = sphi 0, %s54
      %s69 = sphi 0, %s55
      %s73 = sphi 0, %s73
      %s75 = sphi 0, %s73
      %s76 = sphi 0, %s75
      %s90 = sphi 0, %s76
      %s94 = sphi 0, %s94
      %s96 = sphi 0, %s94
      %s97 = sphi 0, %s96
      %s111 = sphi 0, %s97
      %s115 = sphi 0, %s115
      %s117 = sphi 0, %s115
      %s118 = sphi 0, %s117
      %s132 = sphi 0, %s118
      %s136 = sphi 0, %s136
      %s138 = sphi 0, %s136
      %s139 = sphi 0, %s138
      %s153 = sphi 0, %s139
      %s157 = sphi 0, %s157
      %s159 = sphi 0, %s157
      %s160 = sphi 0, %s159
      %s174 = sphi 0, %s160
      %s178 = sphi 0, %s178
      %s180 = sphi 0, %s178
      %s181 = sphi 0, %s180
      %s195 = sphi 0, %s181
      %s199 = sphi 0, %s199
      %s201 = sphi 0, %s199
      %s202 = sphi 0, %s201
      %s216 = sphi 0, %s202
      %s222 = sphi 0, %s224
      %s225 = sphi 0, %s222
      %s226 = sphi 0, %s225
      %s242 = sphi 0, %s226
    $region4: #{tpu_custom_call.1} parent=1 // loop_header_branch
      %21 = sbr.rel (%p19) target = $region8
    $region5: #{tpu_custom_call.1} parent=1 // loop_body
      %s23 = ssub.s32 %s18, 1
      %s24 = ssub.s32 %s18, 2
      %s25 = sadd.s32 %s18, 1
      %s26 = ssub.s32 %s18, %s25
      %p27 = scmp.eq.s32.totalorder %s26, 0
      %s29 = sadd.s32 %s28, 1
      %s30 = scalar_select %p27, %s28, %s29
      %p33 = pneg %p27
      %p34 = scmp.eq.s32.totalorder %s18, 1
      %p35 = por %p33, %p34
      %p36 = scmp.ne.s32.totalorder %s28, %s31
      %p37 = scmp.eq.s32.totalorder %s18, 0
      %p38 = por %p36, %p37
      %p39 = scmp.ne.s32.totalorder %s28, %s31
      %p40 = scmp.eq.s32.totalorder %s23, 1
      %p41 = por %p39, %p40
      %p42 = scmp.ne.s32.totalorder %s31, %s32
      %p43 = scmp.eq.s32.totalorder %s23, 0
      %p44 = por %p42, %p43
      %p45 = scmp.ne.s32.totalorder %s31, %s32
      %p46 = scmp.eq.s32.totalorder %s24, 1
      %p47 = por %p45, %p46
      %p49 = scmp.ne.s32.totalorder %s32, %s48
      %p50 = scmp.eq.s32.totalorder %s24, 0
      %p51 = por %p49, %p50
      %s53 = sadd.s32 %s52, 1
      %p56 = scmp.eq.s32.totalorder %s18, 1
      %p57 = scmp.ne.s32.totalorder %s52, %s54
      %p58 = scmp.eq.s32.totalorder %s18, 0
      %p59 = por %p57, %p58
      %p60 = scmp.ne.s32.totalorder %s52, %s54
      %p61 = scmp.eq.s32.totalorder %s23, 1
      %p62 = por %p60, %p61
      %p63 = scmp.ne.s32.totalorder %s54, %s55
      %p64 = scmp.eq.s32.totalorder %s23, 0
      %p65 = por %p63, %p64
      %p66 = scmp.ne.s32.totalorder %s54, %s55
      %p67 = scmp.eq.s32.totalorder %s24, 1
      %p68 = por %p66, %p67
      %p70 = scmp.ne.s32.totalorder %s55, %s69
      %p71 = scmp.eq.s32.totalorder %s24, 0
      %p72 = por %p70, %p71
      %s74 = sadd.s32 %s73, 1
      %p77 = scmp.eq.s32.totalorder %s18, 1
      %p78 = scmp.ne.s32.totalorder %s73, %s75
      %p79 = scmp.eq.s32.totalorder %s18, 0
      %p80 = por %p78, %p79
      %p81 = scmp.ne.s32.totalorder %s73, %s75
      %p82 = scmp.eq.s32.totalorder %s23, 1
      %p83 = por %p81, %p82
      %p84 = scmp.ne.s32.totalorder %s75, %s76
      %p85 = scmp.eq.s32.totalorder %s23, 0
      %p86 = por %p84, %p85
      %p87 = scmp.ne.s32.totalorder %s75, %s76
      %p88 = scmp.eq.s32.totalorder %s24, 1
      %p89 = por %p87, %p88
      %p91 = scmp.ne.s32.totalorder %s76, %s90
      %p92 = scmp.eq.s32.totalorder %s24, 0
      %p93 = por %p91, %p92
      %s95 = sadd.s32 %s94, 1
      %p98 = scmp.eq.s32.totalorder %s18, 1
      %p99 = scmp.ne.s32.totalorder %s94, %s96
      %p100 = scmp.eq.s32.totalorder %s18, 0
      %p101 = por %p99, %p100
      %p102 = scmp.ne.s32.totalorder %s94, %s96
      %p103 = scmp.eq.s32.totalorder %s23, 1
      %p104 = por %p102, %p103
      %p105 = scmp.ne.s32.totalorder %s96, %s97
      %p106 = scmp.eq.s32.totalorder %s23, 0
      %p107 = por %p105, %p106
      %p108 = scmp.ne.s32.totalorder %s96, %s97
      %p109 = scmp.eq.s32.totalorder %s24, 1
      %p110 = por %p108, %p109
      %p112 = scmp.ne.s32.totalorder %s97, %s111
      %p113 = scmp.eq.s32.totalorder %s24, 0
      %p114 = por %p112, %p113
      %s116 = sadd.s32 %s115, 1
      %p119 = scmp.eq.s32.totalorder %s18, 1
      %p120 = scmp.ne.s32.totalorder %s115, %s117
      %p121 = scmp.eq.s32.totalorder %s18, 0
      %p122 = por %p120, %p121
      %p123 = scmp.ne.s32.totalorder %s115, %s117
      %p124 = scmp.eq.s32.totalorder %s23, 1
      %p125 = por %p123, %p124
      %p126 = scmp.ne.s32.totalorder %s117, %s118
      %p127 = scmp.eq.s32.totalorder %s23, 0
      %p128 = por %p126, %p127
      %p129 = scmp.ne.s32.totalorder %s117, %s118
      %p130 = scmp.eq.s32.totalorder %s24, 1
      %p131 = por %p129, %p130
      %p133 = scmp.ne.s32.totalorder %s118, %s132
      %p134 = scmp.eq.s32.totalorder %s24, 0
      %p135 = por %p133, %p134
      %s137 = sadd.s32 %s136, 1
      %p140 = scmp.eq.s32.totalorder %s18, 1
      %p141 = scmp.ne.s32.totalorder %s136, %s138
      %p142 = scmp.eq.s32.totalorder %s18, 0
      %p143 = por %p141, %p142
      %p144 = scmp.ne.s32.totalorder %s136, %s138
      %p145 = scmp.eq.s32.totalorder %s23, 1
      %p146 = por %p144, %p145
      %p147 = scmp.ne.s32.totalorder %s138, %s139
      %p148 = scmp.eq.s32.totalorder %s23, 0
      %p149 = por %p147, %p148
      %p150 = scmp.ne.s32.totalorder %s138, %s139
      %p151 = scmp.eq.s32.totalorder %s24, 1
      %p152 = por %p150, %p151
      %p154 = scmp.ne.s32.totalorder %s139, %s153
      %p155 = scmp.eq.s32.totalorder %s24, 0
      %p156 = por %p154, %p155
      %s158 = sadd.s32 %s157, 1
      %p161 = scmp.eq.s32.totalorder %s18, 1
      %p162 = scmp.ne.s32.totalorder %s157, %s159
      %p163 = scmp.eq.s32.totalorder %s18, 0
      %p164 = por %p162, %p163
      %p165 = scmp.ne.s32.totalorder %s157, %s159
      %p166 = scmp.eq.s32.totalorder %s23, 1
      %p167 = por %p165, %p166
      %p168 = scmp.ne.s32.totalorder %s159, %s160
      %p169 = scmp.eq.s32.totalorder %s23, 0
      %p170 = por %p168, %p169
      %p171 = scmp.ne.s32.totalorder %s159, %s160
      %p172 = scmp.eq.s32.totalorder %s24, 1
      %p173 = por %p171, %p172
      %p175 = scmp.ne.s32.totalorder %s160, %s174
      %p176 = scmp.eq.s32.totalorder %s24, 0
      %p177 = por %p175, %p176
      %s179 = sadd.s32 %s178, 1
      %p182 = scmp.eq.s32.totalorder %s18, 1
      %p183 = scmp.ne.s32.totalorder %s178, %s180
      %p184 = scmp.eq.s32.totalorder %s18, 0
      %p185 = por %p183, %p184
      %p186 = scmp.ne.s32.totalorder %s178, %s180
      %p187 = scmp.eq.s32.totalorder %s23, 1
      %p188 = por %p186, %p187
      %p189 = scmp.ne.s32.totalorder %s180, %s181
      %p190 = scmp.eq.s32.totalorder %s23, 0
      %p191 = por %p189, %p190
      %p192 = scmp.ne.s32.totalorder %s180, %s181
      %p193 = scmp.eq.s32.totalorder %s24, 1
      %p194 = por %p192, %p193
      %p196 = scmp.ne.s32.totalorder %s181, %s195
      %p197 = scmp.eq.s32.totalorder %s24, 0
      %p198 = por %p196, %p197
      %s200 = sadd.s32 %s199, 1
      %p203 = scmp.eq.s32.totalorder %s18, 1
      %p204 = scmp.ne.s32.totalorder %s199, %s201
      %p205 = scmp.eq.s32.totalorder %s18, 0
      %p206 = por %p204, %p205
      %p207 = scmp.ne.s32.totalorder %s199, %s201
      %p208 = scmp.eq.s32.totalorder %s23, 1
      %p209 = por %p207, %p208
      %p210 = scmp.ne.s32.totalorder %s201, %s202
      %p211 = scmp.eq.s32.totalorder %s23, 0
      %p212 = por %p210, %p211
      %p213 = scmp.ne.s32.totalorder %s201, %s202
      %p214 = scmp.eq.s32.totalorder %s24, 1
      %p215 = por %p213, %p214
      %p217 = scmp.ne.s32.totalorder %s202, %s216
      %p218 = scmp.eq.s32.totalorder %s24, 0
      %p219 = por %p217, %p218
      %s220 = ssub.s32 %s18, %s25
      %p221 = scmp.eq.s32.totalorder %s220, 0
      %s223 = sadd.s32 %s222, 1
      %s224 = scalar_select %p221, %s222, %s223
      %p227 = pneg %p221
      %p228 = scmp.eq.s32.totalorder %s18, 1
      %p229 = por %p227, %p228
      %p230 = scmp.ne.s32.totalorder %s222, %s225
      %p231 = scmp.eq.s32.totalorder %s18, 0
      %p232 = por %p230, %p231
      %p233 = scmp.ne.s32.totalorder %s222, %s225
      %p234 = scmp.eq.s32.totalorder %s23, 1
      %p235 = por %p233, %p234
      %p236 = scmp.ne.s32.totalorder %s225, %s226
      %p237 = scmp.eq.s32.totalorder %s23, 0
      %p238 = por %p236, %p237
      %p239 = scmp.ne.s32.totalorder %s225, %s226
      %p240 = scmp.eq.s32.totalorder %s24, 1
      %p241 = por %p239, %p240
      %p243 = scmp.ne.s32.totalorder %s226, %s242
      %p244 = scmp.eq.s32.totalorder %s24, 0
      %p245 = por %p243, %p244
      %p246 = scmp.le.s32.totalorder 1, %s18
      %p247 = scmp.lt.s32.totalorder %s18, 3
      %p248 = pnand %p246, %p247
      %p249 = pneg %p248
      // Predicated region
      $region9: #{tpu_custom_call.1} parent=5 // pred_check
        _
      $region10: #{tpu_custom_call.1} parent=5 // pred_check_branch
        %251 = sbr.rel (%p248) target = $region12
      $region11: #{tpu_custom_call.1} parent=5 // pred_region
        %s252 = ssub.s32 %s18, 1
        // Predicated region
        $region13: #{tpu_custom_call.1} parent=11 // pred_check
          %p253 = pneg %p65
        $region14: #{tpu_custom_call.1} parent=11 // pred_check_branch
          %255 = sbr.rel (%p253) target = $region16
        $region15: #{tpu_custom_call.1} parent=11 // pred_region
          _
        $region16: #{tpu_custom_call.1} parent=11 // pred_fallthru
          _
        // Predicated region
        $region17: #{tpu_custom_call.1} parent=11 // pred_check
          %p256 = pneg %p86
        $region18: #{tpu_custom_call.1} parent=11 // pred_check_branch
          %258 = sbr.rel (%p256) target = $region20
        $region19: #{tpu_custom_call.1} parent=11 // pred_region
          _
        $region20: #{tpu_custom_call.1} parent=11 // pred_fallthru
          _
        // Predicated region
        $region21: #{tpu_custom_call.1} parent=11 // pred_check
          %p259 = pneg %p107
        $region22: #{tpu_custom_call.1} parent=11 // pred_check_branch
          %261 = sbr.rel (%p259) target = $region24
        $region23: #{tpu_custom_call.1} parent=11 // pred_region
          _
        $region24: #{tpu_custom_call.1} parent=11 // pred_fallthru
          _
        // Predicated region
        $region25: #{tpu_custom_call.1} parent=11 // pred_check
          %p262 = pneg %p128
        $region26: #{tpu_custom_call.1} parent=11 // pred_check_branch
          %264 = sbr.rel (%p262) target = $region28
        $region27: #{tpu_custom_call.1} parent=11 // pred_region
          _
        $region28: #{tpu_custom_call.1} parent=11 // pred_fallthru
          _
        // Predicated region
        $region29: #{tpu_custom_call.1} parent=11 // pred_check
          %p265 = pneg %p149
        $region30: #{tpu_custom_call.1} parent=11 // pred_check_branch
          %267 = sbr.rel (%p265) target = $region32
        $region31: #{tpu_custom_call.1} parent=11 // pred_region
          _
        $region32: #{tpu_custom_call.1} parent=11 // pred_fallthru
          _
        // Predicated region
        $region33: #{tpu_custom_call.1} parent=11 // pred_check
          %p268 = pneg %p170
        $region34: #{tpu_custom_call.1} parent=11 // pred_check_branch
          %270 = sbr.rel (%p268) target = $region36
        $region35: #{tpu_custom_call.1} parent=11 // pred_region
          _
        $region36: #{tpu_custom_call.1} parent=11 // pred_fallthru
          _
        // Predicated region
        $region37: #{tpu_custom_call.1} parent=11 // pred_check
          %p271 = pneg %p191
        $region38: #{tpu_custom_call.1} parent=11 // pred_check_branch
          %273 = sbr.rel (%p271) target = $region40
        $region39: #{tpu_custom_call.1} parent=11 // pred_region
          _
        $region40: #{tpu_custom_call.1} parent=11 // pred_fallthru
          _
        // Predicated region
        $region41: #{tpu_custom_call.1} parent=11 // pred_check
          %p274 = pneg %p212
        $region42: #{tpu_custom_call.1} parent=11 // pred_check_branch
          %276 = sbr.rel (%p274) target = $region44
        $region43: #{tpu_custom_call.1} parent=11 // pred_region
          _
        $region44: #{tpu_custom_call.1} parent=11 // pred_fallthru
          _
      $region12: #{tpu_custom_call.1} parent=5 // pred_fallthru
        _
      %p277 = scmp.lt.s32.totalorder %s18, 2
      // Predicated region
      $region45: #{tpu_custom_call.1} parent=5 // pred_check
        %p278 = pneg %p277
      $region46: #{tpu_custom_call.1} parent=5 // pred_check_branch
        %280 = sbr.rel (%p278) target = $region48
      $region47: #{tpu_custom_call.1} parent=5 // pred_region
        // Predicated region
        $region49: #{tpu_custom_call.1} parent=47 // pred_check
          %p281 = pneg %p38
        $region50: #{tpu_custom_call.1} parent=47 // pred_check_branch
          %283 = sbr.rel (%p281) target = $region52
        $region51: #{tpu_custom_call.1} parent=47 // pred_region
          %p284 = scmp.lt.s32.totalorder %s18, 1
          %s285 = scalar_select %p284, %s18, 1
          %s286 = smul.addr %s285, 36
          %s287 = smul.addr %s286, 8
          %s288 = scalar_lea.vmem %s0, %s287
        $region52: #{tpu_custom_call.1} parent=47 // pred_fallthru
          _
      $region48: #{tpu_custom_call.1} parent=5 // pred_fallthru
        _
      %p289 = scmp.le.s32.totalorder 1, %s18
      %p290 = scmp.lt.s32.totalorder %s18, 3
      %p291 = pnand %p289, %p290
      %p292 = pneg %p291
      // Predicated region
      $region53: #{tpu_custom_call.1} parent=5 // pred_check
        _
      $region54: #{tpu_custom_call.1} parent=5 // pred_check_branch
        %294 = sbr.rel (%p291) target = $region56
      $region55: #{tpu_custom_call.1} parent=5 // pred_region
        %s295 = ssub.s32 %s18, 1
        %p296 = scmp.lt.s32.totalorder %s23, 1
        %s297 = scalar_select %p296, %s23, 1
        %s298 = smul.addr %s297, 36
        %s299 = smul.addr %s298, 8
        %s300 = scalar_lea.vmem %s0, %s299
        %p301 = pneg %p44
        %p302 = pneg %p41
        %p303 = pneg %p65
        %p304 = pneg %p62
        %p305 = pneg %p86
        %p306 = pneg %p83
        %p307 = pneg %p107
        %p308 = pneg %p104
        %p309 = pneg %p128
        %p310 = pneg %p125
        %p311 = pneg %p149
        %p312 = pneg %p146
        %p313 = pneg %p170
        %p314 = pneg %p167
        %p315 = pneg %p191
        %p316 = pneg %p188
        %p317 = pneg %p212
        %p318 = pneg %p209
        %p319 = pneg %p238
        %p320 = pneg %p235
        %s321 = sand.u32 %s225, 1
        %s322 = scalar_lea.sflag [#allocation5], %s321
        %s323 = sand.u32 %s225, 1
        %s324 = smul.addr %s323, 64
        %s325 = scalar_lea.vmem [#allocation4], %s324
        %p326 = scmp.lt.s32.totalorder %s23, 1
        %s327 = scalar_select %p326, %s23, 1
        %s328 = smul.addr %s327, 36
        %s329 = smul.addr %s328, 8
        %s330 = scalar_lea.vmem %s0, %s329
        %vm332 = vcmask 523264
        %333 = vst.msk [vmem:[#allocation2] sm:$0xff] %vm332, 0.0
        %334 = vst.msk [vmem:[#allocation2 + $0x8] sm:$0xff] %vm332, 0.0
        %vm335 = vcmask 518144
        %336 = vst.msk [vmem:[#allocation2 + $0x10] sm:$0x7] %vm335, 0.0
        %337 = vst.msk [vmem:[#allocation2 + $0x133] sm:$0xff] %vm332, 0.0
        %338 = vst.msk [vmem:[#allocation2 + $0x13b] sm:$0xff] %vm332, 0.0
        %339 = vst.msk [vmem:[#allocation2 + $0x143] sm:$0x7] %vm335, 0.0
        %v340 = vld [vmem:[%s7] sm:$0xff]
        %v341 = vld [vmem:[%s7 + $0x8] sm:$0xff]
        %v342 = vld [vmem:[%s7 + $0x10] sm:$0xff]
        %v343 = vld [vmem:[%s7 + $0x18] sm:$0xff]
        %v344 = vld [vmem:[%s7 + $0x20] sm:$0xff]
        %v345 = vld [vmem:[%s7 + $0x28] sm:$0xff]
        %v346 = vld [vmem:[%s7 + $0x30] sm:$0xff]
        %v347 = vld [vmem:[%s7 + $0x38] sm:$0xff]
        %v348 = vld [vmem:[%s7 + $0x40] sm:$0xff]
        %v349 = vld [vmem:[%s7 + $0x48] sm:$0xff]
        %v350 = vld [vmem:[%s7 + $0x50] sm:$0xff]
        %v351 = vld [vmem:[%s7 + $0x58] sm:$0xff]
        %v352 = vld [vmem:[%s7 + $0x60] sm:$0xff]
        %v353 = vld [vmem:[%s7 + $0x68] sm:$0xff]
        %v354 = vld [vmem:[%s7 + $0x70] sm:$0xff]
        %v355 = vld [vmem:[%s7 + $0x78] sm:$0xff]
        %v356 = vld [vmem:[%s7 + $0x80] sm:$0xff]
        %v357 = vld [vmem:[%s7 + $0x88] sm:$0xff]
        %v358 = vld [vmem:[%s7 + $0x90] sm:$0xff]
        %v359 = vld [vmem:[%s7 + $0x98] sm:$0xff]
        %v360 = vld [vmem:[%s7 + $0xa0] sm:$0xff]
        %v361 = vld [vmem:[%s7 + $0xa8] sm:$0xff]
        %v362 = vld [vmem:[%s7 + $0xb0] sm:$0xff]
        %v363 = vld [vmem:[%s7 + $0xb8] sm:$0xff]
        %v364 = vld [vmem:[%s7 + $0xc0] sm:$0xff]
        %v365 = vld [vmem:[%s7 + $0xc8] sm:$0xff]
        %v366 = vld [vmem:[%s7 + $0xd0] sm:$0xff]
        %v367 = vld [vmem:[%s7 + $0xd8] sm:$0xff]
        %v368 = vld [vmem:[%s7 + $0xe0] sm:$0xff]
        %v369 = vld [vmem:[%s7 + $0xe8] sm:$0xff]
        %v370 = vld [vmem:[%s7 + $0xf0] sm:$0xff]
        %v371 = vld [vmem:[%s7 + $0xf8] sm:$0xff]
        %v372 = vld [vmem:[%s7 + $0x100] sm:$0xff]
        %v373 = vld [vmem:[%s7 + $0x108] sm:$0xff]
        %v374 = vld [vmem:[%s7 + $0x110] sm:$0xff]
        %v375 = vld [vmem:[%s7 + $0x118] sm:$0xff]
        %v376 = vld [vmem:[%s330] sm:$0xff]
        %v377 = vld [vmem:[%s330 + $0x8] sm:$0xff]
        %v378 = vld [vmem:[%s330 + $0x10] sm:$0xff]
        %v379 = vld [vmem:[%s330 + $0x18] sm:$0xff]
        %v380 = vld [vmem:[%s330 + $0x20] sm:$0xff]
        %v381 = vld [vmem:[%s330 + $0x28] sm:$0xff]
        %v382 = vld [vmem:[%s330 + $0x30] sm:$0xff]
        %v383 = vld [vmem:[%s330 + $0x38] sm:$0xff]
        %v384 = vld [vmem:[%s330 + $0x40] sm:$0xff]
        %v385 = vld [vmem:[%s330 + $0x48] sm:$0xff]
        %v386 = vld [vmem:[%s330 + $0x50] sm:$0xff]
        %v387 = vld [vmem:[%s330 + $0x58] sm:$0xff]
        %v388 = vld [vmem:[%s330 + $0x60] sm:$0xff]
        %v389 = vld [vmem:[%s330 + $0x68] sm:$0xff]
        %v390 = vld [vmem:[%s330 + $0x70] sm:$0xff]
        %v391 = vld [vmem:[%s330 + $0x78] sm:$0xff]
        %v392 = vld [vmem:[%s330 + $0x80] sm:$0xff]
        %v393 = vld [vmem:[%s330 + $0x88] sm:$0xff]
        %v394 = vld [vmem:[%s330 + $0x90] sm:$0xff]
        %v395 = vld [vmem:[%s330 + $0x98] sm:$0xff]
        %v396 = vld [vmem:[%s330 + $0xa0] sm:$0xff]
        %v397 = vld [vmem:[%s330 + $0xa8] sm:$0xff]
        %v398 = vld [vmem:[%s330 + $0xb0] sm:$0xff]
        %v399 = vld [vmem:[%s330 + $0xb8] sm:$0xff]
        %v400 = vld [vmem:[%s330 + $0xc0] sm:$0xff]
        %v401 = vld [vmem:[%s330 + $0xc8] sm:$0xff]
        %v402 = vld [vmem:[%s330 + $0xd0] sm:$0xff]
        %v403 = vld [vmem:[%s330 + $0xd8] sm:$0xff]
        %v404 = vld [vmem:[%s330 + $0xe0] sm:$0xff]
        %v405 = vld [vmem:[%s330 + $0xe8] sm:$0xff]
        %v406 = vld [vmem:[%s330 + $0xf0] sm:$0xff]
        %v407 = vld [vmem:[%s330 + $0xf8] sm:$0xff]
        %v408 = vld [vmem:[%s330 + $0x100] sm:$0xff]
        %v409 = vld [vmem:[%s330 + $0x108] sm:$0xff]
        %v410 = vld [vmem:[%s330 + $0x110] sm:$0xff]
        %v411 = vld [vmem:[%s330 + $0x118] sm:$0xff]
        %412 = vst.msk [vmem:[#allocation2 + $0x13] sm:$0xff] %vm332, %v376
        %413 = vst.msk [vmem:[#allocation2 + $0x1b] sm:$0xff] %vm332, %v377
        %414 = vst.msk [vmem:[#allocation2 + $0x23] sm:$0xff] %vm332, %v378
        %415 = vst.msk [vmem:[#allocation2 + $0x2b] sm:$0xff] %vm332, %v379
        %416 = vst.msk [vmem:[#allocation2 + $0x33] sm:$0xff] %vm332, %v380
        %417 = vst.msk [vmem:[#allocation2 + $0x3b] sm:$0xff] %vm332, %v381
        %418 = vst.msk [vmem:[#allocation2 + $0x43] sm:$0xff] %vm332, %v382
        %419 = vst.msk [vmem:[#allocation2 + $0x4b] sm:$0xff] %vm332, %v383
        %420 = vst.msk [vmem:[#allocation2 + $0x53] sm:$0xff] %vm332, %v384
        %421 = vst.msk [vmem:[#allocation2 + $0x5b] sm:$0xff] %vm332, %v385
        %422 = vst.msk [vmem:[#allocation2 + $0x63] sm:$0xff] %vm332, %v386
        %423 = vst.msk [vmem:[#allocation2 + $0x6b] sm:$0xff] %vm332, %v387
        %424 = vst.msk [vmem:[#allocation2 + $0x73] sm:$0xff] %vm332, %v388
        %425 = vst.msk [vmem:[#allocation2 + $0x7b] sm:$0xff] %vm332, %v389
        %426 = vst.msk [vmem:[#allocation2 + $0x83] sm:$0xff] %vm332, %v390
        %427 = vst.msk [vmem:[#allocation2 + $0x8b] sm:$0xff] %vm332, %v391
        %428 = vst.msk [vmem:[#allocation2 + $0x93] sm:$0xff] %vm332, %v392
        %429 = vst.msk [vmem:[#allocation2 + $0x9b] sm:$0xff] %vm332, %v393
        %430 = vst.msk [vmem:[#allocation2 + $0xa3] sm:$0xff] %vm332, %v394
        %431 = vst.msk [vmem:[#allocation2 + $0xab] sm:$0xff] %vm332, %v395
        %432 = vst.msk [vmem:[#allocation2 + $0xb3] sm:$0xff] %vm332, %v396
        %433 = vst.msk [vmem:[#allocation2 + $0xbb] sm:$0xff] %vm332, %v397
        %434 = vst.msk [vmem:[#allocation2 + $0xc3] sm:$0xff] %vm332, %v398
        %435 = vst.msk [vmem:[#allocation2 + $0xcb] sm:$0xff] %vm332, %v399
        %436 = vst.msk [vmem:[#allocation2 + $0xd3] sm:$0xff] %vm332, %v400
        %437 = vst.msk [vmem:[#allocation2 + $0xdb] sm:$0xff] %vm332, %v401
        %438 = vst.msk [vmem:[#allocation2 + $0xe3] sm:$0xff] %vm332, %v402
        %439 = vst.msk [vmem:[#allocation2 + $0xeb] sm:$0xff] %vm332, %v403
        %440 = vst.msk [vmem:[#allocation2 + $0xf3] sm:$0xff] %vm332, %v404
        %441 = vst.msk [vmem:[#allocation2 + $0xfb] sm:$0xff] %vm332, %v405
        %442 = vst.msk [vmem:[#allocation2 + $0x103] sm:$0xff] %vm332, %v406
        %443 = vst.msk [vmem:[#allocation2 + $0x10b] sm:$0xff] %vm332, %v407
        %444 = vst.msk [vmem:[#allocation2 + $0x113] sm:$0xff] %vm332, %v408
        %445 = vst.msk [vmem:[#allocation2 + $0x11b] sm:$0xff] %vm332, %v409
        %446 = vst.msk [vmem:[#allocation2 + $0x123] sm:$0xff] %vm332, %v410
        %447 = vst.msk [vmem:[#allocation2 + $0x12b] sm:$0xff] %vm332, %v411
        %v448 = vld [vmem:[#allocation2] sm:$0xff]
        %v449 = vld [vmem:[#allocation2 + $0x8] sm:$0xff]
        %v450 = vld [vmem:[#allocation2 + $0x10] sm:$0xff]
        %v451 = vld [vmem:[#allocation2 + $0x18] sm:$0xff]
        %v452 = vld [vmem:[#allocation2 + $0x20] sm:$0xff]
        %v453 = vld [vmem:[#allocation2 + $0x28] sm:$0xff]
        %v454 = vld [vmem:[#allocation2 + $0x30] sm:$0xff]
        %v455 = vld [vmem:[#allocation2 + $0x38] sm:$0xff]
        %v456 = vld [vmem:[#allocation2 + $0x40] sm:$0xff]
        %v457 = vld [vmem:[#allocation2 + $0x48] sm:$0xff]
        %v458 = vld [vmem:[#allocation2 + $0x50] sm:$0xff]
        %v459 = vld [vmem:[#allocation2 + $0x58] sm:$0xff]
        %v460 = vld [vmem:[#allocation2 + $0x60] sm:$0xff]
        %v461 = vld [vmem:[#allocation2 + $0x68] sm:$0xff]
        %v462 = vld [vmem:[#allocation2 + $0x70] sm:$0xff]
        %v463 = vld [vmem:[#allocation2 + $0x78] sm:$0xff]
        %v464 = vld [vmem:[#allocation2 + $0x80] sm:$0xff]
        %v465 = vld [vmem:[#allocation2 + $0x88] sm:$0xff]
        %v466 = vld [vmem:[#allocation2 + $0x90] sm:$0xff]
        %v467 = vld [vmem:[#allocation2 + $0x98] sm:$0xff]
        %v468 = vld [vmem:[#allocation2 + $0xa0] sm:$0xff]
        %v469 = vld [vmem:[#allocation2 + $0xa8] sm:$0xff]
        %v470 = vld [vmem:[#allocation2 + $0xb0] sm:$0xff]
        %v471 = vld [vmem:[#allocation2 + $0xb8] sm:$0xff]
        %v472 = vld [vmem:[#allocation2 + $0xc0] sm:$0xff]
        %v473 = vld [vmem:[#allocation2 + $0xc8] sm:$0xff]
        %v474 = vld [vmem:[#allocation2 + $0xd0] sm:$0xff]
        %v475 = vld [vmem:[#allocation2 + $0xd8] sm:$0xff]
        %v476 = vld [vmem:[#allocation2 + $0xe0] sm:$0xff]
        %v477 = vld [vmem:[#allocation2 + $0xe8] sm:$0xff]
        %v478 = vld [vmem:[#allocation2 + $0xf0] sm:$0xff]
        %v479 = vld [vmem:[#allocation2 + $0xf8] sm:$0xff]
        %v480 = vld [vmem:[#allocation2 + $0x100] sm:$0xff]
        %v481 = vld [vmem:[#allocation2 + $0x108] sm:$0xff]
        %v482 = vld [vmem:[#allocation2 + $0x110] sm:$0xff]
        %v483 = vld [vmem:[#allocation2 + $0x118] sm:$0xff]
        %v484 = vpack.c.bf16 %v449, %v448
        %v485 = vpack.c.bf16 %v451, %v450
        %v486 = vpack.c.bf16 %v453, %v452
        %v487 = vpack.c.bf16 %v455, %v454
        %v488 = vpack.c.bf16 %v457, %v456
        %v489 = vpack.c.bf16 %v459, %v458
        %v490 = vpack.c.bf16 %v461, %v460
        %v491 = vpack.c.bf16 %v463, %v462
        %v492 = vpack.c.bf16 %v465, %v464
        %v493 = vpack.c.bf16 %v467, %v466
        %v494 = vpack.c.bf16 %v469, %v468
        %v495 = vpack.c.bf16 %v471, %v470
        %v496 = vpack.c.bf16 %v473, %v472
        %v497 = vpack.c.bf16 %v475, %v474
        %v498 = vpack.c.bf16 %v477, %v476
        %v499 = vpack.c.bf16 %v479, %v478
        %v500 = vpack.c.bf16 %v481, %v480
        %v501 = vpack.c.bf16 %v483, %v482
        %v502 = vld [vmem:[#allocation2 + $0x1] sm:$0xff]
        %v503 = vld [vmem:[#allocation2 + $0x9] sm:$0xff]
        %v504 = vld [vmem:[#allocation2 + $0x11] sm:$0xff]
        %v505 = vld [vmem:[#allocation2 + $0x19] sm:$0xff]
        %v506 = vld [vmem:[#allocation2 + $0x21] sm:$0xff]
        %v507 = vld [vmem:[#allocation2 + $0x29] sm:$0xff]
        %v508 = vld [vmem:[#allocation2 + $0x31] sm:$0xff]
        %v509 = vld [vmem:[#allocation2 + $0x39] sm:$0xff]
        %v510 = vld [vmem:[#allocation2 + $0x41] sm:$0xff]
        %v511 = vld [vmem:[#allocation2 + $0x49] sm:$0xff]
        %v512 = vld [vmem:[#allocation2 + $0x51] sm:$0xff]
        %v513 = vld [vmem:[#allocation2 + $0x59] sm:$0xff]
        %v514 = vld [vmem:[#allocation2 + $0x61] sm:$0xff]
        %v515 = vld [vmem:[#allocation2 + $0x69] sm:$0xff]
        %v516 = vld [vmem:[#allocation2 + $0x71] sm:$0xff]
        %v517 = vld [vmem:[#allocation2 + $0x79] sm:$0xff]
        %v518 = vld [vmem:[#allocation2 + $0x81] sm:$0xff]
        %v519 = vld [vmem:[#allocation2 + $0x89] sm:$0xff]
        %v520 = vld [vmem:[#allocation2 + $0x91] sm:$0xff]
        %v521 = vld [vmem:[#allocation2 + $0x99] sm:$0xff]
        %v522 = vld [vmem:[#allocation2 + $0xa1] sm:$0xff]
        %v523 = vld [vmem:[#allocation2 + $0xa9] sm:$0xff]
        %v524 = vld [vmem:[#allocation2 + $0xb1] sm:$0xff]
        %v525 = vld [vmem:[#allocation2 + $0xb9] sm:$0xff]
        %v526 = vld [vmem:[#allocation2 + $0xc1] sm:$0xff]
        %v527 = vld [vmem:[#allocation2 + $0xc9] sm:$0xff]
        %v528 = vld [vmem:[#allocation2 + $0xd1] sm:$0xff]
        %v529 = vld [vmem:[#allocation2 + $0xd9] sm:$0xff]
        %v530 = vld [vmem:[#allocation2 + $0xe1] sm:$0xff]
        %v531 = vld [vmem:[#allocation2 + $0xe9] sm:$0xff]
        %v532 = vld [vmem:[#allocation2 + $0xf1] sm:$0xff]
        %v533 = vld [vmem:[#allocation2 + $0xf9] sm:$0xff]
        %v534 = vld [vmem:[#allocation2 + $0x101] sm:$0xff]
        %v535 = vld [vmem:[#allocation2 + $0x109] sm:$0xff]
        %v536 = vld [vmem:[#allocation2 + $0x111] sm:$0xff]
        %v537 = vld [vmem:[#allocation2 + $0x119] sm:$0xff]
        %v538 = vpack.c.bf16 %v503, %v502
        %v539 = vpack.c.bf16 %v505, %v504
        %v540 = vpack.c.bf16 %v507, %v506
        %v541 = vpack.c.bf16 %v509, %v508
        %v542 = vpack.c.bf16 %v511, %v510
        %v543 = vpack.c.bf16 %v513, %v512
        %v544 = vpack.c.bf16 %v515, %v514
        %v545 = vpack.c.bf16 %v517, %v516
        %v546 = vpack.c.bf16 %v519, %v518
        %v547 = vpack.c.bf16 %v521, %v520
        %v548 = vpack.c.bf16 %v523, %v522
        %v549 = vpack.c.bf16 %v525, %v524
        %v550 = vpack.c.bf16 %v527, %v526
        %v551 = vpack.c.bf16 %v529, %v528
        %v552 = vpack.c.bf16 %v531, %v530
        %v553 = vpack.c.bf16 %v533, %v532
        %v554 = vpack.c.bf16 %v535, %v534
        %v555 = vpack.c.bf16 %v537, %v536
        %574 = vrot.lane.b32.xlu0 %v538, 64
        %v575 = vpop.permute.xlu0 %574
        %576 = vrot.lane.b32.xlu0 %v539, 64
        %v577 = vpop.permute.xlu0 %576
        %578 = vrot.lane.b32.xlu0 %v540, 64
        %v579 = vpop.permute.xlu0 %578
        %580 = vrot.lane.b32.xlu0 %v541, 64
        %v581 = vpop.permute.xlu0 %580
        %582 = vrot.lane.b32.xlu0 %v542, 64
        %v583 = vpop.permute.xlu0 %582
        %584 = vrot.lane.b32.xlu0 %v543, 64
        %v585 = vpop.permute.xlu0 %584
        %586 = vrot.lane.b32.xlu0 %v544, 64
        %v587 = vpop.permute.xlu0 %586
        %588 = vrot.lane.b32.xlu0 %v545, 64
        %v589 = vpop.permute.xlu0 %588
        %590 = vrot.lane.b32.xlu0 %v546, 64
        %v591 = vpop.permute.xlu0 %590
        %592 = vrot.lane.b32.xlu0 %v547, 64
        %v593 = vpop.permute.xlu0 %592
        %594 = vrot.lane.b32.xlu0 %v548, 64
        %v595 = vpop.permute.xlu0 %594
        %596 = vrot.lane.b32.xlu0 %v549, 64
        %v597 = vpop.permute.xlu0 %596
        %598 = vrot.lane.b32.xlu0 %v550, 64
        %v599 = vpop.permute.xlu0 %598
        %600 = vrot.lane.b32.xlu0 %v551, 64
        %v601 = vpop.permute.xlu0 %600
        %602 = vrot.lane.b32.xlu0 %v552, 64
        %v603 = vpop.permute.xlu0 %602
        %604 = vrot.lane.b32.xlu0 %v553, 64
        %v605 = vpop.permute.xlu0 %604
        %606 = vrot.lane.b32.xlu0 %v554, 64
        %v607 = vpop.permute.xlu0 %606
        %608 = vrot.lane.b32.xlu0 %v555, 64
        %v609 = vpop.permute.xlu0 %608
        %v612 = vsel %vm332, %v484, %v575
        %v616 = vsel %vm332, %v485, %v577
        %v620 = vsel %vm332, %v486, %v579
        %v624 = vsel %vm332, %v487, %v581
        %v628 = vsel %vm332, %v488, %v583
        %v632 = vsel %vm332, %v489, %v585
        %v636 = vsel %vm332, %v490, %v587
        %v640 = vsel %vm332, %v491, %v589
        %v644 = vsel %vm332, %v492, %v591
        %v648 = vsel %vm332, %v493, %v593
        %v652 = vsel %vm332, %v494, %v595
        %v656 = vsel %vm332, %v495, %v597
        %v660 = vsel %vm332, %v496, %v599
        %v664 = vsel %vm332, %v497, %v601
        %v668 = vsel %vm332, %v498, %v603
        %v672 = vsel %vm332, %v499, %v605
        %v676 = vsel %vm332, %v500, %v607
        %v680 = vsel %vm332, %v501, %v609
        %682 = vst [vmem:[#allocation3] sm:$0xff] %v612
        %683 = vst [vmem:[#allocation3 + $0x28] sm:$0xff] %v616
        %684 = vst [vmem:[#allocation3 + $0x50] sm:$0xff] %v620
        %685 = vst [vmem:[#allocation3 + $0x78] sm:$0xff] %v624
        %686 = vst [vmem:[#allocation3 + $0xa0] sm:$0xff] %v628
        %687 = vst [vmem:[#allocation3 + $0xc8] sm:$0xff] %v632
        %688 = vst [vmem:[#allocation3 + $0xf0] sm:$0xff] %v636
        %689 = vst [vmem:[#allocation3 + $0x118] sm:$0xff] %v640
        %690 = vst [vmem:[#allocation3 + $0x140] sm:$0xff] %v644
        %691 = vst [vmem:[#allocation3 + $0x168] sm:$0xff] %v648
        %692 = vst [vmem:[#allocation3 + $0x190] sm:$0xff] %v652
        %693 = vst [vmem:[#allocation3 + $0x1b8] sm:$0xff] %v656
        %694 = vst [vmem:[#allocation3 + $0x1e0] sm:$0xff] %v660
        %695 = vst [vmem:[#allocation3 + $0x208] sm:$0xff] %v664
        %696 = vst [vmem:[#allocation3 + $0x230] sm:$0xff] %v668
        %697 = vst [vmem:[#allocation3 + $0x258] sm:$0xff] %v672
        %698 = vst [vmem:[#allocation3 + $0x280] sm:$0xff] %v676
        %699 = vst [vmem:[#allocation3 + $0x2a8] sm:$0xff] %v680
        %v700 = vld [vmem:[#allocation2 + $0x2] sm:$0xff]
        %v701 = vld [vmem:[#allocation2 + $0xa] sm:$0xff]
        %v702 = vld [vmem:[#allocation2 + $0x12] sm:$0xff]
        %v703 = vld [vmem:[#allocation2 + $0x1a] sm:$0xff]
        %v704 = vld [vmem:[#allocation2 + $0x22] sm:$0xff]
        %v705 = vld [vmem:[#allocation2 + $0x2a] sm:$0xff]
        %v706 = vld [vmem:[#allocation2 + $0x32] sm:$0xff]
        %v707 = vld [vmem:[#allocation2 + $0x3a] sm:$0xff]
        %v708 = vld [vmem:[#allocation2 + $0x42] sm:$0xff]
        %v709 = vld [vmem:[#allocation2 + $0x4a] sm:$0xff]
        %v710 = vld [vmem:[#allocation2 + $0x52] sm:$0xff]
        %v711 = vld [vmem:[#allocation2 + $0x5a] sm:$0xff]
        %v712 = vld [vmem:[#allocation2 + $0x62] sm:$0xff]
        %v713 = vld [vmem:[#allocation2 + $0x6a] sm:$0xff]
        %v714 = vld [vmem:[#allocation2 + $0x72] sm:$0xff]
        %v715 = vld [vmem:[#allocation2 + $0x7a] sm:$0xff]
        %v716 = vld [vmem:[#allocation2 + $0x82] sm:$0xff]
        %v717 = vld [vmem:[#allocation2 + $0x8a] sm:$0xff]
        %v718 = vld [vmem:[#allocation2 + $0x92] sm:$0xff]
        %v719 = vld [vmem:[#allocation2 + $0x9a] sm:$0xff]
        %v720 = vld [vmem:[#allocation2 + $0xa2] sm:$0xff]
        %v721 = vld [vmem:[#allocation2 + $0xaa] sm:$0xff]
        %v722 = vld [vmem:[#allocation2 + $0xb2] sm:$0xff]
        %v723 = vld [vmem:[#allocation2 + $0xba] sm:$0xff]
        %v724 = vld [vmem:[#allocation2 + $0xc2] sm:$0xff]
        %v725 = vld [vmem:[#allocation2 + $0xca] sm:$0xff]
        %v726 = vld [vmem:[#allocation2 + $0xd2] sm:$0xff]
        %v727 = vld [vmem:[#allocation2 + $0xda] sm:$0xff]
        %v728 = vld [vmem:[#allocation2 + $0xe2] sm:$0xff]
        %v729 = vld [vmem:[#allocation2 + $0xea] sm:$0xff]
        %v730 = vld [vmem:[#allocation2 + $0xf2] sm:$0xff]
        %v731 = vld [vmem:[#allocation2 + $0xfa] sm:$0xff]
        %v732 = vld [vmem:[#allocation2 + $0x102] sm:$0xff]
        %v733 = vld [vmem:[#allocation2 + $0x10a] sm:$0xff]
        %v734 = vld [vmem:[#allocation2 + $0x112] sm:$0xff]
        %v735 = vld [vmem:[#allocation2 + $0x11a] sm:$0xff]
        %v736 = vpack.c.bf16 %v701, %v700
        %v737 = vpack.c.bf16 %v703, %v702
        %v738 = vpack.c.bf16 %v705, %v704
        %v739 = vpack.c.bf16 %v707, %v706
        %v740 = vpack.c.bf16 %v709, %v708
        %v741 = vpack.c.bf16 %v711, %v710
        %v742 = vpack.c.bf16 %v713, %v712
        %v743 = vpack.c.bf16 %v715, %v714
        %v744 = vpack.c.bf16 %v717, %v716
        %v745 = vpack.c.bf16 %v719, %v718
        %v746 = vpack.c.bf16 %v721, %v720
        %v747 = vpack.c.bf16 %v723, %v722
        %v748 = vpack.c.bf16 %v725, %v724
        %v749 = vpack.c.bf16 %v727, %v726
        %v750 = vpack.c.bf16 %v729, %v728
        %v751 = vpack.c.bf16 %v731, %v730
        %v752 = vpack.c.bf16 %v733, %v732
        %v753 = vpack.c.bf16 %v735, %v734
        %v754 = vld [vmem:[#allocation2 + $0x122] sm:$0xff]
        %v755 = vld [vmem:[#allocation2 + $0x12a] sm:$0xff]
        %v756 = vpack.c.bf16 %v755, %v754
        %775 = vrot.lane.b32.xlu0 %v737, 64
        %v776 = vpop.permute.xlu0 %775
        %777 = vrot.lane.b32.xlu0 %v738, 64
        %v778 = vpop.permute.xlu0 %777
        %779 = vrot.lane.b32.xlu0 %v739, 64
        %v780 = vpop.permute.xlu0 %779
        %781 = vrot.lane.b32.xlu0 %v740, 64
        %v782 = vpop.permute.xlu0 %781
        %783 = vrot.lane.b32.xlu0 %v741, 64
        %v784 = vpop.permute.xlu0 %783
        %785 = vrot.lane.b32.xlu0 %v742, 64
        %v786 = vpop.permute.xlu0 %785
        %787 = vrot.lane.b32.xlu0 %v743, 64
        %v788 = vpop.permute.xlu0 %787
        %789 = vrot.lane.b32.xlu0 %v744, 64
        %v790 = vpop.permute.xlu0 %789
        %791 = vrot.lane.b32.xlu0 %v745, 64
        %v792 = vpop.permute.xlu0 %791
        %793 = vrot.lane.b32.xlu0 %v746, 64
        %v794 = vpop.permute.xlu0 %793
        %795 = vrot.lane.b32.xlu0 %v747, 64
        %v796 = vpop.permute.xlu0 %795
        %797 = vrot.lane.b32.xlu0 %v748, 64
        %v798 = vpop.permute.xlu0 %797
        %799 = vrot.lane.b32.xlu0 %v749, 64
        %v800 = vpop.permute.xlu0 %799
        %801 = vrot.lane.b32.xlu0 %v750, 64
        %v802 = vpop.permute.xlu0 %801
        %803 = vrot.lane.b32.xlu0 %v751, 64
        %v804 = vpop.permute.xlu0 %803
        %805 = vrot.lane.b32.xlu0 %v752, 64
        %v806 = vpop.permute.xlu0 %805
        %807 = vrot.lane.b32.xlu0 %v753, 64
        %v808 = vpop.permute.xlu0 %807
        %809 = vrot.lane.b32.xlu0 %v756, 64
        %v810 = vpop.permute.xlu0 %809
        %v813 = vsel %vm332, %v736, %v776
        %v817 = vsel %vm332, %v737, %v778
        %v821 = vsel %vm332, %v738, %v780
        %v825 = vsel %vm332, %v739, %v782
        %v829 = vsel %vm332, %v740, %v784
        %v833 = vsel %vm332, %v741, %v786
        %v837 = vsel %vm332, %v742, %v788
        %v841 = vsel %vm332, %v743, %v790
        %v845 = vsel %vm332, %v744, %v792
        %v849 = vsel %vm332, %v745, %v794
        %v853 = vsel %vm332, %v746, %v796
        %v857 = vsel %vm332, %v747, %v798
        %v861 = vsel %vm332, %v748, %v800
        %v865 = vsel %vm332, %v749, %v802
        %v869 = vsel %vm332, %v750, %v804
        %v873 = vsel %vm332, %v751, %v806
        %v877 = vsel %vm332, %v752, %v808
        %v881 = vsel %vm332, %v753, %v810
        %883 = vst [vmem:[#allocation3 + $0x8] sm:$0xff] %v813
        %884 = vst [vmem:[#allocation3 + $0x30] sm:$0xff] %v817
        %885 = vst [vmem:[#allocation3 + $0x58] sm:$0xff] %v821
        %886 = vst [vmem:[#allocation3 + $0x80] sm:$0xff] %v825
        %887 = vst [vmem:[#allocation3 + $0xa8] sm:$0xff] %v829
        %888 = vst [vmem:[#allocation3 + $0xd0] sm:$0xff] %v833
        %889 = vst [vmem:[#allocation3 + $0xf8] sm:$0xff] %v837
        %890 = vst [vmem:[#allocation3 + $0x120] sm:$0xff] %v841
        %891 = vst [vmem:[#allocation3 + $0x148] sm:$0xff] %v845
        %892 = vst [vmem:[#allocation3 + $0x170] sm:$0xff] %v849
        %893 = vst [vmem:[#allocation3 + $0x198] sm:$0xff] %v853
        %894 = vst [vmem:[#allocation3 + $0x1c0] sm:$0xff] %v857
        %895 = vst [vmem:[#allocation3 + $0x1e8] sm:$0xff] %v861
        %896 = vst [vmem:[#allocation3 + $0x210] sm:$0xff] %v865
        %897 = vst [vmem:[#allocation3 + $0x238] sm:$0xff] %v869
        %898 = vst [vmem:[#allocation3 + $0x260] sm:$0xff] %v873
        %899 = vst [vmem:[#allocation3 + $0x288] sm:$0xff] %v877
        %900 = vst [vmem:[#allocation3 + $0x2b0] sm:$0xff] %v881
        %v901 = vld [vmem:[#allocation2 + $0x13] sm:$0xff]
        %v902 = vld [vmem:[#allocation2 + $0x1b] sm:$0xff]
        %v903 = vld [vmem:[#allocation2 + $0x23] sm:$0xff]
        %v904 = vld [vmem:[#allocation2 + $0x2b] sm:$0xff]
        %v905 = vld [vmem:[#allocation2 + $0x33] sm:$0xff]
        %v906 = vld [vmem:[#allocation2 + $0x3b] sm:$0xff]
        %v907 = vld [vmem:[#allocation2 + $0x43] sm:$0xff]
        %v908 = vld [vmem:[#allocation2 + $0x4b] sm:$0xff]
        %v909 = vld [vmem:[#allocation2 + $0x53] sm:$0xff]
        %v910 = vld [vmem:[#allocation2 + $0x5b] sm:$0xff]
        %v911 = vld [vmem:[#allocation2 + $0x63] sm:$0xff]
        %v912 = vld [vmem:[#allocation2 + $0x6b] sm:$0xff]
        %v913 = vld [vmem:[#allocation2 + $0x73] sm:$0xff]
        %v914 = vld [vmem:[#allocation2 + $0x7b] sm:$0xff]
        %v915 = vld [vmem:[#allocation2 + $0x83] sm:$0xff]
        %v916 = vld [vmem:[#allocation2 + $0x8b] sm:$0xff]
        %v917 = vld [vmem:[#allocation2 + $0x93] sm:$0xff]
        %v918 = vld [vmem:[#allocation2 + $0x9b] sm:$0xff]
        %v919 = vld [vmem:[#allocation2 + $0xa3] sm:$0xff]
        %v920 = vld [vmem:[#allocation2 + $0xab] sm:$0xff]
        %v921 = vld [vmem:[#allocation2 + $0xb3] sm:$0xff]
        %v922 = vld [vmem:[#allocation2 + $0xbb] sm:$0xff]
        %v923 = vld [vmem:[#allocation2 + $0xc3] sm:$0xff]
        %v924 = vld [vmem:[#allocation2 + $0xcb] sm:$0xff]
        %v925 = vld [vmem:[#allocation2 + $0xd3] sm:$0xff]
        %v926 = vld [vmem:[#allocation2 + $0xdb] sm:$0xff]
        %v927 = vld [vmem:[#allocation2 + $0xe3] sm:$0xff]
        %v928 = vld [vmem:[#allocation2 + $0xeb] sm:$0xff]
        %v929 = vld [vmem:[#allocation2 + $0xf3] sm:$0xff]
        %v930 = vld [vmem:[#allocation2 + $0xfb] sm:$0xff]
        %v931 = vld [vmem:[#allocation2 + $0x103] sm:$0xff]
        %v932 = vld [vmem:[#allocation2 + $0x10b] sm:$0xff]
        %v933 = vld [vmem:[#allocation2 + $0x113] sm:$0xff]
        %v934 = vld [vmem:[#allocation2 + $0x11b] sm:$0xff]
        %v935 = vld [vmem:[#allocation2 + $0x123] sm:$0xff]
        %v936 = vld [vmem:[#allocation2 + $0x12b] sm:$0xff]
        %v937 = vpack.c.bf16 %v902, %v901
        %v938 = vpack.c.bf16 %v904, %v903
        %v939 = vpack.c.bf16 %v906, %v905
        %v940 = vpack.c.bf16 %v908, %v907
        %v941 = vpack.c.bf16 %v910, %v909
        %v942 = vpack.c.bf16 %v912, %v911
        %v943 = vpack.c.bf16 %v914, %v913
        %v944 = vpack.c.bf16 %v916, %v915
        %v945 = vpack.c.bf16 %v918, %v917
        %v946 = vpack.c.bf16 %v920, %v919
        %v947 = vpack.c.bf16 %v922, %v921
        %v948 = vpack.c.bf16 %v924, %v923
        %v949 = vpack.c.bf16 %v926, %v925
        %v950 = vpack.c.bf16 %v928, %v927
        %v951 = vpack.c.bf16 %v930, %v929
        %v952 = vpack.c.bf16 %v932, %v931
        %v953 = vpack.c.bf16 %v934, %v933
        %v954 = vpack.c.bf16 %v936, %v935
        %v955 = vld [vmem:[#allocation2 + $0x14] sm:$0xff]
        %v956 = vld [vmem:[#allocation2 + $0x1c] sm:$0xff]
        %v957 = vld [vmem:[#allocation2 + $0x24] sm:$0xff]
        %v958 = vld [vmem:[#allocation2 + $0x2c] sm:$0xff]
        %v959 = vld [vmem:[#allocation2 + $0x34] sm:$0xff]
        %v960 = vld [vmem:[#allocation2 + $0x3c] sm:$0xff]
        %v961 = vld [vmem:[#allocation2 + $0x44] sm:$0xff]
        %v962 = vld [vmem:[#allocation2 + $0x4c] sm:$0xff]
        %v963 = vld [vmem:[#allocation2 + $0x54] sm:$0xff]
        %v964 = vld [vmem:[#allocation2 + $0x5c] sm:$0xff]
        %v965 = vld [vmem:[#allocation2 + $0x64] sm:$0xff]
        %v966 = vld [vmem:[#allocation2 + $0x6c] sm:$0xff]
        %v967 = vld [vmem:[#allocation2 + $0x74] sm:$0xff]
        %v968 = vld [vmem:[#allocation2 + $0x7c] sm:$0xff]
        %v969 = vld [vmem:[#allocation2 + $0x84] sm:$0xff]
        %v970 = vld [vmem:[#allocation2 + $0x8c] sm:$0xff]
        %v971 = vld [vmem:[#allocation2 + $0x94] sm:$0xff]
        %v972 = vld [vmem:[#allocation2 + $0x9c] sm:$0xff]
        %v973 = vld [vmem:[#allocation2 + $0xa4] sm:$0xff]
        %v974 = vld [vmem:[#allocation2 + $0xac] sm:$0xff]
        %v975 = vld [vmem:[#allocation2 + $0xb4] sm:$0xff]
        %v976 = vld [vmem:[#allocation2 + $0xbc] sm:$0xff]
        %v977 = vld [vmem:[#allocation2 + $0xc4] sm:$0xff]
        %v978 = vld [vmem:[#allocation2 + $0xcc] sm:$0xff]
        %v979 = vld [vmem:[#allocation2 + $0xd4] sm:$0xff]
        %v980 = vld [vmem:[#allocation2 + $0xdc] sm:$0xff]
        %v981 = vld [vmem:[#allocation2 + $0xe4] sm:$0xff]
        %v982 = vld [vmem:[#allocation2 + $0xec] sm:$0xff]
        %v983 = vld [vmem:[#allocation2 + $0xf4] sm:$0xff]
        %v984 = vld [vmem:[#allocation2 + $0xfc] sm:$0xff]
        %v985 = vld [vmem:[#allocation2 + $0x104] sm:$0xff]
        %v986 = vld [vmem:[#allocation2 + $0x10c] sm:$0xff]
        %v987 = vld [vmem:[#allocation2 + $0x114] sm:$0xff]
        %v988 = vld [vmem:[#allocation2 + $0x11c] sm:$0xff]
        %v989 = vld [vmem:[#allocation2 + $0x124] sm:$0xff]
        %v990 = vld [vmem:[#allocation2 + $0x12c] sm:$0xff]
        %v991 = vpack.c.bf16 %v956, %v955
        %v992 = vpack.c.bf16 %v958, %v957
        %v993 = vpack.c.bf16 %v960, %v959
        %v994 = vpack.c.bf16 %v962, %v961
        %v995 = vpack.c.bf16 %v964, %v963
        %v996 = vpack.c.bf16 %v966, %v965
        %v997 = vpack.c.bf16 %v968, %v967
        %v998 = vpack.c.bf16 %v970, %v969
        %v999 = vpack.c.bf16 %v972, %v971
        %v1000 = vpack.c.bf16 %v974, %v973
        %v1001 = vpack.c.bf16 %v976, %v975
        %v1002 = vpack.c.bf16 %v978, %v977
        %v1003 = vpack.c.bf16 %v980, %v979
        %v1004 = vpack.c.bf16 %v982, %v981
        %v1005 = vpack.c.bf16 %v984, %v983
        %v1006 = vpack.c.bf16 %v986, %v985
        %v1007 = vpack.c.bf16 %v988, %v987
        %v1008 = vpack.c.bf16 %v990, %v989
        %1027 = vrot.lane.b32.xlu0 %v991, 64
        %v1028 = vpop.permute.xlu0 %1027
        %1029 = vrot.lane.b32.xlu0 %v992, 64
        %v1030 = vpop.permute.xlu0 %1029
        %1031 = vrot.lane.b32.xlu0 %v993, 64
        %v1032 = vpop.permute.xlu0 %1031
        %1033 = vrot.lane.b32.xlu0 %v994, 64
        %v1034 = vpop.permute.xlu0 %1033
        %1035 = vrot.lane.b32.xlu0 %v995, 64
        %v1036 = vpop.permute.xlu0 %1035
        %1037 = vrot.lane.b32.xlu0 %v996, 64
        %v1038 = vpop.permute.xlu0 %1037
        %1039 = vrot.lane.b32.xlu0 %v997, 64
        %v1040 = vpop.permute.xlu0 %1039
        %1041 = vrot.lane.b32.xlu0 %v998, 64
        %v1042 = vpop.permute.xlu0 %1041
        %1043 = vrot.lane.b32.xlu0 %v999, 64
        %v1044 = vpop.permute.xlu0 %1043
        %1045 = vrot.lane.b32.xlu0 %v1000, 64
        %v1046 = vpop.permute.xlu0 %1045
        %1047 = vrot.lane.b32.xlu0 %v1001, 64
        %v1048 = vpop.permute.xlu0 %1047
        %1049 = vrot.lane.b32.xlu0 %v1002, 64
        %v1050 = vpop.permute.xlu0 %1049
        %1051 = vrot.lane.b32.xlu0 %v1003, 64
        %v1052 = vpop.permute.xlu0 %1051
        %1053 = vrot.lane.b32.xlu0 %v1004, 64
        %v1054 = vpop.permute.xlu0 %1053
        %1055 = vrot.lane.b32.xlu0 %v1005, 64
        %v1056 = vpop.permute.xlu0 %1055
        %1057 = vrot.lane.b32.xlu0 %v1006, 64
        %v1058 = vpop.permute.xlu0 %1057
        %1059 = vrot.lane.b32.xlu0 %v1007, 64
        %v1060 = vpop.permute.xlu0 %1059
        %1061 = vrot.lane.b32.xlu0 %v1008, 64
        %v1062 = vpop.permute.xlu0 %1061
        %v1065 = vsel %vm332, %v937, %v1028
        %v1069 = vsel %vm332, %v938, %v1030
        %v1073 = vsel %vm332, %v939, %v1032
        %v1077 = vsel %vm332, %v940, %v1034
        %v1081 = vsel %vm332, %v941, %v1036
        %v1085 = vsel %vm332, %v942, %v1038
        %v1089 = vsel %vm332, %v943, %v1040
        %v1093 = vsel %vm332, %v944, %v1042
        %v1097 = vsel %vm332, %v945, %v1044
        %v1101 = vsel %vm332, %v946, %v1046
        %v1105 = vsel %vm332, %v947, %v1048
        %v1109 = vsel %vm332, %v948, %v1050
        %v1113 = vsel %vm332, %v949, %v1052
        %v1117 = vsel %vm332, %v950, %v1054
        %v1121 = vsel %vm332, %v951, %v1056
        %v1125 = vsel %vm332, %v952, %v1058
        %v1129 = vsel %vm332, %v953, %v1060
        %v1133 = vsel %vm332, %v954, %v1062
        %1135 = vst [vmem:[#allocation3 + $0x10] sm:$0xff] %v1065
        %1136 = vst [vmem:[#allocation3 + $0x38] sm:$0xff] %v1069
        %1137 = vst [vmem:[#allocation3 + $0x60] sm:$0xff] %v1073
        %1138 = vst [vmem:[#allocation3 + $0x88] sm:$0xff] %v1077
        %1139 = vst [vmem:[#allocation3 + $0xb0] sm:$0xff] %v1081
        %1140 = vst [vmem:[#allocation3 + $0xd8] sm:$0xff] %v1085
        %1141 = vst [vmem:[#allocation3 + $0x100] sm:$0xff] %v1089
        %1142 = vst [vmem:[#allocation3 + $0x128] sm:$0xff] %v1093
        %1143 = vst [vmem:[#allocation3 + $0x150] sm:$0xff] %v1097
        %1144 = vst [vmem:[#allocation3 + $0x178] sm:$0xff] %v1101
        %1145 = vst [vmem:[#allocation3 + $0x1a0] sm:$0xff] %v1105
        %1146 = vst [vmem:[#allocation3 + $0x1c8] sm:$0xff] %v1109
        %1147 = vst [vmem:[#allocation3 + $0x1f0] sm:$0xff] %v1113
        %1148 = vst [vmem:[#allocation3 + $0x218] sm:$0xff] %v1117
        %1149 = vst [vmem:[#allocation3 + $0x240] sm:$0xff] %v1121
        %1150 = vst [vmem:[#allocation3 + $0x268] sm:$0xff] %v1125
        %1151 = vst [vmem:[#allocation3 + $0x290] sm:$0xff] %v1129
        %1152 = vst [vmem:[#allocation3 + $0x2b8] sm:$0xff] %v1133
        %v1153 = vld [vmem:[#allocation2 + $0x24] sm:$0xff]
        %v1154 = vld [vmem:[#allocation2 + $0x2c] sm:$0xff]
        %v1155 = vld [vmem:[#allocation2 + $0x34] sm:$0xff]
        %v1156 = vld [vmem:[#allocation2 + $0x3c] sm:$0xff]
        %v1157 = vld [vmem:[#allocation2 + $0x44] sm:$0xff]
        %v1158 = vld [vmem:[#allocation2 + $0x4c] sm:$0xff]
        %v1159 = vld [vmem:[#allocation2 + $0x54] sm:$0xff]
        %v1160 = vld [vmem:[#allocation2 + $0x5c] sm:$0xff]
        %v1161 = vld [vmem:[#allocation2 + $0x64] sm:$0xff]
        %v1162 = vld [vmem:[#allocation2 + $0x6c] sm:$0xff]
        %v1163 = vld [vmem:[#allocation2 + $0x74] sm:$0xff]
        %v1164 = vld [vmem:[#allocation2 + $0x7c] sm:$0xff]
        %v1165 = vld [vmem:[#allocation2 + $0x84] sm:$0xff]
        %v1166 = vld [vmem:[#allocation2 + $0x8c] sm:$0xff]
        %v1167 = vld [vmem:[#allocation2 + $0x94] sm:$0xff]
        %v1168 = vld [vmem:[#allocation2 + $0x9c] sm:$0xff]
        %v1169 = vld [vmem:[#allocation2 + $0xa4] sm:$0xff]
        %v1170 = vld [vmem:[#allocation2 + $0xac] sm:$0xff]
        %v1171 = vld [vmem:[#allocation2 + $0xb4] sm:$0xff]
        %v1172 = vld [vmem:[#allocation2 + $0xbc] sm:$0xff]
        %v1173 = vld [vmem:[#allocation2 + $0xc4] sm:$0xff]
        %v1174 = vld [vmem:[#allocation2 + $0xcc] sm:$0xff]
        %v1175 = vld [vmem:[#allocation2 + $0xd4] sm:$0xff]
        %v1176 = vld [vmem:[#allocation2 + $0xdc] sm:$0xff]
        %v1177 = vld [vmem:[#allocation2 + $0xe4] sm:$0xff]
        %v1178 = vld [vmem:[#allocation2 + $0xec] sm:$0xff]
        %v1179 = vld [vmem:[#allocation2 + $0xf4] sm:$0xff]
        %v1180 = vld [vmem:[#allocation2 + $0xfc] sm:$0xff]
        %v1181 = vld [vmem:[#allocation2 + $0x104] sm:$0xff]
        %v1182 = vld [vmem:[#allocation2 + $0x10c] sm:$0xff]
        %v1183 = vld [vmem:[#allocation2 + $0x114] sm:$0xff]
        %v1184 = vld [vmem:[#allocation2 + $0x11c] sm:$0xff]
        %v1185 = vld [vmem:[#allocation2 + $0x124] sm:$0xff]
        %v1186 = vld [vmem:[#allocation2 + $0x12c] sm:$0xff]
        %v1187 = vld [vmem:[#allocation2 + $0x134] sm:$0xff]
        %v1188 = vld [vmem:[#allocation2 + $0x13c] sm:$0xff]
        %v1189 = vpack.c.bf16 %v1154, %v1153
        %v1190 = vpack.c.bf16 %v1156, %v1155
        %v1191 = vpack.c.bf16 %v1158, %v1157
        %v1192 = vpack.c.bf16 %v1160, %v1159
        %v1193 = vpack.c.bf16 %v1162, %v1161
        %v1194 = vpack.c.bf16 %v1164, %v1163
        %v1195 = vpack.c.bf16 %v1166, %v1165
        %v1196 = vpack.c.bf16 %v1168, %v1167
        %v1197 = vpack.c.bf16 %v1170, %v1169
        %v1198 = vpack.c.bf16 %v1172, %v1171
        %v1199 = vpack.c.bf16 %v1174, %v1173
        %v1200 = vpack.c.bf16 %v1176, %v1175
        %v1201 = vpack.c.bf16 %v1178, %v1177
        %v1202 = vpack.c.bf16 %v1180, %v1179
        %v1203 = vpack.c.bf16 %v1182, %v1181
        %v1204 = vpack.c.bf16 %v1184, %v1183
        %v1205 = vpack.c.bf16 %v1186, %v1185
        %v1206 = vpack.c.bf16 %v1188, %v1187
        %v1207 = vld [vmem:[#allocation2 + $0x25] sm:$0xff]
        %v1208 = vld [vmem:[#allocation2 + $0x2d] sm:$0xff]
        %v1209 = vld [vmem:[#allocation2 + $0x35] sm:$0xff]
        %v1210 = vld [vmem:[#allocation2 + $0x3d] sm:$0xff]
        %v1211 = vld [vmem:[#allocation2 + $0x45] sm:$0xff]
        %v1212 = vld [vmem:[#allocation2 + $0x4d] sm:$0xff]
        %v1213 = vld [vmem:[#allocation2 + $0x55] sm:$0xff]
        %v1214 = vld [vmem:[#allocation2 + $0x5d] sm:$0xff]
        %v1215 = vld [vmem:[#allocation2 + $0x65] sm:$0xff]
        %v1216 = vld [vmem:[#allocation2 + $0x6d] sm:$0xff]
        %v1217 = vld [vmem:[#allocation2 + $0x75] sm:$0xff]
        %v1218 = vld [vmem:[#allocation2 + $0x7d] sm:$0xff]
        %v1219 = vld [vmem:[#allocation2 + $0x85] sm:$0xff]
        %v1220 = vld [vmem:[#allocation2 + $0x8d] sm:$0xff]
        %v1221 = vld [vmem:[#allocation2 + $0x95] sm:$0xff]
        %v1222 = vld [vmem:[#allocation2 + $0x9d] sm:$0xff]
        %v1223 = vld [vmem:[#allocation2 + $0xa5] sm:$0xff]
        %v1224 = vld [vmem:[#allocation2 + $0xad] sm:$0xff]
        %v1225 = vld [vmem:[#allocation2 + $0xb5] sm:$0xff]
        %v1226 = vld [vmem:[#allocation2 + $0xbd] sm:$0xff]
        %v1227 = vld [vmem:[#allocation2 + $0xc5] sm:$0xff]
        %v1228 = vld [vmem:[#allocation2 + $0xcd] sm:$0xff]
        %v1229 = vld [vmem:[#allocation2 + $0xd5] sm:$0xff]
        %v1230 = vld [vmem:[#allocation2 + $0xdd] sm:$0xff]
        %v1231 = vld [vmem:[#allocation2 + $0xe5] sm:$0xff]
        %v1232 = vld [vmem:[#allocation2 + $0xed] sm:$0xff]
        %v1233 = vld [vmem:[#allocation2 + $0xf5] sm:$0xff]
        %v1234 = vld [vmem:[#allocation2 + $0xfd] sm:$0xff]
        %v1235 = vld [vmem:[#allocation2 + $0x105] sm:$0xff]
        %v1236 = vld [vmem:[#allocation2 + $0x10d] sm:$0xff]
        %v1237 = vld [vmem:[#allocation2 + $0x115] sm:$0xff]
        %v1238 = vld [vmem:[#allocation2 + $0x11d] sm:$0xff]
        %v1239 = vld [vmem:[#allocation2 + $0x125] sm:$0xff]
        %v1240 = vld [vmem:[#allocation2 + $0x12d] sm:$0xff]
        %v1241 = vld [vmem:[#allocation2 + $0x135] sm:$0xff]
        %v1242 = vld [vmem:[#allocation2 + $0x13d] sm:$0xff]
        %v1243 = vpack.c.bf16 %v1208, %v1207
        %v1244 = vpack.c.bf16 %v1210, %v1209
        %v1245 = vpack.c.bf16 %v1212, %v1211
        %v1246 = vpack.c.bf16 %v1214, %v1213
        %v1247 = vpack.c.bf16 %v1216, %v1215
        %v1248 = vpack.c.bf16 %v1218, %v1217
        %v1249 = vpack.c.bf16 %v1220, %v1219
        %v1250 = vpack.c.bf16 %v1222, %v1221
        %v1251 = vpack.c.bf16 %v1224, %v1223
        %v1252 = vpack.c.bf16 %v1226, %v1225
        %v1253 = vpack.c.bf16 %v1228, %v1227
        %v1254 = vpack.c.bf16 %v1230, %v1229
        %v1255 = vpack.c.bf16 %v1232, %v1231
        %v1256 = vpack.c.bf16 %v1234, %v1233
        %v1257 = vpack.c.bf16 %v1236, %v1235
        %v1258 = vpack.c.bf16 %v1238, %v1237
        %v1259 = vpack.c.bf16 %v1240, %v1239
        %v1260 = vpack.c.bf16 %v1242, %v1241
        %1279 = vrot.lane.b32.xlu0 %v1243, 64
        %v1280 = vpop.permute.xlu0 %1279
        %1281 = vrot.lane.b32.xlu0 %v1244, 64
        %v1282 = vpop.permute.xlu0 %1281
        %1283 = vrot.lane.b32.xlu0 %v1245, 64
        %v1284 = vpop.permute.xlu0 %1283
        %1285 = vrot.lane.b32.xlu0 %v1246, 64
        %v1286 = vpop.permute.xlu0 %1285
        %1287 = vrot.lane.b32.xlu0 %v1247, 64
        %v1288 = vpop.permute.xlu0 %1287
        %1289 = vrot.lane.b32.xlu0 %v1248, 64
        %v1290 = vpop.permute.xlu0 %1289
        %1291 = vrot.lane.b32.xlu0 %v1249, 64
        %v1292 = vpop.permute.xlu0 %1291
        %1293 = vrot.lane.b32.xlu0 %v1250, 64
        %v1294 = vpop.permute.xlu0 %1293
        %1295 = vrot.lane.b32.xlu0 %v1251, 64
        %v1296 = vpop.permute.xlu0 %1295
        %1297 = vrot.lane.b32.xlu0 %v1252, 64
        %v1298 = vpop.permute.xlu0 %1297
        %1299 = vrot.lane.b32.xlu0 %v1253, 64
        %v1300 = vpop.permute.xlu0 %1299
        %1301 = vrot.lane.b32.xlu0 %v1254, 64
        %v1302 = vpop.permute.xlu0 %1301
        %1303 = vrot.lane.b32.xlu0 %v1255, 64
        %v1304 = vpop.permute.xlu0 %1303
        %1305 = vrot.lane.b32.xlu0 %v1256, 64
        %v1306 = vpop.permute.xlu0 %1305
        %1307 = vrot.lane.b32.xlu0 %v1257, 64
        %v1308 = vpop.permute.xlu0 %1307
        %1309 = vrot.lane.b32.xlu0 %v1258, 64
        %v1310 = vpop.permute.xlu0 %1309
        %1311 = vrot.lane.b32.xlu0 %v1259, 64
        %v1312 = vpop.permute.xlu0 %1311
        %1313 = vrot.lane.b32.xlu0 %v1260, 64
        %v1314 = vpop.permute.xlu0 %1313
        %v1317 = vsel %vm332, %v1189, %v1280
        %v1321 = vsel %vm332, %v1190, %v1282
        %v1325 = vsel %vm332, %v1191, %v1284
        %v1329 = vsel %vm332, %v1192, %v1286
        %v1333 = vsel %vm332, %v1193, %v1288
        %v1337 = vsel %vm332, %v1194, %v1290
        %v1341 = vsel %vm332, %v1195, %v1292
        %v1345 = vsel %vm332, %v1196, %v1294
        %v1349 = vsel %vm332, %v1197, %v1296
        %v1353 = vsel %vm332, %v1198, %v1298
        %v1357 = vsel %vm332, %v1199, %v1300
        %v1361 = vsel %vm332, %v1200, %v1302
        %v1365 = vsel %vm332, %v1201, %v1304
        %v1369 = vsel %vm332, %v1202, %v1306
        %v1373 = vsel %vm332, %v1203, %v1308
        %v1377 = vsel %vm332, %v1204, %v1310
        %v1381 = vsel %vm332, %v1205, %v1312
        %v1385 = vsel %vm332, %v1206, %v1314
        %1387 = vst [vmem:[#allocation3 + $0x18] sm:$0xff] %v1317
        %1388 = vst [vmem:[#allocation3 + $0x40] sm:$0xff] %v1321
        %1389 = vst [vmem:[#allocation3 + $0x68] sm:$0xff] %v1325
        %1390 = vst [vmem:[#allocation3 + $0x90] sm:$0xff] %v1329
        %1391 = vst [vmem:[#allocation3 + $0xb8] sm:$0xff] %v1333
        %1392 = vst [vmem:[#allocation3 + $0xe0] sm:$0xff] %v1337
        %1393 = vst [vmem:[#allocation3 + $0x108] sm:$0xff] %v1341
        %1394 = vst [vmem:[#allocation3 + $0x130] sm:$0xff] %v1345
        %1395 = vst [vmem:[#allocation3 + $0x158] sm:$0xff] %v1349
        %1396 = vst [vmem:[#allocation3 + $0x180] sm:$0xff] %v1353
        %1397 = vst [vmem:[#allocation3 + $0x1a8] sm:$0xff] %v1357
        %1398 = vst [vmem:[#allocation3 + $0x1d0] sm:$0xff] %v1361
        %1399 = vst [vmem:[#allocation3 + $0x1f8] sm:$0xff] %v1365
        %1400 = vst [vmem:[#allocation3 + $0x220] sm:$0xff] %v1369
        %1401 = vst [vmem:[#allocation3 + $0x248] sm:$0xff] %v1373
        %1402 = vst [vmem:[#allocation3 + $0x270] sm:$0xff] %v1377
        %1403 = vst [vmem:[#allocation3 + $0x298] sm:$0xff] %v1381
        %1404 = vst [vmem:[#allocation3 + $0x2c0] sm:$0xff] %v1385
        %v1405 = vld [vmem:[#allocation2 + $0x26] sm:$0xff]
        %v1406 = vld [vmem:[#allocation2 + $0x2e] sm:$0xff]
        %v1407 = vld [vmem:[#allocation2 + $0x36] sm:$0xff]
        %v1408 = vld [vmem:[#allocation2 + $0x3e] sm:$0xff]
        %v1409 = vld [vmem:[#allocation2 + $0x46] sm:$0xff]
        %v1410 = vld [vmem:[#allocation2 + $0x4e] sm:$0xff]
        %v1411 = vld [vmem:[#allocation2 + $0x56] sm:$0xff]
        %v1412 = vld [vmem:[#allocation2 + $0x5e] sm:$0xff]
        %v1413 = vld [vmem:[#allocation2 + $0x66] sm:$0xff]
        %v1414 = vld [vmem:[#allocation2 + $0x6e] sm:$0xff]
        %v1415 = vld [vmem:[#allocation2 + $0x76] sm:$0xff]
        %v1416 = vld [vmem:[#allocation2 + $0x7e] sm:$0xff]
        %v1417 = vld [vmem:[#allocation2 + $0x86] sm:$0xff]
        %v1418 = vld [vmem:[#allocation2 + $0x8e] sm:$0xff]
        %v1419 = vld [vmem:[#allocation2 + $0x96] sm:$0xff]
        %v1420 = vld [vmem:[#allocation2 + $0x9e] sm:$0xff]
        %v1421 = vld [vmem:[#allocation2 + $0xa6] sm:$0xff]
        %v1422 = vld [vmem:[#allocation2 + $0xae] sm:$0xff]
        %v1423 = vld [vmem:[#allocation2 + $0xb6] sm:$0xff]
        %v1424 = vld [vmem:[#allocation2 + $0xbe] sm:$0xff]
        %v1425 = vld [vmem:[#allocation2 + $0xc6] sm:$0xff]
        %v1426 = vld [vmem:[#allocation2 + $0xce] sm:$0xff]
        %v1427 = vld [vmem:[#allocation2 + $0xd6] sm:$0xff]
        %v1428 = vld [vmem:[#allocation2 + $0xde] sm:$0xff]
        %v1429 = vld [vmem:[#allocation2 + $0xe6] sm:$0xff]
        %v1430 = vld [vmem:[#allocation2 + $0xee] sm:$0xff]
        %v1431 = vld [vmem:[#allocation2 + $0xf6] sm:$0xff]
        %v1432 = vld [vmem:[#allocation2 + $0xfe] sm:$0xff]
        %v1433 = vld [vmem:[#allocation2 + $0x106] sm:$0xff]
        %v1434 = vld [vmem:[#allocation2 + $0x10e] sm:$0xff]
        %v1435 = vld [vmem:[#allocation2 + $0x116] sm:$0xff]
        %v1436 = vld [vmem:[#allocation2 + $0x11e] sm:$0xff]
        %v1437 = vld [vmem:[#allocation2 + $0x126] sm:$0xff]
        %v1438 = vld [vmem:[#allocation2 + $0x12e] sm:$0xff]
        %v1439 = vld [vmem:[#allocation2 + $0x136] sm:$0xff]
        %v1440 = vld [vmem:[#allocation2 + $0x13e] sm:$0xff]
        %v1441 = vpack.c.bf16 %v1406, %v1405
        %v1442 = vpack.c.bf16 %v1408, %v1407
        %v1443 = vpack.c.bf16 %v1410, %v1409
        %v1444 = vpack.c.bf16 %v1412, %v1411
        %v1445 = vpack.c.bf16 %v1414, %v1413
        %v1446 = vpack.c.bf16 %v1416, %v1415
        %v1447 = vpack.c.bf16 %v1418, %v1417
        %v1448 = vpack.c.bf16 %v1420, %v1419
        %v1449 = vpack.c.bf16 %v1422, %v1421
        %v1450 = vpack.c.bf16 %v1424, %v1423
        %v1451 = vpack.c.bf16 %v1426, %v1425
        %v1452 = vpack.c.bf16 %v1428, %v1427
        %v1453 = vpack.c.bf16 %v1430, %v1429
        %v1454 = vpack.c.bf16 %v1432, %v1431
        %v1455 = vpack.c.bf16 %v1434, %v1433
        %v1456 = vpack.c.bf16 %v1436, %v1435
        %v1457 = vpack.c.bf16 %v1438, %v1437
        %v1458 = vpack.c.bf16 %v1440, %v1439
        %1459 = vst.msk [vmem:[#allocation3 + $0x20] sm:$0xff] %vm332, %v1441
        %1460 = vst.msk [vmem:[#allocation3 + $0x48] sm:$0xff] %vm332, %v1442
        %1461 = vst.msk [vmem:[#allocation3 + $0x70] sm:$0xff] %vm332, %v1443
        %1462 = vst.msk [vmem:[#allocation3 + $0x98] sm:$0xff] %vm332, %v1444
        %1463 = vst.msk [vmem:[#allocation3 + $0xc0] sm:$0xff] %vm332, %v1445
        %1464 = vst.msk [vmem:[#allocation3 + $0xe8] sm:$0xff] %vm332, %v1446
        %1465 = vst.msk [vmem:[#allocation3 + $0x110] sm:$0xff] %vm332, %v1447
        %1466 = vst.msk [vmem:[#allocation3 + $0x138] sm:$0xff] %vm332, %v1448
        %1467 = vst.msk [vmem:[#allocation3 + $0x160] sm:$0xff] %vm332, %v1449
        %1468 = vst.msk [vmem:[#allocation3 + $0x188] sm:$0xff] %vm332, %v1450
        %1469 = vst.msk [vmem:[#allocation3 + $0x1b0] sm:$0xff] %vm332, %v1451
        %1470 = vst.msk [vmem:[#allocation3 + $0x1d8] sm:$0xff] %vm332, %v1452
        %1471 = vst.msk [vmem:[#allocation3 + $0x200] sm:$0xff] %vm332, %v1453
        %1472 = vst.msk [vmem:[#allocation3 + $0x228] sm:$0xff] %vm332, %v1454
        %1473 = vst.msk [vmem:[#allocation3 + $0x250] sm:$0xff] %vm332, %v1455
        %1474 = vst.msk [vmem:[#allocation3 + $0x278] sm:$0xff] %vm332, %v1456
        %1475 = vst.msk [vmem:[#allocation3 + $0x2a0] sm:$0xff] %vm332, %v1457
        %1476 = vst.msk [vmem:[#allocation3 + $0x2c8] sm:$0xff] %vm332, %v1458
        %v1477 = vld [vmem:[#allocation3] sm:$0xff]
        %v1478 = vld [vmem:[#allocation3 + $0x8] sm:$0xff]
        %v1479 = vld [vmem:[#allocation3 + $0x10] sm:$0xff]
        %v1480 = vld [vmem:[#allocation3 + $0x18] sm:$0xff]
        %v1481 = vld [vmem:[#allocation3 + $0x20] sm:$0xff]
        %v1482 = vld [vmem:[#allocation3 + $0x28] sm:$0xff]
        %v1483 = vld [vmem:[#allocation3 + $0x30] sm:$0xff]
        %v1484 = vld [vmem:[#allocation3 + $0x38] sm:$0xff]
        %v1485 = vld [vmem:[#allocation3 + $0x40] sm:$0xff]
        %v1486 = vld [vmem:[#allocation3 + $0x48] sm:$0xff]
        %v1487 = vld [vmem:[#allocation3 + $0x50] sm:$0xff]
        %v1488 = vld [vmem:[#allocation3 + $0x58] sm:$0xff]
        %v1489 = vld [vmem:[#allocation3 + $0x60] sm:$0xff]
        %v1490 = vld [vmem:[#allocation3 + $0x68] sm:$0xff]
        %v1491 = vld [vmem:[#allocation3 + $0x70] sm:$0xff]
        %v1492 = vld [vmem:[#allocation3 + $0x78] sm:$0xff]
        %v1493 = vld [vmem:[#allocation3 + $0x80] sm:$0xff]
        %v1494 = vld [vmem:[#allocation3 + $0x88] sm:$0xff]
        %v1495 = vld [vmem:[#allocation3 + $0x90] sm:$0xff]
        %v1496 = vld [vmem:[#allocation3 + $0x98] sm:$0xff]
        %v1497 = vld [vmem:[#allocation3 + $0xa0] sm:$0xff]
        %v1498 = vld [vmem:[#allocation3 + $0xa8] sm:$0xff]
        %v1499 = vld [vmem:[#allocation3 + $0xb0] sm:$0xff]
        %v1500 = vld [vmem:[#allocation3 + $0xb8] sm:$0xff]
        %v1501 = vld [vmem:[#allocation3 + $0xc0] sm:$0xff]
        %v1502 = vld [vmem:[#allocation3 + $0xc8] sm:$0xff]
        %v1503 = vld [vmem:[#allocation3 + $0xd0] sm:$0xff]
        %v1504 = vld [vmem:[#allocation3 + $0xd8] sm:$0xff]
        %v1505 = vld [vmem:[#allocation3 + $0xe0] sm:$0xff]
        %v1506 = vld [vmem:[#allocation3 + $0xe8] sm:$0xff]
        %v1507 = vld [vmem:[#allocation3 + $0xf0] sm:$0xff]
        %v1508 = vld [vmem:[#allocation3 + $0xf8] sm:$0xff]
        %v1509 = vld [vmem:[#allocation3 + $0x100] sm:$0xff]
        %v1510 = vld [vmem:[#allocation3 + $0x108] sm:$0xff]
        %v1511 = vld [vmem:[#allocation3 + $0x110] sm:$0xff]
        %v1512 = vld [vmem:[#allocation3 + $0x118] sm:$0xff]
        %v1513 = vld [vmem:[#allocation3 + $0x120] sm:$0xff]
        %v1514 = vld [vmem:[#allocation3 + $0x128] sm:$0xff]
        %v1515 = vld [vmem:[#allocation3 + $0x130] sm:$0xff]
        %v1516 = vld [vmem:[#allocation3 + $0x138] sm:$0xff]
        %v1517 = vld [vmem:[#allocation3 + $0x140] sm:$0xff]
        %v1518 = vld [vmem:[#allocation3 + $0x148] sm:$0xff]
        %v1519 = vld [vmem:[#allocation3 + $0x150] sm:$0xff]
        %v1520 = vld [vmem:[#allocation3 + $0x158] sm:$0xff]
        %v1521 = vld [vmem:[#allocation3 + $0x160] sm:$0xff]
        %v1522 = vld [vmem:[#allocation3 + $0x168] sm:$0xff]
        %v1523 = vld [vmem:[#allocation3 + $0x170] sm:$0xff]
        %v1524 = vld [vmem:[#allocation3 + $0x178] sm:$0xff]
        %v1525 = vld [vmem:[#allocation3 + $0x180] sm:$0xff]
        %v1526 = vld [vmem:[#allocation3 + $0x188] sm:$0xff]
        %v1527 = vld [vmem:[#allocation3 + $0x190] sm:$0xff]
        %v1528 = vld [vmem:[#allocation3 + $0x198] sm:$0xff]
        %v1529 = vld [vmem:[#allocation3 + $0x1a0] sm:$0xff]
        %v1530 = vld [vmem:[#allocation3 + $0x1a8] sm:$0xff]
        %v1531 = vld [vmem:[#allocation3 + $0x1b0] sm:$0xff]
        %v1532 = vld [vmem:[#allocation3 + $0x1b8] sm:$0xff]
        %v1533 = vld [vmem:[#allocation3 + $0x1c0] sm:$0xff]
        %v1534 = vld [vmem:[#allocation3 + $0x1c8] sm:$0xff]
        %v1535 = vld [vmem:[#allocation3 + $0x1d0] sm:$0xff]
        %v1536 = vld [vmem:[#allocation3 + $0x1d8] sm:$0xff]
        %v1537 = vld [vmem:[#allocation3 + $0x1e0] sm:$0xff]
        %v1538 = vld [vmem:[#allocation3 + $0x1e8] sm:$0xff]
        %v1539 = vld [vmem:[#allocation3 + $0x1f0] sm:$0xff]
        %v1540 = vld [vmem:[#allocation3 + $0x1f8] sm:$0xff]
        %v1541 = vld [vmem:[#allocation3 + $0x200] sm:$0xff]
        %v1542 = vld [vmem:[#allocation3 + $0x208] sm:$0xff]
        %v1543 = vld [vmem:[#allocation3 + $0x210] sm:$0xff]
        %v1544 = vld [vmem:[#allocation3 + $0x218] sm:$0xff]
        %v1545 = vld [vmem:[#allocation3 + $0x220] sm:$0xff]
        %v1546 = vld [vmem:[#allocation3 + $0x228] sm:$0xff]
        %v1547 = vld [vmem:[#allocation3 + $0x230] sm:$0xff]
        %v1548 = vld [vmem:[#allocation3 + $0x238] sm:$0xff]
        %v1549 = vld [vmem:[#allocation3 + $0x240] sm:$0xff]
        %v1550 = vld [vmem:[#allocation3 + $0x248] sm:$0xff]
        %v1551 = vld [vmem:[#allocation3 + $0x250] sm:$0xff]
        %v1552 = vld [vmem:[#allocation3 + $0x258] sm:$0xff]
        %v1553 = vld [vmem:[#allocation3 + $0x260] sm:$0xff]
        %v1554 = vld [vmem:[#allocation3 + $0x268] sm:$0xff]
        %v1555 = vld [vmem:[#allocation3 + $0x270] sm:$0xff]
        %v1556 = vld [vmem:[#allocation3 + $0x278] sm:$0xff]
        %v1557 = vld [vmem:[#allocation3 + $0x280] sm:$0xff]
        %v1558 = vld [vmem:[#allocation3 + $0x288] sm:$0xff]
        %v1559 = vld [vmem:[#allocation3 + $0x290] sm:$0xff]
        %v1560 = vld [vmem:[#allocation3 + $0x298] sm:$0xff]
        %v1561 = vld [vmem:[#allocation3 + $0x2a0] sm:$0xff]
        %v1562 = vld [vmem:[#allocation3 + $0x2a8] sm:$0xff]
        %v1563 = vld [vmem:[#allocation3 + $0x2b0] sm:$0xff]
        %v1564 = vld [vmem:[#allocation3 + $0x2b8] sm:$0xff]
        %v1565 = vld [vmem:[#allocation3 + $0x2c0] sm:$0xff]
        %v1566 = vld [vmem:[#allocation3 + $0x2c8] sm:$0xff]
        %v1567 = vld [vmem:[%s1] sm:$0xf]
        %v1568 = vld [vmem:[%s1 + $0x4] sm:$0xf]
        %v1569 = vld [vmem:[%s1 + $0x8] sm:$0xf]
        %v1570 = vld [vmem:[%s1 + $0xc] sm:$0xf]
        %v1571 = vld [vmem:[%s1 + $0x10] sm:$0xf]
        %v1572 = vld [vmem:[%s1 + $0x14] sm:$0xf]
        %v1573 = vld [vmem:[%s1 + $0x18] sm:$0xf]
        %v1574 = vld [vmem:[%s1 + $0x1c] sm:$0xf]
        %v1575 = vld [vmem:[%s1 + $0x20] sm:$0xf]
        %v1576 = vld [vmem:[%s1 + $0x24] sm:$0xf]
        %v1577 = vld [vmem:[%s1 + $0x28] sm:$0xf]
        %v1578 = vld [vmem:[%s1 + $0x2c] sm:$0xf]
        %v1579 = vld [vmem:[%s1 + $0x30] sm:$0xf]
        %v1580 = vld [vmem:[%s1 + $0x34] sm:$0xf]
        %v1581 = vld [vmem:[%s1 + $0x38] sm:$0xf]
        %v1582 = vld [vmem:[%s1 + $0x3c] sm:$0xf]
        %v1583 = vld [vmem:[%s1 + $0x40] sm:$0xf]
        %v1584 = vld [vmem:[%s1 + $0x44] sm:$0xf]
        %v1585 = vld [vmem:[%s1 + $0x48] sm:$0xf]
        %v1586 = vld [vmem:[%s1 + $0x4c] sm:$0xf]
        %v1587 = vld [vmem:[%s1 + $0x50] sm:$0xf]
        %v1588 = vld [vmem:[%s1 + $0x54] sm:$0xf]
        %v1589 = vld [vmem:[%s1 + $0x58] sm:$0xf]
        %v1590 = vld [vmem:[%s1 + $0x5c] sm:$0xf]
        %v1591 = vld [vmem:[%s1 + $0x60] sm:$0xf]
        %v1592 = vld [vmem:[%s1 + $0x64] sm:$0xf]
        %v1593 = vld [vmem:[%s1 + $0x68] sm:$0xf]
        %v1594 = vld [vmem:[%s1 + $0x6c] sm:$0xf]
        %v1595 = vld [vmem:[%s1 + $0x70] sm:$0xf]
        %v1596 = vld [vmem:[%s1 + $0x74] sm:$0xf]
        %v1597 = vld [vmem:[%s1 + $0x78] sm:$0xf]
        %v1598 = vld [vmem:[%s1 + $0x7c] sm:$0xf]
        %v1599 = vld [vmem:[%s1 + $0x80] sm:$0xf]
        %v1600 = vld [vmem:[%s1 + $0x84] sm:$0xf]
        %v1601 = vld [vmem:[%s1 + $0x88] sm:$0xf]
        %v1602 = vld [vmem:[%s1 + $0x8c] sm:$0xf]
        %v1603 = vld [vmem:[%s1 + $0x90] sm:$0xf]
        %v1604 = vld [vmem:[%s1 + $0x94] sm:$0xf]
        %v1605 = vld [vmem:[%s1 + $0x98] sm:$0xf]
        %v1606 = vld [vmem:[%s1 + $0x9c] sm:$0xf]
        %v1607 = vld [vmem:[%s1 + $0xa0] sm:$0xf]
        %v1608 = vld [vmem:[%s1 + $0xa4] sm:$0xf]
        %v1609 = vld [vmem:[%s1 + $0xa8] sm:$0xf]
        %v1610 = vld [vmem:[%s1 + $0xac] sm:$0xf]
        %v1611 = vld [vmem:[%s1 + $0xb0] sm:$0xf]
        %v1612 = vld [vmem:[%s1 + $0xb4] sm:$0xf]
        %v1613 = vld [vmem:[%s1 + $0xb8] sm:$0xf]
        %v1614 = vld [vmem:[%s1 + $0xbc] sm:$0xf]
        %v1615 = vld [vmem:[%s1 + $0xc0] sm:$0xf]
        %v1616 = vld [vmem:[%s1 + $0xc4] sm:$0xf]
        %v1617 = vld [vmem:[%s1 + $0xc8] sm:$0xf]
        %v1618 = vld [vmem:[%s1 + $0xcc] sm:$0xf]
        %v1619 = vld [vmem:[%s1 + $0xd0] sm:$0xf]
        %v1620 = vld [vmem:[%s1 + $0xd4] sm:$0xf]
        %v1621 = vld [vmem:[%s1 + $0xd8] sm:$0xf]
        %v1622 = vld [vmem:[%s1 + $0xdc] sm:$0xf]
        %v1623 = vld [vmem:[%s1 + $0xe0] sm:$0xf]
        %v1624 = vld [vmem:[%s1 + $0xe4] sm:$0xf]
        %v1625 = vld [vmem:[%s1 + $0xe8] sm:$0xf]
        %v1626 = vld [vmem:[%s1 + $0xec] sm:$0xf]
        %v1627 = vld [vmem:[%s1 + $0xf0] sm:$0xf]
        %v1628 = vld [vmem:[%s1 + $0xf4] sm:$0xf]
        %v1629 = vld [vmem:[%s1 + $0xf8] sm:$0xf]
        %v1630 = vld [vmem:[%s1 + $0xfc] sm:$0xf]
        %v1631 = vld [vmem:[%s1 + $0x100] sm:$0xf]
        %v1632 = vld [vmem:[%s1 + $0x104] sm:$0xf]
        %v1633 = vld [vmem:[%s1 + $0x108] sm:$0xf]
        %v1634 = vld [vmem:[%s1 + $0x10c] sm:$0xf]
        %v1635 = vld [vmem:[%s1 + $0x110] sm:$0xf]
        %v1636 = vld [vmem:[%s1 + $0x114] sm:$0xf]
        %v1637 = vld [vmem:[%s1 + $0x118] sm:$0xf]
        %v1638 = vld [vmem:[%s1 + $0x11c] sm:$0xf]
        %v1639 = vld [vmem:[%s2] sm:$0x1]
        %v1641 = vlaneseq
        %v1642 = vshrl.u32 %v1641, 7
        %v1643 = vsub.s32 0, %v1642
        %v1644 = vrot.slane %v1639, %v1643
        %v1718 = vunpack.c.l.b16 %v1567
        %v1719 = vunpack.c.l.b16 %v1568
        %v1720 = vunpack.c.l.b16 %v1569
        %v1721 = vunpack.c.l.b16 %v1570
        %v1722 = vunpack.c.l.b16 %v1571
        %v1723 = vunpack.c.l.b16 %v1572
        %v1724 = vunpack.c.l.b16 %v1573
        %v1725 = vunpack.c.l.b16 %v1574
        %v1726 = vunpack.c.l.b16 %v1575
        %v1727 = vunpack.c.l.b16 %v1576
        %v1728 = vunpack.c.l.b16 %v1577
        %v1729 = vunpack.c.l.b16 %v1578
        %v1730 = vunpack.c.l.b16 %v1579
        %v1731 = vunpack.c.l.b16 %v1580
        %v1732 = vunpack.c.l.b16 %v1581
        %v1733 = vunpack.c.l.b16 %v1582
        %v1734 = vunpack.c.l.b16 %v1583
        %v1735 = vunpack.c.l.b16 %v1584
        %v1736 = vunpack.c.l.b16 %v1585
        %v1737 = vunpack.c.l.b16 %v1586
        %v1738 = vunpack.c.l.b16 %v1587
        %v1739 = vunpack.c.l.b16 %v1588
        %v1740 = vunpack.c.l.b16 %v1589
        %v1741 = vunpack.c.l.b16 %v1590
        %v1742 = vunpack.c.l.b16 %v1591
        %v1743 = vunpack.c.l.b16 %v1592
        %v1744 = vunpack.c.l.b16 %v1593
        %v1745 = vunpack.c.l.b16 %v1594
        %v1746 = vunpack.c.l.b16 %v1595
        %v1747 = vunpack.c.l.b16 %v1596
        %v1748 = vunpack.c.l.b16 %v1597
        %v1749 = vunpack.c.l.b16 %v1598
        %v1750 = vunpack.c.l.b16 %v1599
        %v1751 = vunpack.c.l.b16 %v1600
        %v1752 = vunpack.c.l.b16 %v1601
        %v1753 = vunpack.c.l.b16 %v1602
        %v1754 = vunpack.c.l.b16 %v1603
        %v1755 = vunpack.c.l.b16 %v1604
        %v1756 = vunpack.c.l.b16 %v1605
        %v1757 = vunpack.c.l.b16 %v1606
        %v1758 = vunpack.c.l.b16 %v1607
        %v1759 = vunpack.c.l.b16 %v1608
        %v1760 = vunpack.c.l.b16 %v1609
        %v1761 = vunpack.c.l.b16 %v1610
        %v1762 = vunpack.c.l.b16 %v1611
        %v1763 = vunpack.c.l.b16 %v1612
        %v1764 = vunpack.c.l.b16 %v1613
        %v1765 = vunpack.c.l.b16 %v1614
        %v1766 = vunpack.c.l.b16 %v1615
        %v1767 = vunpack.c.l.b16 %v1616
        %v1768 = vunpack.c.l.b16 %v1617
        %v1769 = vunpack.c.l.b16 %v1618
        %v1770 = vunpack.c.l.b16 %v1619
        %v1771 = vunpack.c.l.b16 %v1620
        %v1772 = vunpack.c.l.b16 %v1621
        %v1773 = vunpack.c.l.b16 %v1622
        %v1774 = vunpack.c.l.b16 %v1623
        %v1775 = vunpack.c.l.b16 %v1624
        %v1776 = vunpack.c.l.b16 %v1625
        %v1777 = vunpack.c.l.b16 %v1626
        %v1778 = vunpack.c.l.b16 %v1627
        %v1779 = vunpack.c.l.b16 %v1628
        %v1780 = vunpack.c.l.b16 %v1629
        %v1781 = vunpack.c.l.b16 %v1630
        %v1782 = vunpack.c.l.b16 %v1631
        %v1783 = vunpack.c.l.b16 %v1632
        %v1784 = vunpack.c.l.b16 %v1633
        %v1785 = vunpack.c.l.b16 %v1634
        %v1786 = vunpack.c.l.b16 %v1635
        %v1787 = vunpack.c.l.b16 %v1636
        %v1788 = vunpack.c.l.b16 %v1637
        %v1789 = vunpack.c.l.b16 %v1638
        %v1790 = vpack.c.b16 %v1719, %v1718
        %v1791 = vpack.c.b16 %v1721, %v1720
        %v1792 = vpack.c.b16 %v1723, %v1722
        %v1793 = vpack.c.b16 %v1725, %v1724
        %v1794 = vpack.c.b16 %v1727, %v1726
        %v1795 = vpack.c.b16 %v1729, %v1728
        %v1796 = vpack.c.b16 %v1731, %v1730
        %v1797 = vpack.c.b16 %v1733, %v1732
        %v1798 = vpack.c.b16 %v1735, %v1734
        %v1799 = vpack.c.b16 %v1737, %v1736
        %v1800 = vpack.c.b16 %v1739, %v1738
        %v1801 = vpack.c.b16 %v1741, %v1740
        %v1802 = vpack.c.b16 %v1743, %v1742
        %v1803 = vpack.c.b16 %v1745, %v1744
        %v1804 = vpack.c.b16 %v1747, %v1746
        %v1805 = vpack.c.b16 %v1749, %v1748
        %v1806 = vpack.c.b16 %v1751, %v1750
        %v1807 = vpack.c.b16 %v1753, %v1752
        %v1808 = vpack.c.b16 %v1755, %v1754
        %v1809 = vpack.c.b16 %v1757, %v1756
        %v1810 = vpack.c.b16 %v1759, %v1758
        %v1811 = vpack.c.b16 %v1761, %v1760
        %v1812 = vpack.c.b16 %v1763, %v1762
        %v1813 = vpack.c.b16 %v1765, %v1764
        %v1814 = vpack.c.b16 %v1767, %v1766
        %v1815 = vpack.c.b16 %v1769, %v1768
        %v1816 = vpack.c.b16 %v1771, %v1770
        %v1817 = vpack.c.b16 %v1773, %v1772
        %v1818 = vpack.c.b16 %v1775, %v1774
        %v1819 = vpack.c.b16 %v1777, %v1776
        %v1820 = vpack.c.b16 %v1779, %v1778
        %v1821 = vpack.c.b16 %v1781, %v1780
        %v1822 = vpack.c.b16 %v1783, %v1782
        %v1823 = vpack.c.b16 %v1785, %v1784
        %v1824 = vpack.c.b16 %v1787, %v1786
        %v1825 = vpack.c.b16 %v1789, %v1788
        %v1863 = vsel %vm332, %v1481, 0
        %v1866 = vsel %vm332, %v1486, 0
        %v1869 = vsel %vm332, %v1491, 0
        %v1872 = vsel %vm332, %v1496, 0
        %v1875 = vsel %vm332, %v1501, 0
        %v1878 = vsel %vm332, %v1506, 0
        %v1881 = vsel %vm332, %v1511, 0
        %v1884 = vsel %vm332, %v1516, 0
        %v1887 = vsel %vm332, %v1521, 0
        %v1890 = vsel %vm332, %v1526, 0
        %v1893 = vsel %vm332, %v1531, 0
        %v1896 = vsel %vm332, %v1536, 0
        %v1899 = vsel %vm332, %v1541, 0
        %v1902 = vsel %vm332, %v1546, 0
        %v1905 = vsel %vm332, %v1551, 0
        %v1908 = vsel %vm332, %v1556, 0
        %v1911 = vsel %vm332, %v1561, 0
        %v1914 = vsel %vm332, %v1566, 0
        %1916 = vmatprep.subr.bf16.mxu0 0
        %1917 = vmatpush1.bf16.msra.mxu0 %v1790
        %1918 = vmatprep.subr.bf16.mxu0 0
        %1919 = vmatpush1.bf16.msra.mxu0 %v1791
        %1920 = vmatprep.subr.bf16.mxu0 0
        %1921 = vmatpush1.bf16.msra.mxu0 %v1792
        %1922 = vmatprep.subr.bf16.mxu0 0
        %1923 = vmatpush1.bf16.msra.mxu0 %v1793
        %1924 = vmatprep.subr.bf16.mxu0 0
        %1925 = vmatpush1.bf16.msra.mxu0 %v1794
        %1926 = vmatprep.subr.bf16.mxu0 0
        %1927 = vmatpush1.bf16.msra.mxu0 %v1795
        %1928 = vmatprep.subr.bf16.mxu0 0
        %1929 = vmatpush1.bf16.msra.mxu0 %v1796
        %1930 = vmatprep.subr.bf16.mxu0 0
        %1931 = vmatpush1.bf16.msra.mxu0 %v1797
        %1932 = vmatprep.subr.bf16.mxu0 0
        %1933 = vmatpush1.bf16.msra.mxu0 %v1798
        %1934 = vmatprep.subr.bf16.mxu0 0
        %1935 = vmatpush1.bf16.msra.mxu0 %v1799
        %1936 = vmatprep.subr.bf16.mxu0 0
        %1937 = vmatpush1.bf16.msra.mxu0 %v1800
        %1938 = vmatprep.subr.bf16.mxu0 0
        %1939 = vmatpush1.bf16.msra.mxu0 %v1801
        %1940 = vmatprep.subr.bf16.mxu0 0
        %1941 = vmatpush1.bf16.msra.mxu0 %v1802
        %1942 = vmatprep.subr.bf16.mxu0 0
        %1943 = vmatpush1.bf16.msra.mxu0 %v1803
        %1944 = vmatprep.subr.bf16.mxu0 0
        %1945 = vmatpush1.bf16.msra.mxu0 %v1804
        %1946 = vmatprep.subr.bf16.mxu0 0
        %1947 = vmatpush1.bf16.msra.mxu0 %v1805
        %1948 = vmatprep.mubr.bf16.mxu0 %v1478
        %1949 = vmatmul.mubr.bf16.gmra.mrb[0].mxu0 %v1477
        %v1950 = vpop.f32.mrb[0].mxu0
        %v1951 = vadd.f32 %v1644, %v1950
        %v1952 = vpop.f32.mrb[0].mxu0
        %v1953 = vpop.f32.mrb[0].mxu0
        %v1954 = vadd.f32 %v1644, %v1953
        %v1955 = vpop.f32.mrb[0].mxu0
        %1956 = vmatprep.mubr.bf16.mxu0 %v1483
        %1957 = vmatmul.mubr.bf16.gmra.mrb[0].mxu0 %v1482
        %v1958 = vpop.f32.mrb[0].mxu0
        %v1959 = vadd.f32 %v1644, %v1958
        %v1960 = vpop.f32.mrb[0].mxu0
        %v1961 = vpop.f32.mrb[0].mxu0
        %v1962 = vadd.f32 %v1644, %v1961
        %v1963 = vpop.f32.mrb[0].mxu0
        %1964 = vmatprep.mubr.bf16.mxu0 %v1488
        %1965 = vmatmul.mubr.bf16.gmra.mrb[0].mxu0 %v1487
        %v1966 = vpop.f32.mrb[0].mxu0
        %v1967 = vadd.f32 %v1644, %v1966
        %v1968 = vpop.f32.mrb[0].mxu0
        %v1969 = vpop.f32.mrb[0].mxu0
        %v1970 = vadd.f32 %v1644, %v1969
        %v1971 = vpop.f32.mrb[0].mxu0
        %1972 = vmatprep.mubr.bf16.mxu0 %v1493
        %1973 = vmatmul.mubr.bf16.gmra.mrb[0].mxu0 %v1492
        %v1974 = vpop.f32.mrb[0].mxu0
        %v1975 = vadd.f32 %v1644, %v1974
        %v1976 = vpop.f32.mrb[0].mxu0
        %v1977 = vpop.f32.mrb[0].mxu0
        %v1978 = vadd.f32 %v1644, %v1977
        %v1979 = vpop.f32.mrb[0].mxu0
        %1980 = vmatprep.mubr.bf16.mxu0 %v1498
        %1981 = vmatmul.mubr.bf16.gmra.mrb[0].mxu0 %v1497
        %v1982 = vpop.f32.mrb[0].mxu0
        %v1983 = vadd.f32 %v1644, %v1982
        %v1984 = vpop.f32.mrb[0].mxu0
        %v1985 = vpop.f32.mrb[0].mxu0
        %v1986 = vadd.f32 %v1644, %v1985
        %v1987 = vpop.f32.mrb[0].mxu0
        %1988 = vmatprep.mubr.bf16.mxu0 %v1503
        %1989 = vmatmul.mubr.bf16.gmra.mrb[0].mxu0 %v1502
        %v1990 = vpop.f32.mrb[0].mxu0
        %v1991 = vadd.f32 %v1644, %v1990
        %v1992 = vpop.f32.mrb[0].mxu0
        %v1993 = vpop.f32.mrb[0].mxu0
        %v1994 = vadd.f32 %v1644, %v1993
        %v1995 = vpop.f32.mrb[0].mxu0
        %1996 = vmatprep.mubr.bf16.mxu0 %v1508
        %1997 = vmatmul.mubr.bf16.gmra.mrb[0].mxu0 %v1507
        %v1998 = vpop.f32.mrb[0].mxu0
        %v1999 = vadd.f32 %v1644, %v1998
        %v2000 = vpop.f32.mrb[0].mxu0
        %v2001 = vpop.f32.mrb[0].mxu0
        %v2002 = vadd.f32 %v1644, %v2001
        %v2003 = vpop.f32.mrb[0].mxu0
        %2004 = vmatprep.mubr.bf16.mxu0 %v1513
        %2005 = vmatmul.mubr.bf16.gmra.mrb[0].mxu0 %v1512
        %v2006 = vpop.f32.mrb[0].mxu0
        %v2007 = vadd.f32 %v1644, %v2006
        %v2008 = vpop.f32.mrb[0].mxu0
        %v2009 = vpop.f32.mrb[0].mxu0
        %v2010 = vadd.f32 %v1644, %v2009
        %v2011 = vpop.f32.mrb[0].mxu0
        %2012 = vmatprep.mubr.bf16.mxu0 %v1518
        %2013 = vmatmul.mubr.bf16.gmra.mrb[0].mxu0 %v1517
        %v2014 = vpop.f32.mrb[0].mxu0
        %v2015 = vadd.f32 %v1644, %v2014
        %v2016 = vpop.f32.mrb[0].mxu0
        %v2017 = vpop.f32.mrb[0].mxu0
        %v2018 = vadd.f32 %v1644, %v2017
        %v2019 = vpop.f32.mrb[0].mxu0
        %2020 = vmatprep.mubr.bf16.mxu0 %v1523
        %2021 = vmatmul.mubr.bf16.gmra.mrb[0].mxu0 %v1522
        %v2022 = vpop.f32.mrb[0].mxu0
        %v2023 = vadd.f32 %v1644, %v2022
        %v2024 = vpop.f32.mrb[0].mxu0
        %v2025 = vpop.f32.mrb[0].mxu0
        %v2026 = vadd.f32 %v1644, %v2025
        %v2027 = vpop.f32.mrb[0].mxu0
        %2028 = vmatprep.mubr.bf16.mxu0 %v1528
        %2029 = vmatmul.mubr.bf16.gmra.mrb[0].mxu0 %v1527
        %v2030 = vpop.f32.mrb[0].mxu0
        %v2031 = vadd.f32 %v1644, %v2030
        %v2032 = vpop.f32.mrb[0].mxu0
        %v2033 = vpop.f32.mrb[0].mxu0
        %v2034 = vadd.f32 %v1644, %v2033
        %v2035 = vpop.f32.mrb[0].mxu0
        %2036 = vmatprep.mubr.bf16.mxu0 %v1533
        %2037 = vmatmul.mubr.bf16.gmra.mrb[0].mxu0 %v1532
        %v2038 = vpop.f32.mrb[0].mxu0
        %v2039 = vadd.f32 %v1644, %v2038
        %v2040 = vpop.f32.mrb[0].mxu0
        %v2041 = vpop.f32.mrb[0].mxu0
        %v2042 = vadd.f32 %v1644, %v2041
        %v2043 = vpop.f32.mrb[0].mxu0
        %2044 = vmatprep.mubr.bf16.mxu0 %v1538
        %2045 = vmatmul.mubr.bf16.gmra.mrb[0].mxu0 %v1537
        %v2046 = vpop.f32.mrb[0].mxu0
        %v2047 = vadd.f32 %v1644, %v2046
        %v2048 = vpop.f32.mrb[0].mxu0
        %v2049 = vpop.f32.mrb[0].mxu0
        %v2050 = vadd.f32 %v1644, %v2049
        %v2051 = vpop.f32.mrb[0].mxu0
        %2052 = vmatprep.mubr.bf16.mxu0 %v1543
        %2053 = vmatmul.mubr.bf16.gmra.mrb[0].mxu0 %v1542
        %v2054 = vpop.f32.mrb[0].mxu0
        %v2055 = vadd.f32 %v1644, %v2054
        %v2056 = vpop.f32.mrb[0].mxu0
        %v2057 = vpop.f32.mrb[0].mxu0
        %v2058 = vadd.f32 %v1644, %v2057
        %v2059 = vpop.f32.mrb[0].mxu0
        %2060 = vmatprep.mubr.bf16.mxu0 %v1548
        %2061 = vmatmul.mubr.bf16.gmra.mrb[0].mxu0 %v1547
        %v2062 = vpop.f32.mrb[0].mxu0
        %v2063 = vadd.f32 %v1644, %v2062
        %v2064 = vpop.f32.mrb[0].mxu0
        %v2065 = vpop.f32.mrb[0].mxu0
        %v2066 = vadd.f32 %v1644, %v2065
        %v2067 = vpop.f32.mrb[0].mxu0
        %2068 = vmatprep.mubr.bf16.mxu0 %v1553
        %2069 = vmatmul.mubr.bf16.gmra.mrb[0].mxu0 %v1552
        %v2070 = vpop.f32.mrb[0].mxu0
        %v2071 = vadd.f32 %v1644, %v2070
        %v2072 = vpop.f32.mrb[0].mxu0
        %v2073 = vpop.f32.mrb[0].mxu0
        %v2074 = vadd.f32 %v1644, %v2073
        %v2075 = vpop.f32.mrb[0].mxu0
        %2076 = vmatprep.mubr.bf16.mxu0 %v1558
        %2077 = vmatmul.mubr.bf16.gmra.mrb[0].mxu0 %v1557
        %v2078 = vpop.f32.mrb[0].mxu0
        %v2079 = vadd.f32 %v1644, %v2078
        %v2080 = vpop.f32.mrb[0].mxu0
        %v2081 = vpop.f32.mrb[0].mxu0
        %v2082 = vadd.f32 %v1644, %v2081
        %v2083 = vpop.f32.mrb[0].mxu0
        %2084 = vmatprep.mubr.bf16.mxu0 %v1563
        %2085 = vmatmul.mubr.bf16.gmra.mrb[0].mxu0 %v1562
        %v2086 = vpop.f32.mrb[0].mxu0
        %v2087 = vadd.f32 %v1644, %v2086
        %v2088 = vpop.f32.mrb[0].mxu0
        %v2089 = vpop.f32.mrb[0].mxu0
        %v2090 = vadd.f32 %v1644, %v2089
        %v2091 = vpop.f32.mrb[0].mxu0
        %2092 = vdwg.mxu0
        %2093 = vmatprep.subr.bf16.mxu0 0
        %2094 = vmatpush1.bf16.msra.mxu0 %v1806
        %2095 = vmatprep.subr.bf16.mxu0 0
        %2096 = vmatpush1.bf16.msra.mxu0 %v1807
        %2097 = vmatprep.subr.bf16.mxu0 0
        %2098 = vmatpush1.bf16.msra.mxu0 %v1808
        %2099 = vmatprep.subr.bf16.mxu0 0
        %2100 = vmatpush1.bf16.msra.mxu0 %v1809
        %2101 = vmatprep.subr.bf16.mxu0 0
        %2102 = vmatpush1.bf16.msra.mxu0 %v1810
        %2103 = vmatprep.subr.bf16.mxu0 0
        %2104 = vmatpush1.bf16.msra.mxu0 %v1811
        %2105 = vmatprep.subr.bf16.mxu0 0
        %2106 = vmatpush1.bf16.msra.mxu0 %v1812
        %2107 = vmatprep.subr.bf16.mxu0 0
        %2108 = vmatpush1.bf16.msra.mxu0 %v1813
        %2109 = vmatprep.subr.bf16.mxu0 0
        %2110 = vmatpush1.bf16.msra.mxu0 %v1814
        %2111 = vmatprep.subr.bf16.mxu0 0
        %2112 = vmatpush1.bf16.msra.mxu0 %v1815
        %2113 = vmatprep.subr.bf16.mxu0 0
        %2114 = vmatpush1.bf16.msra.mxu0 %v1816
        %2115 = vmatprep.subr.bf16.mxu0 0
        %2116 = vmatpush1.bf16.msra.mxu0 %v1817
        %2117 = vmatprep.subr.bf16.mxu0 0
        %2118 = vmatpush1.bf16.msra.mxu0 %v1818
        %2119 = vmatprep.subr.bf16.mxu0 0
        %2120 = vmatpush1.bf16.msra.mxu0 %v1819
        %2121 = vmatprep.subr.bf16.mxu0 0
        %2122 = vmatpush1.bf16.msra.mxu0 %v1820
        %2123 = vmatprep.subr.bf16.mxu0 0
        %2124 = vmatpush1.bf16.msra.mxu0 %v1821
        %2125 = vmatprep.mubr.bf16.mxu0 %v1480
        %2126 = vmatmul.mubr.bf16.gmra.mrb[0].mxu0 %v1479
        %v2127 = vpop.f32.mrb[0].mxu0
        %v2128 = vadd.f32 %v1951, %v2127
        %v2129 = vpop.f32.mrb[0].mxu0
        %v2130 = vpop.f32.mrb[0].mxu0
        %v2131 = vadd.f32 %v1954, %v2130
        %v2132 = vpop.f32.mrb[0].mxu0
        %2133 = vmatprep.mubr.bf16.mxu0 %v1485
        %2134 = vmatmul.mubr.bf16.gmra.mrb[0].mxu0 %v1484
        %v2135 = vpop.f32.mrb[0].mxu0
        %v2136 = vadd.f32 %v1959, %v2135
        %v2137 = vpop.f32.mrb[0].mxu0
        %v2138 = vpop.f32.mrb[0].mxu0
        %v2139 = vadd.f32 %v1962, %v2138
        %v2140 = vpop.f32.mrb[0].mxu0
        %2141 = vmatprep.mubr.bf16.mxu0 %v1490
        %2142 = vmatmul.mubr.bf16.gmra.mrb[0].mxu0 %v1489
        %v2143 = vpop.f32.mrb[0].mxu0
        %v2144 = vadd.f32 %v1967, %v2143
        %v2145 = vpop.f32.mrb[0].mxu0
        %v2146 = vpop.f32.mrb[0].mxu0
        %v2147 = vadd.f32 %v1970, %v2146
        %v2148 = vpop.f32.mrb[0].mxu0
        %2149 = vmatprep.mubr.bf16.mxu0 %v1495
        %2150 = vmatmul.mubr.bf16.gmra.mrb[0].mxu0 %v1494
        %v2151 = vpop.f32.mrb[0].mxu0
        %v2152 = vadd.f32 %v1975, %v2151
        %v2153 = vpop.f32.mrb[0].mxu0
        %v2154 = vpop.f32.mrb[0].mxu0
        %v2155 = vadd.f32 %v1978, %v2154
        %v2156 = vpop.f32.mrb[0].mxu0
        %2157 = vmatprep.mubr.bf16.mxu0 %v1500
        %2158 = vmatmul.mubr.bf16.gmra.mrb[0].mxu0 %v1499
        %v2159 = vpop.f32.mrb[0].mxu0
        %v2160 = vadd.f32 %v1983, %v2159
        %v2161 = vpop.f32.mrb[0].mxu0
        %v2162 = vpop.f32.mrb[0].mxu0
        %v2163 = vadd.f32 %v1986, %v2162
        %v2164 = vpop.f32.mrb[0].mxu0
        %2165 = vmatprep.mubr.bf16.mxu0 %v1505
        %2166 = vmatmul.mubr.bf16.gmra.mrb[0].mxu0 %v1504
        %v2167 = vpop.f32.mrb[0].mxu0
        %v2168 = vadd.f32 %v1991, %v2167
        %v2169 = vpop.f32.mrb[0].mxu0
        %v2170 = vpop.f32.mrb[0].mxu0
        %v2171 = vadd.f32 %v1994, %v2170
        %v2172 = vpop.f32.mrb[0].mxu0
        %2173 = vmatprep.mubr.bf16.mxu0 %v1510
        %2174 = vmatmul.mubr.bf16.gmra.mrb[0].mxu0 %v1509
        %v2175 = vpop.f32.mrb[0].mxu0
        %v2176 = vadd.f32 %v1999, %v2175
        %v2177 = vpop.f32.mrb[0].mxu0
        %v2178 = vpop.f32.mrb[0].mxu0
        %v2179 = vadd.f32 %v2002, %v2178
        %v2180 = vpop.f32.mrb[0].mxu0
        %2181 = vmatprep.mubr.bf16.mxu0 %v1515
        %2182 = vmatmul.mubr.bf16.gmra.mrb[0].mxu0 %v1514
        %v2183 = vpop.f32.mrb[0].mxu0
        %v2184 = vadd.f32 %v2007, %v2183
        %v2185 = vpop.f32.mrb[0].mxu0
        %v2186 = vpop.f32.mrb[0].mxu0
        %v2187 = vadd.f32 %v2010, %v2186
        %v2188 = vpop.f32.mrb[0].mxu0
        %2189 = vmatprep.mubr.bf16.mxu0 %v1520
        %2190 = vmatmul.mubr.bf16.gmra.mrb[0].mxu0 %v1519
        %v2191 = vpop.f32.mrb[0].mxu0
        %v2192 = vadd.f32 %v2015, %v2191
        %v2193 = vpop.f32.mrb[0].mxu0
        %v2194 = vpop.f32.mrb[0].mxu0
        %v2195 = vadd.f32 %v2018, %v2194
        %v2196 = vpop.f32.mrb[0].mxu0
        %2197 = vmatprep.mubr.bf16.mxu0 %v1525
        %2198 = vmatmul.mubr.bf16.gmra.mrb[0].mxu0 %v1524
        %v2199 = vpop.f32.mrb[0].mxu0
        %v2200 = vadd.f32 %v2023, %v2199
        %v2201 = vpop.f32.mrb[0].mxu0
        %v2202 = vpop.f32.mrb[0].mxu0
        %v2203 = vadd.f32 %v2026, %v2202
        %v2204 = vpop.f32.mrb[0].mxu0
        %2205 = vmatprep.mubr.bf16.mxu0 %v1530
        %2206 = vmatmul.mubr.bf16.gmra.mrb[0].mxu0 %v1529
        %v2207 = vpop.f32.mrb[0].mxu0
        %v2208 = vadd.f32 %v2031, %v2207
        %v2209 = vpop.f32.mrb[0].mxu0
        %v2210 = vpop.f32.mrb[0].mxu0
        %v2211 = vadd.f32 %v2034, %v2210
        %v2212 = vpop.f32.mrb[0].mxu0
        %2213 = vmatprep.mubr.bf16.mxu0 %v1535
        %2214 = vmatmul.mubr.bf16.gmra.mrb[0].mxu0 %v1534
        %v2215 = vpop.f32.mrb[0].mxu0
        %v2216 = vadd.f32 %v2039, %v2215
        %v2217 = vpop.f32.mrb[0].mxu0
        %v2218 = vpop.f32.mrb[0].mxu0
        %v2219 = vadd.f32 %v2042, %v2218
        %v2220 = vpop.f32.mrb[0].mxu0
        %2221 = vmatprep.mubr.bf16.mxu0 %v1540
        %2222 = vmatmul.mubr.bf16.gmra.mrb[0].mxu0 %v1539
        %v2223 = vpop.f32.mrb[0].mxu0
        %v2224 = vadd.f32 %v2047, %v2223
        %v2225 = vpop.f32.mrb[0].mxu0
        %v2226 = vpop.f32.mrb[0].mxu0
        %v2227 = vadd.f32 %v2050, %v2226
        %v2228 = vpop.f32.mrb[0].mxu0
        %2229 = vmatprep.mubr.bf16.mxu0 %v1545
        %2230 = vmatmul.mubr.bf16.gmra.mrb[0].mxu0 %v1544
        %v2231 = vpop.f32.mrb[0].mxu0
        %v2232 = vadd.f32 %v2055, %v2231
        %v2233 = vpop.f32.mrb[0].mxu0
        %v2234 = vpop.f32.mrb[0].mxu0
        %v2235 = vadd.f32 %v2058, %v2234
        %v2236 = vpop.f32.mrb[0].mxu0
        %2237 = vmatprep.mubr.bf16.mxu0 %v1550
        %2238 = vmatmul.mubr.bf16.gmra.mrb[0].mxu0 %v1549
        %v2239 = vpop.f32.mrb[0].mxu0
        %v2240 = vadd.f32 %v2063, %v2239
        %v2241 = vpop.f32.mrb[0].mxu0
        %v2242 = vpop.f32.mrb[0].mxu0
        %v2243 = vadd.f32 %v2066, %v2242
        %v2244 = vpop.f32.mrb[0].mxu0
        %2245 = vmatprep.mubr.bf16.mxu0 %v1555
        %2246 = vmatmul.mubr.bf16.gmra.mrb[0].mxu0 %v1554
        %v2247 = vpop.f32.mrb[0].mxu0
        %v2248 = vadd.f32 %v2071, %v2247
        %v2249 = vpop.f32.mrb[0].mxu0
        %v2250 = vpop.f32.mrb[0].mxu0
        %v2251 = vadd.f32 %v2074, %v2250
        %v2252 = vpop.f32.mrb[0].mxu0
        %2253 = vmatprep.mubr.bf16.mxu0 %v1560
        %2254 = vmatmul.mubr.bf16.gmra.mrb[0].mxu0 %v1559
        %v2255 = vpop.f32.mrb[0].mxu0
        %v2256 = vadd.f32 %v2079, %v2255
        %v2257 = vpop.f32.mrb[0].mxu0
        %v2258 = vpop.f32.mrb[0].mxu0
        %v2259 = vadd.f32 %v2082, %v2258
        %v2260 = vpop.f32.mrb[0].mxu0
        %2261 = vmatprep.mubr.bf16.mxu0 %v1565
        %2262 = vmatmul.mubr.bf16.gmra.mrb[0].mxu0 %v1564
        %v2263 = vpop.f32.mrb[0].mxu0
        %v2264 = vadd.f32 %v2087, %v2263
        %v2265 = vpop.f32.mrb[0].mxu0
        %v2266 = vpop.f32.mrb[0].mxu0
        %v2267 = vadd.f32 %v2090, %v2266
        %v2268 = vpop.f32.mrb[0].mxu0
        %2269 = vdwg.mxu0
        %2270 = vmatprep.subr.bf16.mxu0 0
        %2271 = vmatpush1.bf16.msra.mxu0 %v1822
        %2272 = vmatprep.subr.bf16.mxu0 0
        %2273 = vmatpush1.bf16.msra.mxu0 %v1823
        %2274 = vmatprep.subr.bf16.mxu0 0
        %2275 = vmatpush1.bf16.msra.mxu0 %v1824
        %2276 = vmatprep.subr.bf16.mxu0 0
        %2277 = vmatpush1.bf16.msra.mxu0 %v1825
        %2278 = vmatprep.subr.bf16.mxu0 0
        %2279 = vmatpush1.bf16.msra.mxu0 0
        %2280 = vmatprep.subr.bf16.mxu0 0
        %2281 = vmatpush1.bf16.msra.mxu0 0
        %2282 = vmatprep.subr.bf16.mxu0 0
        %2283 = vmatpush1.bf16.msra.mxu0 0
        %2284 = vmatprep.subr.bf16.mxu0 0
        %2285 = vmatpush1.bf16.msra.mxu0 0
        %2286 = vmatprep.subr.bf16.mxu0 0
        %2287 = vmatpush1.bf16.msra.mxu0 0
        %2288 = vmatprep.subr.bf16.mxu0 0
        %2289 = vmatpush1.bf16.msra.mxu0 0
        %2290 = vmatprep.subr.bf16.mxu0 0
        %2291 = vmatpush1.bf16.msra.mxu0 0
        %2292 = vmatprep.subr.bf16.mxu0 0
        %2293 = vmatpush1.bf16.msra.mxu0 0
        %2294 = vmatprep.subr.bf16.mxu0 0
        %2295 = vmatpush1.bf16.msra.mxu0 0
        %2296 = vmatprep.subr.bf16.mxu0 0
        %2297 = vmatpush1.bf16.msra.mxu0 0
        %2298 = vmatprep.subr.bf16.mxu0 0
        %2299 = vmatpush1.bf16.msra.mxu0 0
        %2300 = vmatprep.subr.bf16.mxu0 0
        %2301 = vmatpush1.bf16.msra.mxu0 0
        %2302 = vmatprep.mubr.bf16.mxu0 0
        %2303 = vmatmul.mubr.bf16.gmra.mrb[0].mxu0 %v1863
        %v2304 = vpop.f32.mrb[0].mxu0
        %v2305 = vadd.f32 %v2128, %v2304
        %v2306 = vpop.f32.mrb[0].mxu0
        %v2307 = vpop.f32.mrb[0].mxu0
        %v2308 = vadd.f32 %v2131, %v2307
        %v2309 = vpop.f32.mrb[0].mxu0
        %2310 = vmatprep.mubr.bf16.mxu0 0
        %2311 = vmatmul.mubr.bf16.gmra.mrb[0].mxu0 %v1866
        %v2312 = vpop.f32.mrb[0].mxu0
        %v2313 = vadd.f32 %v2136, %v2312
        %v2314 = vpop.f32.mrb[0].mxu0
        %v2315 = vpop.f32.mrb[0].mxu0
        %v2316 = vadd.f32 %v2139, %v2315
        %v2317 = vpop.f32.mrb[0].mxu0
        %2318 = vmatprep.mubr.bf16.mxu0 0
        %2319 = vmatmul.mubr.bf16.gmra.mrb[0].mxu0 %v1869
        %v2320 = vpop.f32.mrb[0].mxu0
        %v2321 = vadd.f32 %v2144, %v2320
        %v2322 = vpop.f32.mrb[0].mxu0
        %v2323 = vpop.f32.mrb[0].mxu0
        %v2324 = vadd.f32 %v2147, %v2323
        %v2325 = vpop.f32.mrb[0].mxu0
        %2326 = vmatprep.mubr.bf16.mxu0 0
        %2327 = vmatmul.mubr.bf16.gmra.mrb[0].mxu0 %v1872
        %v2328 = vpop.f32.mrb[0].mxu0
        %v2329 = vadd.f32 %v2152, %v2328
        %v2330 = vpop.f32.mrb[0].mxu0
        %v2331 = vpop.f32.mrb[0].mxu0
        %v2332 = vadd.f32 %v2155, %v2331
        %v2333 = vpop.f32.mrb[0].mxu0
        %2334 = vmatprep.mubr.bf16.mxu0 0
        %2335 = vmatmul.mubr.bf16.gmra.mrb[0].mxu0 %v1875
        %v2336 = vpop.f32.mrb[0].mxu0
        %v2337 = vadd.f32 %v2160, %v2336
        %v2338 = vpop.f32.mrb[0].mxu0
        %v2339 = vpop.f32.mrb[0].mxu0
        %v2340 = vadd.f32 %v2163, %v2339
        %v2341 = vpop.f32.mrb[0].mxu0
        %2342 = vmatprep.mubr.bf16.mxu0 0
        %2343 = vmatmul.mubr.bf16.gmra.mrb[0].mxu0 %v1878
        %v2344 = vpop.f32.mrb[0].mxu0
        %v2345 = vadd.f32 %v2168, %v2344
        %v2346 = vpop.f32.mrb[0].mxu0
        %v2347 = vpop.f32.mrb[0].mxu0
        %v2348 = vadd.f32 %v2171, %v2347
        %v2349 = vpop.f32.mrb[0].mxu0
        %2350 = vmatprep.mubr.bf16.mxu0 0
        %2351 = vmatmul.mubr.bf16.gmra.mrb[0].mxu0 %v1881
        %v2352 = vpop.f32.mrb[0].mxu0
        %v2353 = vadd.f32 %v2176, %v2352
        %v2354 = vpop.f32.mrb[0].mxu0
        %v2355 = vpop.f32.mrb[0].mxu0
        %v2356 = vadd.f32 %v2179, %v2355
        %v2357 = vpop.f32.mrb[0].mxu0
        %2358 = vmatprep.mubr.bf16.mxu0 0
        %2359 = vmatmul.mubr.bf16.gmra.mrb[0].mxu0 %v1884
        %v2360 = vpop.f32.mrb[0].mxu0
        %v2361 = vadd.f32 %v2184, %v2360
        %v2362 = vpop.f32.mrb[0].mxu0
        %v2363 = vpop.f32.mrb[0].mxu0
        %v2364 = vadd.f32 %v2187, %v2363
        %v2365 = vpop.f32.mrb[0].mxu0
        %2366 = vmatprep.mubr.bf16.mxu0 0
        %2367 = vmatmul.mubr.bf16.gmra.mrb[0].mxu0 %v1887
        %v2368 = vpop.f32.mrb[0].mxu0
        %v2369 = vadd.f32 %v2192, %v2368
        %v2370 = vpop.f32.mrb[0].mxu0
        %v2371 = vpop.f32.mrb[0].mxu0
        %v2372 = vadd.f32 %v2195, %v2371
        %v2373 = vpop.f32.mrb[0].mxu0
        %2374 = vmatprep.mubr.bf16.mxu0 0
        %2375 = vmatmul.mubr.bf16.gmra.mrb[0].mxu0 %v1890
        %v2376 = vpop.f32.mrb[0].mxu0
        %v2377 = vadd.f32 %v2200, %v2376
        %v2378 = vpop.f32.mrb[0].mxu0
        %v2379 = vpop.f32.mrb[0].mxu0
        %v2380 = vadd.f32 %v2203, %v2379
        %v2381 = vpop.f32.mrb[0].mxu0
        %2382 = vmatprep.mubr.bf16.mxu0 0
        %2383 = vmatmul.mubr.bf16.gmra.mrb[0].mxu0 %v1893
        %v2384 = vpop.f32.mrb[0].mxu0
        %v2385 = vadd.f32 %v2208, %v2384
        %v2386 = vpop.f32.mrb[0].mxu0
        %v2387 = vpop.f32.mrb[0].mxu0
        %v2388 = vadd.f32 %v2211, %v2387
        %v2389 = vpop.f32.mrb[0].mxu0
        %2390 = vmatprep.mubr.bf16.mxu0 0
        %2391 = vmatmul.mubr.bf16.gmra.mrb[0].mxu0 %v1896
        %v2392 = vpop.f32.mrb[0].mxu0
        %v2393 = vadd.f32 %v2216, %v2392
        %v2394 = vpop.f32.mrb[0].mxu0
        %v2395 = vpop.f32.mrb[0].mxu0
        %v2396 = vadd.f32 %v2219, %v2395
        %v2397 = vpop.f32.mrb[0].mxu0
        %2398 = vmatprep.mubr.bf16.mxu0 0
        %2399 = vmatmul.mubr.bf16.gmra.mrb[0].mxu0 %v1899
        %v2400 = vpop.f32.mrb[0].mxu0
        %v2401 = vadd.f32 %v2224, %v2400
        %v2402 = vpop.f32.mrb[0].mxu0
        %v2403 = vpop.f32.mrb[0].mxu0
        %v2404 = vadd.f32 %v2227, %v2403
        %v2405 = vpop.f32.mrb[0].mxu0
        %2406 = vmatprep.mubr.bf16.mxu0 0
        %2407 = vmatmul.mubr.bf16.gmra.mrb[0].mxu0 %v1902
        %v2408 = vpop.f32.mrb[0].mxu0
        %v2409 = vadd.f32 %v2232, %v2408
        %v2410 = vpop.f32.mrb[0].mxu0
        %v2411 = vpop.f32.mrb[0].mxu0
        %v2412 = vadd.f32 %v2235, %v2411
        %v2413 = vpop.f32.mrb[0].mxu0
        %2414 = vmatprep.mubr.bf16.mxu0 0
        %2415 = vmatmul.mubr.bf16.gmra.mrb[0].mxu0 %v1905
        %v2416 = vpop.f32.mrb[0].mxu0
        %v2417 = vadd.f32 %v2240, %v2416
        %v2418 = vpop.f32.mrb[0].mxu0
        %v2419 = vpop.f32.mrb[0].mxu0
        %v2420 = vadd.f32 %v2243, %v2419
        %v2421 = vpop.f32.mrb[0].mxu0
        %2422 = vmatprep.mubr.bf16.mxu0 0
        %2423 = vmatmul.mubr.bf16.gmra.mrb[0].mxu0 %v1908
        %v2424 = vpop.f32.mrb[0].mxu0
        %v2425 = vadd.f32 %v2248, %v2424
        %v2426 = vpop.f32.mrb[0].mxu0
        %v2427 = vpop.f32.mrb[0].mxu0
        %v2428 = vadd.f32 %v2251, %v2427
        %v2429 = vpop.f32.mrb[0].mxu0
        %2430 = vmatprep.mubr.bf16.mxu0 0
        %2431 = vmatmul.mubr.bf16.gmra.mrb[0].mxu0 %v1911
        %v2432 = vpop.f32.mrb[0].mxu0
        %v2433 = vadd.f32 %v2256, %v2432
        %v2434 = vpop.f32.mrb[0].mxu0
        %v2435 = vpop.f32.mrb[0].mxu0
        %v2436 = vadd.f32 %v2259, %v2435
        %v2437 = vpop.f32.mrb[0].mxu0
        %2438 = vmatprep.mubr.bf16.mxu0 0
        %2439 = vmatmul.mubr.bf16.gmra.mrb[0].mxu0 %v1914
        %v2440 = vpop.f32.mrb[0].mxu0
        %v2441 = vadd.f32 %v2264, %v2440
        %v2442 = vpop.f32.mrb[0].mxu0
        %v2443 = vpop.f32.mrb[0].mxu0
        %v2444 = vadd.f32 %v2267, %v2443
        %v2445 = vpop.f32.mrb[0].mxu0
        %2446 = vdwg.mxu0
        %v2447 = vsub.f32 0.0, %v2305
        %v2448 = vsub.f32 0.0, %v2308
        %v2449 = vsub.f32 0.0, %v2313
        %v2450 = vsub.f32 0.0, %v2316
        %v2451 = vsub.f32 0.0, %v2321
        %v2452 = vsub.f32 0.0, %v2324
        %v2453 = vsub.f32 0.0, %v2329
        %v2454 = vsub.f32 0.0, %v2332
        %v2455 = vsub.f32 0.0, %v2337
        %v2456 = vsub.f32 0.0, %v2340
        %v2457 = vsub.f32 0.0, %v2345
        %v2458 = vsub.f32 0.0, %v2348
        %v2459 = vsub.f32 0.0, %v2353
        %v2460 = vsub.f32 0.0, %v2356
        %v2461 = vsub.f32 0.0, %v2361
        %v2462 = vsub.f32 0.0, %v2364
        %v2463 = vsub.f32 0.0, %v2369
        %v2464 = vsub.f32 0.0, %v2372
        %v2465 = vsub.f32 0.0, %v2377
        %v2466 = vsub.f32 0.0, %v2380
        %v2467 = vsub.f32 0.0, %v2385
        %v2468 = vsub.f32 0.0, %v2388
        %v2469 = vsub.f32 0.0, %v2393
        %v2470 = vsub.f32 0.0, %v2396
        %v2471 = vsub.f32 0.0, %v2401
        %v2472 = vsub.f32 0.0, %v2404
        %v2473 = vsub.f32 0.0, %v2409
        %v2474 = vsub.f32 0.0, %v2412
        %v2475 = vsub.f32 0.0, %v2417
        %v2476 = vsub.f32 0.0, %v2420
        %v2477 = vsub.f32 0.0, %v2425
        %v2478 = vsub.f32 0.0, %v2428
        %v2479 = vsub.f32 0.0, %v2433
        %v2480 = vsub.f32 0.0, %v2436
        %v2481 = vsub.f32 0.0, %v2441
        %v2482 = vsub.f32 0.0, %v2444
        %v2483 = vmul.f32 %v2447, 1.442695
        %v2484 = vpow.pop %v2483
        %v2485 = vmul.f32 %v2448, 1.442695
        %v2486 = vpow.pop %v2485
        %v2487 = vmul.f32 %v2449, 1.442695
        %v2488 = vpow.pop %v2487
        %v2489 = vmul.f32 %v2450, 1.442695
        %v2490 = vpow.pop %v2489
        %v2491 = vmul.f32 %v2451, 1.442695
        %v2492 = vpow.pop %v2491
        %v2493 = vmul.f32 %v2452, 1.442695
        %v2494 = vpow.pop %v2493
        %v2495 = vmul.f32 %v2453, 1.442695
        %v2496 = vpow.pop %v2495
        %v2497 = vmul.f32 %v2454, 1.442695
        %v2498 = vpow.pop %v2497
        %v2499 = vmul.f32 %v2455, 1.442695
        %v2500 = vpow.pop %v2499
        %v2501 = vmul.f32 %v2456, 1.442695
        %v2502 = vpow.pop %v2501
        %v2503 = vmul.f32 %v2457, 1.442695
        %v2504 = vpow.pop %v2503
        %v2505 = vmul.f32 %v2458, 1.442695
        %v2506 = vpow.pop %v2505
        %v2507 = vmul.f32 %v2459, 1.442695
        %v2508 = vpow.pop %v2507
        %v2509 = vmul.f32 %v2460, 1.442695
        %v2510 = vpow.pop %v2509
        %v2511 = vmul.f32 %v2461, 1.442695
        %v2512 = vpow.pop %v2511
        %v2513 = vmul.f32 %v2462, 1.442695
        %v2514 = vpow.pop %v2513
        %v2515 = vmul.f32 %v2463, 1.442695
        %v2516 = vpow.pop %v2515
        %v2517 = vmul.f32 %v2464, 1.442695
        %v2518 = vpow.pop %v2517
        %v2519 = vmul.f32 %v2465, 1.442695
        %v2520 = vpow.pop %v2519
        %v2521 = vmul.f32 %v2466, 1.442695
        %v2522 = vpow.pop %v2521
        %v2523 = vmul.f32 %v2467, 1.442695
        %v2524 = vpow.pop %v2523
        %v2525 = vmul.f32 %v2468, 1.442695
        %v2526 = vpow.pop %v2525
        %v2527 = vmul.f32 %v2469, 1.442695
        %v2528 = vpow.pop %v2527
        %v2529 = vmul.f32 %v2470, 1.442695
        %v2530 = vpow.pop %v2529
        %v2531 = vmul.f32 %v2471, 1.442695
        %v2532 = vpow.pop %v2531
        %v2533 = vmul.f32 %v2472, 1.442695
        %v2534 = vpow.pop %v2533
        %v2535 = vmul.f32 %v2473, 1.442695
        %v2536 = vpow.pop %v2535
        %v2537 = vmul.f32 %v2474, 1.442695
        %v2538 = vpow.pop %v2537
        %v2539 = vmul.f32 %v2475, 1.442695
        %v2540 = vpow.pop %v2539
        %v2541 = vmul.f32 %v2476, 1.442695
        %v2542 = vpow.pop %v2541
        %v2543 = vmul.f32 %v2477, 1.442695
        %v2544 = vpow.pop %v2543
        %v2545 = vmul.f32 %v2478, 1.442695
        %v2546 = vpow.pop %v2545
        %v2547 = vmul.f32 %v2479, 1.442695
        %v2548 = vpow.pop %v2547
        %v2549 = vmul.f32 %v2480, 1.442695
        %v2550 = vpow.pop %v2549
        %v2551 = vmul.f32 %v2481, 1.442695
        %v2552 = vpow.pop %v2551
        %v2553 = vmul.f32 %v2482, 1.442695
        %v2554 = vpow.pop %v2553
        %v2555 = vadd.f32 %v2484, 1.0
        %v2556 = vadd.f32 %v2486, 1.0
        %v2557 = vadd.f32 %v2488, 1.0
        %v2558 = vadd.f32 %v2490, 1.0
        %v2559 = vadd.f32 %v2492, 1.0
        %v2560 = vadd.f32 %v2494, 1.0
        %v2561 = vadd.f32 %v2496, 1.0
        %v2562 = vadd.f32 %v2498, 1.0
        %v2563 = vadd.f32 %v2500, 1.0
        %v2564 = vadd.f32 %v2502, 1.0
        %v2565 = vadd.f32 %v2504, 1.0
        %v2566 = vadd.f32 %v2506, 1.0
        %v2567 = vadd.f32 %v2508, 1.0
        %v2568 = vadd.f32 %v2510, 1.0
        %v2569 = vadd.f32 %v2512, 1.0
        %v2570 = vadd.f32 %v2514, 1.0
        %v2571 = vadd.f32 %v2516, 1.0
        %v2572 = vadd.f32 %v2518, 1.0
        %v2573 = vadd.f32 %v2520, 1.0
        %v2574 = vadd.f32 %v2522, 1.0
        %v2575 = vadd.f32 %v2524, 1.0
        %v2576 = vadd.f32 %v2526, 1.0
        %v2577 = vadd.f32 %v2528, 1.0
        %v2578 = vadd.f32 %v2530, 1.0
        %v2579 = vadd.f32 %v2532, 1.0
        %v2580 = vadd.f32 %v2534, 1.0
        %v2581 = vadd.f32 %v2536, 1.0
        %v2582 = vadd.f32 %v2538, 1.0
        %v2583 = vadd.f32 %v2540, 1.0
        %v2584 = vadd.f32 %v2542, 1.0
        %v2585 = vadd.f32 %v2544, 1.0
        %v2586 = vadd.f32 %v2546, 1.0
        %v2587 = vadd.f32 %v2548, 1.0
        %v2588 = vadd.f32 %v2550, 1.0
        %v2589 = vadd.f32 %v2552, 1.0
        %v2590 = vadd.f32 %v2554, 1.0
        %v2591 = vrcp.pop %v2555
        %v2592 = vrcp.pop %v2556
        %v2593 = vrcp.pop %v2557
        %v2594 = vrcp.pop %v2558
        %v2595 = vrcp.pop %v2559
        %v2596 = vrcp.pop %v2560
        %v2597 = vrcp.pop %v2561
        %v2598 = vrcp.pop %v2562
        %v2599 = vrcp.pop %v2563
        %v2600 = vrcp.pop %v2564
        %v2601 = vrcp.pop %v2565
        %v2602 = vrcp.pop %v2566
        %v2603 = vrcp.pop %v2567
        %v2604 = vrcp.pop %v2568
        %v2605 = vrcp.pop %v2569
        %v2606 = vrcp.pop %v2570
        %v2607 = vrcp.pop %v2571
        %v2608 = vrcp.pop %v2572
        %v2609 = vrcp.pop %v2573
        %v2610 = vrcp.pop %v2574
        %v2611 = vrcp.pop %v2575
        %v2612 = vrcp.pop %v2576
        %v2613 = vrcp.pop %v2577
        %v2614 = vrcp.pop %v2578
        %v2615 = vrcp.pop %v2579
        %v2616 = vrcp.pop %v2580
        %v2617 = vrcp.pop %v2581
        %v2618 = vrcp.pop %v2582
        %v2619 = vrcp.pop %v2583
        %v2620 = vrcp.pop %v2584
        %v2621 = vrcp.pop %v2585
        %v2622 = vrcp.pop %v2586
        %v2623 = vrcp.pop %v2587
        %v2624 = vrcp.pop %v2588
        %v2625 = vrcp.pop %v2589
        %v2626 = vrcp.pop %v2590
        %v2627 = vmul.f32 %v2305, %v2591
        %v2628 = vmul.f32 %v2308, %v2592
        %v2629 = vmul.f32 %v2313, %v2593
        %v2630 = vmul.f32 %v2316, %v2594
        %v2631 = vmul.f32 %v2321, %v2595
        %v2632 = vmul.f32 %v2324, %v2596
        %v2633 = vmul.f32 %v2329, %v2597
        %v2634 = vmul.f32 %v2332, %v2598
        %v2635 = vmul.f32 %v2337, %v2599
        %v2636 = vmul.f32 %v2340, %v2600
        %v2637 = vmul.f32 %v2345, %v2601
        %v2638 = vmul.f32 %v2348, %v2602
        %v2639 = vmul.f32 %v2353, %v2603
        %v2640 = vmul.f32 %v2356, %v2604
        %v2641 = vmul.f32 %v2361, %v2605
        %v2642 = vmul.f32 %v2364, %v2606
        %v2643 = vmul.f32 %v2369, %v2607
        %v2644 = vmul.f32 %v2372, %v2608
        %v2645 = vmul.f32 %v2377, %v2609
        %v2646 = vmul.f32 %v2380, %v2610
        %v2647 = vmul.f32 %v2385, %v2611
        %v2648 = vmul.f32 %v2388, %v2612
        %v2649 = vmul.f32 %v2393, %v2613
        %v2650 = vmul.f32 %v2396, %v2614
        %v2651 = vmul.f32 %v2401, %v2615
        %v2652 = vmul.f32 %v2404, %v2616
        %v2653 = vmul.f32 %v2409, %v2617
        %v2654 = vmul.f32 %v2412, %v2618
        %v2655 = vmul.f32 %v2417, %v2619
        %v2656 = vmul.f32 %v2420, %v2620
        %v2657 = vmul.f32 %v2425, %v2621
        %v2658 = vmul.f32 %v2428, %v2622
        %v2659 = vmul.f32 %v2433, %v2623
        %v2660 = vmul.f32 %v2436, %v2624
        %v2661 = vmul.f32 %v2441, %v2625
        %v2662 = vmul.f32 %v2444, %v2626
        %2664 = vset.pattern.permute.xlu0 0
        %2665 = vperm.xlu0 %2664, %v340
        %v2666 = vpop.permute.xlu0 %2665
        %2669 = vset.pattern.permute.xlu0 0
        %2670 = vperm.xlu0 %2669, %v341
        %v2671 = vpop.permute.xlu0 %2670
        %2674 = vset.pattern.permute.xlu0 0
        %2675 = vperm.xlu0 %2674, %v342
        %v2676 = vpop.permute.xlu0 %2675
        %2679 = vset.pattern.permute.xlu0 0
        %2680 = vperm.xlu0 %2679, %v343
        %v2681 = vpop.permute.xlu0 %2680
        %2684 = vset.pattern.permute.xlu0 0
        %2685 = vperm.xlu0 %2684, %v344
        %v2686 = vpop.permute.xlu0 %2685
        %2689 = vset.pattern.permute.xlu0 0
        %2690 = vperm.xlu0 %2689, %v345
        %v2691 = vpop.permute.xlu0 %2690
        %2694 = vset.pattern.permute.xlu0 0
        %2695 = vperm.xlu0 %2694, %v346
        %v2696 = vpop.permute.xlu0 %2695
        %2699 = vset.pattern.permute.xlu0 0
        %2700 = vperm.xlu0 %2699, %v347
        %v2701 = vpop.permute.xlu0 %2700
        %2704 = vset.pattern.permute.xlu0 0
        %2705 = vperm.xlu0 %2704, %v348
        %v2706 = vpop.permute.xlu0 %2705
        %2709 = vset.pattern.permute.xlu0 0
        %2710 = vperm.xlu0 %2709, %v349
        %v2711 = vpop.permute.xlu0 %2710
        %2714 = vset.pattern.permute.xlu0 0
        %2715 = vperm.xlu0 %2714, %v350
        %v2716 = vpop.permute.xlu0 %2715
        %2719 = vset.pattern.permute.xlu0 0
        %2720 = vperm.xlu0 %2719, %v351
        %v2721 = vpop.permute.xlu0 %2720
        %2724 = vset.pattern.permute.xlu0 0
        %2725 = vperm.xlu0 %2724, %v352
        %v2726 = vpop.permute.xlu0 %2725
        %2729 = vset.pattern.permute.xlu0 0
        %2730 = vperm.xlu0 %2729, %v353
        %v2731 = vpop.permute.xlu0 %2730
        %2734 = vset.pattern.permute.xlu0 0
        %2735 = vperm.xlu0 %2734, %v354
        %v2736 = vpop.permute.xlu0 %2735
        %2739 = vset.pattern.permute.xlu0 0
        %2740 = vperm.xlu0 %2739, %v355
        %v2741 = vpop.permute.xlu0 %2740
        %2744 = vset.pattern.permute.xlu0 0
        %2745 = vperm.xlu0 %2744, %v356
        %v2746 = vpop.permute.xlu0 %2745
        %2749 = vset.pattern.permute.xlu0 0
        %2750 = vperm.xlu0 %2749, %v357
        %v2751 = vpop.permute.xlu0 %2750
        %2754 = vset.pattern.permute.xlu0 0
        %2755 = vperm.xlu0 %2754, %v358
        %v2756 = vpop.permute.xlu0 %2755
        %2759 = vset.pattern.permute.xlu0 0
        %2760 = vperm.xlu0 %2759, %v359
        %v2761 = vpop.permute.xlu0 %2760
        %2764 = vset.pattern.permute.xlu0 0
        %2765 = vperm.xlu0 %2764, %v360
        %v2766 = vpop.permute.xlu0 %2765
        %2769 = vset.pattern.permute.xlu0 0
        %2770 = vperm.xlu0 %2769, %v361
        %v2771 = vpop.permute.xlu0 %2770
        %2774 = vset.pattern.permute.xlu0 0
        %2775 = vperm.xlu0 %2774, %v362
        %v2776 = vpop.permute.xlu0 %2775
        %2779 = vset.pattern.permute.xlu0 0
        %2780 = vperm.xlu0 %2779, %v363
        %v2781 = vpop.permute.xlu0 %2780
        %2784 = vset.pattern.permute.xlu0 0
        %2785 = vperm.xlu0 %2784, %v364
        %v2786 = vpop.permute.xlu0 %2785
        %2789 = vset.pattern.permute.xlu0 0
        %2790 = vperm.xlu0 %2789, %v365
        %v2791 = vpop.permute.xlu0 %2790
        %2794 = vset.pattern.permute.xlu0 0
        %2795 = vperm.xlu0 %2794, %v366
        %v2796 = vpop.permute.xlu0 %2795
        %2799 = vset.pattern.permute.xlu0 0
        %2800 = vperm.xlu0 %2799, %v367
        %v2801 = vpop.permute.xlu0 %2800
        %2804 = vset.pattern.permute.xlu0 0
        %2805 = vperm.xlu0 %2804, %v368
        %v2806 = vpop.permute.xlu0 %2805
        %2809 = vset.pattern.permute.xlu0 0
        %2810 = vperm.xlu0 %2809, %v369
        %v2811 = vpop.permute.xlu0 %2810
        %2814 = vset.pattern.permute.xlu0 0
        %2815 = vperm.xlu0 %2814, %v370
        %v2816 = vpop.permute.xlu0 %2815
        %2819 = vset.pattern.permute.xlu0 0
        %2820 = vperm.xlu0 %2819, %v371
        %v2821 = vpop.permute.xlu0 %2820
        %2824 = vset.pattern.permute.xlu0 0
        %2825 = vperm.xlu0 %2824, %v372
        %v2826 = vpop.permute.xlu0 %2825
        %2829 = vset.pattern.permute.xlu0 0
        %2830 = vperm.xlu0 %2829, %v373
        %v2831 = vpop.permute.xlu0 %2830
        %2834 = vset.pattern.permute.xlu0 0
        %2835 = vperm.xlu0 %2834, %v374
        %v2836 = vpop.permute.xlu0 %2835
        %2839 = vset.pattern.permute.xlu0 0
        %2840 = vperm.xlu0 %2839, %v375
        %v2841 = vpop.permute.xlu0 %2840
        %v2843 = vmul.f32 %v2627, %v2666
        %v2844 = vmul.f32 %v2628, %v2671
        %v2845 = vmul.f32 %v2629, %v2676
        %v2846 = vmul.f32 %v2630, %v2681
        %v2847 = vmul.f32 %v2631, %v2686
        %v2848 = vmul.f32 %v2632, %v2691
        %v2849 = vmul.f32 %v2633, %v2696
        %v2850 = vmul.f32 %v2634, %v2701
        %v2851 = vmul.f32 %v2635, %v2706
        %v2852 = vmul.f32 %v2636, %v2711
        %v2853 = vmul.f32 %v2637, %v2716
        %v2854 = vmul.f32 %v2638, %v2721
        %v2855 = vmul.f32 %v2639, %v2726
        %v2856 = vmul.f32 %v2640, %v2731
        %v2857 = vmul.f32 %v2641, %v2736
        %v2858 = vmul.f32 %v2642, %v2741
        %v2859 = vmul.f32 %v2643, %v2746
        %v2860 = vmul.f32 %v2644, %v2751
        %v2861 = vmul.f32 %v2645, %v2756
        %v2862 = vmul.f32 %v2646, %v2761
        %v2863 = vmul.f32 %v2647, %v2766
        %v2864 = vmul.f32 %v2648, %v2771
        %v2865 = vmul.f32 %v2649, %v2776
        %v2866 = vmul.f32 %v2650, %v2781
        %v2867 = vmul.f32 %v2651, %v2786
        %v2868 = vmul.f32 %v2652, %v2791
        %v2869 = vmul.f32 %v2653, %v2796
        %v2870 = vmul.f32 %v2654, %v2801
        %v2871 = vmul.f32 %v2655, %v2806
        %v2872 = vmul.f32 %v2656, %v2811
        %v2873 = vmul.f32 %v2657, %v2816
        %v2874 = vmul.f32 %v2658, %v2821
        %v2875 = vmul.f32 %v2659, %v2826
        %v2876 = vmul.f32 %v2660, %v2831
        %v2877 = vmul.f32 %v2661, %v2836
        %v2878 = vmul.f32 %v2662, %v2841
        %2879 = vst.msk [vmem:[#allocation2 + $0x13] sm:$0xff] %vm332, %v2843
        %2880 = vst.msk [vmem:[#allocation2 + $0x1b] sm:$0xff] %vm332, %v2844
        %2881 = vst.msk [vmem:[#allocation2 + $0x23] sm:$0xff] %vm332, %v2845
        %2882 = vst.msk [vmem:[#allocation2 + $0x2b] sm:$0xff] %vm332, %v2846
        %2883 = vst.msk [vmem:[#allocation2 + $0x33] sm:$0xff] %vm332, %v2847
        %2884 = vst.msk [vmem:[#allocation2 + $0x3b] sm:$0xff] %vm332, %v2848
        %2885 = vst.msk [vmem:[#allocation2 + $0x43] sm:$0xff] %vm332, %v2849
        %2886 = vst.msk [vmem:[#allocation2 + $0x4b] sm:$0xff] %vm332, %v2850
        %2887 = vst.msk [vmem:[#allocation2 + $0x53] sm:$0xff] %vm332, %v2851
        %2888 = vst.msk [vmem:[#allocation2 + $0x5b] sm:$0xff] %vm332, %v2852
        %2889 = vst.msk [vmem:[#allocation2 + $0x63] sm:$0xff] %vm332, %v2853
        %2890 = vst.msk [vmem:[#allocation2 + $0x6b] sm:$0xff] %vm332, %v2854
        %2891 = vst.msk [vmem:[#allocation2 + $0x73] sm:$0xff] %vm332, %v2855
        %2892 = vst.msk [vmem:[#allocation2 + $0x7b] sm:$0xff] %vm332, %v2856
        %2893 = vst.msk [vmem:[#allocation2 + $0x83] sm:$0xff] %vm332, %v2857
        %2894 = vst.msk [vmem:[#allocation2 + $0x8b] sm:$0xff] %vm332, %v2858
        %2895 = vst.msk [vmem:[#allocation2 + $0x93] sm:$0xff] %vm332, %v2859
        %2896 = vst.msk [vmem:[#allocation2 + $0x9b] sm:$0xff] %vm332, %v2860
        %2897 = vst.msk [vmem:[#allocation2 + $0xa3] sm:$0xff] %vm332, %v2861
        %2898 = vst.msk [vmem:[#allocation2 + $0xab] sm:$0xff] %vm332, %v2862
        %2899 = vst.msk [vmem:[#allocation2 + $0xb3] sm:$0xff] %vm332, %v2863
        %2900 = vst.msk [vmem:[#allocation2 + $0xbb] sm:$0xff] %vm332, %v2864
        %2901 = vst.msk [vmem:[#allocation2 + $0xc3] sm:$0xff] %vm332, %v2865
        %2902 = vst.msk [vmem:[#allocation2 + $0xcb] sm:$0xff] %vm332, %v2866
        %2903 = vst.msk [vmem:[#allocation2 + $0xd3] sm:$0xff] %vm332, %v2867
        %2904 = vst.msk [vmem:[#allocation2 + $0xdb] sm:$0xff] %vm332, %v2868
        %2905 = vst.msk [vmem:[#allocation2 + $0xe3] sm:$0xff] %vm332, %v2869
        %2906 = vst.msk [vmem:[#allocation2 + $0xeb] sm:$0xff] %vm332, %v2870
        %2907 = vst.msk [vmem:[#allocation2 + $0xf3] sm:$0xff] %vm332, %v2871
        %2908 = vst.msk [vmem:[#allocation2 + $0xfb] sm:$0xff] %vm332, %v2872
        %2909 = vst.msk [vmem:[#allocation2 + $0x103] sm:$0xff] %vm332, %v2873
        %2910 = vst.msk [vmem:[#allocation2 + $0x10b] sm:$0xff] %vm332, %v2874
        %2911 = vst.msk [vmem:[#allocation2 + $0x113] sm:$0xff] %vm332, %v2875
        %2912 = vst.msk [vmem:[#allocation2 + $0x11b] sm:$0xff] %vm332, %v2876
        %2913 = vst.msk [vmem:[#allocation2 + $0x123] sm:$0xff] %vm332, %v2877
        %2914 = vst.msk [vmem:[#allocation2 + $0x12b] sm:$0xff] %vm332, %v2878
        %v2915 = vld [vmem:[#allocation2] sm:$0xff]
        %v2916 = vld [vmem:[#allocation2 + $0x8] sm:$0xff]
        %v2917 = vld [vmem:[#allocation2 + $0x10] sm:$0xff]
        %v2918 = vld [vmem:[#allocation2 + $0x18] sm:$0xff]
        %v2919 = vld [vmem:[#allocation2 + $0x20] sm:$0xff]
        %v2920 = vld [vmem:[#allocation2 + $0x28] sm:$0xff]
        %v2921 = vld [vmem:[#allocation2 + $0x30] sm:$0xff]
        %v2922 = vld [vmem:[#allocation2 + $0x38] sm:$0xff]
        %v2923 = vld [vmem:[#allocation2 + $0x40] sm:$0xff]
        %v2924 = vld [vmem:[#allocation2 + $0x48] sm:$0xff]
        %v2925 = vld [vmem:[#allocation2 + $0x50] sm:$0xff]
        %v2926 = vld [vmem:[#allocation2 + $0x58] sm:$0xff]
        %v2927 = vld [vmem:[#allocation2 + $0x60] sm:$0xff]
        %v2928 = vld [vmem:[#allocation2 + $0x68] sm:$0xff]
        %v2929 = vld [vmem:[#allocation2 + $0x70] sm:$0xff]
        %v2930 = vld [vmem:[#allocation2 + $0x78] sm:$0xff]
        %v2931 = vld [vmem:[#allocation2 + $0x80] sm:$0xff]
        %v2932 = vld [vmem:[#allocation2 + $0x88] sm:$0xff]
        %v2933 = vld [vmem:[#allocation2 + $0x90] sm:$0xff]
        %v2934 = vld [vmem:[#allocation2 + $0x98] sm:$0xff]
        %v2935 = vld [vmem:[#allocation2 + $0xa0] sm:$0xff]
        %v2936 = vld [vmem:[#allocation2 + $0xa8] sm:$0xff]
        %v2937 = vld [vmem:[#allocation2 + $0xb0] sm:$0xff]
        %v2938 = vld [vmem:[#allocation2 + $0xb8] sm:$0xff]
        %v2939 = vld [vmem:[#allocation2 + $0xc0] sm:$0xff]
        %v2940 = vld [vmem:[#allocation2 + $0xc8] sm:$0xff]
        %v2941 = vld [vmem:[#allocation2 + $0xd0] sm:$0xff]
        %v2942 = vld [vmem:[#allocation2 + $0xd8] sm:$0xff]
        %v2943 = vld [vmem:[#allocation2 + $0xe0] sm:$0xff]
        %v2944 = vld [vmem:[#allocation2 + $0xe8] sm:$0xff]
        %v2945 = vld [vmem:[#allocation2 + $0xf0] sm:$0xff]
        %v2946 = vld [vmem:[#allocation2 + $0xf8] sm:$0xff]
        %v2947 = vld [vmem:[#allocation2 + $0x100] sm:$0xff]
        %v2948 = vld [vmem:[#allocation2 + $0x108] sm:$0xff]
        %v2949 = vld [vmem:[#allocation2 + $0x110] sm:$0xff]
        %v2950 = vld [vmem:[#allocation2 + $0x118] sm:$0xff]
        %v2951 = vpack.c.bf16 %v2916, %v2915
        %v2952 = vpack.c.bf16 %v2918, %v2917
        %v2953 = vpack.c.bf16 %v2920, %v2919
        %v2954 = vpack.c.bf16 %v2922, %v2921
        %v2955 = vpack.c.bf16 %v2924, %v2923
        %v2956 = vpack.c.bf16 %v2926, %v2925
        %v2957 = vpack.c.bf16 %v2928, %v2927
        %v2958 = vpack.c.bf16 %v2930, %v2929
        %v2959 = vpack.c.bf16 %v2932, %v2931
        %v2960 = vpack.c.bf16 %v2934, %v2933
        %v2961 = vpack.c.bf16 %v2936, %v2935
        %v2962 = vpack.c.bf16 %v2938, %v2937
        %v2963 = vpack.c.bf16 %v2940, %v2939
        %v2964 = vpack.c.bf16 %v2942, %v2941
        %v2965 = vpack.c.bf16 %v2944, %v2943
        %v2966 = vpack.c.bf16 %v2946, %v2945
        %v2967 = vpack.c.bf16 %v2948, %v2947
        %v2968 = vpack.c.bf16 %v2950, %v2949
        %v2969 = vld [vmem:[#allocation2 + $0x1] sm:$0xff]
        %v2970 = vld [vmem:[#allocation2 + $0x9] sm:$0xff]
        %v2971 = vld [vmem:[#allocation2 + $0x11] sm:$0xff]
        %v2972 = vld [vmem:[#allocation2 + $0x19] sm:$0xff]
        %v2973 = vld [vmem:[#allocation2 + $0x21] sm:$0xff]
        %v2974 = vld [vmem:[#allocation2 + $0x29] sm:$0xff]
        %v2975 = vld [vmem:[#allocation2 + $0x31] sm:$0xff]
        %v2976 = vld [vmem:[#allocation2 + $0x39] sm:$0xff]
        %v2977 = vld [vmem:[#allocation2 + $0x41] sm:$0xff]
        %v2978 = vld [vmem:[#allocation2 + $0x49] sm:$0xff]
        %v2979 = vld [vmem:[#allocation2 + $0x51] sm:$0xff]
        %v2980 = vld [vmem:[#allocation2 + $0x59] sm:$0xff]
        %v2981 = vld [vmem:[#allocation2 + $0x61] sm:$0xff]
        %v2982 = vld [vmem:[#allocation2 + $0x69] sm:$0xff]
        %v2983 = vld [vmem:[#allocation2 + $0x71] sm:$0xff]
        %v2984 = vld [vmem:[#allocation2 + $0x79] sm:$0xff]
        %v2985 = vld [vmem:[#allocation2 + $0x81] sm:$0xff]
        %v2986 = vld [vmem:[#allocation2 + $0x89] sm:$0xff]
        %v2987 = vld [vmem:[#allocation2 + $0x91] sm:$0xff]
        %v2988 = vld [vmem:[#allocation2 + $0x99] sm:$0xff]
        %v2989 = vld [vmem:[#allocation2 + $0xa1] sm:$0xff]
        %v2990 = vld [vmem:[#allocation2 + $0xa9] sm:$0xff]
        %v2991 = vld [vmem:[#allocation2 + $0xb1] sm:$0xff]
        %v2992 = vld [vmem:[#allocation2 + $0xb9] sm:$0xff]
        %v2993 = vld [vmem:[#allocation2 + $0xc1] sm:$0xff]
        %v2994 = vld [vmem:[#allocation2 + $0xc9] sm:$0xff]
        %v2995 = vld [vmem:[#allocation2 + $0xd1] sm:$0xff]
        %v2996 = vld [vmem:[#allocation2 + $0xd9] sm:$0xff]
        %v2997 = vld [vmem:[#allocation2 + $0xe1] sm:$0xff]
        %v2998 = vld [vmem:[#allocation2 + $0xe9] sm:$0xff]
        %v2999 = vld [vmem:[#allocation2 + $0xf1] sm:$0xff]
        %v3000 = vld [vmem:[#allocation2 + $0xf9] sm:$0xff]
        %v3001 = vld [vmem:[#allocation2 + $0x101] sm:$0xff]
        %v3002 = vld [vmem:[#allocation2 + $0x109] sm:$0xff]
        %v3003 = vld [vmem:[#allocation2 + $0x111] sm:$0xff]
        %v3004 = vld [vmem:[#allocation2 + $0x119] sm:$0xff]
        %v3005 = vpack.c.bf16 %v2970, %v2969
        %v3006 = vpack.c.bf16 %v2972, %v2971
        %v3007 = vpack.c.bf16 %v2974, %v2973
        %v3008 = vpack.c.bf16 %v2976, %v2975
        %v3009 = vpack.c.bf16 %v2978, %v2977
        %v3010 = vpack.c.bf16 %v2980, %v2979
        %v3011 = vpack.c.bf16 %v2982, %v2981
        %v3012 = vpack.c.bf16 %v2984, %v2983
        %v3013 = vpack.c.bf16 %v2986, %v2985
        %v3014 = vpack.c.bf16 %v2988, %v2987
        %v3015 = vpack.c.bf16 %v2990, %v2989
        %v3016 = vpack.c.bf16 %v2992, %v2991
        %v3017 = vpack.c.bf16 %v2994, %v2993
        %v3018 = vpack.c.bf16 %v2996, %v2995
        %v3019 = vpack.c.bf16 %v2998, %v2997
        %v3020 = vpack.c.bf16 %v3000, %v2999
        %v3021 = vpack.c.bf16 %v3002, %v3001
        %v3022 = vpack.c.bf16 %v3004, %v3003
        %3041 = vrot.lane.b32.xlu0 %v3005, 64
        %v3042 = vpop.permute.xlu0 %3041
        %3043 = vrot.lane.b32.xlu0 %v3006, 64
        %v3044 = vpop.permute.xlu0 %3043
        %3045 = vrot.lane.b32.xlu0 %v3007, 64
        %v3046 = vpop.permute.xlu0 %3045
        %3047 = vrot.lane.b32.xlu0 %v3008, 64
        %v3048 = vpop.permute.xlu0 %3047
        %3049 = vrot.lane.b32.xlu0 %v3009, 64
        %v3050 = vpop.permute.xlu0 %3049
        %3051 = vrot.lane.b32.xlu0 %v3010, 64
        %v3052 = vpop.permute.xlu0 %3051
        %3053 = vrot.lane.b32.xlu0 %v3011, 64
        %v3054 = vpop.permute.xlu0 %3053
        %3055 = vrot.lane.b32.xlu0 %v3012, 64
        %v3056 = vpop.permute.xlu0 %3055
        %3057 = vrot.lane.b32.xlu0 %v3013, 64
        %v3058 = vpop.permute.xlu0 %3057
        %3059 = vrot.lane.b32.xlu0 %v3014, 64
        %v3060 = vpop.permute.xlu0 %3059
        %3061 = vrot.lane.b32.xlu0 %v3015, 64
        %v3062 = vpop.permute.xlu0 %3061
        %3063 = vrot.lane.b32.xlu0 %v3016, 64
        %v3064 = vpop.permute.xlu0 %3063
        %3065 = vrot.lane.b32.xlu0 %v3017, 64
        %v3066 = vpop.permute.xlu0 %3065
        %3067 = vrot.lane.b32.xlu0 %v3018, 64
        %v3068 = vpop.permute.xlu0 %3067
        %3069 = vrot.lane.b32.xlu0 %v3019, 64
        %v3070 = vpop.permute.xlu0 %3069
        %3071 = vrot.lane.b32.xlu0 %v3020, 64
        %v3072 = vpop.permute.xlu0 %3071
        %3073 = vrot.lane.b32.xlu0 %v3021, 64
        %v3074 = vpop.permute.xlu0 %3073
        %3075 = vrot.lane.b32.xlu0 %v3022, 64
        %v3076 = vpop.permute.xlu0 %3075
        %v3079 = vsel %vm332, %v2951, %v3042
        %v3083 = vsel %vm332, %v2952, %v3044
        %v3087 = vsel %vm332, %v2953, %v3046
        %v3091 = vsel %vm332, %v2954, %v3048
        %v3095 = vsel %vm332, %v2955, %v3050
        %v3099 = vsel %vm332, %v2956, %v3052
        %v3103 = vsel %vm332, %v2957, %v3054
        %v3107 = vsel %vm332, %v2958, %v3056
        %v3111 = vsel %vm332, %v2959, %v3058
        %v3115 = vsel %vm332, %v2960, %v3060
        %v3119 = vsel %vm332, %v2961, %v3062
        %v3123 = vsel %vm332, %v2962, %v3064
        %v3127 = vsel %vm332, %v2963, %v3066
        %v3131 = vsel %vm332, %v2964, %v3068
        %v3135 = vsel %vm332, %v2965, %v3070
        %v3139 = vsel %vm332, %v2966, %v3072
        %v3143 = vsel %vm332, %v2967, %v3074
        %v3147 = vsel %vm332, %v2968, %v3076
        %3149 = vst [vmem:[#allocation3] sm:$0xff] %v3079
        %3150 = vst [vmem:[#allocation3 + $0x28] sm:$0xff] %v3083
        %3151 = vst [vmem:[#allocation3 + $0x50] sm:$0xff] %v3087
        %3152 = vst [vmem:[#allocation3 + $0x78] sm:$0xff] %v3091
        %3153 = vst [vmem:[#allocation3 + $0xa0] sm:$0xff] %v3095
        %3154 = vst [vmem:[#allocation3 + $0xc8] sm:$0xff] %v3099
        %3155 = vst [vmem:[#allocation3 + $0xf0] sm:$0xff] %v3103
        %3156 = vst [vmem:[#allocation3 + $0x118] sm:$0xff] %v3107
        %3157 = vst [vmem:[#allocation3 + $0x140] sm:$0xff] %v3111
        %3158 = vst [vmem:[#allocation3 + $0x168] sm:$0xff] %v3115
        %3159 = vst [vmem:[#allocation3 + $0x190] sm:$0xff] %v3119
        %3160 = vst [vmem:[#allocation3 + $0x1b8] sm:$0xff] %v3123
        %3161 = vst [vmem:[#allocation3 + $0x1e0] sm:$0xff] %v3127
        %3162 = vst [vmem:[#allocation3 + $0x208] sm:$0xff] %v3131
        %3163 = vst [vmem:[#allocation3 + $0x230] sm:$0xff] %v3135
        %3164 = vst [vmem:[#allocation3 + $0x258] sm:$0xff] %v3139
        %3165 = vst [vmem:[#allocation3 + $0x280] sm:$0xff] %v3143
        %3166 = vst [vmem:[#allocation3 + $0x2a8] sm:$0xff] %v3147
        %v3167 = vld [vmem:[#allocation2 + $0x2] sm:$0xff]
        %v3168 = vld [vmem:[#allocation2 + $0xa] sm:$0xff]
        %v3169 = vld [vmem:[#allocation2 + $0x12] sm:$0xff]
        %v3170 = vld [vmem:[#allocation2 + $0x1a] sm:$0xff]
        %v3171 = vld [vmem:[#allocation2 + $0x22] sm:$0xff]
        %v3172 = vld [vmem:[#allocation2 + $0x2a] sm:$0xff]
        %v3173 = vld [vmem:[#allocation2 + $0x32] sm:$0xff]
        %v3174 = vld [vmem:[#allocation2 + $0x3a] sm:$0xff]
        %v3175 = vld [vmem:[#allocation2 + $0x42] sm:$0xff]
        %v3176 = vld [vmem:[#allocation2 + $0x4a] sm:$0xff]
        %v3177 = vld [vmem:[#allocation2 + $0x52] sm:$0xff]
        %v3178 = vld [vmem:[#allocation2 + $0x5a] sm:$0xff]
        %v3179 = vld [vmem:[#allocation2 + $0x62] sm:$0xff]
        %v3180 = vld [vmem:[#allocation2 + $0x6a] sm:$0xff]
        %v3181 = vld [vmem:[#allocation2 + $0x72] sm:$0xff]
        %v3182 = vld [vmem:[#allocation2 + $0x7a] sm:$0xff]
        %v3183 = vld [vmem:[#allocation2 + $0x82] sm:$0xff]
        %v3184 = vld [vmem:[#allocation2 + $0x8a] sm:$0xff]
        %v3185 = vld [vmem:[#allocation2 + $0x92] sm:$0xff]
        %v3186 = vld [vmem:[#allocation2 + $0x9a] sm:$0xff]
        %v3187 = vld [vmem:[#allocation2 + $0xa2] sm:$0xff]
        %v3188 = vld [vmem:[#allocation2 + $0xaa] sm:$0xff]
        %v3189 = vld [vmem:[#allocation2 + $0xb2] sm:$0xff]
        %v3190 = vld [vmem:[#allocation2 + $0xba] sm:$0xff]
        %v3191 = vld [vmem:[#allocation2 + $0xc2] sm:$0xff]
        %v3192 = vld [vmem:[#allocation2 + $0xca] sm:$0xff]
        %v3193 = vld [vmem:[#allocation2 + $0xd2] sm:$0xff]
        %v3194 = vld [vmem:[#allocation2 + $0xda] sm:$0xff]
        %v3195 = vld [vmem:[#allocation2 + $0xe2] sm:$0xff]
        %v3196 = vld [vmem:[#allocation2 + $0xea] sm:$0xff]
        %v3197 = vld [vmem:[#allocation2 + $0xf2] sm:$0xff]
        %v3198 = vld [vmem:[#allocation2 + $0xfa] sm:$0xff]
        %v3199 = vld [vmem:[#allocation2 + $0x102] sm:$0xff]
        %v3200 = vld [vmem:[#allocation2 + $0x10a] sm:$0xff]
        %v3201 = vld [vmem:[#allocation2 + $0x112] sm:$0xff]
        %v3202 = vld [vmem:[#allocation2 + $0x11a] sm:$0xff]
        %v3203 = vpack.c.bf16 %v3168, %v3167
        %v3204 = vpack.c.bf16 %v3170, %v3169
        %v3205 = vpack.c.bf16 %v3172, %v3171
        %v3206 = vpack.c.bf16 %v3174, %v3173
        %v3207 = vpack.c.bf16 %v3176, %v3175
        %v3208 = vpack.c.bf16 %v3178, %v3177
        %v3209 = vpack.c.bf16 %v3180, %v3179
        %v3210 = vpack.c.bf16 %v3182, %v3181
        %v3211 = vpack.c.bf16 %v3184, %v3183
        %v3212 = vpack.c.bf16 %v3186, %v3185
        %v3213 = vpack.c.bf16 %v3188, %v3187
        %v3214 = vpack.c.bf16 %v3190, %v3189
        %v3215 = vpack.c.bf16 %v3192, %v3191
        %v3216 = vpack.c.bf16 %v3194, %v3193
        %v3217 = vpack.c.bf16 %v3196, %v3195
        %v3218 = vpack.c.bf16 %v3198, %v3197
        %v3219 = vpack.c.bf16 %v3200, %v3199
        %v3220 = vpack.c.bf16 %v3202, %v3201
        %v3221 = vld [vmem:[#allocation2 + $0x122] sm:$0xff]
        %v3222 = vld [vmem:[#allocation2 + $0x12a] sm:$0xff]
        %v3223 = vpack.c.bf16 %v3222, %v3221
        %3242 = vrot.lane.b32.xlu0 %v3204, 64
        %v3243 = vpop.permute.xlu0 %3242
        %3244 = vrot.lane.b32.xlu0 %v3205, 64
        %v3245 = vpop.permute.xlu0 %3244
        %3246 = vrot.lane.b32.xlu0 %v3206, 64
        %v3247 = vpop.permute.xlu0 %3246
        %3248 = vrot.lane.b32.xlu0 %v3207, 64
        %v3249 = vpop.permute.xlu0 %3248
        %3250 = vrot.lane.b32.xlu0 %v3208, 64
        %v3251 = vpop.permute.xlu0 %3250
        %3252 = vrot.lane.b32.xlu0 %v3209, 64
        %v3253 = vpop.permute.xlu0 %3252
        %3254 = vrot.lane.b32.xlu0 %v3210, 64
        %v3255 = vpop.permute.xlu0 %3254
        %3256 = vrot.lane.b32.xlu0 %v3211, 64
        %v3257 = vpop.permute.xlu0 %3256
        %3258 = vrot.lane.b32.xlu0 %v3212, 64
        %v3259 = vpop.permute.xlu0 %3258
        %3260 = vrot.lane.b32.xlu0 %v3213, 64
        %v3261 = vpop.permute.xlu0 %3260
        %3262 = vrot.lane.b32.xlu0 %v3214, 64
        %v3263 = vpop.permute.xlu0 %3262
        %3264 = vrot.lane.b32.xlu0 %v3215, 64
        %v3265 = vpop.permute.xlu0 %3264
        %3266 = vrot.lane.b32.xlu0 %v3216, 64
        %v3267 = vpop.permute.xlu0 %3266
        %3268 = vrot.lane.b32.xlu0 %v3217, 64
        %v3269 = vpop.permute.xlu0 %3268
        %3270 = vrot.lane.b32.xlu0 %v3218, 64
        %v3271 = vpop.permute.xlu0 %3270
        %3272 = vrot.lane.b32.xlu0 %v3219, 64
        %v3273 = vpop.permute.xlu0 %3272
        %3274 = vrot.lane.b32.xlu0 %v3220, 64
        %v3275 = vpop.permute.xlu0 %3274
        %3276 = vrot.lane.b32.xlu0 %v3223, 64
        %v3277 = vpop.permute.xlu0 %3276
        %v3280 = vsel %vm332, %v3203, %v3243
        %v3284 = vsel %vm332, %v3204, %v3245
        %v3288 = vsel %vm332, %v3205, %v3247
        %v3292 = vsel %vm332, %v3206, %v3249
        %v3296 = vsel %vm332, %v3207, %v3251
        %v3300 = vsel %vm332, %v3208, %v3253
        %v3304 = vsel %vm332, %v3209, %v3255
        %v3308 = vsel %vm332, %v3210, %v3257
        %v3312 = vsel %vm332, %v3211, %v3259
        %v3316 = vsel %vm332, %v3212, %v3261
        %v3320 = vsel %vm332, %v3213, %v3263
        %v3324 = vsel %vm332, %v3214, %v3265
        %v3328 = vsel %vm332, %v3215, %v3267
        %v3332 = vsel %vm332, %v3216, %v3269
        %v3336 = vsel %vm332, %v3217, %v3271
        %v3340 = vsel %vm332, %v3218, %v3273
        %v3344 = vsel %vm332, %v3219, %v3275
        %v3348 = vsel %vm332, %v3220, %v3277
        %3350 = vst [vmem:[#allocation3 + $0x8] sm:$0xff] %v3280
        %3351 = vst [vmem:[#allocation3 + $0x30] sm:$0xff] %v3284
        %3352 = vst [vmem:[#allocation3 + $0x58] sm:$0xff] %v3288
        %3353 = vst [vmem:[#allocation3 + $0x80] sm:$0xff] %v3292
        %3354 = vst [vmem:[#allocation3 + $0xa8] sm:$0xff] %v3296
        %3355 = vst [vmem:[#allocation3 + $0xd0] sm:$0xff] %v3300
        %3356 = vst [vmem:[#allocation3 + $0xf8] sm:$0xff] %v3304
        %3357 = vst [vmem:[#allocation3 + $0x120] sm:$0xff] %v3308
        %3358 = vst [vmem:[#allocation3 + $0x148] sm:$0xff] %v3312
        %3359 = vst [vmem:[#allocation3 + $0x170] sm:$0xff] %v3316
        %3360 = vst [vmem:[#allocation3 + $0x198] sm:$0xff] %v3320
        %3361 = vst [vmem:[#allocation3 + $0x1c0] sm:$0xff] %v3324
        %3362 = vst [vmem:[#allocation3 + $0x1e8] sm:$0xff] %v3328
        %3363 = vst [vmem:[#allocation3 + $0x210] sm:$0xff] %v3332
        %3364 = vst [vmem:[#allocation3 + $0x238] sm:$0xff] %v3336
        %3365 = vst [vmem:[#allocation3 + $0x260] sm:$0xff] %v3340
        %3366 = vst [vmem:[#allocation3 + $0x288] sm:$0xff] %v3344
        %3367 = vst [vmem:[#allocation3 + $0x2b0] sm:$0xff] %v3348
        %v3368 = vld [vmem:[#allocation2 + $0x13] sm:$0xff]
        %v3369 = vld [vmem:[#allocation2 + $0x1b] sm:$0xff]
        %v3370 = vld [vmem:[#allocation2 + $0x23] sm:$0xff]
        %v3371 = vld [vmem:[#allocation2 + $0x2b] sm:$0xff]
        %v3372 = vld [vmem:[#allocation2 + $0x33] sm:$0xff]
        %v3373 = vld [vmem:[#allocation2 + $0x3b] sm:$0xff]
        %v3374 = vld [vmem:[#allocation2 + $0x43] sm:$0xff]
        %v3375 = vld [vmem:[#allocation2 + $0x4b] sm:$0xff]
        %v3376 = vld [vmem:[#allocation2 + $0x53] sm:$0xff]
        %v3377 = vld [vmem:[#allocation2 + $0x5b] sm:$0xff]
        %v3378 = vld [vmem:[#allocation2 + $0x63] sm:$0xff]
        %v3379 = vld [vmem:[#allocation2 + $0x6b] sm:$0xff]
        %v3380 = vld [vmem:[#allocation2 + $0x73] sm:$0xff]
        %v3381 = vld [vmem:[#allocation2 + $0x7b] sm:$0xff]
        %v3382 = vld [vmem:[#allocation2 + $0x83] sm:$0xff]
        %v3383 = vld [vmem:[#allocation2 + $0x8b] sm:$0xff]
        %v3384 = vld [vmem:[#allocation2 + $0x93] sm:$0xff]
        %v3385 = vld [vmem:[#allocation2 + $0x9b] sm:$0xff]
        %v3386 = vld [vmem:[#allocation2 + $0xa3] sm:$0xff]
        %v3387 = vld [vmem:[#allocation2 + $0xab] sm:$0xff]
        %v3388 = vld [vmem:[#allocation2 + $0xb3] sm:$0xff]
        %v3389 = vld [vmem:[#allocation2 + $0xbb] sm:$0xff]
        %v3390 = vld [vmem:[#allocation2 + $0xc3] sm:$0xff]
        %v3391 = vld [vmem:[#allocation2 + $0xcb] sm:$0xff]
        %v3392 = vld [vmem:[#allocation2 + $0xd3] sm:$0xff]
        %v3393 = vld [vmem:[#allocation2 + $0xdb] sm:$0xff]
        %v3394 = vld [vmem:[#allocation2 + $0xe3] sm:$0xff]
        %v3395 = vld [vmem:[#allocation2 + $0xeb] sm:$0xff]
        %v3396 = vld [vmem:[#allocation2 + $0xf3] sm:$0xff]
        %v3397 = vld [vmem:[#allocation2 + $0xfb] sm:$0xff]
        %v3398 = vld [vmem:[#allocation2 + $0x103] sm:$0xff]
        %v3399 = vld [vmem:[#allocation2 + $0x10b] sm:$0xff]
        %v3400 = vld [vmem:[#allocation2 + $0x113] sm:$0xff]
        %v3401 = vld [vmem:[#allocation2 + $0x11b] sm:$0xff]
        %v3402 = vld [vmem:[#allocation2 + $0x123] sm:$0xff]
        %v3403 = vld [vmem:[#allocation2 + $0x12b] sm:$0xff]
        %v3404 = vpack.c.bf16 %v3369, %v3368
        %v3405 = vpack.c.bf16 %v3371, %v3370
        %v3406 = vpack.c.bf16 %v3373, %v3372
        %v3407 = vpack.c.bf16 %v3375, %v3374
        %v3408 = vpack.c.bf16 %v3377, %v3376
        %v3409 = vpack.c.bf16 %v3379, %v3378
        %v3410 = vpack.c.bf16 %v3381, %v3380
        %v3411 = vpack.c.bf16 %v3383, %v3382
        %v3412 = vpack.c.bf16 %v3385, %v3384
        %v3413 = vpack.c.bf16 %v3387, %v3386
        %v3414 = vpack.c.bf16 %v3389, %v3388
        %v3415 = vpack.c.bf16 %v3391, %v3390
        %v3416 = vpack.c.bf16 %v3393, %v3392
        %v3417 = vpack.c.bf16 %v3395, %v3394
        %v3418 = vpack.c.bf16 %v3397, %v3396
        %v3419 = vpack.c.bf16 %v3399, %v3398
        %v3420 = vpack.c.bf16 %v3401, %v3400
        %v3421 = vpack.c.bf16 %v3403, %v3402
        %v3422 = vld [vmem:[#allocation2 + $0x14] sm:$0xff]
        %v3423 = vld [vmem:[#allocation2 + $0x1c] sm:$0xff]
        %v3424 = vld [vmem:[#allocation2 + $0x24] sm:$0xff]
        %v3425 = vld [vmem:[#allocation2 + $0x2c] sm:$0xff]
        %v3426 = vld [vmem:[#allocation2 + $0x34] sm:$0xff]
        %v3427 = vld [vmem:[#allocation2 + $0x3c] sm:$0xff]
        %v3428 = vld [vmem:[#allocation2 + $0x44] sm:$0xff]
        %v3429 = vld [vmem:[#allocation2 + $0x4c] sm:$0xff]
        %v3430 = vld [vmem:[#allocation2 + $0x54] sm:$0xff]
        %v3431 = vld [vmem:[#allocation2 + $0x5c] sm:$0xff]
        %v3432 = vld [vmem:[#allocation2 + $0x64] sm:$0xff]
        %v3433 = vld [vmem:[#allocation2 + $0x6c] sm:$0xff]
        %v3434 = vld [vmem:[#allocation2 + $0x74] sm:$0xff]
        %v3435 = vld [vmem:[#allocation2 + $0x7c] sm:$0xff]
        %v3436 = vld [vmem:[#allocation2 + $0x84] sm:$0xff]
        %v3437 = vld [vmem:[#allocation2 + $0x8c] sm:$0xff]
        %v3438 = vld [vmem:[#allocation2 + $0x94] sm:$0xff]
        %v3439 = vld [vmem:[#allocation2 + $0x9c] sm:$0xff]
        %v3440 = vld [vmem:[#allocation2 + $0xa4] sm:$0xff]
        %v3441 = vld [vmem:[#allocation2 + $0xac] sm:$0xff]
        %v3442 = vld [vmem:[#allocation2 + $0xb4] sm:$0xff]
        %v3443 = vld [vmem:[#allocation2 + $0xbc] sm:$0xff]
        %v3444 = vld [vmem:[#allocation2 + $0xc4] sm:$0xff]
        %v3445 = vld [vmem:[#allocation2 + $0xcc] sm:$0xff]
        %v3446 = vld [vmem:[#allocation2 + $0xd4] sm:$0xff]
        %v3447 = vld [vmem:[#allocation2 + $0xdc] sm:$0xff]
        %v3448 = vld [vmem:[#allocation2 + $0xe4] sm:$0xff]
        %v3449 = vld [vmem:[#allocation2 + $0xec] sm:$0xff]
        %v3450 = vld [vmem:[#allocation2 + $0xf4] sm:$0xff]
        %v3451 = vld [vmem:[#allocation2 + $0xfc] sm:$0xff]
        %v3452 = vld [vmem:[#allocation2 + $0x104] sm:$0xff]
        %v3453 = vld [vmem:[#allocation2 + $0x10c] sm:$0xff]
        %v3454 = vld [vmem:[#allocation2 + $0x114] sm:$0xff]
        %v3455 = vld [vmem:[#allocation2 + $0x11c] sm:$0xff]
        %v3456 = vld [vmem:[#allocation2 + $0x124] sm:$0xff]
        %v3457 = vld [vmem:[#allocation2 + $0x12c] sm:$0xff]
        %v3458 = vpack.c.bf16 %v3423, %v3422
        %v3459 = vpack.c.bf16 %v3425, %v3424
        %v3460 = vpack.c.bf16 %v3427, %v3426
        %v3461 = vpack.c.bf16 %v3429, %v3428
        %v3462 = vpack.c.bf16 %v3431, %v3430
        %v3463 = vpack.c.bf16 %v3433, %v3432
        %v3464 = vpack.c.bf16 %v3435, %v3434
        %v3465 = vpack.c.bf16 %v3437, %v3436
        %v3466 = vpack.c.bf16 %v3439, %v3438
        %v3467 = vpack.c.bf16 %v3441, %v3440
        %v3468 = vpack.c.bf16 %v3443, %v3442
        %v3469 = vpack.c.bf16 %v3445, %v3444
        %v3470 = vpack.c.bf16 %v3447, %v3446
        %v3471 = vpack.c.bf16 %v3449, %v3448
        %v3472 = vpack.c.bf16 %v3451, %v3450
        %v3473 = vpack.c.bf16 %v3453, %v3452
        %v3474 = vpack.c.bf16 %v3455, %v3454
        %v3475 = vpack.c.bf16 %v3457, %v3456
        %3494 = vrot.lane.b32.xlu0 %v3458, 64
        %v3495 = vpop.permute.xlu0 %3494
        %3496 = vrot.lane.b32.xlu0 %v3459, 64
        %v3497 = vpop.permute.xlu0 %3496
        %3498 = vrot.lane.b32.xlu0 %v3460, 64
        %v3499 = vpop.permute.xlu0 %3498
        %3500 = vrot.lane.b32.xlu0 %v3461, 64
        %v3501 = vpop.permute.xlu0 %3500
        %3502 = vrot.lane.b32.xlu0 %v3462, 64
        %v3503 = vpop.permute.xlu0 %3502
        %3504 = vrot.lane.b32.xlu0 %v3463, 64
        %v3505 = vpop.permute.xlu0 %3504
        %3506 = vrot.lane.b32.xlu0 %v3464, 64
        %v3507 = vpop.permute.xlu0 %3506
        %3508 = vrot.lane.b32.xlu0 %v3465, 64
        %v3509 = vpop.permute.xlu0 %3508
        %3510 = vrot.lane.b32.xlu0 %v3466, 64
        %v3511 = vpop.permute.xlu0 %3510
        %3512 = vrot.lane.b32.xlu0 %v3467, 64
        %v3513 = vpop.permute.xlu0 %3512
        %3514 = vrot.lane.b32.xlu0 %v3468, 64
        %v3515 = vpop.permute.xlu0 %3514
        %3516 = vrot.lane.b32.xlu0 %v3469, 64
        %v3517 = vpop.permute.xlu0 %3516
        %3518 = vrot.lane.b32.xlu0 %v3470, 64
        %v3519 = vpop.permute.xlu0 %3518
        %3520 = vrot.lane.b32.xlu0 %v3471, 64
        %v3521 = vpop.permute.xlu0 %3520
        %3522 = vrot.lane.b32.xlu0 %v3472, 64
        %v3523 = vpop.permute.xlu0 %3522
        %3524 = vrot.lane.b32.xlu0 %v3473, 64
        %v3525 = vpop.permute.xlu0 %3524
        %3526 = vrot.lane.b32.xlu0 %v3474, 64
        %v3527 = vpop.permute.xlu0 %3526
        %3528 = vrot.lane.b32.xlu0 %v3475, 64
        %v3529 = vpop.permute.xlu0 %3528
        %v3532 = vsel %vm332, %v3404, %v3495
        %v3536 = vsel %vm332, %v3405, %v3497
        %v3540 = vsel %vm332, %v3406, %v3499
        %v3544 = vsel %vm332, %v3407, %v3501
        %v3548 = vsel %vm332, %v3408, %v3503
        %v3552 = vsel %vm332, %v3409, %v3505
        %v3556 = vsel %vm332, %v3410, %v3507
        %v3560 = vsel %vm332, %v3411, %v3509
        %v3564 = vsel %vm332, %v3412, %v3511
        %v3568 = vsel %vm332, %v3413, %v3513
        %v3572 = vsel %vm332, %v3414, %v3515
        %v3576 = vsel %vm332, %v3415, %v3517
        %v3580 = vsel %vm332, %v3416, %v3519
        %v3584 = vsel %vm332, %v3417, %v3521
        %v3588 = vsel %vm332, %v3418, %v3523
        %v3592 = vsel %vm332, %v3419, %v3525
        %v3596 = vsel %vm332, %v3420, %v3527
        %v3600 = vsel %vm332, %v3421, %v3529
        %3602 = vst [vmem:[#allocation3 + $0x10] sm:$0xff] %v3532
        %3603 = vst [vmem:[#allocation3 + $0x38] sm:$0xff] %v3536
        %3604 = vst [vmem:[#allocation3 + $0x60] sm:$0xff] %v3540
        %3605 = vst [vmem:[#allocation3 + $0x88] sm:$0xff] %v3544
        %3606 = vst [vmem:[#allocation3 + $0xb0] sm:$0xff] %v3548
        %3607 = vst [vmem:[#allocation3 + $0xd8] sm:$0xff] %v3552
        %3608 = vst [vmem:[#allocation3 + $0x100] sm:$0xff] %v3556
        %3609 = vst [vmem:[#allocation3 + $0x128] sm:$0xff] %v3560
        %3610 = vst [vmem:[#allocation3 + $0x150] sm:$0xff] %v3564
        %3611 = vst [vmem:[#allocation3 + $0x178] sm:$0xff] %v3568
        %3612 = vst [vmem:[#allocation3 + $0x1a0] sm:$0xff] %v3572
        %3613 = vst [vmem:[#allocation3 + $0x1c8] sm:$0xff] %v3576
        %3614 = vst [vmem:[#allocation3 + $0x1f0] sm:$0xff] %v3580
        %3615 = vst [vmem:[#allocation3 + $0x218] sm:$0xff] %v3584
        %3616 = vst [vmem:[#allocation3 + $0x240] sm:$0xff] %v3588
        %3617 = vst [vmem:[#allocation3 + $0x268] sm:$0xff] %v3592
        %3618 = vst [vmem:[#allocation3 + $0x290] sm:$0xff] %v3596
        %3619 = vst [vmem:[#allocation3 + $0x2b8] sm:$0xff] %v3600
        %v3620 = vld [vmem:[#allocation2 + $0x24] sm:$0xff]
        %v3621 = vld [vmem:[#allocation2 + $0x2c] sm:$0xff]
        %v3622 = vld [vmem:[#allocation2 + $0x34] sm:$0xff]
        %v3623 = vld [vmem:[#allocation2 + $0x3c] sm:$0xff]
        %v3624 = vld [vmem:[#allocation2 + $0x44] sm:$0xff]
        %v3625 = vld [vmem:[#allocation2 + $0x4c] sm:$0xff]
        %v3626 = vld [vmem:[#allocation2 + $0x54] sm:$0xff]
        %v3627 = vld [vmem:[#allocation2 + $0x5c] sm:$0xff]
        %v3628 = vld [vmem:[#allocation2 + $0x64] sm:$0xff]
        %v3629 = vld [vmem:[#allocation2 + $0x6c] sm:$0xff]
        %v3630 = vld [vmem:[#allocation2 + $0x74] sm:$0xff]
        %v3631 = vld [vmem:[#allocation2 + $0x7c] sm:$0xff]
        %v3632 = vld [vmem:[#allocation2 + $0x84] sm:$0xff]
        %v3633 = vld [vmem:[#allocation2 + $0x8c] sm:$0xff]
        %v3634 = vld [vmem:[#allocation2 + $0x94] sm:$0xff]
        %v3635 = vld [vmem:[#allocation2 + $0x9c] sm:$0xff]
        %v3636 = vld [vmem:[#allocation2 + $0xa4] sm:$0xff]
        %v3637 = vld [vmem:[#allocation2 + $0xac] sm:$0xff]
        %v3638 = vld [vmem:[#allocation2 + $0xb4] sm:$0xff]
        %v3639 = vld [vmem:[#allocation2 + $0xbc] sm:$0xff]
        %v3640 = vld [vmem:[#allocation2 + $0xc4] sm:$0xff]
        %v3641 = vld [vmem:[#allocation2 + $0xcc] sm:$0xff]
        %v3642 = vld [vmem:[#allocation2 + $0xd4] sm:$0xff]
        %v3643 = vld [vmem:[#allocation2 + $0xdc] sm:$0xff]
        %v3644 = vld [vmem:[#allocation2 + $0xe4] sm:$0xff]
        %v3645 = vld [vmem:[#allocation2 + $0xec] sm:$0xff]
        %v3646 = vld [vmem:[#allocation2 + $0xf4] sm:$0xff]
        %v3647 = vld [vmem:[#allocation2 + $0xfc] sm:$0xff]
        %v3648 = vld [vmem:[#allocation2 + $0x104] sm:$0xff]
        %v3649 = vld [vmem:[#allocation2 + $0x10c] sm:$0xff]
        %v3650 = vld [vmem:[#allocation2 + $0x114] sm:$0xff]
        %v3651 = vld [vmem:[#allocation2 + $0x11c] sm:$0xff]
        %v3652 = vld [vmem:[#allocation2 + $0x124] sm:$0xff]
        %v3653 = vld [vmem:[#allocation2 + $0x12c] sm:$0xff]
        %v3654 = vld [vmem:[#allocation2 + $0x134] sm:$0xff]
        %v3655 = vld [vmem:[#allocation2 + $0x13c] sm:$0xff]
        %v3656 = vpack.c.bf16 %v3621, %v3620
        %v3657 = vpack.c.bf16 %v3623, %v3622
        %v3658 = vpack.c.bf16 %v3625, %v3624
        %v3659 = vpack.c.bf16 %v3627, %v3626
        %v3660 = vpack.c.bf16 %v3629, %v3628
        %v3661 = vpack.c.bf16 %v3631, %v3630
        %v3662 = vpack.c.bf16 %v3633, %v3632
        %v3663 = vpack.c.bf16 %v3635, %v3634
        %v3664 = vpack.c.bf16 %v3637, %v3636
        %v3665 = vpack.c.bf16 %v3639, %v3638
        %v3666 = vpack.c.bf16 %v3641, %v3640
        %v3667 = vpack.c.bf16 %v3643, %v3642
        %v3668 = vpack.c.bf16 %v3645, %v3644
        %v3669 = vpack.c.bf16 %v3647, %v3646
        %v3670 = vpack.c.bf16 %v3649, %v3648
        %v3671 = vpack.c.bf16 %v3651, %v3650
        %v3672 = vpack.c.bf16 %v3653, %v3652
        %v3673 = vpack.c.bf16 %v3655, %v3654
        %v3674 = vld [vmem:[#allocation2 + $0x25] sm:$0xff]
        %v3675 = vld [vmem:[#allocation2 + $0x2d] sm:$0xff]
        %v3676 = vld [vmem:[#allocation2 + $0x35] sm:$0xff]
        %v3677 = vld [vmem:[#allocation2 + $0x3d] sm:$0xff]
        %v3678 = vld [vmem:[#allocation2 + $0x45] sm:$0xff]
        %v3679 = vld [vmem:[#allocation2 + $0x4d] sm:$0xff]
        %v3680 = vld [vmem:[#allocation2 + $0x55] sm:$0xff]
        %v3681 = vld [vmem:[#allocation2 + $0x5d] sm:$0xff]
        %v3682 = vld [vmem:[#allocation2 + $0x65] sm:$0xff]
        %v3683 = vld [vmem:[#allocation2 + $0x6d] sm:$0xff]
        %v3684 = vld [vmem:[#allocation2 + $0x75] sm:$0xff]
        %v3685 = vld [vmem:[#allocation2 + $0x7d] sm:$0xff]
        %v3686 = vld [vmem:[#allocation2 + $0x85] sm:$0xff]
        %v3687 = vld [vmem:[#allocation2 + $0x8d] sm:$0xff]
        %v3688 = vld [vmem:[#allocation2 + $0x95] sm:$0xff]
        %v3689 = vld [vmem:[#allocation2 + $0x9d] sm:$0xff]
        %v3690 = vld [vmem:[#allocation2 + $0xa5] sm:$0xff]
        %v3691 = vld [vmem:[#allocation2 + $0xad] sm:$0xff]
        %v3692 = vld [vmem:[#allocation2 + $0xb5] sm:$0xff]
        %v3693 = vld [vmem:[#allocation2 + $0xbd] sm:$0xff]
        %v3694 = vld [vmem:[#allocation2 + $0xc5] sm:$0xff]
        %v3695 = vld [vmem:[#allocation2 + $0xcd] sm:$0xff]
        %v3696 = vld [vmem:[#allocation2 + $0xd5] sm:$0xff]
        %v3697 = vld [vmem:[#allocation2 + $0xdd] sm:$0xff]
        %v3698 = vld [vmem:[#allocation2 + $0xe5] sm:$0xff]
        %v3699 = vld [vmem:[#allocation2 + $0xed] sm:$0xff]
        %v3700 = vld [vmem:[#allocation2 + $0xf5] sm:$0xff]
        %v3701 = vld [vmem:[#allocation2 + $0xfd] sm:$0xff]
        %v3702 = vld [vmem:[#allocation2 + $0x105] sm:$0xff]
        %v3703 = vld [vmem:[#allocation2 + $0x10d] sm:$0xff]
        %v3704 = vld [vmem:[#allocation2 + $0x115] sm:$0xff]
        %v3705 = vld [vmem:[#allocation2 + $0x11d] sm:$0xff]
        %v3706 = vld [vmem:[#allocation2 + $0x125] sm:$0xff]
        %v3707 = vld [vmem:[#allocation2 + $0x12d] sm:$0xff]
        %v3708 = vld [vmem:[#allocation2 + $0x135] sm:$0xff]
        %v3709 = vld [vmem:[#allocation2 + $0x13d] sm:$0xff]
        %v3710 = vpack.c.bf16 %v3675, %v3674
        %v3711 = vpack.c.bf16 %v3677, %v3676
        %v3712 = vpack.c.bf16 %v3679, %v3678
        %v3713 = vpack.c.bf16 %v3681, %v3680
        %v3714 = vpack.c.bf16 %v3683, %v3682
        %v3715 = vpack.c.bf16 %v3685, %v3684
        %v3716 = vpack.c.bf16 %v3687, %v3686
        %v3717 = vpack.c.bf16 %v3689, %v3688
        %v3718 = vpack.c.bf16 %v3691, %v3690
        %v3719 = vpack.c.bf16 %v3693, %v3692
        %v3720 = vpack.c.bf16 %v3695, %v3694
        %v3721 = vpack.c.bf16 %v3697, %v3696
        %v3722 = vpack.c.bf16 %v3699, %v3698
        %v3723 = vpack.c.bf16 %v3701, %v3700
        %v3724 = vpack.c.bf16 %v3703, %v3702
        %v3725 = vpack.c.bf16 %v3705, %v3704
        %v3726 = vpack.c.bf16 %v3707, %v3706
        %v3727 = vpack.c.bf16 %v3709, %v3708
        %3746 = vrot.lane.b32.xlu0 %v3710, 64
        %v3747 = vpop.permute.xlu0 %3746
        %3748 = vrot.lane.b32.xlu0 %v3711, 64
        %v3749 = vpop.permute.xlu0 %3748
        %3750 = vrot.lane.b32.xlu0 %v3712, 64
        %v3751 = vpop.permute.xlu0 %3750
        %3752 = vrot.lane.b32.xlu0 %v3713, 64
        %v3753 = vpop.permute.xlu0 %3752
        %3754 = vrot.lane.b32.xlu0 %v3714, 64
        %v3755 = vpop.permute.xlu0 %3754
        %3756 = vrot.lane.b32.xlu0 %v3715, 64
        %v3757 = vpop.permute.xlu0 %3756
        %3758 = vrot.lane.b32.xlu0 %v3716, 64
        %v3759 = vpop.permute.xlu0 %3758
        %3760 = vrot.lane.b32.xlu0 %v3717, 64
        %v3761 = vpop.permute.xlu0 %3760
        %3762 = vrot.lane.b32.xlu0 %v3718, 64
        %v3763 = vpop.permute.xlu0 %3762
        %3764 = vrot.lane.b32.xlu0 %v3719, 64
        %v3765 = vpop.permute.xlu0 %3764
        %3766 = vrot.lane.b32.xlu0 %v3720, 64
        %v3767 = vpop.permute.xlu0 %3766
        %3768 = vrot.lane.b32.xlu0 %v3721, 64
        %v3769 = vpop.permute.xlu0 %3768
        %3770 = vrot.lane.b32.xlu0 %v3722, 64
        %v3771 = vpop.permute.xlu0 %3770
        %3772 = vrot.lane.b32.xlu0 %v3723, 64
        %v3773 = vpop.permute.xlu0 %3772
        %3774 = vrot.lane.b32.xlu0 %v3724, 64
        %v3775 = vpop.permute.xlu0 %3774
        %3776 = vrot.lane.b32.xlu0 %v3725, 64
        %v3777 = vpop.permute.xlu0 %3776
        %3778 = vrot.lane.b32.xlu0 %v3726, 64
        %v3779 = vpop.permute.xlu0 %3778
        %3780 = vrot.lane.b32.xlu0 %v3727, 64
        %v3781 = vpop.permute.xlu0 %3780
        %v3784 = vsel %vm332, %v3656, %v3747
        %v3788 = vsel %vm332, %v3657, %v3749
        %v3792 = vsel %vm332, %v3658, %v3751
        %v3796 = vsel %vm332, %v3659, %v3753
        %v3800 = vsel %vm332, %v3660, %v3755
        %v3804 = vsel %vm332, %v3661, %v3757
        %v3808 = vsel %vm332, %v3662, %v3759
        %v3812 = vsel %vm332, %v3663, %v3761
        %v3816 = vsel %vm332, %v3664, %v3763
        %v3820 = vsel %vm332, %v3665, %v3765
        %v3824 = vsel %vm332, %v3666, %v3767
        %v3828 = vsel %vm332, %v3667, %v3769
        %v3832 = vsel %vm332, %v3668, %v3771
        %v3836 = vsel %vm332, %v3669, %v3773
        %v3840 = vsel %vm332, %v3670, %v3775
        %v3844 = vsel %vm332, %v3671, %v3777
        %v3848 = vsel %vm332, %v3672, %v3779
        %v3852 = vsel %vm332, %v3673, %v3781
        %3854 = vst [vmem:[#allocation3 + $0x18] sm:$0xff] %v3784
        %3855 = vst [vmem:[#allocation3 + $0x40] sm:$0xff] %v3788
        %3856 = vst [vmem:[#allocation3 + $0x68] sm:$0xff] %v3792
        %3857 = vst [vmem:[#allocation3 + $0x90] sm:$0xff] %v3796
        %3858 = vst [vmem:[#allocation3 + $0xb8] sm:$0xff] %v3800
        %3859 = vst [vmem:[#allocation3 + $0xe0] sm:$0xff] %v3804
        %3860 = vst [vmem:[#allocation3 + $0x108] sm:$0xff] %v3808
        %3861 = vst [vmem:[#allocation3 + $0x130] sm:$0xff] %v3812
        %3862 = vst [vmem:[#allocation3 + $0x158] sm:$0xff] %v3816
        %3863 = vst [vmem:[#allocation3 + $0x180] sm:$0xff] %v3820
        %3864 = vst [vmem:[#allocation3 + $0x1a8] sm:$0xff] %v3824
        %3865 = vst [vmem:[#allocation3 + $0x1d0] sm:$0xff] %v3828
        %3866 = vst [vmem:[#allocation3 + $0x1f8] sm:$0xff] %v3832
        %3867 = vst [vmem:[#allocation3 + $0x220] sm:$0xff] %v3836
        %3868 = vst [vmem:[#allocation3 + $0x248] sm:$0xff] %v3840
        %3869 = vst [vmem:[#allocation3 + $0x270] sm:$0xff] %v3844
        %3870 = vst [vmem:[#allocation3 + $0x298] sm:$0xff] %v3848
        %3871 = vst [vmem:[#allocation3 + $0x2c0] sm:$0xff] %v3852
        %v3872 = vld [vmem:[#allocation2 + $0x26] sm:$0xff]
        %v3873 = vld [vmem:[#allocation2 + $0x2e] sm:$0xff]
        %v3874 = vld [vmem:[#allocation2 + $0x36] sm:$0xff]
        %v3875 = vld [vmem:[#allocation2 + $0x3e] sm:$0xff]
        %v3876 = vld [vmem:[#allocation2 + $0x46] sm:$0xff]
        %v3877 = vld [vmem:[#allocation2 + $0x4e] sm:$0xff]
        %v3878 = vld [vmem:[#allocation2 + $0x56] sm:$0xff]
        %v3879 = vld [vmem:[#allocation2 + $0x5e] sm:$0xff]
        %v3880 = vld [vmem:[#allocation2 + $0x66] sm:$0xff]
        %v3881 = vld [vmem:[#allocation2 + $0x6e] sm:$0xff]
        %v3882 = vld [vmem:[#allocation2 + $0x76] sm:$0xff]
        %v3883 = vld [vmem:[#allocation2 + $0x7e] sm:$0xff]
        %v3884 = vld [vmem:[#allocation2 + $0x86] sm:$0xff]
        %v3885 = vld [vmem:[#allocation2 + $0x8e] sm:$0xff]
        %v3886 = vld [vmem:[#allocation2 + $0x96] sm:$0xff]
        %v3887 = vld [vmem:[#allocation2 + $0x9e] sm:$0xff]
        %v3888 = vld [vmem:[#allocation2 + $0xa6] sm:$0xff]
        %v3889 = vld [vmem:[#allocation2 + $0xae] sm:$0xff]
        %v3890 = vld [vmem:[#allocation2 + $0xb6] sm:$0xff]
        %v3891 = vld [vmem:[#allocation2 + $0xbe] sm:$0xff]
        %v3892 = vld [vmem:[#allocation2 + $0xc6] sm:$0xff]
        %v3893 = vld [vmem:[#allocation2 + $0xce] sm:$0xff]
        %v3894 = vld [vmem:[#allocation2 + $0xd6] sm:$0xff]
        %v3895 = vld [vmem:[#allocation2 + $0xde] sm:$0xff]
        %v3896 = vld [vmem:[#allocation2 + $0xe6] sm:$0xff]
        %v3897 = vld [vmem:[#allocation2 + $0xee] sm:$0xff]
        %v3898 = vld [vmem:[#allocation2 + $0xf6] sm:$0xff]
        %v3899 = vld [vmem:[#allocation2 + $0xfe] sm:$0xff]
        %v3900 = vld [vmem:[#allocation2 + $0x106] sm:$0xff]
        %v3901 = vld [vmem:[#allocation2 + $0x10e] sm:$0xff]
        %v3902 = vld [vmem:[#allocation2 + $0x116] sm:$0xff]
        %v3903 = vld [vmem:[#allocation2 + $0x11e] sm:$0xff]
        %v3904 = vld [vmem:[#allocation2 + $0x126] sm:$0xff]
        %v3905 = vld [vmem:[#allocation2 + $0x12e] sm:$0xff]
        %v3906 = vld [vmem:[#allocation2 + $0x136] sm:$0xff]
        %v3907 = vld [vmem:[#allocation2 + $0x13e] sm:$0xff]
        %v3908 = vpack.c.bf16 %v3873, %v3872
        %v3909 = vpack.c.bf16 %v3875, %v3874
        %v3910 = vpack.c.bf16 %v3877, %v3876
        %v3911 = vpack.c.bf16 %v3879, %v3878
        %v3912 = vpack.c.bf16 %v3881, %v3880
        %v3913 = vpack.c.bf16 %v3883, %v3882
        %v3914 = vpack.c.bf16 %v3885, %v3884
        %v3915 = vpack.c.bf16 %v3887, %v3886
        %v3916 = vpack.c.bf16 %v3889, %v3888
        %v3917 = vpack.c.bf16 %v3891, %v3890
        %v3918 = vpack.c.bf16 %v3893, %v3892
        %v3919 = vpack.c.bf16 %v3895, %v3894
        %v3920 = vpack.c.bf16 %v3897, %v3896
        %v3921 = vpack.c.bf16 %v3899, %v3898
        %v3922 = vpack.c.bf16 %v3901, %v3900
        %v3923 = vpack.c.bf16 %v3903, %v3902
        %v3924 = vpack.c.bf16 %v3905, %v3904
        %v3925 = vpack.c.bf16 %v3907, %v3906
        %3926 = vst.msk [vmem:[#allocation3 + $0x20] sm:$0xff] %vm332, %v3908
        %3927 = vst.msk [vmem:[#allocation3 + $0x48] sm:$0xff] %vm332, %v3909
        %3928 = vst.msk [vmem:[#allocation3 + $0x70] sm:$0xff] %vm332, %v3910
        %3929 = vst.msk [vmem:[#allocation3 + $0x98] sm:$0xff] %vm332, %v3911
        %3930 = vst.msk [vmem:[#allocation3 + $0xc0] sm:$0xff] %vm332, %v3912
        %3931 = vst.msk [vmem:[#allocation3 + $0xe8] sm:$0xff] %vm332, %v3913
        %3932 = vst.msk [vmem:[#allocation3 + $0x110] sm:$0xff] %vm332, %v3914
        %3933 = vst.msk [vmem:[#allocation3 + $0x138] sm:$0xff] %vm332, %v3915
        %3934 = vst.msk [vmem:[#allocation3 + $0x160] sm:$0xff] %vm332, %v3916
        %3935 = vst.msk [vmem:[#allocation3 + $0x188] sm:$0xff] %vm332, %v3917
        %3936 = vst.msk [vmem:[#allocation3 + $0x1b0] sm:$0xff] %vm332, %v3918
        %3937 = vst.msk [vmem:[#allocation3 + $0x1d8] sm:$0xff] %vm332, %v3919
        %3938 = vst.msk [vmem:[#allocation3 + $0x200] sm:$0xff] %vm332, %v3920
        %3939 = vst.msk [vmem:[#allocation3 + $0x228] sm:$0xff] %vm332, %v3921
        %3940 = vst.msk [vmem:[#allocation3 + $0x250] sm:$0xff] %vm332, %v3922
        %3941 = vst.msk [vmem:[#allocation3 + $0x278] sm:$0xff] %vm332, %v3923
        %3942 = vst.msk [vmem:[#allocation3 + $0x2a0] sm:$0xff] %vm332, %v3924
        %3943 = vst.msk [vmem:[#allocation3 + $0x2c8] sm:$0xff] %vm332, %v3925
        %v3944 = vld [vmem:[#allocation3] sm:$0xff]
        %v3945 = vld [vmem:[#allocation3 + $0x8] sm:$0xff]
        %v3946 = vld [vmem:[#allocation3 + $0x10] sm:$0xff]
        %v3947 = vld [vmem:[#allocation3 + $0x18] sm:$0xff]
        %v3948 = vld [vmem:[#allocation3 + $0x20] sm:$0xff]
        %v3949 = vld [vmem:[#allocation3 + $0x28] sm:$0xff]
        %v3950 = vld [vmem:[#allocation3 + $0x30] sm:$0xff]
        %v3951 = vld [vmem:[#allocation3 + $0x38] sm:$0xff]
        %v3952 = vld [vmem:[#allocation3 + $0x40] sm:$0xff]
        %v3953 = vld [vmem:[#allocation3 + $0x48] sm:$0xff]
        %v3954 = vld [vmem:[#allocation3 + $0x50] sm:$0xff]
        %v3955 = vld [vmem:[#allocation3 + $0x58] sm:$0xff]
        %v3956 = vld [vmem:[#allocation3 + $0x60] sm:$0xff]
        %v3957 = vld [vmem:[#allocation3 + $0x68] sm:$0xff]
        %v3958 = vld [vmem:[#allocation3 + $0x70] sm:$0xff]
        %v3959 = vld [vmem:[#allocation3 + $0x78] sm:$0xff]
        %v3960 = vld [vmem:[#allocation3 + $0x80] sm:$0xff]
        %v3961 = vld [vmem:[#allocation3 + $0x88] sm:$0xff]
        %v3962 = vld [vmem:[#allocation3 + $0x90] sm:$0xff]
        %v3963 = vld [vmem:[#allocation3 + $0x98] sm:$0xff]
        %v3964 = vld [vmem:[#allocation3 + $0xa0] sm:$0xff]
        %v3965 = vld [vmem:[#allocation3 + $0xa8] sm:$0xff]
        %v3966 = vld [vmem:[#allocation3 + $0xb0] sm:$0xff]
        %v3967 = vld [vmem:[#allocation3 + $0xb8] sm:$0xff]
        %v3968 = vld [vmem:[#allocation3 + $0xc0] sm:$0xff]
        %v3969 = vld [vmem:[#allocation3 + $0xc8] sm:$0xff]
        %v3970 = vld [vmem:[#allocation3 + $0xd0] sm:$0xff]
        %v3971 = vld [vmem:[#allocation3 + $0xd8] sm:$0xff]
        %v3972 = vld [vmem:[#allocation3 + $0xe0] sm:$0xff]
        %v3973 = vld [vmem:[#allocation3 + $0xe8] sm:$0xff]
        %v3974 = vld [vmem:[#allocation3 + $0xf0] sm:$0xff]
        %v3975 = vld [vmem:[#allocation3 + $0xf8] sm:$0xff]
        %v3976 = vld [vmem:[#allocation3 + $0x100] sm:$0xff]
        %v3977 = vld [vmem:[#allocation3 + $0x108] sm:$0xff]
        %v3978 = vld [vmem:[#allocation3 + $0x110] sm:$0xff]
        %v3979 = vld [vmem:[#allocation3 + $0x118] sm:$0xff]
        %v3980 = vld [vmem:[#allocation3 + $0x120] sm:$0xff]
        %v3981 = vld [vmem:[#allocation3 + $0x128] sm:$0xff]
        %v3982 = vld [vmem:[#allocation3 + $0x130] sm:$0xff]
        %v3983 = vld [vmem:[#allocation3 + $0x138] sm:$0xff]
        %v3984 = vld [vmem:[#allocation3 + $0x140] sm:$0xff]
        %v3985 = vld [vmem:[#allocation3 + $0x148] sm:$0xff]
        %v3986 = vld [vmem:[#allocation3 + $0x150] sm:$0xff]
        %v3987 = vld [vmem:[#allocation3 + $0x158] sm:$0xff]
        %v3988 = vld [vmem:[#allocation3 + $0x160] sm:$0xff]
        %v3989 = vld [vmem:[#allocation3 + $0x168] sm:$0xff]
        %v3990 = vld [vmem:[#allocation3 + $0x170] sm:$0xff]
        %v3991 = vld [vmem:[#allocation3 + $0x178] sm:$0xff]
        %v3992 = vld [vmem:[#allocation3 + $0x180] sm:$0xff]
        %v3993 = vld [vmem:[#allocation3 + $0x188] sm:$0xff]
        %v3994 = vld [vmem:[#allocation3 + $0x190] sm:$0xff]
        %v3995 = vld [vmem:[#allocation3 + $0x198] sm:$0xff]
        %v3996 = vld [vmem:[#allocation3 + $0x1a0] sm:$0xff]
        %v3997 = vld [vmem:[#allocation3 + $0x1a8] sm:$0xff]
        %v3998 = vld [vmem:[#allocation3 + $0x1b0] sm:$0xff]
        %v3999 = vld [vmem:[#allocation3 + $0x1b8] sm:$0xff]
        %v4000 = vld [vmem:[#allocation3 + $0x1c0] sm:$0xff]
        %v4001 = vld [vmem:[#allocation3 + $0x1c8] sm:$0xff]
        %v4002 = vld [vmem:[#allocation3 + $0x1d0] sm:$0xff]
        %v4003 = vld [vmem:[#allocation3 + $0x1d8] sm:$0xff]
        %v4004 = vld [vmem:[#allocation3 + $0x1e0] sm:$0xff]
        %v4005 = vld [vmem:[#allocation3 + $0x1e8] sm:$0xff]
        %v4006 = vld [vmem:[#allocation3 + $0x1f0] sm:$0xff]
        %v4007 = vld [vmem:[#allocation3 + $0x1f8] sm:$0xff]
        %v4008 = vld [vmem:[#allocation3 + $0x200] sm:$0xff]
        %v4009 = vld [vmem:[#allocation3 + $0x208] sm:$0xff]
        %v4010 = vld [vmem:[#allocation3 + $0x210] sm:$0xff]
        %v4011 = vld [vmem:[#allocation3 + $0x218] sm:$0xff]
        %v4012 = vld [vmem:[#allocation3 + $0x220] sm:$0xff]
        %v4013 = vld [vmem:[#allocation3 + $0x228] sm:$0xff]
        %v4014 = vld [vmem:[#allocation3 + $0x230] sm:$0xff]
        %v4015 = vld [vmem:[#allocation3 + $0x238] sm:$0xff]
        %v4016 = vld [vmem:[#allocation3 + $0x240] sm:$0xff]
        %v4017 = vld [vmem:[#allocation3 + $0x248] sm:$0xff]
        %v4018 = vld [vmem:[#allocation3 + $0x250] sm:$0xff]
        %v4019 = vld [vmem:[#allocation3 + $0x258] sm:$0xff]
        %v4020 = vld [vmem:[#allocation3 + $0x260] sm:$0xff]
        %v4021 = vld [vmem:[#allocation3 + $0x268] sm:$0xff]
        %v4022 = vld [vmem:[#allocation3 + $0x270] sm:$0xff]
        %v4023 = vld [vmem:[#allocation3 + $0x278] sm:$0xff]
        %v4024 = vld [vmem:[#allocation3 + $0x280] sm:$0xff]
        %v4025 = vld [vmem:[#allocation3 + $0x288] sm:$0xff]
        %v4026 = vld [vmem:[#allocation3 + $0x290] sm:$0xff]
        %v4027 = vld [vmem:[#allocation3 + $0x298] sm:$0xff]
        %v4028 = vld [vmem:[#allocation3 + $0x2a0] sm:$0xff]
        %v4029 = vld [vmem:[#allocation3 + $0x2a8] sm:$0xff]
        %v4030 = vld [vmem:[#allocation3 + $0x2b0] sm:$0xff]
        %v4031 = vld [vmem:[#allocation3 + $0x2b8] sm:$0xff]
        %v4032 = vld [vmem:[#allocation3 + $0x2c0] sm:$0xff]
        %v4033 = vld [vmem:[#allocation3 + $0x2c8] sm:$0xff]
        %v4034 = vld [vmem:[%s3] sm:$0xf]
        %v4035 = vld [vmem:[%s3 + $0x4] sm:$0xf]
        %v4036 = vld [vmem:[%s3 + $0x8] sm:$0xf]
        %v4037 = vld [vmem:[%s3 + $0xc] sm:$0xf]
        %v4038 = vld [vmem:[%s3 + $0x10] sm:$0xf]
        %v4039 = vld [vmem:[%s3 + $0x14] sm:$0xf]
        %v4040 = vld [vmem:[%s3 + $0x18] sm:$0xf]
        %v4041 = vld [vmem:[%s3 + $0x1c] sm:$0xf]
        %v4042 = vld [vmem:[%s3 + $0x20] sm:$0xf]
        %v4043 = vld [vmem:[%s3 + $0x24] sm:$0xf]
        %v4044 = vld [vmem:[%s3 + $0x28] sm:$0xf]
        %v4045 = vld [vmem:[%s3 + $0x2c] sm:$0xf]
        %v4046 = vld [vmem:[%s3 + $0x30] sm:$0xf]
        %v4047 = vld [vmem:[%s3 + $0x34] sm:$0xf]
        %v4048 = vld [vmem:[%s3 + $0x38] sm:$0xf]
        %v4049 = vld [vmem:[%s3 + $0x3c] sm:$0xf]
        %v4050 = vld [vmem:[%s3 + $0x40] sm:$0xf]
        %v4051 = vld [vmem:[%s3 + $0x44] sm:$0xf]
        %v4052 = vld [vmem:[%s3 + $0x48] sm:$0xf]
        %v4053 = vld [vmem:[%s3 + $0x4c] sm:$0xf]
        %v4054 = vld [vmem:[%s3 + $0x50] sm:$0xf]
        %v4055 = vld [vmem:[%s3 + $0x54] sm:$0xf]
        %v4056 = vld [vmem:[%s3 + $0x58] sm:$0xf]
        %v4057 = vld [vmem:[%s3 + $0x5c] sm:$0xf]
        %v4058 = vld [vmem:[%s3 + $0x60] sm:$0xf]
        %v4059 = vld [vmem:[%s3 + $0x64] sm:$0xf]
        %v4060 = vld [vmem:[%s3 + $0x68] sm:$0xf]
        %v4061 = vld [vmem:[%s3 + $0x6c] sm:$0xf]
        %v4062 = vld [vmem:[%s3 + $0x70] sm:$0xf]
        %v4063 = vld [vmem:[%s3 + $0x74] sm:$0xf]
        %v4064 = vld [vmem:[%s3 + $0x78] sm:$0xf]
        %v4065 = vld [vmem:[%s3 + $0x7c] sm:$0xf]
        %v4066 = vld [vmem:[%s3 + $0x80] sm:$0xf]
        %v4067 = vld [vmem:[%s3 + $0x84] sm:$0xf]
        %v4068 = vld [vmem:[%s3 + $0x88] sm:$0xf]
        %v4069 = vld [vmem:[%s3 + $0x8c] sm:$0xf]
        %v4070 = vld [vmem:[%s3 + $0x90] sm:$0xf]
        %v4071 = vld [vmem:[%s3 + $0x94] sm:$0xf]
        %v4072 = vld [vmem:[%s3 + $0x98] sm:$0xf]
        %v4073 = vld [vmem:[%s3 + $0x9c] sm:$0xf]
        %v4074 = vld [vmem:[%s3 + $0xa0] sm:$0xf]
        %v4075 = vld [vmem:[%s3 + $0xa4] sm:$0xf]
        %v4076 = vld [vmem:[%s3 + $0xa8] sm:$0xf]
        %v4077 = vld [vmem:[%s3 + $0xac] sm:$0xf]
        %v4078 = vld [vmem:[%s3 + $0xb0] sm:$0xf]
        %v4079 = vld [vmem:[%s3 + $0xb4] sm:$0xf]
        %v4080 = vld [vmem:[%s3 + $0xb8] sm:$0xf]
        %v4081 = vld [vmem:[%s3 + $0xbc] sm:$0xf]
        %v4082 = vld [vmem:[%s3 + $0xc0] sm:$0xf]
        %v4083 = vld [vmem:[%s3 + $0xc4] sm:$0xf]
        %v4084 = vld [vmem:[%s3 + $0xc8] sm:$0xf]
        %v4085 = vld [vmem:[%s3 + $0xcc] sm:$0xf]
        %v4086 = vld [vmem:[%s3 + $0xd0] sm:$0xf]
        %v4087 = vld [vmem:[%s3 + $0xd4] sm:$0xf]
        %v4088 = vld [vmem:[%s3 + $0xd8] sm:$0xf]
        %v4089 = vld [vmem:[%s3 + $0xdc] sm:$0xf]
        %v4090 = vld [vmem:[%s3 + $0xe0] sm:$0xf]
        %v4091 = vld [vmem:[%s3 + $0xe4] sm:$0xf]
        %v4092 = vld [vmem:[%s3 + $0xe8] sm:$0xf]
        %v4093 = vld [vmem:[%s3 + $0xec] sm:$0xf]
        %v4094 = vld [vmem:[%s3 + $0xf0] sm:$0xf]
        %v4095 = vld [vmem:[%s3 + $0xf4] sm:$0xf]
        %v4096 = vld [vmem:[%s3 + $0xf8] sm:$0xf]
        %v4097 = vld [vmem:[%s3 + $0xfc] sm:$0xf]
        %v4098 = vld [vmem:[%s3 + $0x100] sm:$0xf]
        %v4099 = vld [vmem:[%s3 + $0x104] sm:$0xf]
        %v4100 = vld [vmem:[%s3 + $0x108] sm:$0xf]
        %v4101 = vld [vmem:[%s3 + $0x10c] sm:$0xf]
        %v4102 = vld [vmem:[%s3 + $0x110] sm:$0xf]
        %v4103 = vld [vmem:[%s3 + $0x114] sm:$0xf]
        %v4104 = vld [vmem:[%s3 + $0x118] sm:$0xf]
        %v4105 = vld [vmem:[%s3 + $0x11c] sm:$0xf]
        %v4106 = vld [vmem:[%s4] sm:$0x1]
        %v4108 = vlaneseq
        %v4109 = vshrl.u32 %v4108, 7
        %v4110 = vsub.s32 0, %v4109
        %v4111 = vrot.slane %v4106, %v4110
        %v4185 = vunpack.c.l.b16 %v4034
        %v4186 = vunpack.c.l.b16 %v4035
        %v4187 = vunpack.c.l.b16 %v4036
        %v4188 = vunpack.c.l.b16 %v4037
        %v4189 = vunpack.c.l.b16 %v4038
        %v4190 = vunpack.c.l.b16 %v4039
        %v4191 = vunpack.c.l.b16 %v4040
        %v4192 = vunpack.c.l.b16 %v4041
        %v4193 = vunpack.c.l.b16 %v4042
        %v4194 = vunpack.c.l.b16 %v4043
        %v4195 = vunpack.c.l.b16 %v4044
        %v4196 = vunpack.c.l.b16 %v4045
        %v4197 = vunpack.c.l.b16 %v4046
        %v4198 = vunpack.c.l.b16 %v4047
        %v4199 = vunpack.c.l.b16 %v4048
        %v4200 = vunpack.c.l.b16 %v4049
        %v4201 = vunpack.c.l.b16 %v4050
        %v4202 = vunpack.c.l.b16 %v4051
        %v4203 = vunpack.c.l.b16 %v4052
        %v4204 = vunpack.c.l.b16 %v4053
        %v4205 = vunpack.c.l.b16 %v4054
        %v4206 = vunpack.c.l.b16 %v4055
        %v4207 = vunpack.c.l.b16 %v4056
        %v4208 = vunpack.c.l.b16 %v4057
        %v4209 = vunpack.c.l.b16 %v4058
        %v4210 = vunpack.c.l.b16 %v4059
        %v4211 = vunpack.c.l.b16 %v4060
        %v4212 = vunpack.c.l.b16 %v4061
        %v4213 = vunpack.c.l.b16 %v4062
        %v4214 = vunpack.c.l.b16 %v4063
        %v4215 = vunpack.c.l.b16 %v4064
        %v4216 = vunpack.c.l.b16 %v4065
        %v4217 = vunpack.c.l.b16 %v4066
        %v4218 = vunpack.c.l.b16 %v4067
        %v4219 = vunpack.c.l.b16 %v4068
        %v4220 = vunpack.c.l.b16 %v4069
        %v4221 = vunpack.c.l.b16 %v4070
        %v4222 = vunpack.c.l.b16 %v4071
        %v4223 = vunpack.c.l.b16 %v4072
        %v4224 = vunpack.c.l.b16 %v4073
        %v4225 = vunpack.c.l.b16 %v4074
        %v4226 = vunpack.c.l.b16 %v4075
        %v4227 = vunpack.c.l.b16 %v4076
        %v4228 = vunpack.c.l.b16 %v4077
        %v4229 = vunpack.c.l.b16 %v4078
        %v4230 = vunpack.c.l.b16 %v4079
        %v4231 = vunpack.c.l.b16 %v4080
        %v4232 = vunpack.c.l.b16 %v4081
        %v4233 = vunpack.c.l.b16 %v4082
        %v4234 = vunpack.c.l.b16 %v4083
        %v4235 = vunpack.c.l.b16 %v4084
        %v4236 = vunpack.c.l.b16 %v4085
        %v4237 = vunpack.c.l.b16 %v4086
        %v4238 = vunpack.c.l.b16 %v4087
        %v4239 = vunpack.c.l.b16 %v4088
        %v4240 = vunpack.c.l.b16 %v4089
        %v4241 = vunpack.c.l.b16 %v4090
        %v4242 = vunpack.c.l.b16 %v4091
        %v4243 = vunpack.c.l.b16 %v4092
        %v4244 = vunpack.c.l.b16 %v4093
        %v4245 = vunpack.c.l.b16 %v4094
        %v4246 = vunpack.c.l.b16 %v4095
        %v4247 = vunpack.c.l.b16 %v4096
        %v4248 = vunpack.c.l.b16 %v4097
        %v4249 = vunpack.c.l.b16 %v4098
        %v4250 = vunpack.c.l.b16 %v4099
        %v4251 = vunpack.c.l.b16 %v4100
        %v4252 = vunpack.c.l.b16 %v4101
        %v4253 = vunpack.c.l.b16 %v4102
        %v4254 = vunpack.c.l.b16 %v4103
        %v4255 = vunpack.c.l.b16 %v4104
        %v4256 = vunpack.c.l.b16 %v4105
        %v4257 = vpack.c.b16 %v4186, %v4185
        %v4258 = vpack.c.b16 %v4188, %v4187
        %v4259 = vpack.c.b16 %v4190, %v4189
        %v4260 = vpack.c.b16 %v4192, %v4191
        %v4261 = vpack.c.b16 %v4194, %v4193
        %v4262 = vpack.c.b16 %v4196, %v4195
        %v4263 = vpack.c.b16 %v4198, %v4197
        %v4264 = vpack.c.b16 %v4200, %v4199
        %v4265 = vpack.c.b16 %v4202, %v4201
        %v4266 = vpack.c.b16 %v4204, %v4203
        %v4267 = vpack.c.b16 %v4206, %v4205
        %v4268 = vpack.c.b16 %v4208, %v4207
        %v4269 = vpack.c.b16 %v4210, %v4209
        %v4270 = vpack.c.b16 %v4212, %v4211
        %v4271 = vpack.c.b16 %v4214, %v4213
        %v4272 = vpack.c.b16 %v4216, %v4215
        %v4273 = vpack.c.b16 %v4218, %v4217
        %v4274 = vpack.c.b16 %v4220, %v4219
        %v4275 = vpack.c.b16 %v4222, %v4221
        %v4276 = vpack.c.b16 %v4224, %v4223
        %v4277 = vpack.c.b16 %v4226, %v4225
        %v4278 = vpack.c.b16 %v4228, %v4227
        %v4279 = vpack.c.b16 %v4230, %v4229
        %v4280 = vpack.c.b16 %v4232, %v4231
        %v4281 = vpack.c.b16 %v4234, %v4233
        %v4282 = vpack.c.b16 %v4236, %v4235
        %v4283 = vpack.c.b16 %v4238, %v4237
        %v4284 = vpack.c.b16 %v4240, %v4239
        %v4285 = vpack.c.b16 %v4242, %v4241
        %v4286 = vpack.c.b16 %v4244, %v4243
        %v4287 = vpack.c.b16 %v4246, %v4245
        %v4288 = vpack.c.b16 %v4248, %v4247
        %v4289 = vpack.c.b16 %v4250, %v4249
        %v4290 = vpack.c.b16 %v4252, %v4251
        %v4291 = vpack.c.b16 %v4254, %v4253
        %v4292 = vpack.c.b16 %v4256, %v4255
        %v4330 = vsel %vm332, %v3948, 0
        %v4333 = vsel %vm332, %v3953, 0
        %v4336 = vsel %vm332, %v3958, 0
        %v4339 = vsel %vm332, %v3963, 0
        %v4342 = vsel %vm332, %v3968, 0
        %v4345 = vsel %vm332, %v3973, 0
        %v4348 = vsel %vm332, %v3978, 0
        %v4351 = vsel %vm332, %v3983, 0
        %v4354 = vsel %vm332, %v3988, 0
        %v4357 = vsel %vm332, %v3993, 0
        %v4360 = vsel %vm332, %v3998, 0
        %v4363 = vsel %vm332, %v4003, 0
        %v4366 = vsel %vm332, %v4008, 0
        %v4369 = vsel %vm332, %v4013, 0
        %v4372 = vsel %vm332, %v4018, 0
        %v4375 = vsel %vm332, %v4023, 0
        %v4378 = vsel %vm332, %v4028, 0
        %v4381 = vsel %vm332, %v4033, 0
        %4383 = vmatprep.subr.bf16.mxu0 0
        %4384 = vmatpush1.bf16.msra.mxu0 %v4257
        %4385 = vmatprep.subr.bf16.mxu0 0
        %4386 = vmatpush1.bf16.msra.mxu0 %v4258
        %4387 = vmatprep.subr.bf16.mxu0 0
        %4388 = vmatpush1.bf16.msra.mxu0 %v4259
        %4389 = vmatprep.subr.bf16.mxu0 0
        %4390 = vmatpush1.bf16.msra.mxu0 %v4260
        %4391 = vmatprep.subr.bf16.mxu0 0
        %4392 = vmatpush1.bf16.msra.mxu0 %v4261
        %4393 = vmatprep.subr.bf16.mxu0 0
        %4394 = vmatpush1.bf16.msra.mxu0 %v4262
        %4395 = vmatprep.subr.bf16.mxu0 0
        %4396 = vmatpush1.bf16.msra.mxu0 %v4263
        %4397 = vmatprep.subr.bf16.mxu0 0
        %4398 = vmatpush1.bf16.msra.mxu0 %v4264
        %4399 = vmatprep.subr.bf16.mxu0 0
        %4400 = vmatpush1.bf16.msra.mxu0 %v4265
        %4401 = vmatprep.subr.bf16.mxu0 0
        %4402 = vmatpush1.bf16.msra.mxu0 %v4266
        %4403 = vmatprep.subr.bf16.mxu0 0
        %4404 = vmatpush1.bf16.msra.mxu0 %v4267
        %4405 = vmatprep.subr.bf16.mxu0 0
        %4406 = vmatpush1.bf16.msra.mxu0 %v4268
        %4407 = vmatprep.subr.bf16.mxu0 0
        %4408 = vmatpush1.bf16.msra.mxu0 %v4269
        %4409 = vmatprep.subr.bf16.mxu0 0
        %4410 = vmatpush1.bf16.msra.mxu0 %v4270
        %4411 = vmatprep.subr.bf16.mxu0 0
        %4412 = vmatpush1.bf16.msra.mxu0 %v4271
        %4413 = vmatprep.subr.bf16.mxu0 0
        %4414 = vmatpush1.bf16.msra.mxu0 %v4272
        %4415 = vmatprep.mubr.bf16.mxu0 %v3945
        %4416 = vmatmul.mubr.bf16.gmra.mrb[0].mxu0 %v3944
        %v4417 = vpop.f32.mrb[0].mxu0
        %v4418 = vadd.f32 %v4111, %v4417
        %v4419 = vpop.f32.mrb[0].mxu0
        %v4420 = vpop.f32.mrb[0].mxu0
        %v4421 = vadd.f32 %v4111, %v4420
        %v4422 = vpop.f32.mrb[0].mxu0
        %4423 = vmatprep.mubr.bf16.mxu0 %v3950
        %4424 = vmatmul.mubr.bf16.gmra.mrb[0].mxu0 %v3949
        %v4425 = vpop.f32.mrb[0].mxu0
        %v4426 = vadd.f32 %v4111, %v4425
        %v4427 = vpop.f32.mrb[0].mxu0
        %v4428 = vpop.f32.mrb[0].mxu0
        %v4429 = vadd.f32 %v4111, %v4428
        %v4430 = vpop.f32.mrb[0].mxu0
        %4431 = vmatprep.mubr.bf16.mxu0 %v3955
        %4432 = vmatmul.mubr.bf16.gmra.mrb[0].mxu0 %v3954
        %v4433 = vpop.f32.mrb[0].mxu0
        %v4434 = vadd.f32 %v4111, %v4433
        %v4435 = vpop.f32.mrb[0].mxu0
        %v4436 = vpop.f32.mrb[0].mxu0
        %v4437 = vadd.f32 %v4111, %v4436
        %v4438 = vpop.f32.mrb[0].mxu0
        %4439 = vmatprep.mubr.bf16.mxu0 %v3960
        %4440 = vmatmul.mubr.bf16.gmra.mrb[0].mxu0 %v3959
        %v4441 = vpop.f32.mrb[0].mxu0
        %v4442 = vadd.f32 %v4111, %v4441
        %v4443 = vpop.f32.mrb[0].mxu0
        %v4444 = vpop.f32.mrb[0].mxu0
        %v4445 = vadd.f32 %v4111, %v4444
        %v4446 = vpop.f32.mrb[0].mxu0
        %4447 = vmatprep.mubr.bf16.mxu0 %v3965
        %4448 = vmatmul.mubr.bf16.gmra.mrb[0].mxu0 %v3964
        %v4449 = vpop.f32.mrb[0].mxu0
        %v4450 = vadd.f32 %v4111, %v4449
        %v4451 = vpop.f32.mrb[0].mxu0
        %v4452 = vpop.f32.mrb[0].mxu0
        %v4453 = vadd.f32 %v4111, %v4452
        %v4454 = vpop.f32.mrb[0].mxu0
        %4455 = vmatprep.mubr.bf16.mxu0 %v3970
        %4456 = vmatmul.mubr.bf16.gmra.mrb[0].mxu0 %v3969
        %v4457 = vpop.f32.mrb[0].mxu0
        %v4458 = vadd.f32 %v4111, %v4457
        %v4459 = vpop.f32.mrb[0].mxu0
        %v4460 = vpop.f32.mrb[0].mxu0
        %v4461 = vadd.f32 %v4111, %v4460
        %v4462 = vpop.f32.mrb[0].mxu0
        %4463 = vmatprep.mubr.bf16.mxu0 %v3975
        %4464 = vmatmul.mubr.bf16.gmra.mrb[0].mxu0 %v3974
        %v4465 = vpop.f32.mrb[0].mxu0
        %v4466 = vadd.f32 %v4111, %v4465
        %v4467 = vpop.f32.mrb[0].mxu0
        %v4468 = vpop.f32.mrb[0].mxu0
        %v4469 = vadd.f32 %v4111, %v4468
        %v4470 = vpop.f32.mrb[0].mxu0
        %4471 = vmatprep.mubr.bf16.mxu0 %v3980
        %4472 = vmatmul.mubr.bf16.gmra.mrb[0].mxu0 %v3979
        %v4473 = vpop.f32.mrb[0].mxu0
        %v4474 = vadd.f32 %v4111, %v4473
        %v4475 = vpop.f32.mrb[0].mxu0
        %v4476 = vpop.f32.mrb[0].mxu0
        %v4477 = vadd.f32 %v4111, %v4476
        %v4478 = vpop.f32.mrb[0].mxu0
        %4479 = vmatprep.mubr.bf16.mxu0 %v3985
        %4480 = vmatmul.mubr.bf16.gmra.mrb[0].mxu0 %v3984
        %v4481 = vpop.f32.mrb[0].mxu0
        %v4482 = vadd.f32 %v4111, %v4481
        %v4483 = vpop.f32.mrb[0].mxu0
        %v4484 = vpop.f32.mrb[0].mxu0
        %v4485 = vadd.f32 %v4111, %v4484
        %v4486 = vpop.f32.mrb[0].mxu0
        %4487 = vmatprep.mubr.bf16.mxu0 %v3990
        %4488 = vmatmul.mubr.bf16.gmra.mrb[0].mxu0 %v3989
        %v4489 = vpop.f32.mrb[0].mxu0
        %v4490 = vadd.f32 %v4111, %v4489
        %v4491 = vpop.f32.mrb[0].mxu0
        %v4492 = vpop.f32.mrb[0].mxu0
        %v4493 = vadd.f32 %v4111, %v4492
        %v4494 = vpop.f32.mrb[0].mxu0
        %4495 = vmatprep.mubr.bf16.mxu0 %v3995
        %4496 = vmatmul.mubr.bf16.gmra.mrb[0].mxu0 %v3994
        %v4497 = vpop.f32.mrb[0].mxu0
        %v4498 = vadd.f32 %v4111, %v4497
        %v4499 = vpop.f32.mrb[0].mxu0
        %v4500 = vpop.f32.mrb[0].mxu0
        %v4501 = vadd.f32 %v4111, %v4500
        %v4502 = vpop.f32.mrb[0].mxu0
        %4503 = vmatprep.mubr.bf16.mxu0 %v4000
        %4504 = vmatmul.mubr.bf16.gmra.mrb[0].mxu0 %v3999
        %v4505 = vpop.f32.mrb[0].mxu0
        %v4506 = vadd.f32 %v4111, %v4505
        %v4507 = vpop.f32.mrb[0].mxu0
        %v4508 = vpop.f32.mrb[0].mxu0
        %v4509 = vadd.f32 %v4111, %v4508
        %v4510 = vpop.f32.mrb[0].mxu0
        %4511 = vmatprep.mubr.bf16.mxu0 %v4005
        %4512 = vmatmul.mubr.bf16.gmra.mrb[0].mxu0 %v4004
        %v4513 = vpop.f32.mrb[0].mxu0
        %v4514 = vadd.f32 %v4111, %v4513
        %v4515 = vpop.f32.mrb[0].mxu0
        %v4516 = vpop.f32.mrb[0].mxu0
        %v4517 = vadd.f32 %v4111, %v4516
        %v4518 = vpop.f32.mrb[0].mxu0
        %4519 = vmatprep.mubr.bf16.mxu0 %v4010
        %4520 = vmatmul.mubr.bf16.gmra.mrb[0].mxu0 %v4009
        %v4521 = vpop.f32.mrb[0].mxu0
        %v4522 = vadd.f32 %v4111, %v4521
        %v4523 = vpop.f32.mrb[0].mxu0
        %v4524 = vpop.f32.mrb[0].mxu0
        %v4525 = vadd.f32 %v4111, %v4524
        %v4526 = vpop.f32.mrb[0].mxu0
        %4527 = vmatprep.mubr.bf16.mxu0 %v4015
        %4528 = vmatmul.mubr.bf16.gmra.mrb[0].mxu0 %v4014
        %v4529 = vpop.f32.mrb[0].mxu0
        %v4530 = vadd.f32 %v4111, %v4529
        %v4531 = vpop.f32.mrb[0].mxu0
        %v4532 = vpop.f32.mrb[0].mxu0
        %v4533 = vadd.f32 %v4111, %v4532
        %v4534 = vpop.f32.mrb[0].mxu0
        %4535 = vmatprep.mubr.bf16.mxu0 %v4020
        %4536 = vmatmul.mubr.bf16.gmra.mrb[0].mxu0 %v4019
        %v4537 = vpop.f32.mrb[0].mxu0
        %v4538 = vadd.f32 %v4111, %v4537
        %v4539 = vpop.f32.mrb[0].mxu0
        %v4540 = vpop.f32.mrb[0].mxu0
        %v4541 = vadd.f32 %v4111, %v4540
        %v4542 = vpop.f32.mrb[0].mxu0
        %4543 = vmatprep.mubr.bf16.mxu0 %v4025
        %4544 = vmatmul.mubr.bf16.gmra.mrb[0].mxu0 %v4024
        %v4545 = vpop.f32.mrb[0].mxu0
        %v4546 = vadd.f32 %v4111, %v4545
        %v4547 = vpop.f32.mrb[0].mxu0
        %v4548 = vpop.f32.mrb[0].mxu0
        %v4549 = vadd.f32 %v4111, %v4548
        %v4550 = vpop.f32.mrb[0].mxu0
        %4551 = vmatprep.mubr.bf16.mxu0 %v4030
        %4552 = vmatmul.mubr.bf16.gmra.mrb[0].mxu0 %v4029
        %v4553 = vpop.f32.mrb[0].mxu0
        %v4554 = vadd.f32 %v4111, %v4553
        %v4555 = vpop.f32.mrb[0].mxu0
        %v4556 = vpop.f32.mrb[0].mxu0
        %v4557 = vadd.f32 %v4111, %v4556
        %v4558 = vpop.f32.mrb[0].mxu0
        %4559 = vdwg.mxu0
        %4560 = vmatprep.subr.bf16.mxu0 0
        %4561 = vmatpush1.bf16.msra.mxu0 %v4273
        %4562 = vmatprep.subr.bf16.mxu0 0
        %4563 = vmatpush1.bf16.msra.mxu0 %v4274
        %4564 = vmatprep.subr.bf16.mxu0 0
        %4565 = vmatpush1.bf16.msra.mxu0 %v4275
        %4566 = vmatprep.subr.bf16.mxu0 0
        %4567 = vmatpush1.bf16.msra.mxu0 %v4276
        %4568 = vmatprep.subr.bf16.mxu0 0
        %4569 = vmatpush1.bf16.msra.mxu0 %v4277
        %4570 = vmatprep.subr.bf16.mxu0 0
        %4571 = vmatpush1.bf16.msra.mxu0 %v4278
        %4572 = vmatprep.subr.bf16.mxu0 0
        %4573 = vmatpush1.bf16.msra.mxu0 %v4279
        %4574 = vmatprep.subr.bf16.mxu0 0
        %4575 = vmatpush1.bf16.msra.mxu0 %v4280
        %4576 = vmatprep.subr.bf16.mxu0 0
        %4577 = vmatpush1.bf16.msra.mxu0 %v4281
        %4578 = vmatprep.subr.bf16.mxu0 0
        %4579 = vmatpush1.bf16.msra.mxu0 %v4282
        %4580 = vmatprep.subr.bf16.mxu0 0
        %4581 = vmatpush1.bf16.msra.mxu0 %v4283
        %4582 = vmatprep.subr.bf16.mxu0 0
        %4583 = vmatpush1.bf16.msra.mxu0 %v4284
        %4584 = vmatprep.subr.bf16.mxu0 0
        %4585 = vmatpush1.bf16.msra.mxu0 %v4285
        %4586 = vmatprep.subr.bf16.mxu0 0
        %4587 = vmatpush1.bf16.msra.mxu0 %v4286
        %4588 = vmatprep.subr.bf16.mxu0 0
        %4589 = vmatpush1.bf16.msra.mxu0 %v4287
        %4590 = vmatprep.subr.bf16.mxu0 0
        %4591 = vmatpush1.bf16.msra.mxu0 %v4288
        %4592 = vmatprep.mubr.bf16.mxu0 %v3947
        %4593 = vmatmul.mubr.bf16.gmra.mrb[0].mxu0 %v3946
        %v4594 = vpop.f32.mrb[0].mxu0
        %v4595 = vadd.f32 %v4418, %v4594
        %v4596 = vpop.f32.mrb[0].mxu0
        %v4597 = vpop.f32.mrb[0].mxu0
        %v4598 = vadd.f32 %v4421, %v4597
        %v4599 = vpop.f32.mrb[0].mxu0
        %4600 = vmatprep.mubr.bf16.mxu0 %v3952
        %4601 = vmatmul.mubr.bf16.gmra.mrb[0].mxu0 %v3951
        %v4602 = vpop.f32.mrb[0].mxu0
        %v4603 = vadd.f32 %v4426, %v4602
        %v4604 = vpop.f32.mrb[0].mxu0
        %v4605 = vpop.f32.mrb[0].mxu0
        %v4606 = vadd.f32 %v4429, %v4605
        %v4607 = vpop.f32.mrb[0].mxu0
        %4608 = vmatprep.mubr.bf16.mxu0 %v3957
        %4609 = vmatmul.mubr.bf16.gmra.mrb[0].mxu0 %v3956
        %v4610 = vpop.f32.mrb[0].mxu0
        %v4611 = vadd.f32 %v4434, %v4610
        %v4612 = vpop.f32.mrb[0].mxu0
        %v4613 = vpop.f32.mrb[0].mxu0
        %v4614 = vadd.f32 %v4437, %v4613
        %v4615 = vpop.f32.mrb[0].mxu0
        %4616 = vmatprep.mubr.bf16.mxu0 %v3962
        %4617 = vmatmul.mubr.bf16.gmra.mrb[0].mxu0 %v3961
        %v4618 = vpop.f32.mrb[0].mxu0
        %v4619 = vadd.f32 %v4442, %v4618
        %v4620 = vpop.f32.mrb[0].mxu0
        %v4621 = vpop.f32.mrb[0].mxu0
        %v4622 = vadd.f32 %v4445, %v4621
        %v4623 = vpop.f32.mrb[0].mxu0
        %4624 = vmatprep.mubr.bf16.mxu0 %v3967
        %4625 = vmatmul.mubr.bf16.gmra.mrb[0].mxu0 %v3966
        %v4626 = vpop.f32.mrb[0].mxu0
        %v4627 = vadd.f32 %v4450, %v4626
        %v4628 = vpop.f32.mrb[0].mxu0
        %v4629 = vpop.f32.mrb[0].mxu0
        %v4630 = vadd.f32 %v4453, %v4629
        %v4631 = vpop.f32.mrb[0].mxu0
        %4632 = vmatprep.mubr.bf16.mxu0 %v3972
        %4633 = vmatmul.mubr.bf16.gmra.mrb[0].mxu0 %v3971
        %v4634 = vpop.f32.mrb[0].mxu0
        %v4635 = vadd.f32 %v4458, %v4634
        %v4636 = vpop.f32.mrb[0].mxu0
        %v4637 = vpop.f32.mrb[0].mxu0
        %v4638 = vadd.f32 %v4461, %v4637
        %v4639 = vpop.f32.mrb[0].mxu0
        %4640 = vmatprep.mubr.bf16.mxu0 %v3977
        %4641 = vmatmul.mubr.bf16.gmra.mrb[0].mxu0 %v3976
        %v4642 = vpop.f32.mrb[0].mxu0
        %v4643 = vadd.f32 %v4466, %v4642
        %v4644 = vpop.f32.mrb[0].mxu0
        %v4645 = vpop.f32.mrb[0].mxu0
        %v4646 = vadd.f32 %v4469, %v4645
        %v4647 = vpop.f32.mrb[0].mxu0
        %4648 = vmatprep.mubr.bf16.mxu0 %v3982
        %4649 = vmatmul.mubr.bf16.gmra.mrb[0].mxu0 %v3981
        %v4650 = vpop.f32.mrb[0].mxu0
        %v4651 = vadd.f32 %v4474, %v4650
        %v4652 = vpop.f32.mrb[0].mxu0
        %v4653 = vpop.f32.mrb[0].mxu0
        %v4654 = vadd.f32 %v4477, %v4653
        %v4655 = vpop.f32.mrb[0].mxu0
        %4656 = vmatprep.mubr.bf16.mxu0 %v3987
        %4657 = vmatmul.mubr.bf16.gmra.mrb[0].mxu0 %v3986
        %v4658 = vpop.f32.mrb[0].mxu0
        %v4659 = vadd.f32 %v4482, %v4658
        %v4660 = vpop.f32.mrb[0].mxu0
        %v4661 = vpop.f32.mrb[0].mxu0
        %v4662 = vadd.f32 %v4485, %v4661
        %v4663 = vpop.f32.mrb[0].mxu0
        %4664 = vmatprep.mubr.bf16.mxu0 %v3992
        %4665 = vmatmul.mubr.bf16.gmra.mrb[0].mxu0 %v3991
        %v4666 = vpop.f32.mrb[0].mxu0
        %v4667 = vadd.f32 %v4490, %v4666
        %v4668 = vpop.f32.mrb[0].mxu0
        %v4669 = vpop.f32.mrb[0].mxu0
        %v4670 = vadd.f32 %v4493, %v4669
        %v4671 = vpop.f32.mrb[0].mxu0
        %4672 = vmatprep.mubr.bf16.mxu0 %v3997
        %4673 = vmatmul.mubr.bf16.gmra.mrb[0].mxu0 %v3996
        %v4674 = vpop.f32.mrb[0].mxu0
        %v4675 = vadd.f32 %v4498, %v4674
        %v4676 = vpop.f32.mrb[0].mxu0
        %v4677 = vpop.f32.mrb[0].mxu0
        %v4678 = vadd.f32 %v4501, %v4677
        %v4679 = vpop.f32.mrb[0].mxu0
        %4680 = vmatprep.mubr.bf16.mxu0 %v4002
        %4681 = vmatmul.mubr.bf16.gmra.mrb[0].mxu0 %v4001
        %v4682 = vpop.f32.mrb[0].mxu0
        %v4683 = vadd.f32 %v4506, %v4682
        %v4684 = vpop.f32.mrb[0].mxu0
        %v4685 = vpop.f32.mrb[0].mxu0
        %v4686 = vadd.f32 %v4509, %v4685
        %v4687 = vpop.f32.mrb[0].mxu0
        %4688 = vmatprep.mubr.bf16.mxu0 %v4007
        %4689 = vmatmul.mubr.bf16.gmra.mrb[0].mxu0 %v4006
        %v4690 = vpop.f32.mrb[0].mxu0
        %v4691 = vadd.f32 %v4514, %v4690
        %v4692 = vpop.f32.mrb[0].mxu0
        %v4693 = vpop.f32.mrb[0].mxu0
        %v4694 = vadd.f32 %v4517, %v4693
        %v4695 = vpop.f32.mrb[0].mxu0
        %4696 = vmatprep.mubr.bf16.mxu0 %v4012
        %4697 = vmatmul.mubr.bf16.gmra.mrb[0].mxu0 %v4011
        %v4698 = vpop.f32.mrb[0].mxu0
        %v4699 = vadd.f32 %v4522, %v4698
        %v4700 = vpop.f32.mrb[0].mxu0
        %v4701 = vpop.f32.mrb[0].mxu0
        %v4702 = vadd.f32 %v4525, %v4701
        %v4703 = vpop.f32.mrb[0].mxu0
        %4704 = vmatprep.mubr.bf16.mxu0 %v4017
        %4705 = vmatmul.mubr.bf16.gmra.mrb[0].mxu0 %v4016
        %v4706 = vpop.f32.mrb[0].mxu0
        %v4707 = vadd.f32 %v4530, %v4706
        %v4708 = vpop.f32.mrb[0].mxu0
        %v4709 = vpop.f32.mrb[0].mxu0
        %v4710 = vadd.f32 %v4533, %v4709
        %v4711 = vpop.f32.mrb[0].mxu0
        %4712 = vmatprep.mubr.bf16.mxu0 %v4022
        %4713 = vmatmul.mubr.bf16.gmra.mrb[0].mxu0 %v4021
        %v4714 = vpop.f32.mrb[0].mxu0
        %v4715 = vadd.f32 %v4538, %v4714
        %v4716 = vpop.f32.mrb[0].mxu0
        %v4717 = vpop.f32.mrb[0].mxu0
        %v4718 = vadd.f32 %v4541, %v4717
        %v4719 = vpop.f32.mrb[0].mxu0
        %4720 = vmatprep.mubr.bf16.mxu0 %v4027
        %4721 = vmatmul.mubr.bf16.gmra.mrb[0].mxu0 %v4026
        %v4722 = vpop.f32.mrb[0].mxu0
        %v4723 = vadd.f32 %v4546, %v4722
        %v4724 = vpop.f32.mrb[0].mxu0
        %v4725 = vpop.f32.mrb[0].mxu0
        %v4726 = vadd.f32 %v4549, %v4725
        %v4727 = vpop.f32.mrb[0].mxu0
        %4728 = vmatprep.mubr.bf16.mxu0 %v4032
        %4729 = vmatmul.mubr.bf16.gmra.mrb[0].mxu0 %v4031
        %v4730 = vpop.f32.mrb[0].mxu0
        %v4731 = vadd.f32 %v4554, %v4730
        %v4732 = vpop.f32.mrb[0].mxu0
        %v4733 = vpop.f32.mrb[0].mxu0
        %v4734 = vadd.f32 %v4557, %v4733
        %v4735 = vpop.f32.mrb[0].mxu0
        %4736 = vdwg.mxu0
        %4737 = vmatprep.subr.bf16.mxu0 0
        %4738 = vmatpush1.bf16.msra.mxu0 %v4289
        %4739 = vmatprep.subr.bf16.mxu0 0
        %4740 = vmatpush1.bf16.msra.mxu0 %v4290
        %4741 = vmatprep.subr.bf16.mxu0 0
        %4742 = vmatpush1.bf16.msra.mxu0 %v4291
        %4743 = vmatprep.subr.bf16.mxu0 0
        %4744 = vmatpush1.bf16.msra.mxu0 %v4292
        %4745 = vmatprep.subr.bf16.mxu0 0
        %4746 = vmatpush1.bf16.msra.mxu0 0
        %4747 = vmatprep.subr.bf16.mxu0 0
        %4748 = vmatpush1.bf16.msra.mxu0 0
        %4749 = vmatprep.subr.bf16.mxu0 0
        %4750 = vmatpush1.bf16.msra.mxu0 0
        %4751 = vmatprep.subr.bf16.mxu0 0
        %4752 = vmatpush1.bf16.msra.mxu0 0
        %4753 = vmatprep.subr.bf16.mxu0 0
        %4754 = vmatpush1.bf16.msra.mxu0 0
        %4755 = vmatprep.subr.bf16.mxu0 0
        %4756 = vmatpush1.bf16.msra.mxu0 0
        %4757 = vmatprep.subr.bf16.mxu0 0
        %4758 = vmatpush1.bf16.msra.mxu0 0
        %4759 = vmatprep.subr.bf16.mxu0 0
        %4760 = vmatpush1.bf16.msra.mxu0 0
        %4761 = vmatprep.subr.bf16.mxu0 0
        %4762 = vmatpush1.bf16.msra.mxu0 0
        %4763 = vmatprep.subr.bf16.mxu0 0
        %4764 = vmatpush1.bf16.msra.mxu0 0
        %4765 = vmatprep.subr.bf16.mxu0 0
        %4766 = vmatpush1.bf16.msra.mxu0 0
        %4767 = vmatprep.subr.bf16.mxu0 0
        %4768 = vmatpush1.bf16.msra.mxu0 0
        %4769 = vmatprep.mubr.bf16.mxu0 0
        %4770 = vmatmul.mubr.bf16.gmra.mrb[0].mxu0 %v4330
        %v4771 = vpop.f32.mrb[0].mxu0
        %v4772 = vadd.f32 %v4595, %v4771
        %v4773 = vpop.f32.mrb[0].mxu0
        %v4774 = vpop.f32.mrb[0].mxu0
        %v4775 = vadd.f32 %v4598, %v4774
        %v4776 = vpop.f32.mrb[0].mxu0
        %4777 = vmatprep.mubr.bf16.mxu0 0
        %4778 = vmatmul.mubr.bf16.gmra.mrb[0].mxu0 %v4333
        %v4779 = vpop.f32.mrb[0].mxu0
        %v4780 = vadd.f32 %v4603, %v4779
        %v4781 = vpop.f32.mrb[0].mxu0
        %v4782 = vpop.f32.mrb[0].mxu0
        %v4783 = vadd.f32 %v4606, %v4782
        %v4784 = vpop.f32.mrb[0].mxu0
        %4785 = vmatprep.mubr.bf16.mxu0 0
        %4786 = vmatmul.mubr.bf16.gmra.mrb[0].mxu0 %v4336
        %v4787 = vpop.f32.mrb[0].mxu0
        %v4788 = vadd.f32 %v4611, %v4787
        %v4789 = vpop.f32.mrb[0].mxu0
        %v4790 = vpop.f32.mrb[0].mxu0
        %v4791 = vadd.f32 %v4614, %v4790
        %v4792 = vpop.f32.mrb[0].mxu0
        %4793 = vmatprep.mubr.bf16.mxu0 0
        %4794 = vmatmul.mubr.bf16.gmra.mrb[0].mxu0 %v4339
        %v4795 = vpop.f32.mrb[0].mxu0
        %v4796 = vadd.f32 %v4619, %v4795
        %v4797 = vpop.f32.mrb[0].mxu0
        %v4798 = vpop.f32.mrb[0].mxu0
        %v4799 = vadd.f32 %v4622, %v4798
        %v4800 = vpop.f32.mrb[0].mxu0
        %4801 = vmatprep.mubr.bf16.mxu0 0
        %4802 = vmatmul.mubr.bf16.gmra.mrb[0].mxu0 %v4342
        %v4803 = vpop.f32.mrb[0].mxu0
        %v4804 = vadd.f32 %v4627, %v4803
        %v4805 = vpop.f32.mrb[0].mxu0
        %v4806 = vpop.f32.mrb[0].mxu0
        %v4807 = vadd.f32 %v4630, %v4806
        %v4808 = vpop.f32.mrb[0].mxu0
        %4809 = vmatprep.mubr.bf16.mxu0 0
        %4810 = vmatmul.mubr.bf16.gmra.mrb[0].mxu0 %v4345
        %v4811 = vpop.f32.mrb[0].mxu0
        %v4812 = vadd.f32 %v4635, %v4811
        %v4813 = vpop.f32.mrb[0].mxu0
        %v4814 = vpop.f32.mrb[0].mxu0
        %v4815 = vadd.f32 %v4638, %v4814
        %v4816 = vpop.f32.mrb[0].mxu0
        %4817 = vmatprep.mubr.bf16.mxu0 0
        %4818 = vmatmul.mubr.bf16.gmra.mrb[0].mxu0 %v4348
        %v4819 = vpop.f32.mrb[0].mxu0
        %v4820 = vadd.f32 %v4643, %v4819
        %v4821 = vpop.f32.mrb[0].mxu0
        %v4822 = vpop.f32.mrb[0].mxu0
        %v4823 = vadd.f32 %v4646, %v4822
        %v4824 = vpop.f32.mrb[0].mxu0
        %4825 = vmatprep.mubr.bf16.mxu0 0
        %4826 = vmatmul.mubr.bf16.gmra.mrb[0].mxu0 %v4351
        %v4827 = vpop.f32.mrb[0].mxu0
        %v4828 = vadd.f32 %v4651, %v4827
        %v4829 = vpop.f32.mrb[0].mxu0
        %v4830 = vpop.f32.mrb[0].mxu0
        %v4831 = vadd.f32 %v4654, %v4830
        %v4832 = vpop.f32.mrb[0].mxu0
        %4833 = vmatprep.mubr.bf16.mxu0 0
        %4834 = vmatmul.mubr.bf16.gmra.mrb[0].mxu0 %v4354
        %v4835 = vpop.f32.mrb[0].mxu0
        %v4836 = vadd.f32 %v4659, %v4835
        %v4837 = vpop.f32.mrb[0].mxu0
        %v4838 = vpop.f32.mrb[0].mxu0
        %v4839 = vadd.f32 %v4662, %v4838
        %v4840 = vpop.f32.mrb[0].mxu0
        %4841 = vmatprep.mubr.bf16.mxu0 0
        %4842 = vmatmul.mubr.bf16.gmra.mrb[0].mxu0 %v4357
        %v4843 = vpop.f32.mrb[0].mxu0
        %v4844 = vadd.f32 %v4667, %v4843
        %v4845 = vpop.f32.mrb[0].mxu0
        %v4846 = vpop.f32.mrb[0].mxu0
        %v4847 = vadd.f32 %v4670, %v4846
        %v4848 = vpop.f32.mrb[0].mxu0
        %4849 = vmatprep.mubr.bf16.mxu0 0
        %4850 = vmatmul.mubr.bf16.gmra.mrb[0].mxu0 %v4360
        %v4851 = vpop.f32.mrb[0].mxu0
        %v4852 = vadd.f32 %v4675, %v4851
        %v4853 = vpop.f32.mrb[0].mxu0
        %v4854 = vpop.f32.mrb[0].mxu0
        %v4855 = vadd.f32 %v4678, %v4854
        %v4856 = vpop.f32.mrb[0].mxu0
        %4857 = vmatprep.mubr.bf16.mxu0 0
        %4858 = vmatmul.mubr.bf16.gmra.mrb[0].mxu0 %v4363
        %v4859 = vpop.f32.mrb[0].mxu0
        %v4860 = vadd.f32 %v4683, %v4859
        %v4861 = vpop.f32.mrb[0].mxu0
        %v4862 = vpop.f32.mrb[0].mxu0
        %v4863 = vadd.f32 %v4686, %v4862
        %v4864 = vpop.f32.mrb[0].mxu0
        %4865 = vmatprep.mubr.bf16.mxu0 0
        %4866 = vmatmul.mubr.bf16.gmra.mrb[0].mxu0 %v4366
        %v4867 = vpop.f32.mrb[0].mxu0
        %v4868 = vadd.f32 %v4691, %v4867
        %v4869 = vpop.f32.mrb[0].mxu0
        %v4870 = vpop.f32.mrb[0].mxu0
        %v4871 = vadd.f32 %v4694, %v4870
        %v4872 = vpop.f32.mrb[0].mxu0
        %4873 = vmatprep.mubr.bf16.mxu0 0
        %4874 = vmatmul.mubr.bf16.gmra.mrb[0].mxu0 %v4369
        %v4875 = vpop.f32.mrb[0].mxu0
        %v4876 = vadd.f32 %v4699, %v4875
        %v4877 = vpop.f32.mrb[0].mxu0
        %v4878 = vpop.f32.mrb[0].mxu0
        %v4879 = vadd.f32 %v4702, %v4878
        %v4880 = vpop.f32.mrb[0].mxu0
        %4881 = vmatprep.mubr.bf16.mxu0 0
        %4882 = vmatmul.mubr.bf16.gmra.mrb[0].mxu0 %v4372
        %v4883 = vpop.f32.mrb[0].mxu0
        %v4884 = vadd.f32 %v4707, %v4883
        %v4885 = vpop.f32.mrb[0].mxu0
        %v4886 = vpop.f32.mrb[0].mxu0
        %v4887 = vadd.f32 %v4710, %v4886
        %v4888 = vpop.f32.mrb[0].mxu0
        %4889 = vmatprep.mubr.bf16.mxu0 0
        %4890 = vmatmul.mubr.bf16.gmra.mrb[0].mxu0 %v4375
        %v4891 = vpop.f32.mrb[0].mxu0
        %v4892 = vadd.f32 %v4715, %v4891
        %v4893 = vpop.f32.mrb[0].mxu0
        %v4894 = vpop.f32.mrb[0].mxu0
        %v4895 = vadd.f32 %v4718, %v4894
        %v4896 = vpop.f32.mrb[0].mxu0
        %4897 = vmatprep.mubr.bf16.mxu0 0
        %4898 = vmatmul.mubr.bf16.gmra.mrb[0].mxu0 %v4378
        %v4899 = vpop.f32.mrb[0].mxu0
        %v4900 = vadd.f32 %v4723, %v4899
        %v4901 = vpop.f32.mrb[0].mxu0
        %v4902 = vpop.f32.mrb[0].mxu0
        %v4903 = vadd.f32 %v4726, %v4902
        %v4904 = vpop.f32.mrb[0].mxu0
        %4905 = vmatprep.mubr.bf16.mxu0 0
        %4906 = vmatmul.mubr.bf16.gmra.mrb[0].mxu0 %v4381
        %v4907 = vpop.f32.mrb[0].mxu0
        %v4908 = vadd.f32 %v4731, %v4907
        %v4909 = vpop.f32.mrb[0].mxu0
        %v4910 = vpop.f32.mrb[0].mxu0
        %v4911 = vadd.f32 %v4734, %v4910
        %v4912 = vpop.f32.mrb[0].mxu0
        %4913 = vdwg.mxu0
        %v4914 = vsub.f32 0.0, %v4772
        %v4915 = vsub.f32 0.0, %v4775
        %v4916 = vsub.f32 0.0, %v4780
        %v4917 = vsub.f32 0.0, %v4783
        %v4918 = vsub.f32 0.0, %v4788
        %v4919 = vsub.f32 0.0, %v4791
        %v4920 = vsub.f32 0.0, %v4796
        %v4921 = vsub.f32 0.0, %v4799
        %v4922 = vsub.f32 0.0, %v4804
        %v4923 = vsub.f32 0.0, %v4807
        %v4924 = vsub.f32 0.0, %v4812
        %v4925 = vsub.f32 0.0, %v4815
        %v4926 = vsub.f32 0.0, %v4820
        %v4927 = vsub.f32 0.0, %v4823
        %v4928 = vsub.f32 0.0, %v4828
        %v4929 = vsub.f32 0.0, %v4831
        %v4930 = vsub.f32 0.0, %v4836
        %v4931 = vsub.f32 0.0, %v4839
        %v4932 = vsub.f32 0.0, %v4844
        %v4933 = vsub.f32 0.0, %v4847
        %v4934 = vsub.f32 0.0, %v4852
        %v4935 = vsub.f32 0.0, %v4855
        %v4936 = vsub.f32 0.0, %v4860
        %v4937 = vsub.f32 0.0, %v4863
        %v4938 = vsub.f32 0.0, %v4868
        %v4939 = vsub.f32 0.0, %v4871
        %v4940 = vsub.f32 0.0, %v4876
        %v4941 = vsub.f32 0.0, %v4879
        %v4942 = vsub.f32 0.0, %v4884
        %v4943 = vsub.f32 0.0, %v4887
        %v4944 = vsub.f32 0.0, %v4892
        %v4945 = vsub.f32 0.0, %v4895
        %v4946 = vsub.f32 0.0, %v4900
        %v4947 = vsub.f32 0.0, %v4903
        %v4948 = vsub.f32 0.0, %v4908
        %v4949 = vsub.f32 0.0, %v4911
        %v4950 = vmul.f32 %v4914, 1.442695
        %v4951 = vpow.pop %v4950
        %v4952 = vmul.f32 %v4915, 1.442695
        %v4953 = vpow.pop %v4952
        %v4954 = vmul.f32 %v4916, 1.442695
        %v4955 = vpow.pop %v4954
        %v4956 = vmul.f32 %v4917, 1.442695
        %v4957 = vpow.pop %v4956
        %v4958 = vmul.f32 %v4918, 1.442695
        %v4959 = vpow.pop %v4958
        %v4960 = vmul.f32 %v4919, 1.442695
        %v4961 = vpow.pop %v4960
        %v4962 = vmul.f32 %v4920, 1.442695
        %v4963 = vpow.pop %v4962
        %v4964 = vmul.f32 %v4921, 1.442695
        %v4965 = vpow.pop %v4964
        %v4966 = vmul.f32 %v4922, 1.442695
        %v4967 = vpow.pop %v4966
        %v4968 = vmul.f32 %v4923, 1.442695
        %v4969 = vpow.pop %v4968
        %v4970 = vmul.f32 %v4924, 1.442695
        %v4971 = vpow.pop %v4970
        %v4972 = vmul.f32 %v4925, 1.442695
        %v4973 = vpow.pop %v4972
        %v4974 = vmul.f32 %v4926, 1.442695
        %v4975 = vpow.pop %v4974
        %v4976 = vmul.f32 %v4927, 1.442695
        %v4977 = vpow.pop %v4976
        %v4978 = vmul.f32 %v4928, 1.442695
        %v4979 = vpow.pop %v4978
        %v4980 = vmul.f32 %v4929, 1.442695
        %v4981 = vpow.pop %v4980
        %v4982 = vmul.f32 %v4930, 1.442695
        %v4983 = vpow.pop %v4982
        %v4984 = vmul.f32 %v4931, 1.442695
        %v4985 = vpow.pop %v4984
        %v4986 = vmul.f32 %v4932, 1.442695
        %v4987 = vpow.pop %v4986
        %v4988 = vmul.f32 %v4933, 1.442695
        %v4989 = vpow.pop %v4988
        %v4990 = vmul.f32 %v4934, 1.442695
        %v4991 = vpow.pop %v4990
        %v4992 = vmul.f32 %v4935, 1.442695
        %v4993 = vpow.pop %v4992
        %v4994 = vmul.f32 %v4936, 1.442695
        %v4995 = vpow.pop %v4994
        %v4996 = vmul.f32 %v4937, 1.442695
        %v4997 = vpow.pop %v4996
        %v4998 = vmul.f32 %v4938, 1.442695
        %v4999 = vpow.pop %v4998
        %v5000 = vmul.f32 %v4939, 1.442695
        %v5001 = vpow.pop %v5000
        %v5002 = vmul.f32 %v4940, 1.442695
        %v5003 = vpow.pop %v5002
        %v5004 = vmul.f32 %v4941, 1.442695
        %v5005 = vpow.pop %v5004
        %v5006 = vmul.f32 %v4942, 1.442695
        %v5007 = vpow.pop %v5006
        %v5008 = vmul.f32 %v4943, 1.442695
        %v5009 = vpow.pop %v5008
        %v5010 = vmul.f32 %v4944, 1.442695
        %v5011 = vpow.pop %v5010
        %v5012 = vmul.f32 %v4945, 1.442695
        %v5013 = vpow.pop %v5012
        %v5014 = vmul.f32 %v4946, 1.442695
        %v5015 = vpow.pop %v5014
        %v5016 = vmul.f32 %v4947, 1.442695
        %v5017 = vpow.pop %v5016
        %v5018 = vmul.f32 %v4948, 1.442695
        %v5019 = vpow.pop %v5018
        %v5020 = vmul.f32 %v4949, 1.442695
        %v5021 = vpow.pop %v5020
        %v5022 = vadd.f32 %v4951, 1.0
        %v5023 = vadd.f32 %v4953, 1.0
        %v5024 = vadd.f32 %v4955, 1.0
        %v5025 = vadd.f32 %v4957, 1.0
        %v5026 = vadd.f32 %v4959, 1.0
        %v5027 = vadd.f32 %v4961, 1.0
        %v5028 = vadd.f32 %v4963, 1.0
        %v5029 = vadd.f32 %v4965, 1.0
        %v5030 = vadd.f32 %v4967, 1.0
        %v5031 = vadd.f32 %v4969, 1.0
        %v5032 = vadd.f32 %v4971, 1.0
        %v5033 = vadd.f32 %v4973, 1.0
        %v5034 = vadd.f32 %v4975, 1.0
        %v5035 = vadd.f32 %v4977, 1.0
        %v5036 = vadd.f32 %v4979, 1.0
        %v5037 = vadd.f32 %v4981, 1.0
        %v5038 = vadd.f32 %v4983, 1.0
        %v5039 = vadd.f32 %v4985, 1.0
        %v5040 = vadd.f32 %v4987, 1.0
        %v5041 = vadd.f32 %v4989, 1.0
        %v5042 = vadd.f32 %v4991, 1.0
        %v5043 = vadd.f32 %v4993, 1.0
        %v5044 = vadd.f32 %v4995, 1.0
        %v5045 = vadd.f32 %v4997, 1.0
        %v5046 = vadd.f32 %v4999, 1.0
        %v5047 = vadd.f32 %v5001, 1.0
        %v5048 = vadd.f32 %v5003, 1.0
        %v5049 = vadd.f32 %v5005, 1.0
        %v5050 = vadd.f32 %v5007, 1.0
        %v5051 = vadd.f32 %v5009, 1.0
        %v5052 = vadd.f32 %v5011, 1.0
        %v5053 = vadd.f32 %v5013, 1.0
        %v5054 = vadd.f32 %v5015, 1.0
        %v5055 = vadd.f32 %v5017, 1.0
        %v5056 = vadd.f32 %v5019, 1.0
        %v5057 = vadd.f32 %v5021, 1.0
        %v5058 = vrcp.pop %v5022
        %v5059 = vrcp.pop %v5023
        %v5060 = vrcp.pop %v5024
        %v5061 = vrcp.pop %v5025
        %v5062 = vrcp.pop %v5026
        %v5063 = vrcp.pop %v5027
        %v5064 = vrcp.pop %v5028
        %v5065 = vrcp.pop %v5029
        %v5066 = vrcp.pop %v5030
        %v5067 = vrcp.pop %v5031
        %v5068 = vrcp.pop %v5032
        %v5069 = vrcp.pop %v5033
        %v5070 = vrcp.pop %v5034
        %v5071 = vrcp.pop %v5035
        %v5072 = vrcp.pop %v5036
        %v5073 = vrcp.pop %v5037
        %v5074 = vrcp.pop %v5038
        %v5075 = vrcp.pop %v5039
        %v5076 = vrcp.pop %v5040
        %v5077 = vrcp.pop %v5041
        %v5078 = vrcp.pop %v5042
        %v5079 = vrcp.pop %v5043
        %v5080 = vrcp.pop %v5044
        %v5081 = vrcp.pop %v5045
        %v5082 = vrcp.pop %v5046
        %v5083 = vrcp.pop %v5047
        %v5084 = vrcp.pop %v5048
        %v5085 = vrcp.pop %v5049
        %v5086 = vrcp.pop %v5050
        %v5087 = vrcp.pop %v5051
        %v5088 = vrcp.pop %v5052
        %v5089 = vrcp.pop %v5053
        %v5090 = vrcp.pop %v5054
        %v5091 = vrcp.pop %v5055
        %v5092 = vrcp.pop %v5056
        %v5093 = vrcp.pop %v5057
        %v5094 = vmul.f32 %v4772, %v5058
        %v5095 = vmul.f32 %v4775, %v5059
        %v5096 = vmul.f32 %v4780, %v5060
        %v5097 = vmul.f32 %v4783, %v5061
        %v5098 = vmul.f32 %v4788, %v5062
        %v5099 = vmul.f32 %v4791, %v5063
        %v5100 = vmul.f32 %v4796, %v5064
        %v5101 = vmul.f32 %v4799, %v5065
        %v5102 = vmul.f32 %v4804, %v5066
        %v5103 = vmul.f32 %v4807, %v5067
        %v5104 = vmul.f32 %v4812, %v5068
        %v5105 = vmul.f32 %v4815, %v5069
        %v5106 = vmul.f32 %v4820, %v5070
        %v5107 = vmul.f32 %v4823, %v5071
        %v5108 = vmul.f32 %v4828, %v5072
        %v5109 = vmul.f32 %v4831, %v5073
        %v5110 = vmul.f32 %v4836, %v5074
        %v5111 = vmul.f32 %v4839, %v5075
        %v5112 = vmul.f32 %v4844, %v5076
        %v5113 = vmul.f32 %v4847, %v5077
        %v5114 = vmul.f32 %v4852, %v5078
        %v5115 = vmul.f32 %v4855, %v5079
        %v5116 = vmul.f32 %v4860, %v5080
        %v5117 = vmul.f32 %v4863, %v5081
        %v5118 = vmul.f32 %v4868, %v5082
        %v5119 = vmul.f32 %v4871, %v5083
        %v5120 = vmul.f32 %v4876, %v5084
        %v5121 = vmul.f32 %v4879, %v5085
        %v5122 = vmul.f32 %v4884, %v5086
        %v5123 = vmul.f32 %v4887, %v5087
        %v5124 = vmul.f32 %v4892, %v5088
        %v5125 = vmul.f32 %v4895, %v5089
        %v5126 = vmul.f32 %v4900, %v5090
        %v5127 = vmul.f32 %v4903, %v5091
        %v5128 = vmul.f32 %v4908, %v5092
        %v5129 = vmul.f32 %v4911, %v5093
        %v5130 = vadd.f32 %v376, %v5094
        %v5131 = vadd.f32 %v377, %v5095
        %v5132 = vadd.f32 %v378, %v5096
        %v5133 = vadd.f32 %v379, %v5097
        %v5134 = vadd.f32 %v380, %v5098
        %v5135 = vadd.f32 %v381, %v5099
        %v5136 = vadd.f32 %v382, %v5100
        %v5137 = vadd.f32 %v383, %v5101
        %v5138 = vadd.f32 %v384, %v5102
        %v5139 = vadd.f32 %v385, %v5103
        %v5140 = vadd.f32 %v386, %v5104
        %v5141 = vadd.f32 %v387, %v5105
        %v5142 = vadd.f32 %v388, %v5106
        %v5143 = vadd.f32 %v389, %v5107
        %v5144 = vadd.f32 %v390, %v5108
        %v5145 = vadd.f32 %v391, %v5109
        %v5146 = vadd.f32 %v392, %v5110
        %v5147 = vadd.f32 %v393, %v5111
        %v5148 = vadd.f32 %v394, %v5112
        %v5149 = vadd.f32 %v395, %v5113
        %v5150 = vadd.f32 %v396, %v5114
        %v5151 = vadd.f32 %v397, %v5115
        %v5152 = vadd.f32 %v398, %v5116
        %v5153 = vadd.f32 %v399, %v5117
        %v5154 = vadd.f32 %v400, %v5118
        %v5155 = vadd.f32 %v401, %v5119
        %v5156 = vadd.f32 %v402, %v5120
        %v5157 = vadd.f32 %v403, %v5121
        %v5158 = vadd.f32 %v404, %v5122
        %v5159 = vadd.f32 %v405, %v5123
        %v5160 = vadd.f32 %v406, %v5124
        %v5161 = vadd.f32 %v407, %v5125
        %v5162 = vadd.f32 %v408, %v5126
        %v5163 = vadd.f32 %v409, %v5127
        %v5164 = vadd.f32 %v410, %v5128
        %v5165 = vadd.f32 %v411, %v5129
        %v5166 = vmul.f32 %v5130, %v2666
        %v5167 = vmul.f32 %v5131, %v2671
        %v5168 = vmul.f32 %v5132, %v2676
        %v5169 = vmul.f32 %v5133, %v2681
        %v5170 = vmul.f32 %v5134, %v2686
        %v5171 = vmul.f32 %v5135, %v2691
        %v5172 = vmul.f32 %v5136, %v2696
        %v5173 = vmul.f32 %v5137, %v2701
        %v5174 = vmul.f32 %v5138, %v2706
        %v5175 = vmul.f32 %v5139, %v2711
        %v5176 = vmul.f32 %v5140, %v2716
        %v5177 = vmul.f32 %v5141, %v2721
        %v5178 = vmul.f32 %v5142, %v2726
        %v5179 = vmul.f32 %v5143, %v2731
        %v5180 = vmul.f32 %v5144, %v2736
        %v5181 = vmul.f32 %v5145, %v2741
        %v5182 = vmul.f32 %v5146, %v2746
        %v5183 = vmul.f32 %v5147, %v2751
        %v5184 = vmul.f32 %v5148, %v2756
        %v5185 = vmul.f32 %v5149, %v2761
        %v5186 = vmul.f32 %v5150, %v2766
        %v5187 = vmul.f32 %v5151, %v2771
        %v5188 = vmul.f32 %v5152, %v2776
        %v5189 = vmul.f32 %v5153, %v2781
        %v5190 = vmul.f32 %v5154, %v2786
        %v5191 = vmul.f32 %v5155, %v2791
        %v5192 = vmul.f32 %v5156, %v2796
        %v5193 = vmul.f32 %v5157, %v2801
        %v5194 = vmul.f32 %v5158, %v2806
        %v5195 = vmul.f32 %v5159, %v2811
        %v5196 = vmul.f32 %v5160, %v2816
        %v5197 = vmul.f32 %v5161, %v2821
        %v5198 = vmul.f32 %v5162, %v2826
        %v5199 = vmul.f32 %v5163, %v2831
        %v5200 = vmul.f32 %v5164, %v2836
        %v5201 = vmul.f32 %v5165, %v2841
        %5202 = vst.msk [vmem:[#allocation2 + $0x13] sm:$0xff] %vm332, %v5166
        %5203 = vst.msk [vmem:[#allocation2 + $0x1b] sm:$0xff] %vm332, %v5167
        %5204 = vst.msk [vmem:[#allocation2 + $0x23] sm:$0xff] %vm332, %v5168
        %5205 = vst.msk [vmem:[#allocation2 + $0x2b] sm:$0xff] %vm332, %v5169
        %5206 = vst.msk [vmem:[#allocation2 + $0x33] sm:$0xff] %vm332, %v5170
        %5207 = vst.msk [vmem:[#allocation2 + $0x3b] sm:$0xff] %vm332, %v5171
        %5208 = vst.msk [vmem:[#allocation2 + $0x43] sm:$0xff] %vm332, %v5172
        %5209 = vst.msk [vmem:[#allocation2 + $0x4b] sm:$0xff] %vm332, %v5173
        %5210 = vst.msk [vmem:[#allocation2 + $0x53] sm:$0xff] %vm332, %v5174
        %5211 = vst.msk [vmem:[#allocation2 + $0x5b] sm:$0xff] %vm332, %v5175
        %5212 = vst.msk [vmem:[#allocation2 + $0x63] sm:$0xff] %vm332, %v5176
        %5213 = vst.msk [vmem:[#allocation2 + $0x6b] sm:$0xff] %vm332, %v5177
        %5214 = vst.msk [vmem:[#allocation2 + $0x73] sm:$0xff] %vm332, %v5178
        %5215 = vst.msk [vmem:[#allocation2 + $0x7b] sm:$0xff] %vm332, %v5179
        %5216 = vst.msk [vmem:[#allocation2 + $0x83] sm:$0xff] %vm332, %v5180
        %5217 = vst.msk [vmem:[#allocation2 + $0x8b] sm:$0xff] %vm332, %v5181
        %5218 = vst.msk [vmem:[#allocation2 + $0x93] sm:$0xff] %vm332, %v5182
        %5219 = vst.msk [vmem:[#allocation2 + $0x9b] sm:$0xff] %vm332, %v5183
        %5220 = vst.msk [vmem:[#allocation2 + $0xa3] sm:$0xff] %vm332, %v5184
        %5221 = vst.msk [vmem:[#allocation2 + $0xab] sm:$0xff] %vm332, %v5185
        %5222 = vst.msk [vmem:[#allocation2 + $0xb3] sm:$0xff] %vm332, %v5186
        %5223 = vst.msk [vmem:[#allocation2 + $0xbb] sm:$0xff] %vm332, %v5187
        %5224 = vst.msk [vmem:[#allocation2 + $0xc3] sm:$0xff] %vm332, %v5188
        %5225 = vst.msk [vmem:[#allocation2 + $0xcb] sm:$0xff] %vm332, %v5189
        %5226 = vst.msk [vmem:[#allocation2 + $0xd3] sm:$0xff] %vm332, %v5190
        %5227 = vst.msk [vmem:[#allocation2 + $0xdb] sm:$0xff] %vm332, %v5191
        %5228 = vst.msk [vmem:[#allocation2 + $0xe3] sm:$0xff] %vm332, %v5192
        %5229 = vst.msk [vmem:[#allocation2 + $0xeb] sm:$0xff] %vm332, %v5193
        %5230 = vst.msk [vmem:[#allocation2 + $0xf3] sm:$0xff] %vm332, %v5194
        %5231 = vst.msk [vmem:[#allocation2 + $0xfb] sm:$0xff] %vm332, %v5195
        %5232 = vst.msk [vmem:[#allocation2 + $0x103] sm:$0xff] %vm332, %v5196
        %5233 = vst.msk [vmem:[#allocation2 + $0x10b] sm:$0xff] %vm332, %v5197
        %5234 = vst.msk [vmem:[#allocation2 + $0x113] sm:$0xff] %vm332, %v5198
        %5235 = vst.msk [vmem:[#allocation2 + $0x11b] sm:$0xff] %vm332, %v5199
        %5236 = vst.msk [vmem:[#allocation2 + $0x123] sm:$0xff] %vm332, %v5200
        %5237 = vst.msk [vmem:[#allocation2 + $0x12b] sm:$0xff] %vm332, %v5201
        %v5238 = vld [vmem:[#allocation2] sm:$0xff]
        %v5239 = vld [vmem:[#allocation2 + $0x8] sm:$0xff]
        %v5240 = vld [vmem:[#allocation2 + $0x10] sm:$0xff]
        %v5241 = vld [vmem:[#allocation2 + $0x18] sm:$0xff]
        %v5242 = vld [vmem:[#allocation2 + $0x20] sm:$0xff]
        %v5243 = vld [vmem:[#allocation2 + $0x28] sm:$0xff]
        %v5244 = vld [vmem:[#allocation2 + $0x30] sm:$0xff]
        %v5245 = vld [vmem:[#allocation2 + $0x38] sm:$0xff]
        %v5246 = vld [vmem:[#allocation2 + $0x40] sm:$0xff]
        %v5247 = vld [vmem:[#allocation2 + $0x48] sm:$0xff]
        %v5248 = vld [vmem:[#allocation2 + $0x50] sm:$0xff]
        %v5249 = vld [vmem:[#allocation2 + $0x58] sm:$0xff]
        %v5250 = vld [vmem:[#allocation2 + $0x60] sm:$0xff]
        %v5251 = vld [vmem:[#allocation2 + $0x68] sm:$0xff]
        %v5252 = vld [vmem:[#allocation2 + $0x70] sm:$0xff]
        %v5253 = vld [vmem:[#allocation2 + $0x78] sm:$0xff]
        %v5254 = vld [vmem:[#allocation2 + $0x80] sm:$0xff]
        %v5255 = vld [vmem:[#allocation2 + $0x88] sm:$0xff]
        %v5256 = vld [vmem:[#allocation2 + $0x90] sm:$0xff]
        %v5257 = vld [vmem:[#allocation2 + $0x98] sm:$0xff]
        %v5258 = vld [vmem:[#allocation2 + $0xa0] sm:$0xff]
        %v5259 = vld [vmem:[#allocation2 + $0xa8] sm:$0xff]
        %v5260 = vld [vmem:[#allocation2 + $0xb0] sm:$0xff]
        %v5261 = vld [vmem:[#allocation2 + $0xb8] sm:$0xff]
        %v5262 = vld [vmem:[#allocation2 + $0xc0] sm:$0xff]
        %v5263 = vld [vmem:[#allocation2 + $0xc8] sm:$0xff]
        %v5264 = vld [vmem:[#allocation2 + $0xd0] sm:$0xff]
        %v5265 = vld [vmem:[#allocation2 + $0xd8] sm:$0xff]
        %v5266 = vld [vmem:[#allocation2 + $0xe0] sm:$0xff]
        %v5267 = vld [vmem:[#allocation2 + $0xe8] sm:$0xff]
        %v5268 = vld [vmem:[#allocation2 + $0xf0] sm:$0xff]
        %v5269 = vld [vmem:[#allocation2 + $0xf8] sm:$0xff]
        %v5270 = vld [vmem:[#allocation2 + $0x100] sm:$0xff]
        %v5271 = vld [vmem:[#allocation2 + $0x108] sm:$0xff]
        %v5272 = vld [vmem:[#allocation2 + $0x110] sm:$0xff]
        %v5273 = vld [vmem:[#allocation2 + $0x118] sm:$0xff]
        %v5274 = vpack.c.bf16 %v5239, %v5238
        %v5275 = vpack.c.bf16 %v5241, %v5240
        %v5276 = vpack.c.bf16 %v5243, %v5242
        %v5277 = vpack.c.bf16 %v5245, %v5244
        %v5278 = vpack.c.bf16 %v5247, %v5246
        %v5279 = vpack.c.bf16 %v5249, %v5248
        %v5280 = vpack.c.bf16 %v5251, %v5250
        %v5281 = vpack.c.bf16 %v5253, %v5252
        %v5282 = vpack.c.bf16 %v5255, %v5254
        %v5283 = vpack.c.bf16 %v5257, %v5256
        %v5284 = vpack.c.bf16 %v5259, %v5258
        %v5285 = vpack.c.bf16 %v5261, %v5260
        %v5286 = vpack.c.bf16 %v5263, %v5262
        %v5287 = vpack.c.bf16 %v5265, %v5264
        %v5288 = vpack.c.bf16 %v5267, %v5266
        %v5289 = vpack.c.bf16 %v5269, %v5268
        %v5290 = vpack.c.bf16 %v5271, %v5270
        %v5291 = vpack.c.bf16 %v5273, %v5272
        %v5292 = vld [vmem:[#allocation2 + $0x1] sm:$0xff]
        %v5293 = vld [vmem:[#allocation2 + $0x9] sm:$0xff]
        %v5294 = vld [vmem:[#allocation2 + $0x11] sm:$0xff]
        %v5295 = vld [vmem:[#allocation2 + $0x19] sm:$0xff]
        %v5296 = vld [vmem:[#allocation2 + $0x21] sm:$0xff]
        %v5297 = vld [vmem:[#allocation2 + $0x29] sm:$0xff]
        %v5298 = vld [vmem:[#allocation2 + $0x31] sm:$0xff]
        %v5299 = vld [vmem:[#allocation2 + $0x39] sm:$0xff]
        %v5300 = vld [vmem:[#allocation2 + $0x41] sm:$0xff]
        %v5301 = vld [vmem:[#allocation2 + $0x49] sm:$0xff]
        %v5302 = vld [vmem:[#allocation2 + $0x51] sm:$0xff]
        %v5303 = vld [vmem:[#allocation2 + $0x59] sm:$0xff]
        %v5304 = vld [vmem:[#allocation2 + $0x61] sm:$0xff]
        %v5305 = vld [vmem:[#allocation2 + $0x69] sm:$0xff]
        %v5306 = vld [vmem:[#allocation2 + $0x71] sm:$0xff]
        %v5307 = vld [vmem:[#allocation2 + $0x79] sm:$0xff]
        %v5308 = vld [vmem:[#allocation2 + $0x81] sm:$0xff]
        %v5309 = vld [vmem:[#allocation2 + $0x89] sm:$0xff]
        %v5310 = vld [vmem:[#allocation2 + $0x91] sm:$0xff]
        %v5311 = vld [vmem:[#allocation2 + $0x99] sm:$0xff]
        %v5312 = vld [vmem:[#allocation2 + $0xa1] sm:$0xff]
        %v5313 = vld [vmem:[#allocation2 + $0xa9] sm:$0xff]
        %v5314 = vld [vmem:[#allocation2 + $0xb1] sm:$0xff]
        %v5315 = vld [vmem:[#allocation2 + $0xb9] sm:$0xff]
        %v5316 = vld [vmem:[#allocation2 + $0xc1] sm:$0xff]
        %v5317 = vld [vmem:[#allocation2 + $0xc9] sm:$0xff]
        %v5318 = vld [vmem:[#allocation2 + $0xd1] sm:$0xff]
        %v5319 = vld [vmem:[#allocation2 + $0xd9] sm:$0xff]
        %v5320 = vld [vmem:[#allocation2 + $0xe1] sm:$0xff]
        %v5321 = vld [vmem:[#allocation2 + $0xe9] sm:$0xff]
        %v5322 = vld [vmem:[#allocation2 + $0xf1] sm:$0xff]
        %v5323 = vld [vmem:[#allocation2 + $0xf9] sm:$0xff]
        %v5324 = vld [vmem:[#allocation2 + $0x101] sm:$0xff]
        %v5325 = vld [vmem:[#allocation2 + $0x109] sm:$0xff]
        %v5326 = vld [vmem:[#allocation2 + $0x111] sm:$0xff]
        %v5327 = vld [vmem:[#allocation2 + $0x119] sm:$0xff]
        %v5328 = vpack.c.bf16 %v5293, %v5292
        %v5329 = vpack.c.bf16 %v5295, %v5294
        %v5330 = vpack.c.bf16 %v5297, %v5296
        %v5331 = vpack.c.bf16 %v5299, %v5298
        %v5332 = vpack.c.bf16 %v5301, %v5300
        %v5333 = vpack.c.bf16 %v5303, %v5302
        %v5334 = vpack.c.bf16 %v5305, %v5304
        %v5335 = vpack.c.bf16 %v5307, %v5306
        %v5336 = vpack.c.bf16 %v5309, %v5308
        %v5337 = vpack.c.bf16 %v5311, %v5310
        %v5338 = vpack.c.bf16 %v5313, %v5312
        %v5339 = vpack.c.bf16 %v5315, %v5314
        %v5340 = vpack.c.bf16 %v5317, %v5316
        %v5341 = vpack.c.bf16 %v5319, %v5318
        %v5342 = vpack.c.bf16 %v5321, %v5320
        %v5343 = vpack.c.bf16 %v5323, %v5322
        %v5344 = vpack.c.bf16 %v5325, %v5324
        %v5345 = vpack.c.bf16 %v5327, %v5326
        %5364 = vrot.lane.b32.xlu0 %v5328, 64
        %v5365 = vpop.permute.xlu0 %5364
        %5366 = vrot.lane.b32.xlu0 %v5329, 64
        %v5367 = vpop.permute.xlu0 %5366
        %5368 = vrot.lane.b32.xlu0 %v5330, 64
        %v5369 = vpop.permute.xlu0 %5368
        %5370 = vrot.lane.b32.xlu0 %v5331, 64
        %v5371 = vpop.permute.xlu0 %5370
        %5372 = vrot.lane.b32.xlu0 %v5332, 64
        %v5373 = vpop.permute.xlu0 %5372
        %5374 = vrot.lane.b32.xlu0 %v5333, 64
        %v5375 = vpop.permute.xlu0 %5374
        %5376 = vrot.lane.b32.xlu0 %v5334, 64
        %v5377 = vpop.permute.xlu0 %5376
        %5378 = vrot.lane.b32.xlu0 %v5335, 64
        %v5379 = vpop.permute.xlu0 %5378
        %5380 = vrot.lane.b32.xlu0 %v5336, 64
        %v5381 = vpop.permute.xlu0 %5380
        %5382 = vrot.lane.b32.xlu0 %v5337, 64
        %v5383 = vpop.permute.xlu0 %5382
        %5384 = vrot.lane.b32.xlu0 %v5338, 64
        %v5385 = vpop.permute.xlu0 %5384
        %5386 = vrot.lane.b32.xlu0 %v5339, 64
        %v5387 = vpop.permute.xlu0 %5386
        %5388 = vrot.lane.b32.xlu0 %v5340, 64
        %v5389 = vpop.permute.xlu0 %5388
        %5390 = vrot.lane.b32.xlu0 %v5341, 64
        %v5391 = vpop.permute.xlu0 %5390
        %5392 = vrot.lane.b32.xlu0 %v5342, 64
        %v5393 = vpop.permute.xlu0 %5392
        %5394 = vrot.lane.b32.xlu0 %v5343, 64
        %v5395 = vpop.permute.xlu0 %5394
        %5396 = vrot.lane.b32.xlu0 %v5344, 64
        %v5397 = vpop.permute.xlu0 %5396
        %5398 = vrot.lane.b32.xlu0 %v5345, 64
        %v5399 = vpop.permute.xlu0 %5398
        %v5402 = vsel %vm332, %v5274, %v5365
        %v5406 = vsel %vm332, %v5275, %v5367
        %v5410 = vsel %vm332, %v5276, %v5369
        %v5414 = vsel %vm332, %v5277, %v5371
        %v5418 = vsel %vm332, %v5278, %v5373
        %v5422 = vsel %vm332, %v5279, %v5375
        %v5426 = vsel %vm332, %v5280, %v5377
        %v5430 = vsel %vm332, %v5281, %v5379
        %v5434 = vsel %vm332, %v5282, %v5381
        %v5438 = vsel %vm332, %v5283, %v5383
        %v5442 = vsel %vm332, %v5284, %v5385
        %v5446 = vsel %vm332, %v5285, %v5387
        %v5450 = vsel %vm332, %v5286, %v5389
        %v5454 = vsel %vm332, %v5287, %v5391
        %v5458 = vsel %vm332, %v5288, %v5393
        %v5462 = vsel %vm332, %v5289, %v5395
        %v5466 = vsel %vm332, %v5290, %v5397
        %v5470 = vsel %vm332, %v5291, %v5399
        %5472 = vst [vmem:[#allocation3] sm:$0xff] %v5402
        %5473 = vst [vmem:[#allocation3 + $0x28] sm:$0xff] %v5406
        %5474 = vst [vmem:[#allocation3 + $0x50] sm:$0xff] %v5410
        %5475 = vst [vmem:[#allocation3 + $0x78] sm:$0xff] %v5414
        %5476 = vst [vmem:[#allocation3 + $0xa0] sm:$0xff] %v5418
        %5477 = vst [vmem:[#allocation3 + $0xc8] sm:$0xff] %v5422
        %5478 = vst [vmem:[#allocation3 + $0xf0] sm:$0xff] %v5426
        %5479 = vst [vmem:[#allocation3 + $0x118] sm:$0xff] %v5430
        %5480 = vst [vmem:[#allocation3 + $0x140] sm:$0xff] %v5434
        %5481 = vst [vmem:[#allocation3 + $0x168] sm:$0xff] %v5438
        %5482 = vst [vmem:[#allocation3 + $0x190] sm:$0xff] %v5442
        %5483 = vst [vmem:[#allocation3 + $0x1b8] sm:$0xff] %v5446
        %5484 = vst [vmem:[#allocation3 + $0x1e0] sm:$0xff] %v5450
        %5485 = vst [vmem:[#allocation3 + $0x208] sm:$0xff] %v5454
        %5486 = vst [vmem:[#allocation3 + $0x230] sm:$0xff] %v5458
        %5487 = vst [vmem:[#allocation3 + $0x258] sm:$0xff] %v5462
        %5488 = vst [vmem:[#allocation3 + $0x280] sm:$0xff] %v5466
        %5489 = vst [vmem:[#allocation3 + $0x2a8] sm:$0xff] %v5470
        %v5490 = vld [vmem:[#allocation2 + $0x2] sm:$0xff]
        %v5491 = vld [vmem:[#allocation2 + $0xa] sm:$0xff]
        %v5492 = vld [vmem:[#allocation2 + $0x12] sm:$0xff]
        %v5493 = vld [vmem:[#allocation2 + $0x1a] sm:$0xff]
        %v5494 = vld [vmem:[#allocation2 + $0x22] sm:$0xff]
        %v5495 = vld [vmem:[#allocation2 + $0x2a] sm:$0xff]
        %v5496 = vld [vmem:[#allocation2 + $0x32] sm:$0xff]
        %v5497 = vld [vmem:[#allocation2 + $0x3a] sm:$0xff]
        %v5498 = vld [vmem:[#allocation2 + $0x42] sm:$0xff]
        %v5499 = vld [vmem:[#allocation2 + $0x4a] sm:$0xff]
        %v5500 = vld [vmem:[#allocation2 + $0x52] sm:$0xff]
        %v5501 = vld [vmem:[#allocation2 + $0x5a] sm:$0xff]
        %v5502 = vld [vmem:[#allocation2 + $0x62] sm:$0xff]
        %v5503 = vld [vmem:[#allocation2 + $0x6a] sm:$0xff]
        %v5504 = vld [vmem:[#allocation2 + $0x72] sm:$0xff]
        %v5505 = vld [vmem:[#allocation2 + $0x7a] sm:$0xff]
        %v5506 = vld [vmem:[#allocation2 + $0x82] sm:$0xff]
        %v5507 = vld [vmem:[#allocation2 + $0x8a] sm:$0xff]
        %v5508 = vld [vmem:[#allocation2 + $0x92] sm:$0xff]
        %v5509 = vld [vmem:[#allocation2 + $0x9a] sm:$0xff]
        %v5510 = vld [vmem:[#allocation2 + $0xa2] sm:$0xff]
        %v5511 = vld [vmem:[#allocation2 + $0xaa] sm:$0xff]
        %v5512 = vld [vmem:[#allocation2 + $0xb2] sm:$0xff]
        %v5513 = vld [vmem:[#allocation2 + $0xba] sm:$0xff]
        %v5514 = vld [vmem:[#allocation2 + $0xc2] sm:$0xff]
        %v5515 = vld [vmem:[#allocation2 + $0xca] sm:$0xff]
        %v5516 = vld [vmem:[#allocation2 + $0xd2] sm:$0xff]
        %v5517 = vld [vmem:[#allocation2 + $0xda] sm:$0xff]
        %v5518 = vld [vmem:[#allocation2 + $0xe2] sm:$0xff]
        %v5519 = vld [vmem:[#allocation2 + $0xea] sm:$0xff]
        %v5520 = vld [vmem:[#allocation2 + $0xf2] sm:$0xff]
        %v5521 = vld [vmem:[#allocation2 + $0xfa] sm:$0xff]
        %v5522 = vld [vmem:[#allocation2 + $0x102] sm:$0xff]
        %v5523 = vld [vmem:[#allocation2 + $0x10a] sm:$0xff]
        %v5524 = vld [vmem:[#allocation2 + $0x112] sm:$0xff]
        %v5525 = vld [vmem:[#allocation2 + $0x11a] sm:$0xff]
        %v5526 = vpack.c.bf16 %v5491, %v5490
        %v5527 = vpack.c.bf16 %v5493, %v5492
        %v5528 = vpack.c.bf16 %v5495, %v5494
        %v5529 = vpack.c.bf16 %v5497, %v5496
        %v5530 = vpack.c.bf16 %v5499, %v5498
        %v5531 = vpack.c.bf16 %v5501, %v5500
        %v5532 = vpack.c.bf16 %v5503, %v5502
        %v5533 = vpack.c.bf16 %v5505, %v5504
        %v5534 = vpack.c.bf16 %v5507, %v5506
        %v5535 = vpack.c.bf16 %v5509, %v5508
        %v5536 = vpack.c.bf16 %v5511, %v5510
        %v5537 = vpack.c.bf16 %v5513, %v5512
        %v5538 = vpack.c.bf16 %v5515, %v5514
        %v5539 = vpack.c.bf16 %v5517, %v5516
        %v5540 = vpack.c.bf16 %v5519, %v5518
        %v5541 = vpack.c.bf16 %v5521, %v5520
        %v5542 = vpack.c.bf16 %v5523, %v5522
        %v5543 = vpack.c.bf16 %v5525, %v5524
        %v5544 = vld [vmem:[#allocation2 + $0x122] sm:$0xff]
        %v5545 = vld [vmem:[#allocation2 + $0x12a] sm:$0xff]
        %v5546 = vpack.c.bf16 %v5545, %v5544
        %5565 = vrot.lane.b32.xlu0 %v5527, 64
        %v5566 = vpop.permute.xlu0 %5565
        %5567 = vrot.lane.b32.xlu0 %v5528, 64
        %v5568 = vpop.permute.xlu0 %5567
        %5569 = vrot.lane.b32.xlu0 %v5529, 64
        %v5570 = vpop.permute.xlu0 %5569
        %5571 = vrot.lane.b32.xlu0 %v5530, 64
        %v5572 = vpop.permute.xlu0 %5571
        %5573 = vrot.lane.b32.xlu0 %v5531, 64
        %v5574 = vpop.permute.xlu0 %5573
        %5575 = vrot.lane.b32.xlu0 %v5532, 64
        %v5576 = vpop.permute.xlu0 %5575
        %5577 = vrot.lane.b32.xlu0 %v5533, 64
        %v5578 = vpop.permute.xlu0 %5577
        %5579 = vrot.lane.b32.xlu0 %v5534, 64
        %v5580 = vpop.permute.xlu0 %5579
        %5581 = vrot.lane.b32.xlu0 %v5535, 64
        %v5582 = vpop.permute.xlu0 %5581
        %5583 = vrot.lane.b32.xlu0 %v5536, 64
        %v5584 = vpop.permute.xlu0 %5583
        %5585 = vrot.lane.b32.xlu0 %v5537, 64
        %v5586 = vpop.permute.xlu0 %5585
        %5587 = vrot.lane.b32.xlu0 %v5538, 64
        %v5588 = vpop.permute.xlu0 %5587
        %5589 = vrot.lane.b32.xlu0 %v5539, 64
        %v5590 = vpop.permute.xlu0 %5589
        %5591 = vrot.lane.b32.xlu0 %v5540, 64
        %v5592 = vpop.permute.xlu0 %5591
        %5593 = vrot.lane.b32.xlu0 %v5541, 64
        %v5594 = vpop.permute.xlu0 %5593
        %5595 = vrot.lane.b32.xlu0 %v5542, 64
        %v5596 = vpop.permute.xlu0 %5595
        %5597 = vrot.lane.b32.xlu0 %v5543, 64
        %v5598 = vpop.permute.xlu0 %5597
        %5599 = vrot.lane.b32.xlu0 %v5546, 64
        %v5600 = vpop.permute.xlu0 %5599
        %v5603 = vsel %vm332, %v5526, %v5566
        %v5607 = vsel %vm332, %v5527, %v5568
        %v5611 = vsel %vm332, %v5528, %v5570
        %v5615 = vsel %vm332, %v5529, %v5572
        %v5619 = vsel %vm332, %v5530, %v5574
        %v5623 = vsel %vm332, %v5531, %v5576
        %v5627 = vsel %vm332, %v5532, %v5578
        %v5631 = vsel %vm332, %v5533, %v5580
        %v5635 = vsel %vm332, %v5534, %v5582
        %v5639 = vsel %vm332, %v5535, %v5584
        %v5643 = vsel %vm332, %v5536, %v5586
        %v5647 = vsel %vm332, %v5537, %v5588
        %v5651 = vsel %vm332, %v5538, %v5590
        %v5655 = vsel %vm332, %v5539, %v5592
        %v5659 = vsel %vm332, %v5540, %v5594
        %v5663 = vsel %vm332, %v5541, %v5596
        %v5667 = vsel %vm332, %v5542, %v5598
        %v5671 = vsel %vm332, %v5543, %v5600
        %5673 = vst [vmem:[#allocation3 + $0x8] sm:$0xff] %v5603
        %5674 = vst [vmem:[#allocation3 + $0x30] sm:$0xff] %v5607
        %5675 = vst [vmem:[#allocation3 + $0x58] sm:$0xff] %v5611
        %5676 = vst [vmem:[#allocation3 + $0x80] sm:$0xff] %v5615
        %5677 = vst [vmem:[#allocation3 + $0xa8] sm:$0xff] %v5619
        %5678 = vst [vmem:[#allocation3 + $0xd0] sm:$0xff] %v5623
        %5679 = vst [vmem:[#allocation3 + $0xf8] sm:$0xff] %v5627
        %5680 = vst [vmem:[#allocation3 + $0x120] sm:$0xff] %v5631
        %5681 = vst [vmem:[#allocation3 + $0x148] sm:$0xff] %v5635
        %5682 = vst [vmem:[#allocation3 + $0x170] sm:$0xff] %v5639
        %5683 = vst [vmem:[#allocation3 + $0x198] sm:$0xff] %v5643
        %5684 = vst [vmem:[#allocation3 + $0x1c0] sm:$0xff] %v5647
        %5685 = vst [vmem:[#allocation3 + $0x1e8] sm:$0xff] %v5651
        %5686 = vst [vmem:[#allocation3 + $0x210] sm:$0xff] %v5655
        %5687 = vst [vmem:[#allocation3 + $0x238] sm:$0xff] %v5659
        %5688 = vst [vmem:[#allocation3 + $0x260] sm:$0xff] %v5663
        %5689 = vst [vmem:[#allocation3 + $0x288] sm:$0xff] %v5667
        %5690 = vst [vmem:[#allocation3 + $0x2b0] sm:$0xff] %v5671
        %v5691 = vld [vmem:[#allocation2 + $0x13] sm:$0xff]
        %v5692 = vld [vmem:[#allocation2 + $0x1b] sm:$0xff]
        %v5693 = vld [vmem:[#allocation2 + $0x23] sm:$0xff]
        %v5694 = vld [vmem:[#allocation2 + $0x2b] sm:$0xff]
        %v5695 = vld [vmem:[#allocation2 + $0x33] sm:$0xff]
        %v5696 = vld [vmem:[#allocation2 + $0x3b] sm:$0xff]
        %v5697 = vld [vmem:[#allocation2 + $0x43] sm:$0xff]
        %v5698 = vld [vmem:[#allocation2 + $0x4b] sm:$0xff]
        %v5699 = vld [vmem:[#allocation2 + $0x53] sm:$0xff]
        %v5700 = vld [vmem:[#allocation2 + $0x5b] sm:$0xff]
        %v5701 = vld [vmem:[#allocation2 + $0x63] sm:$0xff]
        %v5702 = vld [vmem:[#allocation2 + $0x6b] sm:$0xff]
        %v5703 = vld [vmem:[#allocation2 + $0x73] sm:$0xff]
        %v5704 = vld [vmem:[#allocation2 + $0x7b] sm:$0xff]
        %v5705 = vld [vmem:[#allocation2 + $0x83] sm:$0xff]
        %v5706 = vld [vmem:[#allocation2 + $0x8b] sm:$0xff]
        %v5707 = vld [vmem:[#allocation2 + $0x93] sm:$0xff]
        %v5708 = vld [vmem:[#allocation2 + $0x9b] sm:$0xff]
        %v5709 = vld [vmem:[#allocation2 + $0xa3] sm:$0xff]
        %v5710 = vld [vmem:[#allocation2 + $0xab] sm:$0xff]
        %v5711 = vld [vmem:[#allocation2 + $0xb3] sm:$0xff]
        %v5712 = vld [vmem:[#allocation2 + $0xbb] sm:$0xff]
        %v5713 = vld [vmem:[#allocation2 + $0xc3] sm:$0xff]
        %v5714 = vld [vmem:[#allocation2 + $0xcb] sm:$0xff]
        %v5715 = vld [vmem:[#allocation2 + $0xd3] sm:$0xff]
        %v5716 = vld [vmem:[#allocation2 + $0xdb] sm:$0xff]
        %v5717 = vld [vmem:[#allocation2 + $0xe3] sm:$0xff]
        %v5718 = vld [vmem:[#allocation2 + $0xeb] sm:$0xff]
        %v5719 = vld [vmem:[#allocation2 + $0xf3] sm:$0xff]
        %v5720 = vld [vmem:[#allocation2 + $0xfb] sm:$0xff]
        %v5721 = vld [vmem:[#allocation2 + $0x103] sm:$0xff]
        %v5722 = vld [vmem:[#allocation2 + $0x10b] sm:$0xff]
        %v5723 = vld [vmem:[#allocation2 + $0x113] sm:$0xff]
        %v5724 = vld [vmem:[#allocation2 + $0x11b] sm:$0xff]
        %v5725 = vld [vmem:[#allocation2 + $0x123] sm:$0xff]
        %v5726 = vld [vmem:[#allocation2 + $0x12b] sm:$0xff]
        %v5727 = vpack.c.bf16 %v5692, %v5691
        %v5728 = vpack.c.bf16 %v5694, %v5693
        %v5729 = vpack.c.bf16 %v5696, %v5695
        %v5730 = vpack.c.bf16 %v5698, %v5697
        %v5731 = vpack.c.bf16 %v5700, %v5699
        %v5732 = vpack.c.bf16 %v5702, %v5701
        %v5733 = vpack.c.bf16 %v5704, %v5703
        %v5734 = vpack.c.bf16 %v5706, %v5705
        %v5735 = vpack.c.bf16 %v5708, %v5707
        %v5736 = vpack.c.bf16 %v5710, %v5709
        %v5737 = vpack.c.bf16 %v5712, %v5711
        %v5738 = vpack.c.bf16 %v5714, %v5713
        %v5739 = vpack.c.bf16 %v5716, %v5715
        %v5740 = vpack.c.bf16 %v5718, %v5717
        %v5741 = vpack.c.bf16 %v5720, %v5719
        %v5742 = vpack.c.bf16 %v5722, %v5721
        %v5743 = vpack.c.bf16 %v5724, %v5723
        %v5744 = vpack.c.bf16 %v5726, %v5725
        %v5745 = vld [vmem:[#allocation2 + $0x14] sm:$0xff]
        %v5746 = vld [vmem:[#allocation2 + $0x1c] sm:$0xff]
        %v5747 = vld [vmem:[#allocation2 + $0x24] sm:$0xff]
        %v5748 = vld [vmem:[#allocation2 + $0x2c] sm:$0xff]
        %v5749 = vld [vmem:[#allocation2 + $0x34] sm:$0xff]
        %v5750 = vld [vmem:[#allocation2 + $0x3c] sm:$0xff]
        %v5751 = vld [vmem:[#allocation2 + $0x44] sm:$0xff]
        %v5752 = vld [vmem:[#allocation2 + $0x4c] sm:$0xff]
        %v5753 = vld [vmem:[#allocation2 + $0x54] sm:$0xff]
        %v5754 = vld [vmem:[#allocation2 + $0x5c] sm:$0xff]
        %v5755 = vld [vmem:[#allocation2 + $0x64] sm:$0xff]
        %v5756 = vld [vmem:[#allocation2 + $0x6c] sm:$0xff]
        %v5757 = vld [vmem:[#allocation2 + $0x74] sm:$0xff]
        %v5758 = vld [vmem:[#allocation2 + $0x7c] sm:$0xff]
        %v5759 = vld [vmem:[#allocation2 + $0x84] sm:$0xff]
        %v5760 = vld [vmem:[#allocation2 + $0x8c] sm:$0xff]
        %v5761 = vld [vmem:[#allocation2 + $0x94] sm:$0xff]
        %v5762 = vld [vmem:[#allocation2 + $0x9c] sm:$0xff]
        %v5763 = vld [vmem:[#allocation2 + $0xa4] sm:$0xff]
        %v5764 = vld [vmem:[#allocation2 + $0xac] sm:$0xff]
        %v5765 = vld [vmem:[#allocation2 + $0xb4] sm:$0xff]
        %v5766 = vld [vmem:[#allocation2 + $0xbc] sm:$0xff]
        %v5767 = vld [vmem:[#allocation2 + $0xc4] sm:$0xff]
        %v5768 = vld [vmem:[#allocation2 + $0xcc] sm:$0xff]
        %v5769 = vld [vmem:[#allocation2 + $0xd4] sm:$0xff]
        %v5770 = vld [vmem:[#allocation2 + $0xdc] sm:$0xff]
        %v5771 = vld [vmem:[#allocation2 + $0xe4] sm:$0xff]
        %v5772 = vld [vmem:[#allocation2 + $0xec] sm:$0xff]
        %v5773 = vld [vmem:[#allocation2 + $0xf4] sm:$0xff]
        %v5774 = vld [vmem:[#allocation2 + $0xfc] sm:$0xff]
        %v5775 = vld [vmem:[#allocation2 + $0x104] sm:$0xff]
        %v5776 = vld [vmem:[#allocation2 + $0x10c] sm:$0xff]
        %v5777 = vld [vmem:[#allocation2 + $0x114] sm:$0xff]
        %v5778 = vld [vmem:[#allocation2 + $0x11c] sm:$0xff]
        %v5779 = vld [vmem:[#allocation2 + $0x124] sm:$0xff]
        %v5780 = vld [vmem:[#allocation2 + $0x12c] sm:$0xff]
        %v5781 = vpack.c.bf16 %v5746, %v5745
        %v5782 = vpack.c.bf16 %v5748, %v5747
        %v5783 = vpack.c.bf16 %v5750, %v5749
        %v5784 = vpack.c.bf16 %v5752, %v5751
        %v5785 = vpack.c.bf16 %v5754, %v5753
        %v5786 = vpack.c.bf16 %v5756, %v5755
        %v5787 = vpack.c.bf16 %v5758, %v5757
        %v5788 = vpack.c.bf16 %v5760, %v5759
        %v5789 = vpack.c.bf16 %v5762, %v5761
        %v5790 = vpack.c.bf16 %v5764, %v5763
        %v5791 = vpack.c.bf16 %v5766, %v5765
        %v5792 = vpack.c.bf16 %v5768, %v5767
        %v5793 = vpack.c.bf16 %v5770, %v5769
        %v5794 = vpack.c.bf16 %v5772, %v5771
        %v5795 = vpack.c.bf16 %v5774, %v5773
        %v5796 = vpack.c.bf16 %v5776, %v5775
        %v5797 = vpack.c.bf16 %v5778, %v5777
        %v5798 = vpack.c.bf16 %v5780, %v5779
        %5817 = vrot.lane.b32.xlu0 %v5781, 64
        %v5818 = vpop.permute.xlu0 %5817
        %5819 = vrot.lane.b32.xlu0 %v5782, 64
        %v5820 = vpop.permute.xlu0 %5819
        %5821 = vrot.lane.b32.xlu0 %v5783, 64
        %v5822 = vpop.permute.xlu0 %5821
        %5823 = vrot.lane.b32.xlu0 %v5784, 64
        %v5824 = vpop.permute.xlu0 %5823
        %5825 = vrot.lane.b32.xlu0 %v5785, 64
        %v5826 = vpop.permute.xlu0 %5825
        %5827 = vrot.lane.b32.xlu0 %v5786, 64
        %v5828 = vpop.permute.xlu0 %5827
        %5829 = vrot.lane.b32.xlu0 %v5787, 64
        %v5830 = vpop.permute.xlu0 %5829
        %5831 = vrot.lane.b32.xlu0 %v5788, 64
        %v5832 = vpop.permute.xlu0 %5831
        %5833 = vrot.lane.b32.xlu0 %v5789, 64
        %v5834 = vpop.permute.xlu0 %5833
        %5835 = vrot.lane.b32.xlu0 %v5790, 64
        %v5836 = vpop.permute.xlu0 %5835
        %5837 = vrot.lane.b32.xlu0 %v5791, 64
        %v5838 = vpop.permute.xlu0 %5837
        %5839 = vrot.lane.b32.xlu0 %v5792, 64
        %v5840 = vpop.permute.xlu0 %5839
        %5841 = vrot.lane.b32.xlu0 %v5793, 64
        %v5842 = vpop.permute.xlu0 %5841
        %5843 = vrot.lane.b32.xlu0 %v5794, 64
        %v5844 = vpop.permute.xlu0 %5843
        %5845 = vrot.lane.b32.xlu0 %v5795, 64
        %v5846 = vpop.permute.xlu0 %5845
        %5847 = vrot.lane.b32.xlu0 %v5796, 64
        %v5848 = vpop.permute.xlu0 %5847
        %5849 = vrot.lane.b32.xlu0 %v5797, 64
        %v5850 = vpop.permute.xlu0 %5849
        %5851 = vrot.lane.b32.xlu0 %v5798, 64
        %v5852 = vpop.permute.xlu0 %5851
        %v5855 = vsel %vm332, %v5727, %v5818
        %v5859 = vsel %vm332, %v5728, %v5820
        %v5863 = vsel %vm332, %v5729, %v5822
        %v5867 = vsel %vm332, %v5730, %v5824
        %v5871 = vsel %vm332, %v5731, %v5826
        %v5875 = vsel %vm332, %v5732, %v5828
        %v5879 = vsel %vm332, %v5733, %v5830
        %v5883 = vsel %vm332, %v5734, %v5832
        %v5887 = vsel %vm332, %v5735, %v5834
        %v5891 = vsel %vm332, %v5736, %v5836
        %v5895 = vsel %vm332, %v5737, %v5838
        %v5899 = vsel %vm332, %v5738, %v5840
        %v5903 = vsel %vm332, %v5739, %v5842
        %v5907 = vsel %vm332, %v5740, %v5844
        %v5911 = vsel %vm332, %v5741, %v5846
        %v5915 = vsel %vm332, %v5742, %v5848
        %v5919 = vsel %vm332, %v5743, %v5850
        %v5923 = vsel %vm332, %v5744, %v5852
        %5925 = vst [vmem:[#allocation3 + $0x10] sm:$0xff] %v5855
        %5926 = vst [vmem:[#allocation3 + $0x38] sm:$0xff] %v5859
        %5927 = vst [vmem:[#allocation3 + $0x60] sm:$0xff] %v5863
        %5928 = vst [vmem:[#allocation3 + $0x88] sm:$0xff] %v5867
        %5929 = vst [vmem:[#allocation3 + $0xb0] sm:$0xff] %v5871
        %5930 = vst [vmem:[#allocation3 + $0xd8] sm:$0xff] %v5875
        %5931 = vst [vmem:[#allocation3 + $0x100] sm:$0xff] %v5879
        %5932 = vst [vmem:[#allocation3 + $0x128] sm:$0xff] %v5883
        %5933 = vst [vmem:[#allocation3 + $0x150] sm:$0xff] %v5887
        %5934 = vst [vmem:[#allocation3 + $0x178] sm:$0xff] %v5891
        %5935 = vst [vmem:[#allocation3 + $0x1a0] sm:$0xff] %v5895
        %5936 = vst [vmem:[#allocation3 + $0x1c8] sm:$0xff] %v5899
        %5937 = vst [vmem:[#allocation3 + $0x1f0] sm:$0xff] %v5903
        %5938 = vst [vmem:[#allocation3 + $0x218] sm:$0xff] %v5907
        %5939 = vst [vmem:[#allocation3 + $0x240] sm:$0xff] %v5911
        %5940 = vst [vmem:[#allocation3 + $0x268] sm:$0xff] %v5915
        %5941 = vst [vmem:[#allocation3 + $0x290] sm:$0xff] %v5919
        %5942 = vst [vmem:[#allocation3 + $0x2b8] sm:$0xff] %v5923
        %v5943 = vld [vmem:[#allocation2 + $0x24] sm:$0xff]
        %v5944 = vld [vmem:[#allocation2 + $0x2c] sm:$0xff]
        %v5945 = vld [vmem:[#allocation2 + $0x34] sm:$0xff]
        %v5946 = vld [vmem:[#allocation2 + $0x3c] sm:$0xff]
        %v5947 = vld [vmem:[#allocation2 + $0x44] sm:$0xff]
        %v5948 = vld [vmem:[#allocation2 + $0x4c] sm:$0xff]
        %v5949 = vld [vmem:[#allocation2 + $0x54] sm:$0xff]
        %v5950 = vld [vmem:[#allocation2 + $0x5c] sm:$0xff]
        %v5951 = vld [vmem:[#allocation2 + $0x64] sm:$0xff]
        %v5952 = vld [vmem:[#allocation2 + $0x6c] sm:$0xff]
        %v5953 = vld [vmem:[#allocation2 + $0x74] sm:$0xff]
        %v5954 = vld [vmem:[#allocation2 + $0x7c] sm:$0xff]
        %v5955 = vld [vmem:[#allocation2 + $0x84] sm:$0xff]
        %v5956 = vld [vmem:[#allocation2 + $0x8c] sm:$0xff]
        %v5957 = vld [vmem:[#allocation2 + $0x94] sm:$0xff]
        %v5958 = vld [vmem:[#allocation2 + $0x9c] sm:$0xff]
        %v5959 = vld [vmem:[#allocation2 + $0xa4] sm:$0xff]
        %v5960 = vld [vmem:[#allocation2 + $0xac] sm:$0xff]
        %v5961 = vld [vmem:[#allocation2 + $0xb4] sm:$0xff]
        %v5962 = vld [vmem:[#allocation2 + $0xbc] sm:$0xff]
        %v5963 = vld [vmem:[#allocation2 + $0xc4] sm:$0xff]
        %v5964 = vld [vmem:[#allocation2 + $0xcc] sm:$0xff]
        %v5965 = vld [vmem:[#allocation2 + $0xd4] sm:$0xff]
        %v5966 = vld [vmem:[#allocation2 + $0xdc] sm:$0xff]
        %v5967 = vld [vmem:[#allocation2 + $0xe4] sm:$0xff]
        %v5968 = vld [vmem:[#allocation2 + $0xec] sm:$0xff]
        %v5969 = vld [vmem:[#allocation2 + $0xf4] sm:$0xff]
        %v5970 = vld [vmem:[#allocation2 + $0xfc] sm:$0xff]
        %v5971 = vld [vmem:[#allocation2 + $0x104] sm:$0xff]
        %v5972 = vld [vmem:[#allocation2 + $0x10c] sm:$0xff]
        %v5973 = vld [vmem:[#allocation2 + $0x114] sm:$0xff]
        %v5974 = vld [vmem:[#allocation2 + $0x11c] sm:$0xff]
        %v5975 = vld [vmem:[#allocation2 + $0x124] sm:$0xff]
        %v5976 = vld [vmem:[#allocation2 + $0x12c] sm:$0xff]
        %v5977 = vld [vmem:[#allocation2 + $0x134] sm:$0xff]
        %v5978 = vld [vmem:[#allocation2 + $0x13c] sm:$0xff]
        %v5979 = vpack.c.bf16 %v5944, %v5943
        %v5980 = vpack.c.bf16 %v5946, %v5945
        %v5981 = vpack.c.bf16 %v5948, %v5947
        %v5982 = vpack.c.bf16 %v5950, %v5949
        %v5983 = vpack.c.bf16 %v5952, %v5951
        %v5984 = vpack.c.bf16 %v5954, %v5953
        %v5985 = vpack.c.bf16 %v5956, %v5955
        %v5986 = vpack.c.bf16 %v5958, %v5957
        %v5987 = vpack.c.bf16 %v5960, %v5959
        %v5988 = vpack.c.bf16 %v5962, %v5961
        %v5989 = vpack.c.bf16 %v5964, %v5963
        %v5990 = vpack.c.bf16 %v5966, %v5965
        %v5991 = vpack.c.bf16 %v5968, %v5967
        %v5992 = vpack.c.bf16 %v5970, %v5969
        %v5993 = vpack.c.bf16 %v5972, %v5971
        %v5994 = vpack.c.bf16 %v5974, %v5973
        %v5995 = vpack.c.bf16 %v5976, %v5975
        %v5996 = vpack.c.bf16 %v5978, %v5977
        %v5997 = vld [vmem:[#allocation2 + $0x25] sm:$0xff]
        %v5998 = vld [vmem:[#allocation2 + $0x2d] sm:$0xff]
        %v5999 = vld [vmem:[#allocation2 + $0x35] sm:$0xff]
        %v6000 = vld [vmem:[#allocation2 + $0x3d] sm:$0xff]
        %v6001 = vld [vmem:[#allocation2 + $0x45] sm:$0xff]
        %v6002 = vld [vmem:[#allocation2 + $0x4d] sm:$0xff]
        %v6003 = vld [vmem:[#allocation2 + $0x55] sm:$0xff]
        %v6004 = vld [vmem:[#allocation2 + $0x5d] sm:$0xff]
        %v6005 = vld [vmem:[#allocation2 + $0x65] sm:$0xff]
        %v6006 = vld [vmem:[#allocation2 + $0x6d] sm:$0xff]
        %v6007 = vld [vmem:[#allocation2 + $0x75] sm:$0xff]
        %v6008 = vld [vmem:[#allocation2 + $0x7d] sm:$0xff]
        %v6009 = vld [vmem:[#allocation2 + $0x85] sm:$0xff]
        %v6010 = vld [vmem:[#allocation2 + $0x8d] sm:$0xff]
        %v6011 = vld [vmem:[#allocation2 + $0x95] sm:$0xff]
        %v6012 = vld [vmem:[#allocation2 + $0x9d] sm:$0xff]
        %v6013 = vld [vmem:[#allocation2 + $0xa5] sm:$0xff]
        %v6014 = vld [vmem:[#allocation2 + $0xad] sm:$0xff]
        %v6015 = vld [vmem:[#allocation2 + $0xb5] sm:$0xff]
        %v6016 = vld [vmem:[#allocation2 + $0xbd] sm:$0xff]
        %v6017 = vld [vmem:[#allocation2 + $0xc5] sm:$0xff]
        %v6018 = vld [vmem:[#allocation2 + $0xcd] sm:$0xff]
        %v6019 = vld [vmem:[#allocation2 + $0xd5] sm:$0xff]
        %v6020 = vld [vmem:[#allocation2 + $0xdd] sm:$0xff]
        %v6021 = vld [vmem:[#allocation2 + $0xe5] sm:$0xff]
        %v6022 = vld [vmem:[#allocation2 + $0xed] sm:$0xff]
        %v6023 = vld [vmem:[#allocation2 + $0xf5] sm:$0xff]
        %v6024 = vld [vmem:[#allocation2 + $0xfd] sm:$0xff]
        %v6025 = vld [vmem:[#allocation2 + $0x105] sm:$0xff]
        %v6026 = vld [vmem:[#allocation2 + $0x10d] sm:$0xff]
        %v6027 = vld [vmem:[#allocation2 + $0x115] sm:$0xff]
        %v6028 = vld [vmem:[#allocation2 + $0x11d] sm:$0xff]
        %v6029 = vld [vmem:[#allocation2 + $0x125] sm:$0xff]
        %v6030 = vld [vmem:[#allocation2 + $0x12d] sm:$0xff]
        %v6031 = vld [vmem:[#allocation2 + $0x135] sm:$0xff]
        %v6032 = vld [vmem:[#allocation2 + $0x13d] sm:$0xff]
        %v6033 = vpack.c.bf16 %v5998, %v5997
        %v6034 = vpack.c.bf16 %v6000, %v5999
        %v6035 = vpack.c.bf16 %v6002, %v6001
        %v6036 = vpack.c.bf16 %v6004, %v6003
        %v6037 = vpack.c.bf16 %v6006, %v6005
        %v6038 = vpack.c.bf16 %v6008, %v6007
        %v6039 = vpack.c.bf16 %v6010, %v6009
        %v6040 = vpack.c.bf16 %v6012, %v6011
        %v6041 = vpack.c.bf16 %v6014, %v6013
        %v6042 = vpack.c.bf16 %v6016, %v6015
        %v6043 = vpack.c.bf16 %v6018, %v6017
        %v6044 = vpack.c.bf16 %v6020, %v6019
        %v6045 = vpack.c.bf16 %v6022, %v6021
        %v6046 = vpack.c.bf16 %v6024, %v6023
        %v6047 = vpack.c.bf16 %v6026, %v6025
        %v6048 = vpack.c.bf16 %v6028, %v6027
        %v6049 = vpack.c.bf16 %v6030, %v6029
        %v6050 = vpack.c.bf16 %v6032, %v6031
        %6069 = vrot.lane.b32.xlu0 %v6033, 64
        %v6070 = vpop.permute.xlu0 %6069
        %6071 = vrot.lane.b32.xlu0 %v6034, 64
        %v6072 = vpop.permute.xlu0 %6071
        %6073 = vrot.lane.b32.xlu0 %v6035, 64
        %v6074 = vpop.permute.xlu0 %6073
        %6075 = vrot.lane.b32.xlu0 %v6036, 64
        %v6076 = vpop.permute.xlu0 %6075
        %6077 = vrot.lane.b32.xlu0 %v6037, 64
        %v6078 = vpop.permute.xlu0 %6077
        %6079 = vrot.lane.b32.xlu0 %v6038, 64
        %v6080 = vpop.permute.xlu0 %6079
        %6081 = vrot.lane.b32.xlu0 %v6039, 64
        %v6082 = vpop.permute.xlu0 %6081
        %6083 = vrot.lane.b32.xlu0 %v6040, 64
        %v6084 = vpop.permute.xlu0 %6083
        %6085 = vrot.lane.b32.xlu0 %v6041, 64
        %v6086 = vpop.permute.xlu0 %6085
        %6087 = vrot.lane.b32.xlu0 %v6042, 64
        %v6088 = vpop.permute.xlu0 %6087
        %6089 = vrot.lane.b32.xlu0 %v6043, 64
        %v6090 = vpop.permute.xlu0 %6089
        %6091 = vrot.lane.b32.xlu0 %v6044, 64
        %v6092 = vpop.permute.xlu0 %6091
        %6093 = vrot.lane.b32.xlu0 %v6045, 64
        %v6094 = vpop.permute.xlu0 %6093
        %6095 = vrot.lane.b32.xlu0 %v6046, 64
        %v6096 = vpop.permute.xlu0 %6095
        %6097 = vrot.lane.b32.xlu0 %v6047, 64
        %v6098 = vpop.permute.xlu0 %6097
        %6099 = vrot.lane.b32.xlu0 %v6048, 64
        %v6100 = vpop.permute.xlu0 %6099
        %6101 = vrot.lane.b32.xlu0 %v6049, 64
        %v6102 = vpop.permute.xlu0 %6101
        %6103 = vrot.lane.b32.xlu0 %v6050, 64
        %v6104 = vpop.permute.xlu0 %6103
        %v6107 = vsel %vm332, %v5979, %v6070
        %v6111 = vsel %vm332, %v5980, %v6072
        %v6115 = vsel %vm332, %v5981, %v6074
        %v6119 = vsel %vm332, %v5982, %v6076
        %v6123 = vsel %vm332, %v5983, %v6078
        %v6127 = vsel %vm332, %v5984, %v6080
        %v6131 = vsel %vm332, %v5985, %v6082
        %v6135 = vsel %vm332, %v5986, %v6084
        %v6139 = vsel %vm332, %v5987, %v6086
        %v6143 = vsel %vm332, %v5988, %v6088
        %v6147 = vsel %vm332, %v5989, %v6090
        %v6151 = vsel %vm332, %v5990, %v6092
        %v6155 = vsel %vm332, %v5991, %v6094
        %v6159 = vsel %vm332, %v5992, %v6096
        %v6163 = vsel %vm332, %v5993, %v6098
        %v6167 = vsel %vm332, %v5994, %v6100
        %v6171 = vsel %vm332, %v5995, %v6102
        %v6175 = vsel %vm332, %v5996, %v6104
        %6177 = vst [vmem:[#allocation3 + $0x18] sm:$0xff] %v6107
        %6178 = vst [vmem:[#allocation3 + $0x40] sm:$0xff] %v6111
        %6179 = vst [vmem:[#allocation3 + $0x68] sm:$0xff] %v6115
        %6180 = vst [vmem:[#allocation3 + $0x90] sm:$0xff] %v6119
        %6181 = vst [vmem:[#allocation3 + $0xb8] sm:$0xff] %v6123
        %6182 = vst [vmem:[#allocation3 + $0xe0] sm:$0xff] %v6127
        %6183 = vst [vmem:[#allocation3 + $0x108] sm:$0xff] %v6131
        %6184 = vst [vmem:[#allocation3 + $0x130] sm:$0xff] %v6135
        %6185 = vst [vmem:[#allocation3 + $0x158] sm:$0xff] %v6139
        %6186 = vst [vmem:[#allocation3 + $0x180] sm:$0xff] %v6143
        %6187 = vst [vmem:[#allocation3 + $0x1a8] sm:$0xff] %v6147
        %6188 = vst [vmem:[#allocation3 + $0x1d0] sm:$0xff] %v6151
        %6189 = vst [vmem:[#allocation3 + $0x1f8] sm:$0xff] %v6155
        %6190 = vst [vmem:[#allocation3 + $0x220] sm:$0xff] %v6159
        %6191 = vst [vmem:[#allocation3 + $0x248] sm:$0xff] %v6163
        %6192 = vst [vmem:[#allocation3 + $0x270] sm:$0xff] %v6167
        %6193 = vst [vmem:[#allocation3 + $0x298] sm:$0xff] %v6171
        %6194 = vst [vmem:[#allocation3 + $0x2c0] sm:$0xff] %v6175
        %v6195 = vld [vmem:[#allocation2 + $0x26] sm:$0xff]
        %v6196 = vld [vmem:[#allocation2 + $0x2e] sm:$0xff]
        %v6197 = vld [vmem:[#allocation2 + $0x36] sm:$0xff]
        %v6198 = vld [vmem:[#allocation2 + $0x3e] sm:$0xff]
        %v6199 = vld [vmem:[#allocation2 + $0x46] sm:$0xff]
        %v6200 = vld [vmem:[#allocation2 + $0x4e] sm:$0xff]
        %v6201 = vld [vmem:[#allocation2 + $0x56] sm:$0xff]
        %v6202 = vld [vmem:[#allocation2 + $0x5e] sm:$0xff]
        %v6203 = vld [vmem:[#allocation2 + $0x66] sm:$0xff]
        %v6204 = vld [vmem:[#allocation2 + $0x6e] sm:$0xff]
        %v6205 = vld [vmem:[#allocation2 + $0x76] sm:$0xff]
        %v6206 = vld [vmem:[#allocation2 + $0x7e] sm:$0xff]
        %v6207 = vld [vmem:[#allocation2 + $0x86] sm:$0xff]
        %v6208 = vld [vmem:[#allocation2 + $0x8e] sm:$0xff]
        %v6209 = vld [vmem:[#allocation2 + $0x96] sm:$0xff]
        %v6210 = vld [vmem:[#allocation2 + $0x9e] sm:$0xff]
        %v6211 = vld [vmem:[#allocation2 + $0xa6] sm:$0xff]
        %v6212 = vld [vmem:[#allocation2 + $0xae] sm:$0xff]
        %v6213 = vld [vmem:[#allocation2 + $0xb6] sm:$0xff]
        %v6214 = vld [vmem:[#allocation2 + $0xbe] sm:$0xff]
        %v6215 = vld [vmem:[#allocation2 + $0xc6] sm:$0xff]
        %v6216 = vld [vmem:[#allocation2 + $0xce] sm:$0xff]
        %v6217 = vld [vmem:[#allocation2 + $0xd6] sm:$0xff]
        %v6218 = vld [vmem:[#allocation2 + $0xde] sm:$0xff]
        %v6219 = vld [vmem:[#allocation2 + $0xe6] sm:$0xff]
        %v6220 = vld [vmem:[#allocation2 + $0xee] sm:$0xff]
        %v6221 = vld [vmem:[#allocation2 + $0xf6] sm:$0xff]
        %v6222 = vld [vmem:[#allocation2 + $0xfe] sm:$0xff]
        %v6223 = vld [vmem:[#allocation2 + $0x106] sm:$0xff]
        %v6224 = vld [vmem:[#allocation2 + $0x10e] sm:$0xff]
        %v6225 = vld [vmem:[#allocation2 + $0x116] sm:$0xff]
        %v6226 = vld [vmem:[#allocation2 + $0x11e] sm:$0xff]
        %v6227 = vld [vmem:[#allocation2 + $0x126] sm:$0xff]
        %v6228 = vld [vmem:[#allocation2 + $0x12e] sm:$0xff]
        %v6229 = vld [vmem:[#allocation2 + $0x136] sm:$0xff]
        %v6230 = vld [vmem:[#allocation2 + $0x13e] sm:$0xff]
        %v6231 = vpack.c.bf16 %v6196, %v6195
        %v6232 = vpack.c.bf16 %v6198, %v6197
        %v6233 = vpack.c.bf16 %v6200, %v6199
        %v6234 = vpack.c.bf16 %v6202, %v6201
        %v6235 = vpack.c.bf16 %v6204, %v6203
        %v6236 = vpack.c.bf16 %v6206, %v6205
        %v6237 = vpack.c.bf16 %v6208, %v6207
        %v6238 = vpack.c.bf16 %v6210, %v6209
        %v6239 = vpack.c.bf16 %v6212, %v6211
        %v6240 = vpack.c.bf16 %v6214, %v6213
        %v6241 = vpack.c.bf16 %v6216, %v6215
        %v6242 = vpack.c.bf16 %v6218, %v6217
        %v6243 = vpack.c.bf16 %v6220, %v6219
        %v6244 = vpack.c.bf16 %v6222, %v6221
        %v6245 = vpack.c.bf16 %v6224, %v6223
        %v6246 = vpack.c.bf16 %v6226, %v6225
        %v6247 = vpack.c.bf16 %v6228, %v6227
        %v6248 = vpack.c.bf16 %v6230, %v6229
        %6249 = vst.msk [vmem:[#allocation3 + $0x20] sm:$0xff] %vm332, %v6231
        %6250 = vst.msk [vmem:[#allocation3 + $0x48] sm:$0xff] %vm332, %v6232
        %6251 = vst.msk [vmem:[#allocation3 + $0x70] sm:$0xff] %vm332, %v6233
        %6252 = vst.msk [vmem:[#allocation3 + $0x98] sm:$0xff] %vm332, %v6234
        %6253 = vst.msk [vmem:[#allocation3 + $0xc0] sm:$0xff] %vm332, %v6235
        %6254 = vst.msk [vmem:[#allocation3 + $0xe8] sm:$0xff] %vm332, %v6236
        %6255 = vst.msk [vmem:[#allocation3 + $0x110] sm:$0xff] %vm332, %v6237
        %6256 = vst.msk [vmem:[#allocation3 + $0x138] sm:$0xff] %vm332, %v6238
        %6257 = vst.msk [vmem:[#allocation3 + $0x160] sm:$0xff] %vm332, %v6239
        %6258 = vst.msk [vmem:[#allocation3 + $0x188] sm:$0xff] %vm332, %v6240
        %6259 = vst.msk [vmem:[#allocation3 + $0x1b0] sm:$0xff] %vm332, %v6241
        %6260 = vst.msk [vmem:[#allocation3 + $0x1d8] sm:$0xff] %vm332, %v6242
        %6261 = vst.msk [vmem:[#allocation3 + $0x200] sm:$0xff] %vm332, %v6243
        %6262 = vst.msk [vmem:[#allocation3 + $0x228] sm:$0xff] %vm332, %v6244
        %6263 = vst.msk [vmem:[#allocation3 + $0x250] sm:$0xff] %vm332, %v6245
        %6264 = vst.msk [vmem:[#allocation3 + $0x278] sm:$0xff] %vm332, %v6246
        %6265 = vst.msk [vmem:[#allocation3 + $0x2a0] sm:$0xff] %vm332, %v6247
        %6266 = vst.msk [vmem:[#allocation3 + $0x2c8] sm:$0xff] %vm332, %v6248
        %v6267 = vld [vmem:[#allocation3] sm:$0xff]
        %v6268 = vld [vmem:[#allocation3 + $0x8] sm:$0xff]
        %v6269 = vld [vmem:[#allocation3 + $0x10] sm:$0xff]
        %v6270 = vld [vmem:[#allocation3 + $0x18] sm:$0xff]
        %v6271 = vld [vmem:[#allocation3 + $0x20] sm:$0xff]
        %v6272 = vld [vmem:[#allocation3 + $0x28] sm:$0xff]
        %v6273 = vld [vmem:[#allocation3 + $0x30] sm:$0xff]
        %v6274 = vld [vmem:[#allocation3 + $0x38] sm:$0xff]
        %v6275 = vld [vmem:[#allocation3 + $0x40] sm:$0xff]
        %v6276 = vld [vmem:[#allocation3 + $0x48] sm:$0xff]
        %v6277 = vld [vmem:[#allocation3 + $0x50] sm:$0xff]
        %v6278 = vld [vmem:[#allocation3 + $0x58] sm:$0xff]
        %v6279 = vld [vmem:[#allocation3 + $0x60] sm:$0xff]
        %v6280 = vld [vmem:[#allocation3 + $0x68] sm:$0xff]
        %v6281 = vld [vmem:[#allocation3 + $0x70] sm:$0xff]
        %v6282 = vld [vmem:[#allocation3 + $0x78] sm:$0xff]
        %v6283 = vld [vmem:[#allocation3 + $0x80] sm:$0xff]
        %v6284 = vld [vmem:[#allocation3 + $0x88] sm:$0xff]
        %v6285 = vld [vmem:[#allocation3 + $0x90] sm:$0xff]
        %v6286 = vld [vmem:[#allocation3 + $0x98] sm:$0xff]
        %v6287 = vld [vmem:[#allocation3 + $0xa0] sm:$0xff]
        %v6288 = vld [vmem:[#allocation3 + $0xa8] sm:$0xff]
        %v6289 = vld [vmem:[#allocation3 + $0xb0] sm:$0xff]
        %v6290 = vld [vmem:[#allocation3 + $0xb8] sm:$0xff]
        %v6291 = vld [vmem:[#allocation3 + $0xc0] sm:$0xff]
        %v6292 = vld [vmem:[#allocation3 + $0xc8] sm:$0xff]
        %v6293 = vld [vmem:[#allocation3 + $0xd0] sm:$0xff]
        %v6294 = vld [vmem:[#allocation3 + $0xd8] sm:$0xff]
        %v6295 = vld [vmem:[#allocation3 + $0xe0] sm:$0xff]
        %v6296 = vld [vmem:[#allocation3 + $0xe8] sm:$0xff]
        %v6297 = vld [vmem:[#allocation3 + $0xf0] sm:$0xff]
        %v6298 = vld [vmem:[#allocation3 + $0xf8] sm:$0xff]
        %v6299 = vld [vmem:[#allocation3 + $0x100] sm:$0xff]
        %v6300 = vld [vmem:[#allocation3 + $0x108] sm:$0xff]
        %v6301 = vld [vmem:[#allocation3 + $0x110] sm:$0xff]
        %v6302 = vld [vmem:[#allocation3 + $0x118] sm:$0xff]
        %v6303 = vld [vmem:[#allocation3 + $0x120] sm:$0xff]
        %v6304 = vld [vmem:[#allocation3 + $0x128] sm:$0xff]
        %v6305 = vld [vmem:[#allocation3 + $0x130] sm:$0xff]
        %v6306 = vld [vmem:[#allocation3 + $0x138] sm:$0xff]
        %v6307 = vld [vmem:[#allocation3 + $0x140] sm:$0xff]
        %v6308 = vld [vmem:[#allocation3 + $0x148] sm:$0xff]
        %v6309 = vld [vmem:[#allocation3 + $0x150] sm:$0xff]
        %v6310 = vld [vmem:[#allocation3 + $0x158] sm:$0xff]
        %v6311 = vld [vmem:[#allocation3 + $0x160] sm:$0xff]
        %v6312 = vld [vmem:[#allocation3 + $0x168] sm:$0xff]
        %v6313 = vld [vmem:[#allocation3 + $0x170] sm:$0xff]
        %v6314 = vld [vmem:[#allocation3 + $0x178] sm:$0xff]
        %v6315 = vld [vmem:[#allocation3 + $0x180] sm:$0xff]
        %v6316 = vld [vmem:[#allocation3 + $0x188] sm:$0xff]
        %v6317 = vld [vmem:[#allocation3 + $0x190] sm:$0xff]
        %v6318 = vld [vmem:[#allocation3 + $0x198] sm:$0xff]
        %v6319 = vld [vmem:[#allocation3 + $0x1a0] sm:$0xff]
        %v6320 = vld [vmem:[#allocation3 + $0x1a8] sm:$0xff]
        %v6321 = vld [vmem:[#allocation3 + $0x1b0] sm:$0xff]
        %v6322 = vld [vmem:[#allocation3 + $0x1b8] sm:$0xff]
        %v6323 = vld [vmem:[#allocation3 + $0x1c0] sm:$0xff]
        %v6324 = vld [vmem:[#allocation3 + $0x1c8] sm:$0xff]
        %v6325 = vld [vmem:[#allocation3 + $0x1d0] sm:$0xff]
        %v6326 = vld [vmem:[#allocation3 + $0x1d8] sm:$0xff]
        %v6327 = vld [vmem:[#allocation3 + $0x1e0] sm:$0xff]
        %v6328 = vld [vmem:[#allocation3 + $0x1e8] sm:$0xff]
        %v6329 = vld [vmem:[#allocation3 + $0x1f0] sm:$0xff]
        %v6330 = vld [vmem:[#allocation3 + $0x1f8] sm:$0xff]
        %v6331 = vld [vmem:[#allocation3 + $0x200] sm:$0xff]
        %v6332 = vld [vmem:[#allocation3 + $0x208] sm:$0xff]
        %v6333 = vld [vmem:[#allocation3 + $0x210] sm:$0xff]
        %v6334 = vld [vmem:[#allocation3 + $0x218] sm:$0xff]
        %v6335 = vld [vmem:[#allocation3 + $0x220] sm:$0xff]
        %v6336 = vld [vmem:[#allocation3 + $0x228] sm:$0xff]
        %v6337 = vld [vmem:[#allocation3 + $0x230] sm:$0xff]
        %v6338 = vld [vmem:[#allocation3 + $0x238] sm:$0xff]
        %v6339 = vld [vmem:[#allocation3 + $0x240] sm:$0xff]
        %v6340 = vld [vmem:[#allocation3 + $0x248] sm:$0xff]
        %v6341 = vld [vmem:[#allocation3 + $0x250] sm:$0xff]
        %v6342 = vld [vmem:[#allocation3 + $0x258] sm:$0xff]
        %v6343 = vld [vmem:[#allocation3 + $0x260] sm:$0xff]
        %v6344 = vld [vmem:[#allocation3 + $0x268] sm:$0xff]
        %v6345 = vld [vmem:[#allocation3 + $0x270] sm:$0xff]
        %v6346 = vld [vmem:[#allocation3 + $0x278] sm:$0xff]
        %v6347 = vld [vmem:[#allocation3 + $0x280] sm:$0xff]
        %v6348 = vld [vmem:[#allocation3 + $0x288] sm:$0xff]
        %v6349 = vld [vmem:[#allocation3 + $0x290] sm:$0xff]
        %v6350 = vld [vmem:[#allocation3 + $0x298] sm:$0xff]
        %v6351 = vld [vmem:[#allocation3 + $0x2a0] sm:$0xff]
        %v6352 = vld [vmem:[#allocation3 + $0x2a8] sm:$0xff]
        %v6353 = vld [vmem:[#allocation3 + $0x2b0] sm:$0xff]
        %v6354 = vld [vmem:[#allocation3 + $0x2b8] sm:$0xff]
        %v6355 = vld [vmem:[#allocation3 + $0x2c0] sm:$0xff]
        %v6356 = vld [vmem:[#allocation3 + $0x2c8] sm:$0xff]
        %v6357 = vld [vmem:[%s5] sm:$0xf]
        %v6358 = vld [vmem:[%s5 + $0x4] sm:$0xf]
        %v6359 = vld [vmem:[%s5 + $0x8] sm:$0xf]
        %v6360 = vld [vmem:[%s5 + $0xc] sm:$0xf]
        %v6361 = vld [vmem:[%s5 + $0x10] sm:$0xf]
        %v6362 = vld [vmem:[%s5 + $0x14] sm:$0xf]
        %v6363 = vld [vmem:[%s5 + $0x18] sm:$0xf]
        %v6364 = vld [vmem:[%s5 + $0x1c] sm:$0xf]
        %v6365 = vld [vmem:[%s5 + $0x20] sm:$0xf]
        %v6366 = vld [vmem:[%s5 + $0x24] sm:$0xf]
        %v6367 = vld [vmem:[%s5 + $0x28] sm:$0xf]
        %v6368 = vld [vmem:[%s5 + $0x2c] sm:$0xf]
        %v6369 = vld [vmem:[%s5 + $0x30] sm:$0xf]
        %v6370 = vld [vmem:[%s5 + $0x34] sm:$0xf]
        %v6371 = vld [vmem:[%s5 + $0x38] sm:$0xf]
        %v6372 = vld [vmem:[%s5 + $0x3c] sm:$0xf]
        %v6373 = vld [vmem:[%s5 + $0x40] sm:$0xf]
        %v6374 = vld [vmem:[%s5 + $0x44] sm:$0xf]
        %v6375 = vld [vmem:[%s5 + $0x48] sm:$0xf]
        %v6376 = vld [vmem:[%s5 + $0x4c] sm:$0xf]
        %v6377 = vld [vmem:[%s5 + $0x50] sm:$0xf]
        %v6378 = vld [vmem:[%s5 + $0x54] sm:$0xf]
        %v6379 = vld [vmem:[%s5 + $0x58] sm:$0xf]
        %v6380 = vld [vmem:[%s5 + $0x5c] sm:$0xf]
        %v6381 = vld [vmem:[%s5 + $0x60] sm:$0xf]
        %v6382 = vld [vmem:[%s5 + $0x64] sm:$0xf]
        %v6383 = vld [vmem:[%s5 + $0x68] sm:$0xf]
        %v6384 = vld [vmem:[%s5 + $0x6c] sm:$0xf]
        %v6385 = vld [vmem:[%s5 + $0x70] sm:$0xf]
        %v6386 = vld [vmem:[%s5 + $0x74] sm:$0xf]
        %v6387 = vld [vmem:[%s5 + $0x78] sm:$0xf]
        %v6388 = vld [vmem:[%s5 + $0x7c] sm:$0xf]
        %v6389 = vld [vmem:[%s5 + $0x80] sm:$0xf]
        %v6390 = vld [vmem:[%s5 + $0x84] sm:$0xf]
        %v6391 = vld [vmem:[%s5 + $0x88] sm:$0xf]
        %v6392 = vld [vmem:[%s5 + $0x8c] sm:$0xf]
        %v6393 = vld [vmem:[%s5 + $0x90] sm:$0xf]
        %v6394 = vld [vmem:[%s5 + $0x94] sm:$0xf]
        %v6395 = vld [vmem:[%s5 + $0x98] sm:$0xf]
        %v6396 = vld [vmem:[%s5 + $0x9c] sm:$0xf]
        %v6397 = vld [vmem:[%s5 + $0xa0] sm:$0xf]
        %v6398 = vld [vmem:[%s5 + $0xa4] sm:$0xf]
        %v6399 = vld [vmem:[%s5 + $0xa8] sm:$0xf]
        %v6400 = vld [vmem:[%s5 + $0xac] sm:$0xf]
        %v6401 = vld [vmem:[%s5 + $0xb0] sm:$0xf]
        %v6402 = vld [vmem:[%s5 + $0xb4] sm:$0xf]
        %v6403 = vld [vmem:[%s5 + $0xb8] sm:$0xf]
        %v6404 = vld [vmem:[%s5 + $0xbc] sm:$0xf]
        %v6405 = vld [vmem:[%s5 + $0xc0] sm:$0xf]
        %v6406 = vld [vmem:[%s5 + $0xc4] sm:$0xf]
        %v6407 = vld [vmem:[%s5 + $0xc8] sm:$0xf]
        %v6408 = vld [vmem:[%s5 + $0xcc] sm:$0xf]
        %v6409 = vld [vmem:[%s5 + $0xd0] sm:$0xf]
        %v6410 = vld [vmem:[%s5 + $0xd4] sm:$0xf]
        %v6411 = vld [vmem:[%s5 + $0xd8] sm:$0xf]
        %v6412 = vld [vmem:[%s5 + $0xdc] sm:$0xf]
        %v6413 = vld [vmem:[%s5 + $0xe0] sm:$0xf]
        %v6414 = vld [vmem:[%s5 + $0xe4] sm:$0xf]
        %v6415 = vld [vmem:[%s5 + $0xe8] sm:$0xf]
        %v6416 = vld [vmem:[%s5 + $0xec] sm:$0xf]
        %v6417 = vld [vmem:[%s5 + $0xf0] sm:$0xf]
        %v6418 = vld [vmem:[%s5 + $0xf4] sm:$0xf]
        %v6419 = vld [vmem:[%s5 + $0xf8] sm:$0xf]
        %v6420 = vld [vmem:[%s5 + $0xfc] sm:$0xf]
        %v6421 = vld [vmem:[%s5 + $0x100] sm:$0xf]
        %v6422 = vld [vmem:[%s5 + $0x104] sm:$0xf]
        %v6423 = vld [vmem:[%s5 + $0x108] sm:$0xf]
        %v6424 = vld [vmem:[%s5 + $0x10c] sm:$0xf]
        %v6425 = vld [vmem:[%s5 + $0x110] sm:$0xf]
        %v6426 = vld [vmem:[%s5 + $0x114] sm:$0xf]
        %v6427 = vld [vmem:[%s5 + $0x118] sm:$0xf]
        %v6428 = vld [vmem:[%s5 + $0x11c] sm:$0xf]
        %v6429 = vld [vmem:[%s6] sm:$0x1]
        %v6431 = vlaneseq
        %v6432 = vshrl.u32 %v6431, 7
        %v6433 = vsub.s32 0, %v6432
        %v6434 = vrot.slane %v6429, %v6433
        %v6508 = vunpack.c.l.b16 %v6357
        %v6509 = vunpack.c.l.b16 %v6358
        %v6510 = vunpack.c.l.b16 %v6359
        %v6511 = vunpack.c.l.b16 %v6360
        %v6512 = vunpack.c.l.b16 %v6361
        %v6513 = vunpack.c.l.b16 %v6362
        %v6514 = vunpack.c.l.b16 %v6363
        %v6515 = vunpack.c.l.b16 %v6364
        %v6516 = vunpack.c.l.b16 %v6365
        %v6517 = vunpack.c.l.b16 %v6366
        %v6518 = vunpack.c.l.b16 %v6367
        %v6519 = vunpack.c.l.b16 %v6368
        %v6520 = vunpack.c.l.b16 %v6369
        %v6521 = vunpack.c.l.b16 %v6370
        %v6522 = vunpack.c.l.b16 %v6371
        %v6523 = vunpack.c.l.b16 %v6372
        %v6524 = vunpack.c.l.b16 %v6373
        %v6525 = vunpack.c.l.b16 %v6374
        %v6526 = vunpack.c.l.b16 %v6375
        %v6527 = vunpack.c.l.b16 %v6376
        %v6528 = vunpack.c.l.b16 %v6377
        %v6529 = vunpack.c.l.b16 %v6378
        %v6530 = vunpack.c.l.b16 %v6379
        %v6531 = vunpack.c.l.b16 %v6380
        %v6532 = vunpack.c.l.b16 %v6381
        %v6533 = vunpack.c.l.b16 %v6382
        %v6534 = vunpack.c.l.b16 %v6383
        %v6535 = vunpack.c.l.b16 %v6384
        %v6536 = vunpack.c.l.b16 %v6385
        %v6537 = vunpack.c.l.b16 %v6386
        %v6538 = vunpack.c.l.b16 %v6387
        %v6539 = vunpack.c.l.b16 %v6388
        %v6540 = vunpack.c.l.b16 %v6389
        %v6541 = vunpack.c.l.b16 %v6390
        %v6542 = vunpack.c.l.b16 %v6391
        %v6543 = vunpack.c.l.b16 %v6392
        %v6544 = vunpack.c.l.b16 %v6393
        %v6545 = vunpack.c.l.b16 %v6394
        %v6546 = vunpack.c.l.b16 %v6395
        %v6547 = vunpack.c.l.b16 %v6396
        %v6548 = vunpack.c.l.b16 %v6397
        %v6549 = vunpack.c.l.b16 %v6398
        %v6550 = vunpack.c.l.b16 %v6399
        %v6551 = vunpack.c.l.b16 %v6400
        %v6552 = vunpack.c.l.b16 %v6401
        %v6553 = vunpack.c.l.b16 %v6402
        %v6554 = vunpack.c.l.b16 %v6403
        %v6555 = vunpack.c.l.b16 %v6404
        %v6556 = vunpack.c.l.b16 %v6405
        %v6557 = vunpack.c.l.b16 %v6406
        %v6558 = vunpack.c.l.b16 %v6407
        %v6559 = vunpack.c.l.b16 %v6408
        %v6560 = vunpack.c.l.b16 %v6409
        %v6561 = vunpack.c.l.b16 %v6410
        %v6562 = vunpack.c.l.b16 %v6411
        %v6563 = vunpack.c.l.b16 %v6412
        %v6564 = vunpack.c.l.b16 %v6413
        %v6565 = vunpack.c.l.b16 %v6414
        %v6566 = vunpack.c.l.b16 %v6415
        %v6567 = vunpack.c.l.b16 %v6416
        %v6568 = vunpack.c.l.b16 %v6417
        %v6569 = vunpack.c.l.b16 %v6418
        %v6570 = vunpack.c.l.b16 %v6419
        %v6571 = vunpack.c.l.b16 %v6420
        %v6572 = vunpack.c.l.b16 %v6421
        %v6573 = vunpack.c.l.b16 %v6422
        %v6574 = vunpack.c.l.b16 %v6423
        %v6575 = vunpack.c.l.b16 %v6424
        %v6576 = vunpack.c.l.b16 %v6425
        %v6577 = vunpack.c.l.b16 %v6426
        %v6578 = vunpack.c.l.b16 %v6427
        %v6579 = vunpack.c.l.b16 %v6428
        %v6580 = vpack.c.b16 %v6509, %v6508
        %v6581 = vpack.c.b16 %v6511, %v6510
        %v6582 = vpack.c.b16 %v6513, %v6512
        %v6583 = vpack.c.b16 %v6515, %v6514
        %v6584 = vpack.c.b16 %v6517, %v6516
        %v6585 = vpack.c.b16 %v6519, %v6518
        %v6586 = vpack.c.b16 %v6521, %v6520
        %v6587 = vpack.c.b16 %v6523, %v6522
        %v6588 = vpack.c.b16 %v6525, %v6524
        %v6589 = vpack.c.b16 %v6527, %v6526
        %v6590 = vpack.c.b16 %v6529, %v6528
        %v6591 = vpack.c.b16 %v6531, %v6530
        %v6592 = vpack.c.b16 %v6533, %v6532
        %v6593 = vpack.c.b16 %v6535, %v6534
        %v6594 = vpack.c.b16 %v6537, %v6536
        %v6595 = vpack.c.b16 %v6539, %v6538
        %v6596 = vpack.c.b16 %v6541, %v6540
        %v6597 = vpack.c.b16 %v6543, %v6542
        %v6598 = vpack.c.b16 %v6545, %v6544
        %v6599 = vpack.c.b16 %v6547, %v6546
        %v6600 = vpack.c.b16 %v6549, %v6548
        %v6601 = vpack.c.b16 %v6551, %v6550
        %v6602 = vpack.c.b16 %v6553, %v6552
        %v6603 = vpack.c.b16 %v6555, %v6554
        %v6604 = vpack.c.b16 %v6557, %v6556
        %v6605 = vpack.c.b16 %v6559, %v6558
        %v6606 = vpack.c.b16 %v6561, %v6560
        %v6607 = vpack.c.b16 %v6563, %v6562
        %v6608 = vpack.c.b16 %v6565, %v6564
        %v6609 = vpack.c.b16 %v6567, %v6566
        %v6610 = vpack.c.b16 %v6569, %v6568
        %v6611 = vpack.c.b16 %v6571, %v6570
        %v6612 = vpack.c.b16 %v6573, %v6572
        %v6613 = vpack.c.b16 %v6575, %v6574
        %v6614 = vpack.c.b16 %v6577, %v6576
        %v6615 = vpack.c.b16 %v6579, %v6578
        %v6653 = vsel %vm332, %v6271, 0
        %v6656 = vsel %vm332, %v6276, 0
        %v6659 = vsel %vm332, %v6281, 0
        %v6662 = vsel %vm332, %v6286, 0
        %v6665 = vsel %vm332, %v6291, 0
        %v6668 = vsel %vm332, %v6296, 0
        %v6671 = vsel %vm332, %v6301, 0
        %v6674 = vsel %vm332, %v6306, 0
        %v6677 = vsel %vm332, %v6311, 0
        %v6680 = vsel %vm332, %v6316, 0
        %v6683 = vsel %vm332, %v6321, 0
        %v6686 = vsel %vm332, %v6326, 0
        %v6689 = vsel %vm332, %v6331, 0
        %v6692 = vsel %vm332, %v6336, 0
        %v6695 = vsel %vm332, %v6341, 0
        %v6698 = vsel %vm332, %v6346, 0
        %v6701 = vsel %vm332, %v6351, 0
        %v6704 = vsel %vm332, %v6356, 0
        %6706 = vmatprep.subr.bf16.mxu0 0
        %6707 = vmatpush1.bf16.msra.mxu0 %v6580
        %6708 = vmatprep.subr.bf16.mxu0 0
        %6709 = vmatpush1.bf16.msra.mxu0 %v6581
        %6710 = vmatprep.subr.bf16.mxu0 0
        %6711 = vmatpush1.bf16.msra.mxu0 %v6582
        %6712 = vmatprep.subr.bf16.mxu0 0
        %6713 = vmatpush1.bf16.msra.mxu0 %v6583
        %6714 = vmatprep.subr.bf16.mxu0 0
        %6715 = vmatpush1.bf16.msra.mxu0 %v6584
        %6716 = vmatprep.subr.bf16.mxu0 0
        %6717 = vmatpush1.bf16.msra.mxu0 %v6585
        %6718 = vmatprep.subr.bf16.mxu0 0
        %6719 = vmatpush1.bf16.msra.mxu0 %v6586
        %6720 = vmatprep.subr.bf16.mxu0 0
        %6721 = vmatpush1.bf16.msra.mxu0 %v6587
        %6722 = vmatprep.subr.bf16.mxu0 0
        %6723 = vmatpush1.bf16.msra.mxu0 %v6588
        %6724 = vmatprep.subr.bf16.mxu0 0
        %6725 = vmatpush1.bf16.msra.mxu0 %v6589
        %6726 = vmatprep.subr.bf16.mxu0 0
        %6727 = vmatpush1.bf16.msra.mxu0 %v6590
        %6728 = vmatprep.subr.bf16.mxu0 0
        %6729 = vmatpush1.bf16.msra.mxu0 %v6591
        %6730 = vmatprep.subr.bf16.mxu0 0
        %6731 = vmatpush1.bf16.msra.mxu0 %v6592
        %6732 = vmatprep.subr.bf16.mxu0 0
        %6733 = vmatpush1.bf16.msra.mxu0 %v6593
        %6734 = vmatprep.subr.bf16.mxu0 0
        %6735 = vmatpush1.bf16.msra.mxu0 %v6594
        %6736 = vmatprep.subr.bf16.mxu0 0
        %6737 = vmatpush1.bf16.msra.mxu0 %v6595
        %6738 = vmatprep.mubr.bf16.mxu0 %v6268
        %6739 = vmatmul.mubr.bf16.gmra.mrb[0].mxu0 %v6267
        %v6740 = vpop.f32.mrb[0].mxu0
        %v6741 = vadd.f32 %v6434, %v6740
        %v6742 = vpop.f32.mrb[0].mxu0
        %v6743 = vpop.f32.mrb[0].mxu0
        %v6744 = vadd.f32 %v6434, %v6743
        %v6745 = vpop.f32.mrb[0].mxu0
        %6746 = vmatprep.mubr.bf16.mxu0 %v6273
        %6747 = vmatmul.mubr.bf16.gmra.mrb[0].mxu0 %v6272
        %v6748 = vpop.f32.mrb[0].mxu0
        %v6749 = vadd.f32 %v6434, %v6748
        %v6750 = vpop.f32.mrb[0].mxu0
        %v6751 = vpop.f32.mrb[0].mxu0
        %v6752 = vadd.f32 %v6434, %v6751
        %v6753 = vpop.f32.mrb[0].mxu0
        %6754 = vmatprep.mubr.bf16.mxu0 %v6278
        %6755 = vmatmul.mubr.bf16.gmra.mrb[0].mxu0 %v6277
        %v6756 = vpop.f32.mrb[0].mxu0
        %v6757 = vadd.f32 %v6434, %v6756
        %v6758 = vpop.f32.mrb[0].mxu0
        %v6759 = vpop.f32.mrb[0].mxu0
        %v6760 = vadd.f32 %v6434, %v6759
        %v6761 = vpop.f32.mrb[0].mxu0
        %6762 = vmatprep.mubr.bf16.mxu0 %v6283
        %6763 = vmatmul.mubr.bf16.gmra.mrb[0].mxu0 %v6282
        %v6764 = vpop.f32.mrb[0].mxu0
        %v6765 = vadd.f32 %v6434, %v6764
        %v6766 = vpop.f32.mrb[0].mxu0
        %v6767 = vpop.f32.mrb[0].mxu0
        %v6768 = vadd.f32 %v6434, %v6767
        %v6769 = vpop.f32.mrb[0].mxu0
        %6770 = vmatprep.mubr.bf16.mxu0 %v6288
        %6771 = vmatmul.mubr.bf16.gmra.mrb[0].mxu0 %v6287
        %v6772 = vpop.f32.mrb[0].mxu0
        %v6773 = vadd.f32 %v6434, %v6772
        %v6774 = vpop.f32.mrb[0].mxu0
        %v6775 = vpop.f32.mrb[0].mxu0
        %v6776 = vadd.f32 %v6434, %v6775
        %v6777 = vpop.f32.mrb[0].mxu0
        %6778 = vmatprep.mubr.bf16.mxu0 %v6293
        %6779 = vmatmul.mubr.bf16.gmra.mrb[0].mxu0 %v6292
        %v6780 = vpop.f32.mrb[0].mxu0
        %v6781 = vadd.f32 %v6434, %v6780
        %v6782 = vpop.f32.mrb[0].mxu0
        %v6783 = vpop.f32.mrb[0].mxu0
        %v6784 = vadd.f32 %v6434, %v6783
        %v6785 = vpop.f32.mrb[0].mxu0
        %6786 = vmatprep.mubr.bf16.mxu0 %v6298
        %6787 = vmatmul.mubr.bf16.gmra.mrb[0].mxu0 %v6297
        %v6788 = vpop.f32.mrb[0].mxu0
        %v6789 = vadd.f32 %v6434, %v6788
        %v6790 = vpop.f32.mrb[0].mxu0
        %v6791 = vpop.f32.mrb[0].mxu0
        %v6792 = vadd.f32 %v6434, %v6791
        %v6793 = vpop.f32.mrb[0].mxu0
        %6794 = vmatprep.mubr.bf16.mxu0 %v6303
        %6795 = vmatmul.mubr.bf16.gmra.mrb[0].mxu0 %v6302
        %v6796 = vpop.f32.mrb[0].mxu0
        %v6797 = vadd.f32 %v6434, %v6796
        %v6798 = vpop.f32.mrb[0].mxu0
        %v6799 = vpop.f32.mrb[0].mxu0
        %v6800 = vadd.f32 %v6434, %v6799
        %v6801 = vpop.f32.mrb[0].mxu0
        %6802 = vmatprep.mubr.bf16.mxu0 %v6308
        %6803 = vmatmul.mubr.bf16.gmra.mrb[0].mxu0 %v6307
        %v6804 = vpop.f32.mrb[0].mxu0
        %v6805 = vadd.f32 %v6434, %v6804
        %v6806 = vpop.f32.mrb[0].mxu0
        %v6807 = vpop.f32.mrb[0].mxu0
        %v6808 = vadd.f32 %v6434, %v6807
        %v6809 = vpop.f32.mrb[0].mxu0
        %6810 = vmatprep.mubr.bf16.mxu0 %v6313
        %6811 = vmatmul.mubr.bf16.gmra.mrb[0].mxu0 %v6312
        %v6812 = vpop.f32.mrb[0].mxu0
        %v6813 = vadd.f32 %v6434, %v6812
        %v6814 = vpop.f32.mrb[0].mxu0
        %v6815 = vpop.f32.mrb[0].mxu0
        %v6816 = vadd.f32 %v6434, %v6815
        %v6817 = vpop.f32.mrb[0].mxu0
        %6818 = vmatprep.mubr.bf16.mxu0 %v6318
        %6819 = vmatmul.mubr.bf16.gmra.mrb[0].mxu0 %v6317
        %v6820 = vpop.f32.mrb[0].mxu0
        %v6821 = vadd.f32 %v6434, %v6820
        %v6822 = vpop.f32.mrb[0].mxu0
        %v6823 = vpop.f32.mrb[0].mxu0
        %v6824 = vadd.f32 %v6434, %v6823
        %v6825 = vpop.f32.mrb[0].mxu0
        %6826 = vmatprep.mubr.bf16.mxu0 %v6323
        %6827 = vmatmul.mubr.bf16.gmra.mrb[0].mxu0 %v6322
        %v6828 = vpop.f32.mrb[0].mxu0
        %v6829 = vadd.f32 %v6434, %v6828
        %v6830 = vpop.f32.mrb[0].mxu0
        %v6831 = vpop.f32.mrb[0].mxu0
        %v6832 = vadd.f32 %v6434, %v6831
        %v6833 = vpop.f32.mrb[0].mxu0
        %6834 = vmatprep.mubr.bf16.mxu0 %v6328
        %6835 = vmatmul.mubr.bf16.gmra.mrb[0].mxu0 %v6327
        %v6836 = vpop.f32.mrb[0].mxu0
        %v6837 = vadd.f32 %v6434, %v6836
        %v6838 = vpop.f32.mrb[0].mxu0
        %v6839 = vpop.f32.mrb[0].mxu0
        %v6840 = vadd.f32 %v6434, %v6839
        %v6841 = vpop.f32.mrb[0].mxu0
        %6842 = vmatprep.mubr.bf16.mxu0 %v6333
        %6843 = vmatmul.mubr.bf16.gmra.mrb[0].mxu0 %v6332
        %v6844 = vpop.f32.mrb[0].mxu0
        %v6845 = vadd.f32 %v6434, %v6844
        %v6846 = vpop.f32.mrb[0].mxu0
        %v6847 = vpop.f32.mrb[0].mxu0
        %v6848 = vadd.f32 %v6434, %v6847
        %v6849 = vpop.f32.mrb[0].mxu0
        %6850 = vmatprep.mubr.bf16.mxu0 %v6338
        %6851 = vmatmul.mubr.bf16.gmra.mrb[0].mxu0 %v6337
        %v6852 = vpop.f32.mrb[0].mxu0
        %v6853 = vadd.f32 %v6434, %v6852
        %v6854 = vpop.f32.mrb[0].mxu0
        %v6855 = vpop.f32.mrb[0].mxu0
        %v6856 = vadd.f32 %v6434, %v6855
        %v6857 = vpop.f32.mrb[0].mxu0
        %6858 = vmatprep.mubr.bf16.mxu0 %v6343
        %6859 = vmatmul.mubr.bf16.gmra.mrb[0].mxu0 %v6342
        %v6860 = vpop.f32.mrb[0].mxu0
        %v6861 = vadd.f32 %v6434, %v6860
        %v6862 = vpop.f32.mrb[0].mxu0
        %v6863 = vpop.f32.mrb[0].mxu0
        %v6864 = vadd.f32 %v6434, %v6863
        %v6865 = vpop.f32.mrb[0].mxu0
        %6866 = vmatprep.mubr.bf16.mxu0 %v6348
        %6867 = vmatmul.mubr.bf16.gmra.mrb[0].mxu0 %v6347
        %v6868 = vpop.f32.mrb[0].mxu0
        %v6869 = vadd.f32 %v6434, %v6868
        %v6870 = vpop.f32.mrb[0].mxu0
        %v6871 = vpop.f32.mrb[0].mxu0
        %v6872 = vadd.f32 %v6434, %v6871
        %v6873 = vpop.f32.mrb[0].mxu0
        %6874 = vmatprep.mubr.bf16.mxu0 %v6353
        %6875 = vmatmul.mubr.bf16.gmra.mrb[0].mxu0 %v6352
        %v6876 = vpop.f32.mrb[0].mxu0
        %v6877 = vadd.f32 %v6434, %v6876
        %v6878 = vpop.f32.mrb[0].mxu0
        %v6879 = vpop.f32.mrb[0].mxu0
        %v6880 = vadd.f32 %v6434, %v6879
        %v6881 = vpop.f32.mrb[0].mxu0
        %6882 = vdwg.mxu0
        %6883 = vmatprep.subr.bf16.mxu0 0
        %6884 = vmatpush1.bf16.msra.mxu0 %v6596
        %6885 = vmatprep.subr.bf16.mxu0 0
        %6886 = vmatpush1.bf16.msra.mxu0 %v6597
        %6887 = vmatprep.subr.bf16.mxu0 0
        %6888 = vmatpush1.bf16.msra.mxu0 %v6598
        %6889 = vmatprep.subr.bf16.mxu0 0
        %6890 = vmatpush1.bf16.msra.mxu0 %v6599
        %6891 = vmatprep.subr.bf16.mxu0 0
        %6892 = vmatpush1.bf16.msra.mxu0 %v6600
        %6893 = vmatprep.subr.bf16.mxu0 0
        %6894 = vmatpush1.bf16.msra.mxu0 %v6601
        %6895 = vmatprep.subr.bf16.mxu0 0
        %6896 = vmatpush1.bf16.msra.mxu0 %v6602
        %6897 = vmatprep.subr.bf16.mxu0 0
        %6898 = vmatpush1.bf16.msra.mxu0 %v6603
        %6899 = vmatprep.subr.bf16.mxu0 0
        %6900 = vmatpush1.bf16.msra.mxu0 %v6604
        %6901 = vmatprep.subr.bf16.mxu0 0
        %6902 = vmatpush1.bf16.msra.mxu0 %v6605
        %6903 = vmatprep.subr.bf16.mxu0 0
        %6904 = vmatpush1.bf16.msra.mxu0 %v6606
        %6905 = vmatprep.subr.bf16.mxu0 0
        %6906 = vmatpush1.bf16.msra.mxu0 %v6607
        %6907 = vmatprep.subr.bf16.mxu0 0
        %6908 = vmatpush1.bf16.msra.mxu0 %v6608
        %6909 = vmatprep.subr.bf16.mxu0 0
        %6910 = vmatpush1.bf16.msra.mxu0 %v6609
        %6911 = vmatprep.subr.bf16.mxu0 0
        %6912 = vmatpush1.bf16.msra.mxu0 %v6610
        %6913 = vmatprep.subr.bf16.mxu0 0
        %6914 = vmatpush1.bf16.msra.mxu0 %v6611
        %6915 = vmatprep.mubr.bf16.mxu0 %v6270
        %6916 = vmatmul.mubr.bf16.gmra.mrb[0].mxu0 %v6269
        %v6917 = vpop.f32.mrb[0].mxu0
        %v6918 = vadd.f32 %v6741, %v6917
        %v6919 = vpop.f32.mrb[0].mxu0
        %v6920 = vpop.f32.mrb[0].mxu0
        %v6921 = vadd.f32 %v6744, %v6920
        %v6922 = vpop.f32.mrb[0].mxu0
        %6923 = vmatprep.mubr.bf16.mxu0 %v6275
        %6924 = vmatmul.mubr.bf16.gmra.mrb[0].mxu0 %v6274
        %v6925 = vpop.f32.mrb[0].mxu0
        %v6926 = vadd.f32 %v6749, %v6925
        %v6927 = vpop.f32.mrb[0].mxu0
        %v6928 = vpop.f32.mrb[0].mxu0
        %v6929 = vadd.f32 %v6752, %v6928
        %v6930 = vpop.f32.mrb[0].mxu0
        %6931 = vmatprep.mubr.bf16.mxu0 %v6280
        %6932 = vmatmul.mubr.bf16.gmra.mrb[0].mxu0 %v6279
        %v6933 = vpop.f32.mrb[0].mxu0
        %v6934 = vadd.f32 %v6757, %v6933
        %v6935 = vpop.f32.mrb[0].mxu0
        %v6936 = vpop.f32.mrb[0].mxu0
        %v6937 = vadd.f32 %v6760, %v6936
        %v6938 = vpop.f32.mrb[0].mxu0
        %6939 = vmatprep.mubr.bf16.mxu0 %v6285
        %6940 = vmatmul.mubr.bf16.gmra.mrb[0].mxu0 %v6284
        %v6941 = vpop.f32.mrb[0].mxu0
        %v6942 = vadd.f32 %v6765, %v6941
        %v6943 = vpop.f32.mrb[0].mxu0
        %v6944 = vpop.f32.mrb[0].mxu0
        %v6945 = vadd.f32 %v6768, %v6944
        %v6946 = vpop.f32.mrb[0].mxu0
        %6947 = vmatprep.mubr.bf16.mxu0 %v6290
        %6948 = vmatmul.mubr.bf16.gmra.mrb[0].mxu0 %v6289
        %v6949 = vpop.f32.mrb[0].mxu0
        %v6950 = vadd.f32 %v6773, %v6949
        %v6951 = vpop.f32.mrb[0].mxu0
        %v6952 = vpop.f32.mrb[0].mxu0
        %v6953 = vadd.f32 %v6776, %v6952
        %v6954 = vpop.f32.mrb[0].mxu0
        %6955 = vmatprep.mubr.bf16.mxu0 %v6295
        %6956 = vmatmul.mubr.bf16.gmra.mrb[0].mxu0 %v6294
        %v6957 = vpop.f32.mrb[0].mxu0
        %v6958 = vadd.f32 %v6781, %v6957
        %v6959 = vpop.f32.mrb[0].mxu0
        %v6960 = vpop.f32.mrb[0].mxu0
        %v6961 = vadd.f32 %v6784, %v6960
        %v6962 = vpop.f32.mrb[0].mxu0
        %6963 = vmatprep.mubr.bf16.mxu0 %v6300
        %6964 = vmatmul.mubr.bf16.gmra.mrb[0].mxu0 %v6299
        %v6965 = vpop.f32.mrb[0].mxu0
        %v6966 = vadd.f32 %v6789, %v6965
        %v6967 = vpop.f32.mrb[0].mxu0
        %v6968 = vpop.f32.mrb[0].mxu0
        %v6969 = vadd.f32 %v6792, %v6968
        %v6970 = vpop.f32.mrb[0].mxu0
        %6971 = vmatprep.mubr.bf16.mxu0 %v6305
        %6972 = vmatmul.mubr.bf16.gmra.mrb[0].mxu0 %v6304
        %v6973 = vpop.f32.mrb[0].mxu0
        %v6974 = vadd.f32 %v6797, %v6973
        %v6975 = vpop.f32.mrb[0].mxu0
        %v6976 = vpop.f32.mrb[0].mxu0
        %v6977 = vadd.f32 %v6800, %v6976
        %v6978 = vpop.f32.mrb[0].mxu0
        %6979 = vmatprep.mubr.bf16.mxu0 %v6310
        %6980 = vmatmul.mubr.bf16.gmra.mrb[0].mxu0 %v6309
        %v6981 = vpop.f32.mrb[0].mxu0
        %v6982 = vadd.f32 %v6805, %v6981
        %v6983 = vpop.f32.mrb[0].mxu0
        %v6984 = vpop.f32.mrb[0].mxu0
        %v6985 = vadd.f32 %v6808, %v6984
        %v6986 = vpop.f32.mrb[0].mxu0
        %6987 = vmatprep.mubr.bf16.mxu0 %v6315
        %6988 = vmatmul.mubr.bf16.gmra.mrb[0].mxu0 %v6314
        %v6989 = vpop.f32.mrb[0].mxu0
        %v6990 = vadd.f32 %v6813, %v6989
        %v6991 = vpop.f32.mrb[0].mxu0
        %v6992 = vpop.f32.mrb[0].mxu0
        %v6993 = vadd.f32 %v6816, %v6992
        %v6994 = vpop.f32.mrb[0].mxu0
        %6995 = vmatprep.mubr.bf16.mxu0 %v6320
        %6996 = vmatmul.mubr.bf16.gmra.mrb[0].mxu0 %v6319
        %v6997 = vpop.f32.mrb[0].mxu0
        %v6998 = vadd.f32 %v6821, %v6997
        %v6999 = vpop.f32.mrb[0].mxu0
        %v7000 = vpop.f32.mrb[0].mxu0
        %v7001 = vadd.f32 %v6824, %v7000
        %v7002 = vpop.f32.mrb[0].mxu0
        %7003 = vmatprep.mubr.bf16.mxu0 %v6325
        %7004 = vmatmul.mubr.bf16.gmra.mrb[0].mxu0 %v6324
        %v7005 = vpop.f32.mrb[0].mxu0
        %v7006 = vadd.f32 %v6829, %v7005
        %v7007 = vpop.f32.mrb[0].mxu0
        %v7008 = vpop.f32.mrb[0].mxu0
        %v7009 = vadd.f32 %v6832, %v7008
        %v7010 = vpop.f32.mrb[0].mxu0
        %7011 = vmatprep.mubr.bf16.mxu0 %v6330
        %7012 = vmatmul.mubr.bf16.gmra.mrb[0].mxu0 %v6329
        %v7013 = vpop.f32.mrb[0].mxu0
        %v7014 = vadd.f32 %v6837, %v7013
        %v7015 = vpop.f32.mrb[0].mxu0
        %v7016 = vpop.f32.mrb[0].mxu0
        %v7017 = vadd.f32 %v6840, %v7016
        %v7018 = vpop.f32.mrb[0].mxu0
        %7019 = vmatprep.mubr.bf16.mxu0 %v6335
        %7020 = vmatmul.mubr.bf16.gmra.mrb[0].mxu0 %v6334
        %v7021 = vpop.f32.mrb[0].mxu0
        %v7022 = vadd.f32 %v6845, %v7021
        %v7023 = vpop.f32.mrb[0].mxu0
        %v7024 = vpop.f32.mrb[0].mxu0
        %v7025 = vadd.f32 %v6848, %v7024
        %v7026 = vpop.f32.mrb[0].mxu0
        %7027 = vmatprep.mubr.bf16.mxu0 %v6340
        %7028 = vmatmul.mubr.bf16.gmra.mrb[0].mxu0 %v6339
        %v7029 = vpop.f32.mrb[0].mxu0
        %v7030 = vadd.f32 %v6853, %v7029
        %v7031 = vpop.f32.mrb[0].mxu0
        %v7032 = vpop.f32.mrb[0].mxu0
        %v7033 = vadd.f32 %v6856, %v7032
        %v7034 = vpop.f32.mrb[0].mxu0
        %7035 = vmatprep.mubr.bf16.mxu0 %v6345
        %7036 = vmatmul.mubr.bf16.gmra.mrb[0].mxu0 %v6344
        %v7037 = vpop.f32.mrb[0].mxu0
        %v7038 = vadd.f32 %v6861, %v7037
        %v7039 = vpop.f32.mrb[0].mxu0
        %v7040 = vpop.f32.mrb[0].mxu0
        %v7041 = vadd.f32 %v6864, %v7040
        %v7042 = vpop.f32.mrb[0].mxu0
        %7043 = vmatprep.mubr.bf16.mxu0 %v6350
        %7044 = vmatmul.mubr.bf16.gmra.mrb[0].mxu0 %v6349
        %v7045 = vpop.f32.mrb[0].mxu0
        %v7046 = vadd.f32 %v6869, %v7045
        %v7047 = vpop.f32.mrb[0].mxu0
        %v7048 = vpop.f32.mrb[0].mxu0
        %v7049 = vadd.f32 %v6872, %v7048
        %v7050 = vpop.f32.mrb[0].mxu0
        %7051 = vmatprep.mubr.bf16.mxu0 %v6355
        %7052 = vmatmul.mubr.bf16.gmra.mrb[0].mxu0 %v6354
        %v7053 = vpop.f32.mrb[0].mxu0
        %v7054 = vadd.f32 %v6877, %v7053
        %v7055 = vpop.f32.mrb[0].mxu0
        %v7056 = vpop.f32.mrb[0].mxu0
        %v7057 = vadd.f32 %v6880, %v7056
        %v7058 = vpop.f32.mrb[0].mxu0
        %7059 = vdwg.mxu0
        %7060 = vmatprep.subr.bf16.mxu0 0
        %7061 = vmatpush1.bf16.msra.mxu0 %v6612
        %7062 = vmatprep.subr.bf16.mxu0 0
        %7063 = vmatpush1.bf16.msra.mxu0 %v6613
        %7064 = vmatprep.subr.bf16.mxu0 0
        %7065 = vmatpush1.bf16.msra.mxu0 %v6614
        %7066 = vmatprep.subr.bf16.mxu0 0
        %7067 = vmatpush1.bf16.msra.mxu0 %v6615
        %7068 = vmatprep.subr.bf16.mxu0 0
        %7069 = vmatpush1.bf16.msra.mxu0 0
        %7070 = vmatprep.subr.bf16.mxu0 0
        %7071 = vmatpush1.bf16.msra.mxu0 0
        %7072 = vmatprep.subr.bf16.mxu0 0
        %7073 = vmatpush1.bf16.msra.mxu0 0
        %7074 = vmatprep.subr.bf16.mxu0 0
        %7075 = vmatpush1.bf16.msra.mxu0 0
        %7076 = vmatprep.subr.bf16.mxu0 0
        %7077 = vmatpush1.bf16.msra.mxu0 0
        %7078 = vmatprep.subr.bf16.mxu0 0
        %7079 = vmatpush1.bf16.msra.mxu0 0
        %7080 = vmatprep.subr.bf16.mxu0 0
        %7081 = vmatpush1.bf16.msra.mxu0 0
        %7082 = vmatprep.subr.bf16.mxu0 0
        %7083 = vmatpush1.bf16.msra.mxu0 0
        %7084 = vmatprep.subr.bf16.mxu0 0
        %7085 = vmatpush1.bf16.msra.mxu0 0
        %7086 = vmatprep.subr.bf16.mxu0 0
        %7087 = vmatpush1.bf16.msra.mxu0 0
        %7088 = vmatprep.subr.bf16.mxu0 0
        %7089 = vmatpush1.bf16.msra.mxu0 0
        %7090 = vmatprep.subr.bf16.mxu0 0
        %7091 = vmatpush1.bf16.msra.mxu0 0
        %7092 = vmatprep.mubr.bf16.mxu0 0
        %7093 = vmatmul.mubr.bf16.gmra.mrb[0].mxu0 %v6653
        %v7094 = vpop.f32.mrb[0].mxu0
        %v7095 = vadd.f32 %v6918, %v7094
        %v7096 = vpop.f32.mrb[0].mxu0
        %v7097 = vpop.f32.mrb[0].mxu0
        %v7098 = vadd.f32 %v6921, %v7097
        %v7099 = vpop.f32.mrb[0].mxu0
        %7100 = vmatprep.mubr.bf16.mxu0 0
        %7101 = vmatmul.mubr.bf16.gmra.mrb[0].mxu0 %v6656
        %v7102 = vpop.f32.mrb[0].mxu0
        %v7103 = vadd.f32 %v6926, %v7102
        %v7104 = vpop.f32.mrb[0].mxu0
        %v7105 = vpop.f32.mrb[0].mxu0
        %v7106 = vadd.f32 %v6929, %v7105
        %v7107 = vpop.f32.mrb[0].mxu0
        %7108 = vmatprep.mubr.bf16.mxu0 0
        %7109 = vmatmul.mubr.bf16.gmra.mrb[0].mxu0 %v6659
        %v7110 = vpop.f32.mrb[0].mxu0
        %v7111 = vadd.f32 %v6934, %v7110
        %v7112 = vpop.f32.mrb[0].mxu0
        %v7113 = vpop.f32.mrb[0].mxu0
        %v7114 = vadd.f32 %v6937, %v7113
        %v7115 = vpop.f32.mrb[0].mxu0
        %7116 = vmatprep.mubr.bf16.mxu0 0
        %7117 = vmatmul.mubr.bf16.gmra.mrb[0].mxu0 %v6662
        %v7118 = vpop.f32.mrb[0].mxu0
        %v7119 = vadd.f32 %v6942, %v7118
        %v7120 = vpop.f32.mrb[0].mxu0
        %v7121 = vpop.f32.mrb[0].mxu0
        %v7122 = vadd.f32 %v6945, %v7121
        %v7123 = vpop.f32.mrb[0].mxu0
        %7124 = vmatprep.mubr.bf16.mxu0 0
        %7125 = vmatmul.mubr.bf16.gmra.mrb[0].mxu0 %v6665
        %v7126 = vpop.f32.mrb[0].mxu0
        %v7127 = vadd.f32 %v6950, %v7126
        %v7128 = vpop.f32.mrb[0].mxu0
        %v7129 = vpop.f32.mrb[0].mxu0
        %v7130 = vadd.f32 %v6953, %v7129
        %v7131 = vpop.f32.mrb[0].mxu0
        %7132 = vmatprep.mubr.bf16.mxu0 0
        %7133 = vmatmul.mubr.bf16.gmra.mrb[0].mxu0 %v6668
        %v7134 = vpop.f32.mrb[0].mxu0
        %v7135 = vadd.f32 %v6958, %v7134
        %v7136 = vpop.f32.mrb[0].mxu0
        %v7137 = vpop.f32.mrb[0].mxu0
        %v7138 = vadd.f32 %v6961, %v7137
        %v7139 = vpop.f32.mrb[0].mxu0
        %7140 = vmatprep.mubr.bf16.mxu0 0
        %7141 = vmatmul.mubr.bf16.gmra.mrb[0].mxu0 %v6671
        %v7142 = vpop.f32.mrb[0].mxu0
        %v7143 = vadd.f32 %v6966, %v7142
        %v7144 = vpop.f32.mrb[0].mxu0
        %v7145 = vpop.f32.mrb[0].mxu0
        %v7146 = vadd.f32 %v6969, %v7145
        %v7147 = vpop.f32.mrb[0].mxu0
        %7148 = vmatprep.mubr.bf16.mxu0 0
        %7149 = vmatmul.mubr.bf16.gmra.mrb[0].mxu0 %v6674
        %v7150 = vpop.f32.mrb[0].mxu0
        %v7151 = vadd.f32 %v6974, %v7150
        %v7152 = vpop.f32.mrb[0].mxu0
        %v7153 = vpop.f32.mrb[0].mxu0
        %v7154 = vadd.f32 %v6977, %v7153
        %v7155 = vpop.f32.mrb[0].mxu0
        %7156 = vmatprep.mubr.bf16.mxu0 0
        %7157 = vmatmul.mubr.bf16.gmra.mrb[0].mxu0 %v6677
        %v7158 = vpop.f32.mrb[0].mxu0
        %v7159 = vadd.f32 %v6982, %v7158
        %v7160 = vpop.f32.mrb[0].mxu0
        %v7161 = vpop.f32.mrb[0].mxu0
        %v7162 = vadd.f32 %v6985, %v7161
        %v7163 = vpop.f32.mrb[0].mxu0
        %7164 = vmatprep.mubr.bf16.mxu0 0
        %7165 = vmatmul.mubr.bf16.gmra.mrb[0].mxu0 %v6680
        %v7166 = vpop.f32.mrb[0].mxu0
        %v7167 = vadd.f32 %v6990, %v7166
        %v7168 = vpop.f32.mrb[0].mxu0
        %v7169 = vpop.f32.mrb[0].mxu0
        %v7170 = vadd.f32 %v6993, %v7169
        %v7171 = vpop.f32.mrb[0].mxu0
        %7172 = vmatprep.mubr.bf16.mxu0 0
        %7173 = vmatmul.mubr.bf16.gmra.mrb[0].mxu0 %v6683
        %v7174 = vpop.f32.mrb[0].mxu0
        %v7175 = vadd.f32 %v6998, %v7174
        %v7176 = vpop.f32.mrb[0].mxu0
        %v7177 = vpop.f32.mrb[0].mxu0
        %v7178 = vadd.f32 %v7001, %v7177
        %v7179 = vpop.f32.mrb[0].mxu0
        %7180 = vmatprep.mubr.bf16.mxu0 0
        %7181 = vmatmul.mubr.bf16.gmra.mrb[0].mxu0 %v6686
        %v7182 = vpop.f32.mrb[0].mxu0
        %v7183 = vadd.f32 %v7006, %v7182
        %v7184 = vpop.f32.mrb[0].mxu0
        %v7185 = vpop.f32.mrb[0].mxu0
        %v7186 = vadd.f32 %v7009, %v7185
        %v7187 = vpop.f32.mrb[0].mxu0
        %7188 = vmatprep.mubr.bf16.mxu0 0
        %7189 = vmatmul.mubr.bf16.gmra.mrb[0].mxu0 %v6689
        %v7190 = vpop.f32.mrb[0].mxu0
        %v7191 = vadd.f32 %v7014, %v7190
        %v7192 = vpop.f32.mrb[0].mxu0
        %v7193 = vpop.f32.mrb[0].mxu0
        %v7194 = vadd.f32 %v7017, %v7193
        %v7195 = vpop.f32.mrb[0].mxu0
        %7196 = vmatprep.mubr.bf16.mxu0 0
        %7197 = vmatmul.mubr.bf16.gmra.mrb[0].mxu0 %v6692
        %v7198 = vpop.f32.mrb[0].mxu0
        %v7199 = vadd.f32 %v7022, %v7198
        %v7200 = vpop.f32.mrb[0].mxu0
        %v7201 = vpop.f32.mrb[0].mxu0
        %v7202 = vadd.f32 %v7025, %v7201
        %v7203 = vpop.f32.mrb[0].mxu0
        %7204 = vmatprep.mubr.bf16.mxu0 0
        %7205 = vmatmul.mubr.bf16.gmra.mrb[0].mxu0 %v6695
        %v7206 = vpop.f32.mrb[0].mxu0
        %v7207 = vadd.f32 %v7030, %v7206
        %v7208 = vpop.f32.mrb[0].mxu0
        %v7209 = vpop.f32.mrb[0].mxu0
        %v7210 = vadd.f32 %v7033, %v7209
        %v7211 = vpop.f32.mrb[0].mxu0
        %7212 = vmatprep.mubr.bf16.mxu0 0
        %7213 = vmatmul.mubr.bf16.gmra.mrb[0].mxu0 %v6698
        %v7214 = vpop.f32.mrb[0].mxu0
        %v7215 = vadd.f32 %v7038, %v7214
        %v7216 = vpop.f32.mrb[0].mxu0
        %v7217 = vpop.f32.mrb[0].mxu0
        %v7218 = vadd.f32 %v7041, %v7217
        %v7219 = vpop.f32.mrb[0].mxu0
        %7220 = vmatprep.mubr.bf16.mxu0 0
        %7221 = vmatmul.mubr.bf16.gmra.mrb[0].mxu0 %v6701
        %v7222 = vpop.f32.mrb[0].mxu0
        %v7223 = vadd.f32 %v7046, %v7222
        %v7224 = vpop.f32.mrb[0].mxu0
        %v7225 = vpop.f32.mrb[0].mxu0
        %v7226 = vadd.f32 %v7049, %v7225
        %v7227 = vpop.f32.mrb[0].mxu0
        %7228 = vmatprep.mubr.bf16.mxu0 0
        %7229 = vmatmul.mubr.bf16.gmra.mrb[0].mxu0 %v6704
        %v7230 = vpop.f32.mrb[0].mxu0
        %v7231 = vadd.f32 %v7054, %v7230
        %v7232 = vpop.f32.mrb[0].mxu0
        %v7233 = vpop.f32.mrb[0].mxu0
        %v7234 = vadd.f32 %v7057, %v7233
        %v7235 = vpop.f32.mrb[0].mxu0
        %7236 = vdwg.mxu0
        %v7237 = vsub.f32 0.0, %v7095
        %v7238 = vsub.f32 0.0, %v7098
        %v7239 = vsub.f32 0.0, %v7103
        %v7240 = vsub.f32 0.0, %v7106
        %v7241 = vsub.f32 0.0, %v7111
        %v7242 = vsub.f32 0.0, %v7114
        %v7243 = vsub.f32 0.0, %v7119
        %v7244 = vsub.f32 0.0, %v7122
        %v7245 = vsub.f32 0.0, %v7127
        %v7246 = vsub.f32 0.0, %v7130
        %v7247 = vsub.f32 0.0, %v7135
        %v7248 = vsub.f32 0.0, %v7138
        %v7249 = vsub.f32 0.0, %v7143
        %v7250 = vsub.f32 0.0, %v7146
        %v7251 = vsub.f32 0.0, %v7151
        %v7252 = vsub.f32 0.0, %v7154
        %v7253 = vsub.f32 0.0, %v7159
        %v7254 = vsub.f32 0.0, %v7162
        %v7255 = vsub.f32 0.0, %v7167
        %v7256 = vsub.f32 0.0, %v7170
        %v7257 = vsub.f32 0.0, %v7175
        %v7258 = vsub.f32 0.0, %v7178
        %v7259 = vsub.f32 0.0, %v7183
        %v7260 = vsub.f32 0.0, %v7186
        %v7261 = vsub.f32 0.0, %v7191
        %v7262 = vsub.f32 0.0, %v7194
        %v7263 = vsub.f32 0.0, %v7199
        %v7264 = vsub.f32 0.0, %v7202
        %v7265 = vsub.f32 0.0, %v7207
        %v7266 = vsub.f32 0.0, %v7210
        %v7267 = vsub.f32 0.0, %v7215
        %v7268 = vsub.f32 0.0, %v7218
        %v7269 = vsub.f32 0.0, %v7223
        %v7270 = vsub.f32 0.0, %v7226
        %v7271 = vsub.f32 0.0, %v7231
        %v7272 = vsub.f32 0.0, %v7234
        %v7273 = vmul.f32 %v7237, 1.442695
        %v7274 = vpow.pop %v7273
        %v7275 = vmul.f32 %v7238, 1.442695
        %v7276 = vpow.pop %v7275
        %v7277 = vmul.f32 %v7239, 1.442695
        %v7278 = vpow.pop %v7277
        %v7279 = vmul.f32 %v7240, 1.442695
        %v7280 = vpow.pop %v7279
        %v7281 = vmul.f32 %v7241, 1.442695
        %v7282 = vpow.pop %v7281
        %v7283 = vmul.f32 %v7242, 1.442695
        %v7284 = vpow.pop %v7283
        %v7285 = vmul.f32 %v7243, 1.442695
        %v7286 = vpow.pop %v7285
        %v7287 = vmul.f32 %v7244, 1.442695
        %v7288 = vpow.pop %v7287
        %v7289 = vmul.f32 %v7245, 1.442695
        %v7290 = vpow.pop %v7289
        %v7291 = vmul.f32 %v7246, 1.442695
        %v7292 = vpow.pop %v7291
        %v7293 = vmul.f32 %v7247, 1.442695
        %v7294 = vpow.pop %v7293
        %v7295 = vmul.f32 %v7248, 1.442695
        %v7296 = vpow.pop %v7295
        %v7297 = vmul.f32 %v7249, 1.442695
        %v7298 = vpow.pop %v7297
        %v7299 = vmul.f32 %v7250, 1.442695
        %v7300 = vpow.pop %v7299
        %v7301 = vmul.f32 %v7251, 1.442695
        %v7302 = vpow.pop %v7301
        %v7303 = vmul.f32 %v7252, 1.442695
        %v7304 = vpow.pop %v7303
        %v7305 = vmul.f32 %v7253, 1.442695
        %v7306 = vpow.pop %v7305
        %v7307 = vmul.f32 %v7254, 1.442695
        %v7308 = vpow.pop %v7307
        %v7309 = vmul.f32 %v7255, 1.442695
        %v7310 = vpow.pop %v7309
        %v7311 = vmul.f32 %v7256, 1.442695
        %v7312 = vpow.pop %v7311
        %v7313 = vmul.f32 %v7257, 1.442695
        %v7314 = vpow.pop %v7313
        %v7315 = vmul.f32 %v7258, 1.442695
        %v7316 = vpow.pop %v7315
        %v7317 = vmul.f32 %v7259, 1.442695
        %v7318 = vpow.pop %v7317
        %v7319 = vmul.f32 %v7260, 1.442695
        %v7320 = vpow.pop %v7319
        %v7321 = vmul.f32 %v7261, 1.442695
        %v7322 = vpow.pop %v7321
        %v7323 = vmul.f32 %v7262, 1.442695
        %v7324 = vpow.pop %v7323
        %v7325 = vmul.f32 %v7263, 1.442695
        %v7326 = vpow.pop %v7325
        %v7327 = vmul.f32 %v7264, 1.442695
        %v7328 = vpow.pop %v7327
        %v7329 = vmul.f32 %v7265, 1.442695
        %v7330 = vpow.pop %v7329
        %v7331 = vmul.f32 %v7266, 1.442695
        %v7332 = vpow.pop %v7331
        %v7333 = vmul.f32 %v7267, 1.442695
        %v7334 = vpow.pop %v7333
        %v7335 = vmul.f32 %v7268, 1.442695
        %v7336 = vpow.pop %v7335
        %v7337 = vmul.f32 %v7269, 1.442695
        %v7338 = vpow.pop %v7337
        %v7339 = vmul.f32 %v7270, 1.442695
        %v7340 = vpow.pop %v7339
        %v7341 = vmul.f32 %v7271, 1.442695
        %v7342 = vpow.pop %v7341
        %v7343 = vmul.f32 %v7272, 1.442695
        %v7344 = vpow.pop %v7343
        %v7345 = vadd.f32 %v7274, 1.0
        %v7346 = vadd.f32 %v7276, 1.0
        %v7347 = vadd.f32 %v7278, 1.0
        %v7348 = vadd.f32 %v7280, 1.0
        %v7349 = vadd.f32 %v7282, 1.0
        %v7350 = vadd.f32 %v7284, 1.0
        %v7351 = vadd.f32 %v7286, 1.0
        %v7352 = vadd.f32 %v7288, 1.0
        %v7353 = vadd.f32 %v7290, 1.0
        %v7354 = vadd.f32 %v7292, 1.0
        %v7355 = vadd.f32 %v7294, 1.0
        %v7356 = vadd.f32 %v7296, 1.0
        %v7357 = vadd.f32 %v7298, 1.0
        %v7358 = vadd.f32 %v7300, 1.0
        %v7359 = vadd.f32 %v7302, 1.0
        %v7360 = vadd.f32 %v7304, 1.0
        %v7361 = vadd.f32 %v7306, 1.0
        %v7362 = vadd.f32 %v7308, 1.0
        %v7363 = vadd.f32 %v7310, 1.0
        %v7364 = vadd.f32 %v7312, 1.0
        %v7365 = vadd.f32 %v7314, 1.0
        %v7366 = vadd.f32 %v7316, 1.0
        %v7367 = vadd.f32 %v7318, 1.0
        %v7368 = vadd.f32 %v7320, 1.0
        %v7369 = vadd.f32 %v7322, 1.0
        %v7370 = vadd.f32 %v7324, 1.0
        %v7371 = vadd.f32 %v7326, 1.0
        %v7372 = vadd.f32 %v7328, 1.0
        %v7373 = vadd.f32 %v7330, 1.0
        %v7374 = vadd.f32 %v7332, 1.0
        %v7375 = vadd.f32 %v7334, 1.0
        %v7376 = vadd.f32 %v7336, 1.0
        %v7377 = vadd.f32 %v7338, 1.0
        %v7378 = vadd.f32 %v7340, 1.0
        %v7379 = vadd.f32 %v7342, 1.0
        %v7380 = vadd.f32 %v7344, 1.0
        %v7381 = vrcp.pop %v7345
        %v7382 = vrcp.pop %v7346
        %v7383 = vrcp.pop %v7347
        %v7384 = vrcp.pop %v7348
        %v7385 = vrcp.pop %v7349
        %v7386 = vrcp.pop %v7350
        %v7387 = vrcp.pop %v7351
        %v7388 = vrcp.pop %v7352
        %v7389 = vrcp.pop %v7353
        %v7390 = vrcp.pop %v7354
        %v7391 = vrcp.pop %v7355
        %v7392 = vrcp.pop %v7356
        %v7393 = vrcp.pop %v7357
        %v7394 = vrcp.pop %v7358
        %v7395 = vrcp.pop %v7359
        %v7396 = vrcp.pop %v7360
        %v7397 = vrcp.pop %v7361
        %v7398 = vrcp.pop %v7362
        %v7399 = vrcp.pop %v7363
        %v7400 = vrcp.pop %v7364
        %v7401 = vrcp.pop %v7365
        %v7402 = vrcp.pop %v7366
        %v7403 = vrcp.pop %v7367
        %v7404 = vrcp.pop %v7368
        %v7405 = vrcp.pop %v7369
        %v7406 = vrcp.pop %v7370
        %v7407 = vrcp.pop %v7371
        %v7408 = vrcp.pop %v7372
        %v7409 = vrcp.pop %v7373
        %v7410 = vrcp.pop %v7374
        %v7411 = vrcp.pop %v7375
        %v7412 = vrcp.pop %v7376
        %v7413 = vrcp.pop %v7377
        %v7414 = vrcp.pop %v7378
        %v7415 = vrcp.pop %v7379
        %v7416 = vrcp.pop %v7380
        %v7417 = vmul.f32 %v7095, %v7381
        %v7418 = vmul.f32 %v7098, %v7382
        %v7419 = vmul.f32 %v7103, %v7383
        %v7420 = vmul.f32 %v7106, %v7384
        %v7421 = vmul.f32 %v7111, %v7385
        %v7422 = vmul.f32 %v7114, %v7386
        %v7423 = vmul.f32 %v7119, %v7387
        %v7424 = vmul.f32 %v7122, %v7388
        %v7425 = vmul.f32 %v7127, %v7389
        %v7426 = vmul.f32 %v7130, %v7390
        %v7427 = vmul.f32 %v7135, %v7391
        %v7428 = vmul.f32 %v7138, %v7392
        %v7429 = vmul.f32 %v7143, %v7393
        %v7430 = vmul.f32 %v7146, %v7394
        %v7431 = vmul.f32 %v7151, %v7395
        %v7432 = vmul.f32 %v7154, %v7396
        %v7433 = vmul.f32 %v7159, %v7397
        %v7434 = vmul.f32 %v7162, %v7398
        %v7435 = vmul.f32 %v7167, %v7399
        %v7436 = vmul.f32 %v7170, %v7400
        %v7437 = vmul.f32 %v7175, %v7401
        %v7438 = vmul.f32 %v7178, %v7402
        %v7439 = vmul.f32 %v7183, %v7403
        %v7440 = vmul.f32 %v7186, %v7404
        %v7441 = vmul.f32 %v7191, %v7405
        %v7442 = vmul.f32 %v7194, %v7406
        %v7443 = vmul.f32 %v7199, %v7407
        %v7444 = vmul.f32 %v7202, %v7408
        %v7445 = vmul.f32 %v7207, %v7409
        %v7446 = vmul.f32 %v7210, %v7410
        %v7447 = vmul.f32 %v7215, %v7411
        %v7448 = vmul.f32 %v7218, %v7412
        %v7449 = vmul.f32 %v7223, %v7413
        %v7450 = vmul.f32 %v7226, %v7414
        %v7451 = vmul.f32 %v7231, %v7415
        %v7452 = vmul.f32 %v7234, %v7416
        %v7453 = vld [vmem:[%s8] sm:$0xff]
        %v7454 = vld [vmem:[%s8 + $0x8] sm:$0xf]
        %v7455 = vld [vmem:[%s8 + $0xc] sm:$0xff]
        %v7456 = vld [vmem:[%s8 + $0x14] sm:$0xf]
        %v7457 = vld [vmem:[%s8 + $0x18] sm:$0xff]
        %v7458 = vld [vmem:[%s8 + $0x20] sm:$0xf]
        %v7459 = vld [vmem:[%s8 + $0x24] sm:$0xff]
        %v7460 = vld [vmem:[%s8 + $0x2c] sm:$0xf]
        %v7461 = vld [vmem:[%s8 + $0x30] sm:$0xff]
        %v7462 = vld [vmem:[%s8 + $0x38] sm:$0xf]
        %v7463 = vld [vmem:[%s8 + $0x3c] sm:$0xff]
        %v7464 = vld [vmem:[%s8 + $0x44] sm:$0xf]
        %v7465 = vld [vmem:[%s8 + $0x48] sm:$0xff]
        %v7466 = vld [vmem:[%s8 + $0x50] sm:$0xf]
        %v7467 = vld [vmem:[%s8 + $0x54] sm:$0xff]
        %v7468 = vld [vmem:[%s8 + $0x5c] sm:$0xf]
        %v7469 = vpack.c.bf16 %v7418, %v7417
        %v7470 = vpack.c.bf16 %v7420, %v7419
        %v7471 = vpack.c.bf16 %v7422, %v7421
        %v7472 = vpack.c.bf16 %v7424, %v7423
        %v7473 = vpack.c.bf16 %v7426, %v7425
        %v7474 = vpack.c.bf16 %v7428, %v7427
        %v7475 = vpack.c.bf16 %v7430, %v7429
        %v7476 = vpack.c.bf16 %v7432, %v7431
        %v7477 = vpack.c.bf16 %v7434, %v7433
        %v7478 = vpack.c.bf16 %v7436, %v7435
        %v7479 = vpack.c.bf16 %v7438, %v7437
        %v7480 = vpack.c.bf16 %v7440, %v7439
        %v7481 = vpack.c.bf16 %v7442, %v7441
        %v7482 = vpack.c.bf16 %v7444, %v7443
        %v7483 = vpack.c.bf16 %v7446, %v7445
        %v7484 = vpack.c.bf16 %v7448, %v7447
        %v7485 = vpack.c.bf16 %v7450, %v7449
        %v7486 = vpack.c.bf16 %v7452, %v7451
        %v7503 = vunpack.c.l.b16 %v7453
        %v7504 = vunpack.c.h.b16 %v7453
        %v7505 = vunpack.c.l.b16 %v7454
        %v7506 = vunpack.c.l.b16 %v7455
        %v7507 = vunpack.c.h.b16 %v7455
        %v7508 = vunpack.c.l.b16 %v7456
        %v7509 = vunpack.c.l.b16 %v7457
        %v7510 = vunpack.c.h.b16 %v7457
        %v7511 = vunpack.c.l.b16 %v7458
        %v7512 = vunpack.c.l.b16 %v7459
        %v7513 = vunpack.c.h.b16 %v7459
        %v7514 = vunpack.c.l.b16 %v7460
        %v7515 = vunpack.c.l.b16 %v7461
        %v7516 = vunpack.c.h.b16 %v7461
        %v7517 = vunpack.c.l.b16 %v7462
        %v7518 = vunpack.c.l.b16 %v7463
        %v7519 = vunpack.c.h.b16 %v7463
        %v7520 = vunpack.c.l.b16 %v7464
        %v7521 = vunpack.c.l.b16 %v7465
        %v7522 = vunpack.c.h.b16 %v7465
        %v7523 = vunpack.c.l.b16 %v7466
        %v7524 = vunpack.c.l.b16 %v7467
        %v7525 = vunpack.c.h.b16 %v7467
        %v7526 = vunpack.c.l.b16 %v7468
        %v7527 = vpack.c.b16 %v7506, %v7503
        %v7528 = vpack.c.b16 %v7507, %v7504
        %v7529 = vpack.c.b16 %v7508, %v7505
        %v7530 = vpack.c.b16 %v7512, %v7509
        %v7531 = vpack.c.b16 %v7513, %v7510
        %v7532 = vpack.c.b16 %v7514, %v7511
        %v7533 = vpack.c.b16 %v7518, %v7515
        %v7534 = vpack.c.b16 %v7519, %v7516
        %v7535 = vpack.c.b16 %v7520, %v7517
        %v7536 = vpack.c.b16 %v7524, %v7521
        %v7537 = vpack.c.b16 %v7525, %v7522
        %v7538 = vpack.c.b16 %v7526, %v7523
        %vm7547 = vcmask 261120
        %v7549 = vsel %vm7547, %v7529, 0
        %v7552 = vsel %vm7547, %v7532, 0
        %v7555 = vsel %vm7547, %v7535, 0
        %v7558 = vsel %vm7547, %v7538, 0
        %7560 = vmatprep.subr.bf16.mxu0 0
        %7561 = vmatpush1.bf16.msra.mxu0 %v7469
        %7562 = vmatprep.subr.bf16.mxu0 0
        %7563 = vmatpush1.bf16.msra.mxu0 %v7470
        %7564 = vmatprep.subr.bf16.mxu0 0
        %7565 = vmatpush1.bf16.msra.mxu0 %v7471
        %7566 = vmatprep.subr.bf16.mxu0 0
        %7567 = vmatpush1.bf16.msra.mxu0 %v7472
        %7568 = vmatprep.subr.bf16.mxu0 0
        %7569 = vmatpush1.bf16.msra.mxu0 %v7473
        %7570 = vmatprep.subr.bf16.mxu0 0
        %7571 = vmatpush1.bf16.msra.mxu0 %v7474
        %7572 = vmatprep.subr.bf16.mxu0 0
        %7573 = vmatpush1.bf16.msra.mxu0 %v7475
        %7574 = vmatprep.subr.bf16.mxu0 0
        %7575 = vmatpush1.bf16.msra.mxu0 %v7476
        %7576 = vmatprep.subr.bf16.mxu0 0
        %7577 = vmatpush1.bf16.msra.mxu0 %v7477
        %7578 = vmatprep.subr.bf16.mxu0 0
        %7579 = vmatpush1.bf16.msra.mxu0 %v7478
        %7580 = vmatprep.subr.bf16.mxu0 0
        %7581 = vmatpush1.bf16.msra.mxu0 %v7479
        %7582 = vmatprep.subr.bf16.mxu0 0
        %7583 = vmatpush1.bf16.msra.mxu0 %v7480
        %7584 = vmatprep.subr.bf16.mxu0 0
        %7585 = vmatpush1.bf16.msra.mxu0 %v7481
        %7586 = vmatprep.subr.bf16.mxu0 0
        %7587 = vmatpush1.bf16.msra.mxu0 %v7482
        %7588 = vmatprep.subr.bf16.mxu0 0
        %7589 = vmatpush1.bf16.msra.mxu0 %v7483
        %7590 = vmatprep.subr.bf16.mxu0 0
        %7591 = vmatpush1.bf16.msra.mxu0 %v7484
        %7592 = vmatprep.mubr.bf16.mxu0 %v7528
        %7593 = vmatmul.mubr.bf16.gmra.mrb[0].mxu0 %v7527
        %v7594 = vpop.f32.mrb[0].mxu0
        %v7595 = vadd.f32 0.0, %v7594
        %v7596 = vpop.f32.mrb[0].mxu0
        %v7597 = vpop.f32.mrb[0].mxu0
        %v7598 = vadd.f32 0.0, %v7597
        %v7599 = vpop.f32.mrb[0].mxu0
        %7600 = vmatprep.mubr.bf16.mxu0 %v7531
        %7601 = vmatmul.mubr.bf16.gmra.mrb[0].mxu0 %v7530
        %v7602 = vpop.f32.mrb[0].mxu0
        %v7603 = vadd.f32 0.0, %v7602
        %v7604 = vpop.f32.mrb[0].mxu0
        %v7605 = vpop.f32.mrb[0].mxu0
        %v7606 = vadd.f32 0.0, %v7605
        %v7607 = vpop.f32.mrb[0].mxu0
        %7608 = vmatprep.mubr.bf16.mxu0 %v7534
        %7609 = vmatmul.mubr.bf16.gmra.mrb[0].mxu0 %v7533
        %v7610 = vpop.f32.mrb[0].mxu0
        %v7611 = vadd.f32 0.0, %v7610
        %v7612 = vpop.f32.mrb[0].mxu0
        %v7613 = vpop.f32.mrb[0].mxu0
        %v7614 = vadd.f32 0.0, %v7613
        %v7615 = vpop.f32.mrb[0].mxu0
        %7616 = vmatprep.mubr.bf16.mxu0 %v7537
        %7617 = vmatmul.mubr.bf16.gmra.mrb[0].mxu0 %v7536
        %v7618 = vpop.f32.mrb[0].mxu0
        %v7619 = vadd.f32 0.0, %v7618
        %v7620 = vpop.f32.mrb[0].mxu0
        %v7621 = vpop.f32.mrb[0].mxu0
        %v7622 = vadd.f32 0.0, %v7621
        %v7623 = vpop.f32.mrb[0].mxu0
        %7624 = vdwg.mxu0
        %7625 = vmatprep.subr.bf16.mxu0 0
        %7626 = vmatpush1.bf16.msra.mxu0 %v7485
        %7627 = vmatprep.subr.bf16.mxu0 0
        %7628 = vmatpush1.bf16.msra.mxu0 %v7486
        %7629 = vmatprep.subr.bf16.mxu0 0
        %7630 = vmatpush1.bf16.msra.mxu0 0
        %7631 = vmatprep.subr.bf16.mxu0 0
        %7632 = vmatpush1.bf16.msra.mxu0 0
        %7633 = vmatprep.subr.bf16.mxu0 0
        %7634 = vmatpush1.bf16.msra.mxu0 0
        %7635 = vmatprep.subr.bf16.mxu0 0
        %7636 = vmatpush1.bf16.msra.mxu0 0
        %7637 = vmatprep.subr.bf16.mxu0 0
        %7638 = vmatpush1.bf16.msra.mxu0 0
        %7639 = vmatprep.subr.bf16.mxu0 0
        %7640 = vmatpush1.bf16.msra.mxu0 0
        %7641 = vmatprep.subr.bf16.mxu0 0
        %7642 = vmatpush1.bf16.msra.mxu0 0
        %7643 = vmatprep.subr.bf16.mxu0 0
        %7644 = vmatpush1.bf16.msra.mxu0 0
        %7645 = vmatprep.subr.bf16.mxu0 0
        %7646 = vmatpush1.bf16.msra.mxu0 0
        %7647 = vmatprep.subr.bf16.mxu0 0
        %7648 = vmatpush1.bf16.msra.mxu0 0
        %7649 = vmatprep.subr.bf16.mxu0 0
        %7650 = vmatpush1.bf16.msra.mxu0 0
        %7651 = vmatprep.subr.bf16.mxu0 0
        %7652 = vmatpush1.bf16.msra.mxu0 0
        %7653 = vmatprep.subr.bf16.mxu0 0
        %7654 = vmatpush1.bf16.msra.mxu0 0
        %7655 = vmatprep.subr.bf16.mxu0 0
        %7656 = vmatpush1.bf16.msra.mxu0 0
        %7657 = vmatprep.mubr.bf16.mxu0 0
        %7658 = vmatmul.mubr.bf16.gmra.mrb[0].mxu0 %v7549
        %v7659 = vpop.f32.mrb[0].mxu0
        %v7660 = vadd.f32 %v7595, %v7659
        %v7661 = vpop.f32.mrb[0].mxu0
        %v7662 = vpop.f32.mrb[0].mxu0
        %v7663 = vadd.f32 %v7598, %v7662
        %v7664 = vpop.f32.mrb[0].mxu0
        %7665 = vmatprep.mubr.bf16.mxu0 0
        %7666 = vmatmul.mubr.bf16.gmra.mrb[0].mxu0 %v7552
        %v7667 = vpop.f32.mrb[0].mxu0
        %v7668 = vadd.f32 %v7603, %v7667
        %v7669 = vpop.f32.mrb[0].mxu0
        %v7670 = vpop.f32.mrb[0].mxu0
        %v7671 = vadd.f32 %v7606, %v7670
        %v7672 = vpop.f32.mrb[0].mxu0
        %7673 = vmatprep.mubr.bf16.mxu0 0
        %7674 = vmatmul.mubr.bf16.gmra.mrb[0].mxu0 %v7555
        %v7675 = vpop.f32.mrb[0].mxu0
        %v7676 = vadd.f32 %v7611, %v7675
        %v7677 = vpop.f32.mrb[0].mxu0
        %v7678 = vpop.f32.mrb[0].mxu0
        %v7679 = vadd.f32 %v7614, %v7678
        %v7680 = vpop.f32.mrb[0].mxu0
        %7681 = vmatprep.mubr.bf16.mxu0 0
        %7682 = vmatmul.mubr.bf16.gmra.mrb[0].mxu0 %v7558
        %v7683 = vpop.f32.mrb[0].mxu0
        %v7684 = vadd.f32 %v7619, %v7683
        %v7685 = vpop.f32.mrb[0].mxu0
        %v7686 = vpop.f32.mrb[0].mxu0
        %v7687 = vadd.f32 %v7622, %v7686
        %v7688 = vpop.f32.mrb[0].mxu0
        %7689 = vdwg.mxu0
        %v7690 = vmul.f32 %v7660, 0.11111111
        %v7691 = vmul.f32 %v7663, 0.11111111
        %v7692 = vmul.f32 %v7668, 0.11111111
        %v7693 = vmul.f32 %v7671, 0.11111111
        %v7694 = vmul.f32 %v7676, 0.11111111
        %v7695 = vmul.f32 %v7679, 0.11111111
        %v7696 = vmul.f32 %v7684, 0.11111111
        %v7697 = vmul.f32 %v7687, 0.11111111
        %7698 = vst [vmem:[%s325] sm:$0xff] %v7690
        %7699 = vst [vmem:[%s325 + $0x8] sm:$0xff] %v7691
        %7700 = vst [vmem:[%s325 + $0x10] sm:$0xff] %v7692
        %7701 = vst [vmem:[%s325 + $0x18] sm:$0xff] %v7693
        %7702 = vst [vmem:[%s325 + $0x20] sm:$0xff] %v7694
        %7703 = vst [vmem:[%s325 + $0x28] sm:$0xff] %v7695
        %7704 = vst [vmem:[%s325 + $0x30] sm:$0xff] %v7696
        %7705 = vst [vmem:[%s325 + $0x38] sm:$0xff] %v7697
        %s7706 = sand.u32 %s225, 1
        %s7707 = scalar_lea.sflag [#allocation5], %s7706
        %s7708 = sand.u32 %s225, 1
        %s7709 = smul.addr %s7708, 64
        %s7710 = scalar_lea.vmem [#allocation4], %s7709
        // Predicated region
        $region57: #{tpu_custom_call.1} parent=55 // pred_check
          %p7711 = pneg %p235
        $region58: #{tpu_custom_call.1} parent=55 // pred_check_branch
          %7713 = sbr.rel (%p7711) target = $region60
        $region59: #{tpu_custom_call.1} parent=55 // pred_region
          %s7715 = ssub.s32 1024, 1024
          %7716 = vsyncadd %s7707, %s7715
          %s7717 = smul.addr %s23, 8
          %s7718 = smul.addr %s7717, 128
          %s7719 = scalar_lea.hbm %s9, %s7718
          %s7720 = sshll.u32 %s7710, 4
          %s7721 = int_to_ptr.vmem [resolvable:$true] %s7720
          %7726 = dma.vmem_to_hbm [thread:$0]  %s7721, 1024, %s7719, %s7707, 128, 128, 8
        $region60: #{tpu_custom_call.1} parent=55 // pred_fallthru
          _
      $region56: #{tpu_custom_call.1} parent=5 // pred_fallthru
        _
      %p7727 = scmp.le.s32.totalorder 2, %s18
      // Predicated region
      $region61: #{tpu_custom_call.1} parent=5 // pred_check
        %p7728 = pneg %p7727
      $region62: #{tpu_custom_call.1} parent=5 // pred_check_branch
        %7730 = sbr.rel (%p7728) target = $region64
      $region63: #{tpu_custom_call.1} parent=5 // pred_region
        %s7731 = ssub.s32 %s18, 2
        // Predicated region
        $region65: #{tpu_custom_call.1} parent=63 // pred_check
          %p7732 = pneg %p241
        $region66: #{tpu_custom_call.1} parent=63 // pred_check_branch
          %7734 = sbr.rel (%p7732) target = $region68
        $region67: #{tpu_custom_call.1} parent=63 // pred_region
          %s7735 = sand.u32 %s226, 1
          %s7736 = scalar_lea.sflag [#allocation5], %s7735
          %s7737 = sand.u32 %s226, 1
          %s7738 = smul.addr %s7737, 64
          %s7739 = scalar_lea.vmem [#allocation4], %s7738
          %7740 = dma.done %s7736, 1024
        $region68: #{tpu_custom_call.1} parent=63 // pred_fallthru
          _
      $region64: #{tpu_custom_call.1} parent=5 // pred_fallthru
        _
    $region6: #{tpu_custom_call.1} parent=1 // loop_footer
      %s22 = sadd.s32 1, %s18
    $region7: #{tpu_custom_call.1} parent=1 // loop_footer_branch
      %17 = sbr.rel target = $region3
    $region8: #{tpu_custom_call.1} parent=1 // loop_exit
      _
    %7741 = vsyncpa [#allocation5], 1
    %s7742 = scalar_lea.sflag [#allocation5], 1
    %7743 = vsyncpa %s7742, 1

</llo_original>
